<compile_context>
chip_gen: v5e
topology: v5e:2x2
jax: 0.10.0
libtpu: 0.0.40
codegen_flags: <defaults>
</compile_context>

<pallas_src>
import jax
import jax.numpy as jnp
from jax.experimental import pallas as pl
from jax.experimental.pallas import tpu as pltpu

X_SHAPE = 4 * 16 * 16          # 1024, from the NCHW example input
LATENT = 300                   # fc151 / fc152 logical output dim

# (logical_in, logical_out) for fc11..fc25, in forward order.
LAYERS = [
    (X_SHAPE, 500),   # 0  fc11
    (500, 450),       # 1  fc12
    (450, 400),       # 2  fc13
    (400, 350),       # 3  fc14
    (350, LATENT),    # 4  fc151
    (350, LATENT),    # 5  fc152
    (LATENT, 350),    # 6  fc21
    (350, 400),       # 7  fc22
    (400, 450),       # 8  fc23
    (450, 500),       # 9  fc24
    (500, X_SHAPE),   # 10 fc25
]


def _pad128(n):
    return ((n + 127) // 128) * 128


PAD_IN = [_pad128(i) for i, _ in LAYERS]
PAD_OUT = [_pad128(o) for _, o in LAYERS]
LATENT_PAD = _pad128(LATENT)          # 384
MAX_OUT = max(PAD_OUT)                # 1024 (bias pack lane width)
B_ALIGN = 16                          # bf16 vreg is 16 sublanes
OUT_W = X_SHAPE + 3 * LATENT_PAD      # 2176: packed y | mu | log_var | z

# Weight blobs grouped by padded input width (fewer, larger DMA descriptors).
BLOB_A_LAYERS = (0,)                  # in_pad 1024: fc11
BLOB_B_LAYERS = (1, 2, 3, 8, 9, 10)   # in_pad 512 : fc12 fc13 fc14 fc23 fc24 fc25
BLOB_C_LAYERS = (4, 5, 6, 7)          # in_pad 384 : fc151 fc152 fc21 fc22


def _blob_cols(layer_ids):
    offs, off = {}, 0
    for li in layer_ids:
        offs[li] = off
        off += PAD_OUT[li]
    return offs, off


COL_A, W_A = _blob_cols(BLOB_A_LAYERS)   # W_A = 512
COL_B, W_B = _blob_cols(BLOB_B_LAYERS)   # W_B = 3456
COL_C, W_C = _blob_cols(BLOB_C_LAYERS)   # W_C = 1664


def _vae_kernel(x_ref, eps_ref, bias_ref, wa_hbm, wb_hbm, wc_hbm,
                out_ref, wa, wb, wc, sems):
    """Fused VAE forward: encode -> reparameterize -> decode.

    Weight blobs are streamed HBM->VMEM with manual async copies that overlap
    the MXU work of earlier layers.  Activations f32, weights bf16, matmuls
    accumulate in f32.  Biases live in one packed f32 array.
    """
    # Issue all weight DMAs up-front; wait right before first use.
    cp_a = pltpu.make_async_copy(wa_hbm, wa, sems.at[0])
    cp_b = pltpu.make_async_copy(wb_hbm, wb, sems.at[1])
    cp_c = pltpu.make_async_copy(wc_hbm, wc, sems.at[2])
    cp_a.start()
    cp_b.start()
    cp_c.start()

    relu = lambda v: jnp.maximum(v, 0.0)

    def lin(h, w_ref, li, col):
        out_pad = PAD_OUT[li]                       # static python int
        acc = jnp.dot(h.astype(jnp.bfloat16), w_ref[:, col:col + out_pad],
                      preferred_element_type=jnp.float32)
        return acc + bias_ref[li, :out_pad]         # f32 broadcast add

    # ---- encode ----
    cp_a.wait()
    h = relu(lin(x_ref[...], wa, 0, COL_A[0]))      # fc11
    cp_b.wait()
    h = relu(lin(h, wb, 1, COL_B[1]))               # fc12
    h = relu(lin(h, wb, 2, COL_B[2]))               # fc13
    h = relu(lin(h, wb, 3, COL_B[3]))               # fc14
    cp_c.wait()
    # fc151 + fc152 fused: adjacent columns in blob_c -> one MXU weight load.
    enc = jnp.dot(h.astype(jnp.bfloat16),
                  wc[:, COL_C[4]:COL_C[5] + LATENT_PAD],
                  preferred_element_type=jnp.float32)
    # NOTE: ReLU on mu / log_var matches the PyTorch module's encode().
    mu = relu(enc[:, :LATENT_PAD] + bias_ref[4, :LATENT_PAD])
    log_var = relu(enc[:, LATENT_PAD:] + bias_ref[5, :LATENT_PAD])

    # ---- reparameterize: z = mu + eps * exp(0.5 * log_var) (eps from host) ----
    z = mu + eps_ref[...] * jnp.exp(0.5 * log_var)

    # ---- decode ----
    d = relu(lin(z, wc, 6, COL_C[6]))               # fc21
    d = relu(lin(d, wc, 7, COL_C[7]))               # fc22
    d = relu(lin(d, wb, 8, COL_B[8]))               # fc23
    d = relu(lin(d, wb, 9, COL_B[9]))               # fc24
    y = jax.nn.sigmoid(lin(d, wb, 10, COL_B[10]))   # fc25

    # Single lane-dense packed store: [ y | mu | log_var | z ].
    out_ref[:, :X_SHAPE] = y
    out_ref[:, X_SHAPE:X_SHAPE + LATENT_PAD] = mu
    out_ref[:, X_SHAPE + LATENT_PAD:X_SHAPE + 2 * LATENT_PAD] = log_var
    out_ref[:, X_SHAPE + 2 * LATENT_PAD:] = z


@jax.jit
def vae_forward(x, eps, blobs, bias_pack):
    """x: (B, C, H, W) f32; eps: (B_flat, 300) f32 ~ N(0,1).

    blobs: (blob_a, blob_b, blob_c) bf16 packed/padded weight blobs.
    bias_pack: (11, 1024) f32, row i = zero-padded bias of layer i.
    Returns (y, mu, log_var, z) matching the PyTorch module's forward().
    """
    blob_a, blob_b, blob_c = blobs
    xf = x.reshape(-1, X_SHAPE).astype(jnp.float32)
    b = xf.shape[0]
    b_pad = -(-b // B_ALIGN) * B_ALIGN

    xf_p = jnp.zeros((b_pad, X_SHAPE), jnp.float32).at[:b].set(xf)
    eps_p = jnp.zeros((b_pad, LATENT_PAD), jnp.float32).at[:b, :LATENT].set(eps)

    vmem = pl.BlockSpec(memory_space=pltpu.MemorySpace.VMEM)
    hbm = pl.BlockSpec(memory_space=pl.ANY)

    w_elems = blob_a.size + blob_b.size + blob_c.size
    bytes_accessed = (2 * w_elems                                  # bf16 weights
                      + 4 * (xf_p.size + eps_p.size + bias_pack.size
                             + b_pad * OUT_W))                     # f32 acts
    cost = pl.CostEstimate(flops=2 * b_pad * w_elems,
                           transcendentals=b_pad * (LATENT_PAD + X_SHAPE),
                           bytes_accessed=bytes_accessed)

    out = pl.pallas_call(
        _vae_kernel,
        out_shape=jax.ShapeDtypeStruct((b_pad, OUT_W), jnp.float32),
        in_specs=[vmem, vmem, vmem, hbm, hbm, hbm],
        out_specs=vmem,
        scratch_shapes=[
            pltpu.VMEM((PAD_IN[0], W_A), jnp.bfloat16),
            pltpu.VMEM((512, W_B), jnp.bfloat16),
            pltpu.VMEM((384, W_C), jnp.bfloat16),
            pltpu.SemaphoreType.DMA((3,)),
        ],
        compiler_params=pltpu.CompilerParams(
            vmem_limit_bytes=32 * 1024 * 1024),
        cost_estimate=cost,
    )(xf_p, eps_p, bias_pack, blob_a, blob_b, blob_c)

    # strip batch / lane padding from the packed output
    y = out[:b, :X_SHAPE]
    mu = out[:b, X_SHAPE:X_SHAPE + LATENT]
    log_var = out[:b, X_SHAPE + LATENT_PAD:X_SHAPE + LATENT_PAD + LATENT]
    z = out[:b, X_SHAPE + 2 * LATENT_PAD:X_SHAPE + 2 * LATENT_PAD + LATENT]
    return y, mu, log_var, z


def init_params(key):
    """torch nn.Linear default init: U(-1/sqrt(fan_in), 1/sqrt(fan_in)).

    Returns f32 master params: list of (W (in, out), b (out,))."""
    params = []
    for (fan_in, fan_out) in LAYERS:
        key, kw, kb = jax.random.split(key, 3)
        bound = 1.0 / jnp.sqrt(fan_in)
        w = jax.random.uniform(kw, (fan_in, fan_out), jnp.float32, -bound, bound)
        bias = jax.random.uniform(kb, (fan_out,), jnp.float32, -bound, bound)
        params.append((w, bias))
    return params


def prepare_params(params):
    """Pack f32 master params into kernel form:
       - three bf16 weight blobs, zero-padded, grouped by padded input width
       - one packed f32 bias array (11, 1024)."""
    def pack_blob(layer_ids, cols, in_pad, width):
        blob = jnp.zeros((in_pad, width), jnp.bfloat16)
        for li in layer_ids:
            w, _ = params[li]
            fi, fo = LAYERS[li]
            blob = blob.at[:fi, cols[li]:cols[li] + fo].set(
                w.astype(jnp.bfloat16))
        return blob

    blob_a = pack_blob(BLOB_A_LAYERS, COL_A, PAD_IN[0], W_A)
    blob_b = pack_blob(BLOB_B_LAYERS, COL_B, 512, W_B)
    blob_c = pack_blob(BLOB_C_LAYERS, COL_C, 384, W_C)

    bias_pack = jnp.zeros((len(LAYERS), MAX_OUT), jnp.float32)
    for li, (_, bias) in enumerate(params):
        bias_pack = bias_pack.at[li, :LAYERS[li][1]].set(bias)
    return (blob_a, blob_b, blob_c), bias_pack


def vae_reference(x, eps, params):
    """Pure-JAX reference with the same bf16 weight / f32 accumulate recipe."""
    xf = x.reshape(-1, X_SHAPE)
    relu = lambda v: jnp.maximum(v, 0.0)

    def lin(h, p):
        w, bias = p
        return jnp.dot(h.astype(jnp.bfloat16), w.astype(jnp.bfloat16),
                       preferred_element_type=jnp.float32) + bias

    h = relu(lin(xf, params[0]))
    h = relu(lin(h, params[1]))
    h = relu(lin(h, params[2]))
    h = relu(lin(h, params[3]))
    mu = relu(lin(h, params[4]))
    log_var = relu(lin(h, params[5]))
    z = mu + eps * jnp.exp(0.5 * log_var)
    d = relu(lin(z, params[6]))
    d = relu(lin(d, params[7]))
    d = relu(lin(d, params[8]))
    d = relu(lin(d, params[9]))
    y = jax.nn.sigmoid(lin(d, params[10]))
    return y, mu, log_var, z


if __name__ == "__main__":
    key = jax.random.PRNGKey(0)
    k_param, k_x, k_eps = jax.random.split(key, 3)

    params = init_params(k_param)
    blobs, bias_pack = prepare_params(params)

    x = jax.random.uniform(k_x, (2, 4, 16, 16), jnp.float32)   # NCHW input
    # eps ~ N(0, 1), drawn outside the kernel (torch.randn_like equivalent)
    eps = jax.random.normal(k_eps, (2, LATENT), jnp.float32)

    y, mu, log_var, z = vae_forward(x, eps, blobs, bias_pack)
    jax.block_until_ready((y, mu, log_var, z))

    # correctness check against a pure-JAX reference using the same bf16
    # weight recipe (tolerances loosened for bf16 weights).
    y_r, mu_r, lv_r, z_r = vae_reference(x, eps, params)
    assert y.shape == (2, X_SHAPE) and mu.shape == (2, LATENT)
    assert jnp.allclose(y, y_r, atol=1e-2, rtol=1e-2)
    assert jnp.allclose(mu, mu_r, atol=1e-2, rtol=1e-2)
    assert jnp.allclose(log_var, lv_r, atol=1e-2, rtol=1e-2)
    assert jnp.allclose(z, z_r, atol=1e-2, rtol=1e-2)

    print("KERNEL_OK")
</pallas_src>

<mosaic_0001>
module attributes {stable_mosaic.version = 11 : i64} {
  func.func @_vae_kernel(%arg0: memref<16x1024xf32, #tpu.memory_space<vmem>>, %arg1: memref<16x384xf32, #tpu.memory_space<vmem>>, %arg2: memref<11x1024xf32, #tpu.memory_space<vmem>>, %arg3: memref<1024x512xbf16, #tpu.memory_space<any>>, %arg4: memref<512x3456xbf16, #tpu.memory_space<any>>, %arg5: memref<384x1664xbf16, #tpu.memory_space<any>>, %arg6: memref<16x2176xf32, #tpu.memory_space<vmem>>, %arg7: memref<1024x512xbf16, #tpu.memory_space<vmem>>, %arg8: memref<512x3456xbf16, #tpu.memory_space<vmem>>, %arg9: memref<384x1664xbf16, #tpu.memory_space<vmem>>, %arg10: memref<3x!tpu.dma_semaphore, #tpu.memory_space<semaphore_mem>>) attributes {dimension_semantics = [], scalar_prefetch = 0 : i64, scratch_operands = 4 : i64, tpu.core_type = #tpu.core_type<tc>} {
    %c0_i32 = arith.constant 0 : i32
    %0 = tpu.memref_slice %arg10[%c0_i32] : memref<3x!tpu.dma_semaphore, #tpu.memory_space<semaphore_mem>> -> memref<1x!tpu.dma_semaphore, #tpu.memory_space<semaphore_mem>>
    %1 = tpu.memref_squeeze %0 : memref<1x!tpu.dma_semaphore, #tpu.memory_space<semaphore_mem>> -> memref<!tpu.dma_semaphore, #tpu.memory_space<semaphore_mem>>
    tpu.enqueue_dma source(%arg3 : memref<1024x512xbf16, #tpu.memory_space<any>>) target(%arg7 : memref<1024x512xbf16, #tpu.memory_space<vmem>>) target_semaphore(%1 : memref<!tpu.dma_semaphore, #tpu.memory_space<semaphore_mem>>)
    %c1_i32 = arith.constant 1 : i32
    %2 = tpu.memref_slice %arg10[%c1_i32] : memref<3x!tpu.dma_semaphore, #tpu.memory_space<semaphore_mem>> -> memref<1x!tpu.dma_semaphore, #tpu.memory_space<semaphore_mem>>
    %3 = tpu.memref_squeeze %2 : memref<1x!tpu.dma_semaphore, #tpu.memory_space<semaphore_mem>> -> memref<!tpu.dma_semaphore, #tpu.memory_space<semaphore_mem>>
    tpu.enqueue_dma source(%arg4 : memref<512x3456xbf16, #tpu.memory_space<any>>) target(%arg8 : memref<512x3456xbf16, #tpu.memory_space<vmem>>) target_semaphore(%3 : memref<!tpu.dma_semaphore, #tpu.memory_space<semaphore_mem>>)
    %c2_i32 = arith.constant 2 : i32
    %4 = tpu.memref_slice %arg10[%c2_i32] : memref<3x!tpu.dma_semaphore, #tpu.memory_space<semaphore_mem>> -> memref<1x!tpu.dma_semaphore, #tpu.memory_space<semaphore_mem>>
    %5 = tpu.memref_squeeze %4 : memref<1x!tpu.dma_semaphore, #tpu.memory_space<semaphore_mem>> -> memref<!tpu.dma_semaphore, #tpu.memory_space<semaphore_mem>>
    tpu.enqueue_dma source(%arg5 : memref<384x1664xbf16, #tpu.memory_space<any>>) target(%arg9 : memref<384x1664xbf16, #tpu.memory_space<vmem>>) target_semaphore(%5 : memref<!tpu.dma_semaphore, #tpu.memory_space<semaphore_mem>>)
    %c0_i32_0 = arith.constant 0 : i32
    %6 = tpu.memref_slice %arg10[%c0_i32_0] : memref<3x!tpu.dma_semaphore, #tpu.memory_space<semaphore_mem>> -> memref<1x!tpu.dma_semaphore, #tpu.memory_space<semaphore_mem>>
    %7 = tpu.memref_squeeze %6 : memref<1x!tpu.dma_semaphore, #tpu.memory_space<semaphore_mem>> -> memref<!tpu.dma_semaphore, #tpu.memory_space<semaphore_mem>>
    tpu.wait_dma2 semaphore(%7 : memref<!tpu.dma_semaphore, #tpu.memory_space<semaphore_mem>>) src(%arg3 : memref<1024x512xbf16, #tpu.memory_space<any>>) dst(%arg7 : memref<1024x512xbf16, #tpu.memory_space<vmem>>)
    %c0 = arith.constant 0 : index
    %c0_1 = arith.constant 0 : index
    %8 = vector.load %arg0[%c0, %c0_1] : memref<16x1024xf32, #tpu.memory_space<vmem>>, vector<16x1024xf32>
    %9 = arith.truncf %8 : vector<16x1024xf32> to vector<16x1024xbf16>
    %c0_2 = arith.constant 0 : index
    %c0_3 = arith.constant 0 : index
    %10 = vector.load %arg7[%c0_2, %c0_3] : memref<1024x512xbf16, #tpu.memory_space<vmem>>, vector<1024x512xbf16>
    %cst = arith.constant dense<0.000000e+00> : vector<16x512xf32>
    %11 = tpu.matmul %9, %10, %cst {dimension_numbers = #tpu.dot_dimension_numbers<[1], [0], [0], [1], [0, 0, 1, 1], [], []>} : vector<16x1024xbf16>, vector<1024x512xbf16>, vector<16x512xf32> -> vector<16x512xf32>
    %c0_4 = arith.constant 0 : index
    %c0_5 = arith.constant 0 : index
    %12 = vector.load %arg2[%c0_4, %c0_5] : memref<11x1024xf32, #tpu.memory_space<vmem>>, vector<1x512xf32>
    %13 = vector.shape_cast %12 : vector<1x512xf32> to vector<512xf32>
    %14 = vector.shape_cast %13 : vector<512xf32> to vector<1x512xf32>
    %15 = vector.broadcast %14 : vector<1x512xf32> to vector<16x512xf32>
    %16 = arith.addf %11, %15 : vector<16x512xf32>
    %cst_6 = arith.constant 0.000000e+00 : f32
    %17 = vector.broadcast %cst_6 : f32 to vector<16x512xf32>
    %18 = arith.maximumf %16, %17 : vector<16x512xf32>
    %c1_i32_7 = arith.constant 1 : i32
    %19 = tpu.memref_slice %arg10[%c1_i32_7] : memref<3x!tpu.dma_semaphore, #tpu.memory_space<semaphore_mem>> -> memref<1x!tpu.dma_semaphore, #tpu.memory_space<semaphore_mem>>
    %20 = tpu.memref_squeeze %19 : memref<1x!tpu.dma_semaphore, #tpu.memory_space<semaphore_mem>> -> memref<!tpu.dma_semaphore, #tpu.memory_space<semaphore_mem>>
    tpu.wait_dma2 semaphore(%20 : memref<!tpu.dma_semaphore, #tpu.memory_space<semaphore_mem>>) src(%arg4 : memref<512x3456xbf16, #tpu.memory_space<any>>) dst(%arg8 : memref<512x3456xbf16, #tpu.memory_space<vmem>>)
    %21 = arith.truncf %18 : vector<16x512xf32> to vector<16x512xbf16>
    %c0_8 = arith.constant 0 : index
    %c0_9 = arith.constant 0 : index
    %22 = vector.load %arg8[%c0_8, %c0_9] : memref<512x3456xbf16, #tpu.memory_space<vmem>>, vector<512x512xbf16>
    %cst_10 = arith.constant dense<0.000000e+00> : vector<16x512xf32>
    %23 = tpu.matmul %21, %22, %cst_10 {dimension_numbers = #tpu.dot_dimension_numbers<[1], [0], [0], [1], [0, 0, 1, 1], [], []>} : vector<16x512xbf16>, vector<512x512xbf16>, vector<16x512xf32> -> vector<16x512xf32>
    %c1 = arith.constant 1 : index
    %c0_11 = arith.constant 0 : index
    %24 = vector.load %arg2[%c1, %c0_11] : memref<11x1024xf32, #tpu.memory_space<vmem>>, vector<1x512xf32>
    %25 = vector.shape_cast %24 : vector<1x512xf32> to vector<512xf32>
    %26 = vector.shape_cast %25 : vector<512xf32> to vector<1x512xf32>
    %27 = vector.broadcast %26 : vector<1x512xf32> to vector<16x512xf32>
    %28 = arith.addf %23, %27 : vector<16x512xf32>
    %cst_12 = arith.constant 0.000000e+00 : f32
    %29 = vector.broadcast %cst_12 : f32 to vector<16x512xf32>
    %30 = arith.maximumf %28, %29 : vector<16x512xf32>
    %31 = arith.truncf %30 : vector<16x512xf32> to vector<16x512xbf16>
    %c0_13 = arith.constant 0 : index
    %c512 = arith.constant 512 : index
    %32 = vector.load %arg8[%c0_13, %c512] : memref<512x3456xbf16, #tpu.memory_space<vmem>>, vector<512x512xbf16>
    %cst_14 = arith.constant dense<0.000000e+00> : vector<16x512xf32>
    %33 = tpu.matmul %31, %32, %cst_14 {dimension_numbers = #tpu.dot_dimension_numbers<[1], [0], [0], [1], [0, 0, 1, 1], [], []>} : vector<16x512xbf16>, vector<512x512xbf16>, vector<16x512xf32> -> vector<16x512xf32>
    %c2 = arith.constant 2 : index
    %c0_15 = arith.constant 0 : index
    %34 = vector.load %arg2[%c2, %c0_15] : memref<11x1024xf32, #tpu.memory_space<vmem>>, vector<1x512xf32>
    %35 = vector.shape_cast %34 : vector<1x512xf32> to vector<512xf32>
    %36 = vector.shape_cast %35 : vector<512xf32> to vector<1x512xf32>
    %37 = vector.broadcast %36 : vector<1x512xf32> to vector<16x512xf32>
    %38 = arith.addf %33, %37 : vector<16x512xf32>
    %cst_16 = arith.constant 0.000000e+00 : f32
    %39 = vector.broadcast %cst_16 : f32 to vector<16x512xf32>
    %40 = arith.maximumf %38, %39 : vector<16x512xf32>
    %41 = arith.truncf %40 : vector<16x512xf32> to vector<16x512xbf16>
    %c0_17 = arith.constant 0 : index
    %c1024 = arith.constant 1024 : index
    %42 = vector.load %arg8[%c0_17, %c1024] : memref<512x3456xbf16, #tpu.memory_space<vmem>>, vector<512x384xbf16>
    %cst_18 = arith.constant dense<0.000000e+00> : vector<16x384xf32>
    %43 = tpu.matmul %41, %42, %cst_18 {dimension_numbers = #tpu.dot_dimension_numbers<[1], [0], [0], [1], [0, 0, 1, 1], [], []>} : vector<16x512xbf16>, vector<512x384xbf16>, vector<16x384xf32> -> vector<16x384xf32>
    %c3 = arith.constant 3 : index
    %c0_19 = arith.constant 0 : index
    %44 = vector.load %arg2[%c3, %c0_19] : memref<11x1024xf32, #tpu.memory_space<vmem>>, vector<1x384xf32>
    %45 = vector.shape_cast %44 : vector<1x384xf32> to vector<384xf32>
    %46 = vector.shape_cast %45 : vector<384xf32> to vector<1x384xf32>
    %47 = vector.broadcast %46 : vector<1x384xf32> to vector<16x384xf32>
    %48 = arith.addf %43, %47 : vector<16x384xf32>
    %cst_20 = arith.constant 0.000000e+00 : f32
    %49 = vector.broadcast %cst_20 : f32 to vector<16x384xf32>
    %50 = arith.maximumf %48, %49 : vector<16x384xf32>
    %c2_i32_21 = arith.constant 2 : i32
    %51 = tpu.memref_slice %arg10[%c2_i32_21] : memref<3x!tpu.dma_semaphore, #tpu.memory_space<semaphore_mem>> -> memref<1x!tpu.dma_semaphore, #tpu.memory_space<semaphore_mem>>
    %52 = tpu.memref_squeeze %51 : memref<1x!tpu.dma_semaphore, #tpu.memory_space<semaphore_mem>> -> memref<!tpu.dma_semaphore, #tpu.memory_space<semaphore_mem>>
    tpu.wait_dma2 semaphore(%52 : memref<!tpu.dma_semaphore, #tpu.memory_space<semaphore_mem>>) src(%arg5 : memref<384x1664xbf16, #tpu.memory_space<any>>) dst(%arg9 : memref<384x1664xbf16, #tpu.memory_space<vmem>>)
    %53 = arith.truncf %50 : vector<16x384xf32> to vector<16x384xbf16>
    %c0_22 = arith.constant 0 : index
    %c0_23 = arith.constant 0 : index
    %54 = vector.load %arg9[%c0_22, %c0_23] : memref<384x1664xbf16, #tpu.memory_space<vmem>>, vector<384x768xbf16>
    %cst_24 = arith.constant dense<0.000000e+00> : vector<16x768xf32>
    %55 = tpu.matmul %53, %54, %cst_24 {dimension_numbers = #tpu.dot_dimension_numbers<[1], [0], [0], [1], [0, 0, 1, 1], [], []>} : vector<16x384xbf16>, vector<384x768xbf16>, vector<16x768xf32> -> vector<16x768xf32>
    %56 = vector.extract_strided_slice %55 {offsets = [0, 0], sizes = [16, 384], strides = [1, 1]} : vector<16x768xf32> to vector<16x384xf32>
    %c4 = arith.constant 4 : index
    %c0_25 = arith.constant 0 : index
    %57 = vector.load %arg2[%c4, %c0_25] : memref<11x1024xf32, #tpu.memory_space<vmem>>, vector<1x384xf32>
    %58 = vector.shape_cast %57 : vector<1x384xf32> to vector<384xf32>
    %59 = vector.shape_cast %58 : vector<384xf32> to vector<1x384xf32>
    %60 = vector.broadcast %59 : vector<1x384xf32> to vector<16x384xf32>
    %61 = arith.addf %56, %60 : vector<16x384xf32>
    %cst_26 = arith.constant 0.000000e+00 : f32
    %62 = vector.broadcast %cst_26 : f32 to vector<16x384xf32>
    %63 = arith.maximumf %61, %62 : vector<16x384xf32>
    %64 = vector.extract_strided_slice %55 {offsets = [0, 384], sizes = [16, 384], strides = [1, 1]} : vector<16x768xf32> to vector<16x384xf32>
    %c5 = arith.constant 5 : index
    %c0_27 = arith.constant 0 : index
    %65 = vector.load %arg2[%c5, %c0_27] : memref<11x1024xf32, #tpu.memory_space<vmem>>, vector<1x384xf32>
    %66 = vector.shape_cast %65 : vector<1x384xf32> to vector<384xf32>
    %67 = vector.shape_cast %66 : vector<384xf32> to vector<1x384xf32>
    %68 = vector.broadcast %67 : vector<1x384xf32> to vector<16x384xf32>
    %69 = arith.addf %64, %68 : vector<16x384xf32>
    %cst_28 = arith.constant 0.000000e+00 : f32
    %70 = vector.broadcast %cst_28 : f32 to vector<16x384xf32>
    %71 = arith.maximumf %69, %70 : vector<16x384xf32>
    %c0_29 = arith.constant 0 : index
    %c0_30 = arith.constant 0 : index
    %72 = vector.load %arg1[%c0_29, %c0_30] : memref<16x384xf32, #tpu.memory_space<vmem>>, vector<16x384xf32>
    %cst_31 = arith.constant 5.000000e-01 : f32
    %73 = vector.broadcast %cst_31 : f32 to vector<16x384xf32>
    %74 = arith.mulf %73, %71 : vector<16x384xf32>
    %75 = math.exp %74 : vector<16x384xf32>
    %76 = arith.mulf %72, %75 : vector<16x384xf32>
    %77 = arith.addf %63, %76 : vector<16x384xf32>
    %78 = arith.truncf %77 : vector<16x384xf32> to vector<16x384xbf16>
    %c0_32 = arith.constant 0 : index
    %c768 = arith.constant 768 : index
    %79 = vector.load %arg9[%c0_32, %c768] : memref<384x1664xbf16, #tpu.memory_space<vmem>>, vector<384x384xbf16>
    %cst_33 = arith.constant dense<0.000000e+00> : vector<16x384xf32>
    %80 = tpu.matmul %78, %79, %cst_33 {dimension_numbers = #tpu.dot_dimension_numbers<[1], [0], [0], [1], [0, 0, 1, 1], [], []>} : vector<16x384xbf16>, vector<384x384xbf16>, vector<16x384xf32> -> vector<16x384xf32>
    %c6 = arith.constant 6 : index
    %c0_34 = arith.constant 0 : index
    %81 = vector.load %arg2[%c6, %c0_34] : memref<11x1024xf32, #tpu.memory_space<vmem>>, vector<1x384xf32>
    %82 = vector.shape_cast %81 : vector<1x384xf32> to vector<384xf32>
    %83 = vector.shape_cast %82 : vector<384xf32> to vector<1x384xf32>
    %84 = vector.broadcast %83 : vector<1x384xf32> to vector<16x384xf32>
    %85 = arith.addf %80, %84 : vector<16x384xf32>
    %cst_35 = arith.constant 0.000000e+00 : f32
    %86 = vector.broadcast %cst_35 : f32 to vector<16x384xf32>
    %87 = arith.maximumf %85, %86 : vector<16x384xf32>
    %88 = arith.truncf %87 : vector<16x384xf32> to vector<16x384xbf16>
    %c0_36 = arith.constant 0 : index
    %c1152 = arith.constant 1152 : index
    %89 = vector.load %arg9[%c0_36, %c1152] : memref<384x1664xbf16, #tpu.memory_space<vmem>>, vector<384x512xbf16>
    %cst_37 = arith.constant dense<0.000000e+00> : vector<16x512xf32>
    %90 = tpu.matmul %88, %89, %cst_37 {dimension_numbers = #tpu.dot_dimension_numbers<[1], [0], [0], [1], [0, 0, 1, 1], [], []>} : vector<16x384xbf16>, vector<384x512xbf16>, vector<16x512xf32> -> vector<16x512xf32>
    %c7 = arith.constant 7 : index
    %c0_38 = arith.constant 0 : index
    %91 = vector.load %arg2[%c7, %c0_38] : memref<11x1024xf32, #tpu.memory_space<vmem>>, vector<1x512xf32>
    %92 = vector.shape_cast %91 : vector<1x512xf32> to vector<512xf32>
    %93 = vector.shape_cast %92 : vector<512xf32> to vector<1x512xf32>
    %94 = vector.broadcast %93 : vector<1x512xf32> to vector<16x512xf32>
    %95 = arith.addf %90, %94 : vector<16x512xf32>
    %cst_39 = arith.constant 0.000000e+00 : f32
    %96 = vector.broadcast %cst_39 : f32 to vector<16x512xf32>
    %97 = arith.maximumf %95, %96 : vector<16x512xf32>
    %98 = arith.truncf %97 : vector<16x512xf32> to vector<16x512xbf16>
    %c0_40 = arith.constant 0 : index
    %c1408 = arith.constant 1408 : index
    %99 = vector.load %arg8[%c0_40, %c1408] : memref<512x3456xbf16, #tpu.memory_space<vmem>>, vector<512x512xbf16>
    %cst_41 = arith.constant dense<0.000000e+00> : vector<16x512xf32>
    %100 = tpu.matmul %98, %99, %cst_41 {dimension_numbers = #tpu.dot_dimension_numbers<[1], [0], [0], [1], [0, 0, 1, 1], [], []>} : vector<16x512xbf16>, vector<512x512xbf16>, vector<16x512xf32> -> vector<16x512xf32>
    %c8 = arith.constant 8 : index
    %c0_42 = arith.constant 0 : index
    %101 = vector.load %arg2[%c8, %c0_42] : memref<11x1024xf32, #tpu.memory_space<vmem>>, vector<1x512xf32>
    %102 = vector.shape_cast %101 : vector<1x512xf32> to vector<512xf32>
    %103 = vector.shape_cast %102 : vector<512xf32> to vector<1x512xf32>
    %104 = vector.broadcast %103 : vector<1x512xf32> to vector<16x512xf32>
    %105 = arith.addf %100, %104 : vector<16x512xf32>
    %cst_43 = arith.constant 0.000000e+00 : f32
    %106 = vector.broadcast %cst_43 : f32 to vector<16x512xf32>
    %107 = arith.maximumf %105, %106 : vector<16x512xf32>
    %108 = arith.truncf %107 : vector<16x512xf32> to vector<16x512xbf16>
    %c0_44 = arith.constant 0 : index
    %c1920 = arith.constant 1920 : index
    %109 = vector.load %arg8[%c0_44, %c1920] : memref<512x3456xbf16, #tpu.memory_space<vmem>>, vector<512x512xbf16>
    %cst_45 = arith.constant dense<0.000000e+00> : vector<16x512xf32>
    %110 = tpu.matmul %108, %109, %cst_45 {dimension_numbers = #tpu.dot_dimension_numbers<[1], [0], [0], [1], [0, 0, 1, 1], [], []>} : vector<16x512xbf16>, vector<512x512xbf16>, vector<16x512xf32> -> vector<16x512xf32>
    %c9 = arith.constant 9 : index
    %c0_46 = arith.constant 0 : index
    %111 = vector.load %arg2[%c9, %c0_46] : memref<11x1024xf32, #tpu.memory_space<vmem>>, vector<1x512xf32>
    %112 = vector.shape_cast %111 : vector<1x512xf32> to vector<512xf32>
    %113 = vector.shape_cast %112 : vector<512xf32> to vector<1x512xf32>
    %114 = vector.broadcast %113 : vector<1x512xf32> to vector<16x512xf32>
    %115 = arith.addf %110, %114 : vector<16x512xf32>
    %cst_47 = arith.constant 0.000000e+00 : f32
    %116 = vector.broadcast %cst_47 : f32 to vector<16x512xf32>
    %117 = arith.maximumf %115, %116 : vector<16x512xf32>
    %118 = arith.truncf %117 : vector<16x512xf32> to vector<16x512xbf16>
    %c0_48 = arith.constant 0 : index
    %c2432 = arith.constant 2432 : index
    %119 = vector.load %arg8[%c0_48, %c2432] : memref<512x3456xbf16, #tpu.memory_space<vmem>>, vector<512x1024xbf16>
    %cst_49 = arith.constant dense<0.000000e+00> : vector<16x1024xf32>
    %120 = tpu.matmul %118, %119, %cst_49 {dimension_numbers = #tpu.dot_dimension_numbers<[1], [0], [0], [1], [0, 0, 1, 1], [], []>} : vector<16x512xbf16>, vector<512x1024xbf16>, vector<16x1024xf32> -> vector<16x1024xf32>
    %c10 = arith.constant 10 : index
    %c0_50 = arith.constant 0 : index
    %121 = vector.load %arg2[%c10, %c0_50] : memref<11x1024xf32, #tpu.memory_space<vmem>>, vector<1x1024xf32>
    %122 = vector.shape_cast %121 : vector<1x1024xf32> to vector<1024xf32>
    %123 = vector.shape_cast %122 : vector<1024xf32> to vector<1x1024xf32>
    %124 = vector.broadcast %123 : vector<1x1024xf32> to vector<16x1024xf32>
    %125 = arith.addf %120, %124 : vector<16x1024xf32>
    %126 = arith.negf %125 : vector<16x1024xf32>
    %127 = math.exp %126 : vector<16x1024xf32>
    %cst_51 = arith.constant 1.000000e+00 : f32
    %128 = vector.broadcast %cst_51 : f32 to vector<16x1024xf32>
    %129 = arith.addf %128, %127 : vector<16x1024xf32>
    %130 = arith.divf %128, %129 : vector<16x1024xf32>
    %c0_52 = arith.constant 0 : index
    %c0_53 = arith.constant 0 : index
    %131 = vector.load %arg6[%c0_52, %c0_53] : memref<16x2176xf32, #tpu.memory_space<vmem>>, vector<16x1024xf32>
    tpu.vector_store %arg6[%c0_52, %c0_53], %130 {strides = array<i32>} : memref<16x2176xf32, #tpu.memory_space<vmem>>, vector<16x1024xf32>,
    %c0_54 = arith.constant 0 : index
    %c1024_55 = arith.constant 1024 : index
    %132 = vector.load %arg6[%c0_54, %c1024_55] : memref<16x2176xf32, #tpu.memory_space<vmem>>, vector<16x384xf32>
    tpu.vector_store %arg6[%c0_54, %c1024_55], %63 {strides = array<i32>} : memref<16x2176xf32, #tpu.memory_space<vmem>>, vector<16x384xf32>,
    %c0_56 = arith.constant 0 : index
    %c1408_57 = arith.constant 1408 : index
    %133 = vector.load %arg6[%c0_56, %c1408_57] : memref<16x2176xf32, #tpu.memory_space<vmem>>, vector<16x384xf32>
    tpu.vector_store %arg6[%c0_56, %c1408_57], %71 {strides = array<i32>} : memref<16x2176xf32, #tpu.memory_space<vmem>>, vector<16x384xf32>,
    %c0_58 = arith.constant 0 : index
    %c1792 = arith.constant 1792 : index
    %134 = vector.load %arg6[%c0_58, %c1792] : memref<16x2176xf32, #tpu.memory_space<vmem>>, vector<16x384xf32>
    tpu.vector_store %arg6[%c0_58, %c1792], %77 {strides = array<i32>} : memref<16x2176xf32, #tpu.memory_space<vmem>>, vector<16x384xf32>,
    return
  }
}

</mosaic_0001>

<llo_original>
// kernel: vae_forward.1
$region0: #{vae_forward.1}
  #allocation0 [shape = 'u32[]', space=smem, size = 0x4, offset = 0x4, fixed_abs, tag = 'smem constant byte address 0x4 - core index']
  #allocation1 [shape = 'u32[72,128]{1,0:T(1,128)}', space=vmem, size = 0x9000, scoped, tag = 'internal scratch']
  #allocation2 [shape = 'bf16[1024,512]{1,0:T(8,128)(2,1)}', space=vmem, size = 0x100000, scoped, tag = 'scratch operand']
  #allocation3 [shape = 'bf16[512,3456]{1,0:T(8,128)(2,1)}', space=vmem, size = 0x360000, scoped, tag = 'scratch operand']
  #allocation4 [shape = 'bf16[384,1664]{1,0:T(8,128)(2,1)}', space=vmem, size = 0x138000, scoped, tag = 'scratch operand']
  #allocation5 [shape = 's32[3]{0}', space=sflag, size = 0xc, scoped, tag = 'scratch operand']
  #allocation8 [shape = 's32[]', space=sflag, size = 0x4, offset = 0, fixed_abs, tag = 'sflag constant byte address 0x0 - dummy sync flag']
  #allocation9 [shape = 's32[]', space=sflag, size = 0x4, offset = 0, fixed_abs, tag = 'sflag constant byte address 0x0 - dummy sync flag']
  #allocation10 [shape = 'u32[]', space=smem, size = 0x4, offset = 0x44, fixed_abs, tag = 'smem constant byte address 0x44 - assertion arg 0']
  #allocation11 [shape = 'u32[]', space=smem, size = 0x4, offset = 0x48, fixed_abs, tag = 'smem constant byte address 0x48 - assertion arg 1']
  #allocation12 [shape = 's32[]', space=sflag, size = 0x4, offset = 0, fixed_abs, tag = 'sflag constant byte address 0x0 - dummy sync flag']
  #allocation13 [shape = 's32[]', space=sflag, size = 0x4, offset = 0, fixed_abs, tag = 'sflag constant byte address 0x0 - dummy sync flag']
  #allocation14 [shape = 's32[]', space=sflag, size = 0x4, offset = 0, fixed_abs, tag = 'sflag constant byte address 0x0 - dummy sync flag']
  #allocation15 [shape = 's32[]', space=sflag, size = 0x4, offset = 0, fixed_abs, tag = 'sflag constant byte address 0x0 - dummy sync flag']
  %s0 = inlined_call_operand.vmem [shape: f32[16,1024], index: 0, kind: input, shape index: {}]
  %s1 = inlined_call_operand.vmem [shape: f32[16,384], index: 1, kind: input, shape index: {}]
  %s2 = inlined_call_operand.hbm [shape: f32[11,1024], index: 2, kind: input, shape index: {}]
  %s3 = inlined_call_operand.hbm [shape: bf16[1024,512], index: 3, kind: input, shape index: {}]
  %s4 = inlined_call_operand.hbm [shape: bf16[512,3456], index: 4, kind: input, shape index: {}]
  %s5 = inlined_call_operand.hbm [shape: bf16[384,1664], index: 5, kind: input, shape index: {}]
  %s6 = inlined_call_operand.vmem [shape: f32[16,2176], index: 6, kind: output, shape index: {}]
  %s7 = sld [smem:[#allocation0]]
  $region38: #{vae_forward.1} parent=0
    _
  %s9 = ssub.s32 1, %s7
  %s10 = scalar_select 0, %s9, %s7
  $region1: #{vae_forward.1} parent=0
    #allocation6 [shape = 'u8[65536]{0}', space=vmem, size = 0x10000, scoped, tag = 'input window, operand 2, single buffered']
    #allocation7 [shape = 's32[1]{0}', space=sflag, size = 0x4, scoped, tag = 'scoped memory for vae_forward.1']
    %11 = vsyncpa [#allocation7], 0
    // Predicated region
    $region2: #{vae_forward.1} parent=1 // pred_check
      _
    $region3: #{vae_forward.1} parent=1 // pred_check_branch
      %13 = sbr.rel (0) target = $region5
    $region4: #{vae_forward.1} parent=1 // pred_region
      _
    $region5: #{vae_forward.1} parent=1 // pred_fallthru
      _
    // Predicated region
    $region6: #{vae_forward.1} parent=1 // pred_check
      _
    $region7: #{vae_forward.1} parent=1 // pred_check_branch
      %15 = sbr.rel (0) target = $region9
    $region8: #{vae_forward.1} parent=1 // pred_region
      _
    $region9: #{vae_forward.1} parent=1 // pred_fallthru
      _
    // Predicated region
    $region10: #{vae_forward.1} parent=1 // pred_check
      _
    $region11: #{vae_forward.1} parent=1 // pred_check_branch
      %17 = sbr.rel (0) target = $region13
    $region12: #{vae_forward.1} parent=1 // pred_region
      %19 = vsyncadd [#allocation7], 0
      %s20 = sshll.u32 %s2, 4
      %s21 = int_to_ptr.hbm [resolvable:$true] %s20
      %s22 = sshll.u32 [#allocation6], 4
      %s23 = int_to_ptr.vmem [resolvable:$true] %s22
      %28 = dma.hbm_to_vmem [thread:$0]  %s21, 2048, %s23, [#allocation7], 1024, 1024, 64
    $region13: #{vae_forward.1} parent=1 // pred_fallthru
      _
    // Predicated region
    $region14: #{vae_forward.1} parent=1 // pred_check
      _
    $region15: #{vae_forward.1} parent=1 // pred_check_branch
      %30 = sbr.rel (0) target = $region17
    $region16: #{vae_forward.1} parent=1 // pred_region
      %32 = dma.done [#allocation7], 2048
    $region17: #{vae_forward.1} parent=1 // pred_fallthru
      _
    // Predicated region
    $region18: #{vae_forward.1} parent=1 // pred_check
      _
    $region19: #{vae_forward.1} parent=1 // pred_check_branch
      %34 = sbr.rel target = $region21
    $region20: #{vae_forward.1} parent=1 // pred_region
      %35 = sst [smem:[#allocation10]] [#allocation9]
      %36 = sst [smem:[#allocation11]] [#allocation8]
    $region21: #{vae_forward.1} parent=1 // pred_fallthru
      _
    %38 = shalt.err (0)
    %s40 = sshll.u32 %s3, 4
    %s41 = int_to_ptr.hbm [resolvable:$true] %s40
    %s42 = sshll.u32 [#allocation2], 4
    %s43 = int_to_ptr.vmem [resolvable:$true] %s42
    %45 = dma.hbm_to_vmem [thread:$0]  %s41, 32768, %s43, [#allocation5]
    %s46 = scalar_lea.sflag [#allocation5], 1
    // Predicated region
    $region22: #{vae_forward.1} parent=1 // pred_check
      _
    $region23: #{vae_forward.1} parent=1 // pred_check_branch
      %48 = sbr.rel target = $region25
    $region24: #{vae_forward.1} parent=1 // pred_region
      %49 = sst [smem:[#allocation10]] [#allocation13]
      %50 = sst [smem:[#allocation11]] [#allocation12]
    $region25: #{vae_forward.1} parent=1 // pred_fallthru
      _
    %52 = shalt.err (0)
    %s54 = sshll.u32 %s4, 4
    %s55 = int_to_ptr.hbm [resolvable:$true] %s54
    %s56 = sshll.u32 [#allocation3], 4
    %s57 = int_to_ptr.vmem [resolvable:$true] %s56
    %59 = dma.hbm_to_vmem [thread:$0]  %s55, 110592, %s57, %s46
    %s60 = scalar_lea.sflag [#allocation5], 2
    // Predicated region
    $region26: #{vae_forward.1} parent=1 // pred_check
      _
    $region27: #{vae_forward.1} parent=1 // pred_check_branch
      %62 = sbr.rel target = $region29
    $region28: #{vae_forward.1} parent=1 // pred_region
      %63 = sst [smem:[#allocation10]] [#allocation15]
      %64 = sst [smem:[#allocation11]] [#allocation14]
    $region29: #{vae_forward.1} parent=1 // pred_fallthru
      _
    %66 = shalt.err (0)
    %s68 = sshll.u32 %s5, 4
    %s69 = int_to_ptr.hbm [resolvable:$true] %s68
    %s70 = sshll.u32 [#allocation4], 4
    %s71 = int_to_ptr.vmem [resolvable:$true] %s70
    %73 = dma.hbm_to_vmem [thread:$0]  %s69, 39936, %s71, %s60
    %s74 = smul.u32 4, 128
    %s75 = smul.u32 %s74, 4
    %s76 = sshll.u32 %s75, 4
    %77 = dma.done [#allocation5], %s76
    %v78 = vld [vmem:[%s0] sm:$0xff]
    %v79 = vld [vmem:[%s0 + $0x8] sm:$0xff]
    %v80 = vld [vmem:[%s0 + $0x10] sm:$0xff]
    %v81 = vld [vmem:[%s0 + $0x18] sm:$0xff]
    %v82 = vld [vmem:[%s0 + $0x20] sm:$0xff]
    %v83 = vld [vmem:[%s0 + $0x28] sm:$0xff]
    %v84 = vld [vmem:[%s0 + $0x30] sm:$0xff]
    %v85 = vld [vmem:[%s0 + $0x38] sm:$0xff]
    %v86 = vld [vmem:[%s0 + $0x40] sm:$0xff]
    %v87 = vld [vmem:[%s0 + $0x48] sm:$0xff]
    %v88 = vld [vmem:[%s0 + $0x50] sm:$0xff]
    %v89 = vld [vmem:[%s0 + $0x58] sm:$0xff]
    %v90 = vld [vmem:[%s0 + $0x60] sm:$0xff]
    %v91 = vld [vmem:[%s0 + $0x68] sm:$0xff]
    %v92 = vld [vmem:[%s0 + $0x70] sm:$0xff]
    %v93 = vld [vmem:[%s0 + $0x78] sm:$0xff]
    %v94 = vpack.c.bf16 %v86, %v78
    %v95 = vpack.c.bf16 %v87, %v79
    %v96 = vpack.c.bf16 %v88, %v80
    %v97 = vpack.c.bf16 %v89, %v81
    %v98 = vpack.c.bf16 %v90, %v82
    %v99 = vpack.c.bf16 %v91, %v83
    %v100 = vpack.c.bf16 %v92, %v84
    %v101 = vpack.c.bf16 %v93, %v85
    %v102 = vld [vmem:[#allocation2] sm:$0xff]
    %v103 = vld [vmem:[#allocation2 + $0x8] sm:$0xff]
    %v104 = vld [vmem:[#allocation2 + $0x10] sm:$0xff]
    %v105 = vld [vmem:[#allocation2 + $0x18] sm:$0xff]
    %v106 = vld [vmem:[#allocation2 + $0x20] sm:$0xff]
    %v107 = vld [vmem:[#allocation2 + $0x28] sm:$0xff]
    %v108 = vld [vmem:[#allocation2 + $0x30] sm:$0xff]
    %v109 = vld [vmem:[#allocation2 + $0x38] sm:$0xff]
    %v110 = vld [vmem:[#allocation2 + $0x40] sm:$0xff]
    %v111 = vld [vmem:[#allocation2 + $0x48] sm:$0xff]
    %v112 = vld [vmem:[#allocation2 + $0x50] sm:$0xff]
    %v113 = vld [vmem:[#allocation2 + $0x58] sm:$0xff]
    %v114 = vld [vmem:[#allocation2 + $0x60] sm:$0xff]
    %v115 = vld [vmem:[#allocation2 + $0x68] sm:$0xff]
    %v116 = vld [vmem:[#allocation2 + $0x70] sm:$0xff]
    %v117 = vld [vmem:[#allocation2 + $0x78] sm:$0xff]
    %v118 = vld [vmem:[#allocation2 + $0x80] sm:$0xff]
    %v119 = vld [vmem:[#allocation2 + $0x88] sm:$0xff]
    %v120 = vld [vmem:[#allocation2 + $0x90] sm:$0xff]
    %v121 = vld [vmem:[#allocation2 + $0x98] sm:$0xff]
    %v122 = vld [vmem:[#allocation2 + $0xa0] sm:$0xff]
    %v123 = vld [vmem:[#allocation2 + $0xa8] sm:$0xff]
    %v124 = vld [vmem:[#allocation2 + $0xb0] sm:$0xff]
    %v125 = vld [vmem:[#allocation2 + $0xb8] sm:$0xff]
    %v126 = vld [vmem:[#allocation2 + $0xc0] sm:$0xff]
    %v127 = vld [vmem:[#allocation2 + $0xc8] sm:$0xff]
    %v128 = vld [vmem:[#allocation2 + $0xd0] sm:$0xff]
    %v129 = vld [vmem:[#allocation2 + $0xd8] sm:$0xff]
    %v130 = vld [vmem:[#allocation2 + $0xe0] sm:$0xff]
    %v131 = vld [vmem:[#allocation2 + $0xe8] sm:$0xff]
    %v132 = vld [vmem:[#allocation2 + $0xf0] sm:$0xff]
    %v133 = vld [vmem:[#allocation2 + $0xf8] sm:$0xff]
    %v134 = vld [vmem:[#allocation2 + $0x100] sm:$0xff]
    %v135 = vld [vmem:[#allocation2 + $0x108] sm:$0xff]
    %v136 = vld [vmem:[#allocation2 + $0x110] sm:$0xff]
    %v137 = vld [vmem:[#allocation2 + $0x118] sm:$0xff]
    %v138 = vld [vmem:[#allocation2 + $0x120] sm:$0xff]
    %v139 = vld [vmem:[#allocation2 + $0x128] sm:$0xff]
    %v140 = vld [vmem:[#allocation2 + $0x130] sm:$0xff]
    %v141 = vld [vmem:[#allocation2 + $0x138] sm:$0xff]
    %v142 = vld [vmem:[#allocation2 + $0x140] sm:$0xff]
    %v143 = vld [vmem:[#allocation2 + $0x148] sm:$0xff]
    %v144 = vld [vmem:[#allocation2 + $0x150] sm:$0xff]
    %v145 = vld [vmem:[#allocation2 + $0x158] sm:$0xff]
    %v146 = vld [vmem:[#allocation2 + $0x160] sm:$0xff]
    %v147 = vld [vmem:[#allocation2 + $0x168] sm:$0xff]
    %v148 = vld [vmem:[#allocation2 + $0x170] sm:$0xff]
    %v149 = vld [vmem:[#allocation2 + $0x178] sm:$0xff]
    %v150 = vld [vmem:[#allocation2 + $0x180] sm:$0xff]
    %v151 = vld [vmem:[#allocation2 + $0x188] sm:$0xff]
    %v152 = vld [vmem:[#allocation2 + $0x190] sm:$0xff]
    %v153 = vld [vmem:[#allocation2 + $0x198] sm:$0xff]
    %v154 = vld [vmem:[#allocation2 + $0x1a0] sm:$0xff]
    %v155 = vld [vmem:[#allocation2 + $0x1a8] sm:$0xff]
    %v156 = vld [vmem:[#allocation2 + $0x1b0] sm:$0xff]
    %v157 = vld [vmem:[#allocation2 + $0x1b8] sm:$0xff]
    %v158 = vld [vmem:[#allocation2 + $0x1c0] sm:$0xff]
    %v159 = vld [vmem:[#allocation2 + $0x1c8] sm:$0xff]
    %v160 = vld [vmem:[#allocation2 + $0x1d0] sm:$0xff]
    %v161 = vld [vmem:[#allocation2 + $0x1d8] sm:$0xff]
    %v162 = vld [vmem:[#allocation2 + $0x1e0] sm:$0xff]
    %v163 = vld [vmem:[#allocation2 + $0x1e8] sm:$0xff]
    %v164 = vld [vmem:[#allocation2 + $0x1f0] sm:$0xff]
    %v165 = vld [vmem:[#allocation2 + $0x1f8] sm:$0xff]
    %v166 = vld [vmem:[#allocation2 + $0x200] sm:$0xff]
    %v167 = vld [vmem:[#allocation2 + $0x208] sm:$0xff]
    %v168 = vld [vmem:[#allocation2 + $0x210] sm:$0xff]
    %v169 = vld [vmem:[#allocation2 + $0x218] sm:$0xff]
    %v170 = vld [vmem:[#allocation2 + $0x220] sm:$0xff]
    %v171 = vld [vmem:[#allocation2 + $0x228] sm:$0xff]
    %v172 = vld [vmem:[#allocation2 + $0x230] sm:$0xff]
    %v173 = vld [vmem:[#allocation2 + $0x238] sm:$0xff]
    %v174 = vld [vmem:[#allocation2 + $0x240] sm:$0xff]
    %v175 = vld [vmem:[#allocation2 + $0x248] sm:$0xff]
    %v176 = vld [vmem:[#allocation2 + $0x250] sm:$0xff]
    %v177 = vld [vmem:[#allocation2 + $0x258] sm:$0xff]
    %v178 = vld [vmem:[#allocation2 + $0x260] sm:$0xff]
    %v179 = vld [vmem:[#allocation2 + $0x268] sm:$0xff]
    %v180 = vld [vmem:[#allocation2 + $0x270] sm:$0xff]
    %v181 = vld [vmem:[#allocation2 + $0x278] sm:$0xff]
    %v182 = vld [vmem:[#allocation2 + $0x280] sm:$0xff]
    %v183 = vld [vmem:[#allocation2 + $0x288] sm:$0xff]
    %v184 = vld [vmem:[#allocation2 + $0x290] sm:$0xff]
    %v185 = vld [vmem:[#allocation2 + $0x298] sm:$0xff]
    %v186 = vld [vmem:[#allocation2 + $0x2a0] sm:$0xff]
    %v187 = vld [vmem:[#allocation2 + $0x2a8] sm:$0xff]
    %v188 = vld [vmem:[#allocation2 + $0x2b0] sm:$0xff]
    %v189 = vld [vmem:[#allocation2 + $0x2b8] sm:$0xff]
    %v190 = vld [vmem:[#allocation2 + $0x2c0] sm:$0xff]
    %v191 = vld [vmem:[#allocation2 + $0x2c8] sm:$0xff]
    %v192 = vld [vmem:[#allocation2 + $0x2d0] sm:$0xff]
    %v193 = vld [vmem:[#allocation2 + $0x2d8] sm:$0xff]
    %v194 = vld [vmem:[#allocation2 + $0x2e0] sm:$0xff]
    %v195 = vld [vmem:[#allocation2 + $0x2e8] sm:$0xff]
    %v196 = vld [vmem:[#allocation2 + $0x2f0] sm:$0xff]
    %v197 = vld [vmem:[#allocation2 + $0x2f8] sm:$0xff]
    %v198 = vld [vmem:[#allocation2 + $0x300] sm:$0xff]
    %v199 = vld [vmem:[#allocation2 + $0x308] sm:$0xff]
    %v200 = vld [vmem:[#allocation2 + $0x310] sm:$0xff]
    %v201 = vld [vmem:[#allocation2 + $0x318] sm:$0xff]
    %v202 = vld [vmem:[#allocation2 + $0x320] sm:$0xff]
    %v203 = vld [vmem:[#allocation2 + $0x328] sm:$0xff]
    %v204 = vld [vmem:[#allocation2 + $0x330] sm:$0xff]
    %v205 = vld [vmem:[#allocation2 + $0x338] sm:$0xff]
    %v206 = vld [vmem:[#allocation2 + $0x340] sm:$0xff]
    %v207 = vld [vmem:[#allocation2 + $0x348] sm:$0xff]
    %v208 = vld [vmem:[#allocation2 + $0x350] sm:$0xff]
    %v209 = vld [vmem:[#allocation2 + $0x358] sm:$0xff]
    %v210 = vld [vmem:[#allocation2 + $0x360] sm:$0xff]
    %v211 = vld [vmem:[#allocation2 + $0x368] sm:$0xff]
    %v212 = vld [vmem:[#allocation2 + $0x370] sm:$0xff]
    %v213 = vld [vmem:[#allocation2 + $0x378] sm:$0xff]
    %v214 = vld [vmem:[#allocation2 + $0x380] sm:$0xff]
    %v215 = vld [vmem:[#allocation2 + $0x388] sm:$0xff]
    %v216 = vld [vmem:[#allocation2 + $0x390] sm:$0xff]
    %v217 = vld [vmem:[#allocation2 + $0x398] sm:$0xff]
    %v218 = vld [vmem:[#allocation2 + $0x3a0] sm:$0xff]
    %v219 = vld [vmem:[#allocation2 + $0x3a8] sm:$0xff]
    %v220 = vld [vmem:[#allocation2 + $0x3b0] sm:$0xff]
    %v221 = vld [vmem:[#allocation2 + $0x3b8] sm:$0xff]
    %v222 = vld [vmem:[#allocation2 + $0x3c0] sm:$0xff]
    %v223 = vld [vmem:[#allocation2 + $0x3c8] sm:$0xff]
    %v224 = vld [vmem:[#allocation2 + $0x3d0] sm:$0xff]
    %v225 = vld [vmem:[#allocation2 + $0x3d8] sm:$0xff]
    %v226 = vld [vmem:[#allocation2 + $0x3e0] sm:$0xff]
    %v227 = vld [vmem:[#allocation2 + $0x3e8] sm:$0xff]
    %v228 = vld [vmem:[#allocation2 + $0x3f0] sm:$0xff]
    %v229 = vld [vmem:[#allocation2 + $0x3f8] sm:$0xff]
    %v230 = vld [vmem:[#allocation2 + $0x400] sm:$0xff]
    %v231 = vld [vmem:[#allocation2 + $0x408] sm:$0xff]
    %v232 = vld [vmem:[#allocation2 + $0x410] sm:$0xff]
    %v233 = vld [vmem:[#allocation2 + $0x418] sm:$0xff]
    %v234 = vld [vmem:[#allocation2 + $0x420] sm:$0xff]
    %v235 = vld [vmem:[#allocation2 + $0x428] sm:$0xff]
    %v236 = vld [vmem:[#allocation2 + $0x430] sm:$0xff]
    %v237 = vld [vmem:[#allocation2 + $0x438] sm:$0xff]
    %v238 = vld [vmem:[#allocation2 + $0x440] sm:$0xff]
    %v239 = vld [vmem:[#allocation2 + $0x448] sm:$0xff]
    %v240 = vld [vmem:[#allocation2 + $0x450] sm:$0xff]
    %v241 = vld [vmem:[#allocation2 + $0x458] sm:$0xff]
    %v242 = vld [vmem:[#allocation2 + $0x460] sm:$0xff]
    %v243 = vld [vmem:[#allocation2 + $0x468] sm:$0xff]
    %v244 = vld [vmem:[#allocation2 + $0x470] sm:$0xff]
    %v245 = vld [vmem:[#allocation2 + $0x478] sm:$0xff]
    %v246 = vld [vmem:[#allocation2 + $0x480] sm:$0xff]
    %v247 = vld [vmem:[#allocation2 + $0x488] sm:$0xff]
    %v248 = vld [vmem:[#allocation2 + $0x490] sm:$0xff]
    %v249 = vld [vmem:[#allocation2 + $0x498] sm:$0xff]
    %v250 = vld [vmem:[#allocation2 + $0x4a0] sm:$0xff]
    %v251 = vld [vmem:[#allocation2 + $0x4a8] sm:$0xff]
    %v252 = vld [vmem:[#allocation2 + $0x4b0] sm:$0xff]
    %v253 = vld [vmem:[#allocation2 + $0x4b8] sm:$0xff]
    %v254 = vld [vmem:[#allocation2 + $0x4c0] sm:$0xff]
    %v255 = vld [vmem:[#allocation2 + $0x4c8] sm:$0xff]
    %v256 = vld [vmem:[#allocation2 + $0x4d0] sm:$0xff]
    %v257 = vld [vmem:[#allocation2 + $0x4d8] sm:$0xff]
    %v258 = vld [vmem:[#allocation2 + $0x4e0] sm:$0xff]
    %v259 = vld [vmem:[#allocation2 + $0x4e8] sm:$0xff]
    %v260 = vld [vmem:[#allocation2 + $0x4f0] sm:$0xff]
    %v261 = vld [vmem:[#allocation2 + $0x4f8] sm:$0xff]
    %v262 = vld [vmem:[#allocation2 + $0x500] sm:$0xff]
    %v263 = vld [vmem:[#allocation2 + $0x508] sm:$0xff]
    %v264 = vld [vmem:[#allocation2 + $0x510] sm:$0xff]
    %v265 = vld [vmem:[#allocation2 + $0x518] sm:$0xff]
    %v266 = vld [vmem:[#allocation2 + $0x520] sm:$0xff]
    %v267 = vld [vmem:[#allocation2 + $0x528] sm:$0xff]
    %v268 = vld [vmem:[#allocation2 + $0x530] sm:$0xff]
    %v269 = vld [vmem:[#allocation2 + $0x538] sm:$0xff]
    %v270 = vld [vmem:[#allocation2 + $0x540] sm:$0xff]
    %v271 = vld [vmem:[#allocation2 + $0x548] sm:$0xff]
    %v272 = vld [vmem:[#allocation2 + $0x550] sm:$0xff]
    %v273 = vld [vmem:[#allocation2 + $0x558] sm:$0xff]
    %v274 = vld [vmem:[#allocation2 + $0x560] sm:$0xff]
    %v275 = vld [vmem:[#allocation2 + $0x568] sm:$0xff]
    %v276 = vld [vmem:[#allocation2 + $0x570] sm:$0xff]
    %v277 = vld [vmem:[#allocation2 + $0x578] sm:$0xff]
    %v278 = vld [vmem:[#allocation2 + $0x580] sm:$0xff]
    %v279 = vld [vmem:[#allocation2 + $0x588] sm:$0xff]
    %v280 = vld [vmem:[#allocation2 + $0x590] sm:$0xff]
    %v281 = vld [vmem:[#allocation2 + $0x598] sm:$0xff]
    %v282 = vld [vmem:[#allocation2 + $0x5a0] sm:$0xff]
    %v283 = vld [vmem:[#allocation2 + $0x5a8] sm:$0xff]
    %v284 = vld [vmem:[#allocation2 + $0x5b0] sm:$0xff]
    %v285 = vld [vmem:[#allocation2 + $0x5b8] sm:$0xff]
    %v286 = vld [vmem:[#allocation2 + $0x5c0] sm:$0xff]
    %v287 = vld [vmem:[#allocation2 + $0x5c8] sm:$0xff]
    %v288 = vld [vmem:[#allocation2 + $0x5d0] sm:$0xff]
    %v289 = vld [vmem:[#allocation2 + $0x5d8] sm:$0xff]
    %v290 = vld [vmem:[#allocation2 + $0x5e0] sm:$0xff]
    %v291 = vld [vmem:[#allocation2 + $0x5e8] sm:$0xff]
    %v292 = vld [vmem:[#allocation2 + $0x5f0] sm:$0xff]
    %v293 = vld [vmem:[#allocation2 + $0x5f8] sm:$0xff]
    %v294 = vld [vmem:[#allocation2 + $0x600] sm:$0xff]
    %v295 = vld [vmem:[#allocation2 + $0x608] sm:$0xff]
    %v296 = vld [vmem:[#allocation2 + $0x610] sm:$0xff]
    %v297 = vld [vmem:[#allocation2 + $0x618] sm:$0xff]
    %v298 = vld [vmem:[#allocation2 + $0x620] sm:$0xff]
    %v299 = vld [vmem:[#allocation2 + $0x628] sm:$0xff]
    %v300 = vld [vmem:[#allocation2 + $0x630] sm:$0xff]
    %v301 = vld [vmem:[#allocation2 + $0x638] sm:$0xff]
    %v302 = vld [vmem:[#allocation2 + $0x640] sm:$0xff]
    %v303 = vld [vmem:[#allocation2 + $0x648] sm:$0xff]
    %v304 = vld [vmem:[#allocation2 + $0x650] sm:$0xff]
    %v305 = vld [vmem:[#allocation2 + $0x658] sm:$0xff]
    %v306 = vld [vmem:[#allocation2 + $0x660] sm:$0xff]
    %v307 = vld [vmem:[#allocation2 + $0x668] sm:$0xff]
    %v308 = vld [vmem:[#allocation2 + $0x670] sm:$0xff]
    %v309 = vld [vmem:[#allocation2 + $0x678] sm:$0xff]
    %v310 = vld [vmem:[#allocation2 + $0x680] sm:$0xff]
    %v311 = vld [vmem:[#allocation2 + $0x688] sm:$0xff]
    %v312 = vld [vmem:[#allocation2 + $0x690] sm:$0xff]
    %v313 = vld [vmem:[#allocation2 + $0x698] sm:$0xff]
    %v314 = vld [vmem:[#allocation2 + $0x6a0] sm:$0xff]
    %v315 = vld [vmem:[#allocation2 + $0x6a8] sm:$0xff]
    %v316 = vld [vmem:[#allocation2 + $0x6b0] sm:$0xff]
    %v317 = vld [vmem:[#allocation2 + $0x6b8] sm:$0xff]
    %v318 = vld [vmem:[#allocation2 + $0x6c0] sm:$0xff]
    %v319 = vld [vmem:[#allocation2 + $0x6c8] sm:$0xff]
    %v320 = vld [vmem:[#allocation2 + $0x6d0] sm:$0xff]
    %v321 = vld [vmem:[#allocation2 + $0x6d8] sm:$0xff]
    %v322 = vld [vmem:[#allocation2 + $0x6e0] sm:$0xff]
    %v323 = vld [vmem:[#allocation2 + $0x6e8] sm:$0xff]
    %v324 = vld [vmem:[#allocation2 + $0x6f0] sm:$0xff]
    %v325 = vld [vmem:[#allocation2 + $0x6f8] sm:$0xff]
    %v326 = vld [vmem:[#allocation2 + $0x700] sm:$0xff]
    %v327 = vld [vmem:[#allocation2 + $0x708] sm:$0xff]
    %v328 = vld [vmem:[#allocation2 + $0x710] sm:$0xff]
    %v329 = vld [vmem:[#allocation2 + $0x718] sm:$0xff]
    %v330 = vld [vmem:[#allocation2 + $0x720] sm:$0xff]
    %v331 = vld [vmem:[#allocation2 + $0x728] sm:$0xff]
    %v332 = vld [vmem:[#allocation2 + $0x730] sm:$0xff]
    %v333 = vld [vmem:[#allocation2 + $0x738] sm:$0xff]
    %v334 = vld [vmem:[#allocation2 + $0x740] sm:$0xff]
    %v335 = vld [vmem:[#allocation2 + $0x748] sm:$0xff]
    %v336 = vld [vmem:[#allocation2 + $0x750] sm:$0xff]
    %v337 = vld [vmem:[#allocation2 + $0x758] sm:$0xff]
    %v338 = vld [vmem:[#allocation2 + $0x760] sm:$0xff]
    %v339 = vld [vmem:[#allocation2 + $0x768] sm:$0xff]
    %v340 = vld [vmem:[#allocation2 + $0x770] sm:$0xff]
    %v341 = vld [vmem:[#allocation2 + $0x778] sm:$0xff]
    %v342 = vld [vmem:[#allocation2 + $0x780] sm:$0xff]
    %v343 = vld [vmem:[#allocation2 + $0x788] sm:$0xff]
    %v344 = vld [vmem:[#allocation2 + $0x790] sm:$0xff]
    %v345 = vld [vmem:[#allocation2 + $0x798] sm:$0xff]
    %v346 = vld [vmem:[#allocation2 + $0x7a0] sm:$0xff]
    %v347 = vld [vmem:[#allocation2 + $0x7a8] sm:$0xff]
    %v348 = vld [vmem:[#allocation2 + $0x7b0] sm:$0xff]
    %v349 = vld [vmem:[#allocation2 + $0x7b8] sm:$0xff]
    %v350 = vld [vmem:[#allocation2 + $0x7c0] sm:$0xff]
    %v351 = vld [vmem:[#allocation2 + $0x7c8] sm:$0xff]
    %v352 = vld [vmem:[#allocation2 + $0x7d0] sm:$0xff]
    %v353 = vld [vmem:[#allocation2 + $0x7d8] sm:$0xff]
    %v354 = vld [vmem:[#allocation2 + $0x7e0] sm:$0xff]
    %v355 = vld [vmem:[#allocation2 + $0x7e8] sm:$0xff]
    %v356 = vld [vmem:[#allocation2 + $0x7f0] sm:$0xff]
    %v357 = vld [vmem:[#allocation2 + $0x7f8] sm:$0xff]
    %v358 = vld [vmem:[#allocation6] ss:$8 sm:$0xf]
    %v360 = vperm.slane %v358, 0
    %v361 = vperm.slane %v358, 1
    %v362 = vperm.slane %v358, 2
    %v363 = vperm.slane %v358, 3
    %v624 = vunpack.c.l.b16 %v102
    %v625 = vunpack.c.h.b16 %v102
    %v626 = vunpack.c.l.b16 %v103
    %v627 = vunpack.c.h.b16 %v103
    %v628 = vunpack.c.l.b16 %v104
    %v629 = vunpack.c.h.b16 %v104
    %v630 = vunpack.c.l.b16 %v105
    %v631 = vunpack.c.h.b16 %v105
    %v632 = vunpack.c.l.b16 %v106
    %v633 = vunpack.c.h.b16 %v106
    %v634 = vunpack.c.l.b16 %v107
    %v635 = vunpack.c.h.b16 %v107
    %v636 = vunpack.c.l.b16 %v108
    %v637 = vunpack.c.h.b16 %v108
    %v638 = vunpack.c.l.b16 %v109
    %v639 = vunpack.c.h.b16 %v109
    %v640 = vunpack.c.l.b16 %v110
    %v641 = vunpack.c.h.b16 %v110
    %v642 = vunpack.c.l.b16 %v111
    %v643 = vunpack.c.h.b16 %v111
    %v644 = vunpack.c.l.b16 %v112
    %v645 = vunpack.c.h.b16 %v112
    %v646 = vunpack.c.l.b16 %v113
    %v647 = vunpack.c.h.b16 %v113
    %v648 = vunpack.c.l.b16 %v114
    %v649 = vunpack.c.h.b16 %v114
    %v650 = vunpack.c.l.b16 %v115
    %v651 = vunpack.c.h.b16 %v115
    %v652 = vunpack.c.l.b16 %v116
    %v653 = vunpack.c.h.b16 %v116
    %v654 = vunpack.c.l.b16 %v117
    %v655 = vunpack.c.h.b16 %v117
    %v656 = vunpack.c.l.b16 %v118
    %v657 = vunpack.c.h.b16 %v118
    %v658 = vunpack.c.l.b16 %v119
    %v659 = vunpack.c.h.b16 %v119
    %v660 = vunpack.c.l.b16 %v120
    %v661 = vunpack.c.h.b16 %v120
    %v662 = vunpack.c.l.b16 %v121
    %v663 = vunpack.c.h.b16 %v121
    %v664 = vunpack.c.l.b16 %v122
    %v665 = vunpack.c.h.b16 %v122
    %v666 = vunpack.c.l.b16 %v123
    %v667 = vunpack.c.h.b16 %v123
    %v668 = vunpack.c.l.b16 %v124
    %v669 = vunpack.c.h.b16 %v124
    %v670 = vunpack.c.l.b16 %v125
    %v671 = vunpack.c.h.b16 %v125
    %v672 = vunpack.c.l.b16 %v126
    %v673 = vunpack.c.h.b16 %v126
    %v674 = vunpack.c.l.b16 %v127
    %v675 = vunpack.c.h.b16 %v127
    %v676 = vunpack.c.l.b16 %v128
    %v677 = vunpack.c.h.b16 %v128
    %v678 = vunpack.c.l.b16 %v129
    %v679 = vunpack.c.h.b16 %v129
    %v680 = vunpack.c.l.b16 %v130
    %v681 = vunpack.c.h.b16 %v130
    %v682 = vunpack.c.l.b16 %v131
    %v683 = vunpack.c.h.b16 %v131
    %v684 = vunpack.c.l.b16 %v132
    %v685 = vunpack.c.h.b16 %v132
    %v686 = vunpack.c.l.b16 %v133
    %v687 = vunpack.c.h.b16 %v133
    %v688 = vunpack.c.l.b16 %v134
    %v689 = vunpack.c.h.b16 %v134
    %v690 = vunpack.c.l.b16 %v135
    %v691 = vunpack.c.h.b16 %v135
    %v692 = vunpack.c.l.b16 %v136
    %v693 = vunpack.c.h.b16 %v136
    %v694 = vunpack.c.l.b16 %v137
    %v695 = vunpack.c.h.b16 %v137
    %v696 = vunpack.c.l.b16 %v138
    %v697 = vunpack.c.h.b16 %v138
    %v698 = vunpack.c.l.b16 %v139
    %v699 = vunpack.c.h.b16 %v139
    %v700 = vunpack.c.l.b16 %v140
    %v701 = vunpack.c.h.b16 %v140
    %v702 = vunpack.c.l.b16 %v141
    %v703 = vunpack.c.h.b16 %v141
    %v704 = vunpack.c.l.b16 %v142
    %v705 = vunpack.c.h.b16 %v142
    %v706 = vunpack.c.l.b16 %v143
    %v707 = vunpack.c.h.b16 %v143
    %v708 = vunpack.c.l.b16 %v144
    %v709 = vunpack.c.h.b16 %v144
    %v710 = vunpack.c.l.b16 %v145
    %v711 = vunpack.c.h.b16 %v145
    %v712 = vunpack.c.l.b16 %v146
    %v713 = vunpack.c.h.b16 %v146
    %v714 = vunpack.c.l.b16 %v147
    %v715 = vunpack.c.h.b16 %v147
    %v716 = vunpack.c.l.b16 %v148
    %v717 = vunpack.c.h.b16 %v148
    %v718 = vunpack.c.l.b16 %v149
    %v719 = vunpack.c.h.b16 %v149
    %v720 = vunpack.c.l.b16 %v150
    %v721 = vunpack.c.h.b16 %v150
    %v722 = vunpack.c.l.b16 %v151
    %v723 = vunpack.c.h.b16 %v151
    %v724 = vunpack.c.l.b16 %v152
    %v725 = vunpack.c.h.b16 %v152
    %v726 = vunpack.c.l.b16 %v153
    %v727 = vunpack.c.h.b16 %v153
    %v728 = vunpack.c.l.b16 %v154
    %v729 = vunpack.c.h.b16 %v154
    %v730 = vunpack.c.l.b16 %v155
    %v731 = vunpack.c.h.b16 %v155
    %v732 = vunpack.c.l.b16 %v156
    %v733 = vunpack.c.h.b16 %v156
    %v734 = vunpack.c.l.b16 %v157
    %v735 = vunpack.c.h.b16 %v157
    %v736 = vunpack.c.l.b16 %v158
    %v737 = vunpack.c.h.b16 %v158
    %v738 = vunpack.c.l.b16 %v159
    %v739 = vunpack.c.h.b16 %v159
    %v740 = vunpack.c.l.b16 %v160
    %v741 = vunpack.c.h.b16 %v160
    %v742 = vunpack.c.l.b16 %v161
    %v743 = vunpack.c.h.b16 %v161
    %v744 = vunpack.c.l.b16 %v162
    %v745 = vunpack.c.h.b16 %v162
    %v746 = vunpack.c.l.b16 %v163
    %v747 = vunpack.c.h.b16 %v163
    %v748 = vunpack.c.l.b16 %v164
    %v749 = vunpack.c.h.b16 %v164
    %v750 = vunpack.c.l.b16 %v165
    %v751 = vunpack.c.h.b16 %v165
    %v752 = vunpack.c.l.b16 %v166
    %v753 = vunpack.c.h.b16 %v166
    %v754 = vunpack.c.l.b16 %v167
    %v755 = vunpack.c.h.b16 %v167
    %v756 = vunpack.c.l.b16 %v168
    %v757 = vunpack.c.h.b16 %v168
    %v758 = vunpack.c.l.b16 %v169
    %v759 = vunpack.c.h.b16 %v169
    %v760 = vunpack.c.l.b16 %v170
    %v761 = vunpack.c.h.b16 %v170
    %v762 = vunpack.c.l.b16 %v171
    %v763 = vunpack.c.h.b16 %v171
    %v764 = vunpack.c.l.b16 %v172
    %v765 = vunpack.c.h.b16 %v172
    %v766 = vunpack.c.l.b16 %v173
    %v767 = vunpack.c.h.b16 %v173
    %v768 = vunpack.c.l.b16 %v174
    %v769 = vunpack.c.h.b16 %v174
    %v770 = vunpack.c.l.b16 %v175
    %v771 = vunpack.c.h.b16 %v175
    %v772 = vunpack.c.l.b16 %v176
    %v773 = vunpack.c.h.b16 %v176
    %v774 = vunpack.c.l.b16 %v177
    %v775 = vunpack.c.h.b16 %v177
    %v776 = vunpack.c.l.b16 %v178
    %v777 = vunpack.c.h.b16 %v178
    %v778 = vunpack.c.l.b16 %v179
    %v779 = vunpack.c.h.b16 %v179
    %v780 = vunpack.c.l.b16 %v180
    %v781 = vunpack.c.h.b16 %v180
    %v782 = vunpack.c.l.b16 %v181
    %v783 = vunpack.c.h.b16 %v181
    %v784 = vunpack.c.l.b16 %v182
    %v785 = vunpack.c.h.b16 %v182
    %v786 = vunpack.c.l.b16 %v183
    %v787 = vunpack.c.h.b16 %v183
    %v788 = vunpack.c.l.b16 %v184
    %v789 = vunpack.c.h.b16 %v184
    %v790 = vunpack.c.l.b16 %v185
    %v791 = vunpack.c.h.b16 %v185
    %v792 = vunpack.c.l.b16 %v186
    %v793 = vunpack.c.h.b16 %v186
    %v794 = vunpack.c.l.b16 %v187
    %v795 = vunpack.c.h.b16 %v187
    %v796 = vunpack.c.l.b16 %v188
    %v797 = vunpack.c.h.b16 %v188
    %v798 = vunpack.c.l.b16 %v189
    %v799 = vunpack.c.h.b16 %v189
    %v800 = vunpack.c.l.b16 %v190
    %v801 = vunpack.c.h.b16 %v190
    %v802 = vunpack.c.l.b16 %v191
    %v803 = vunpack.c.h.b16 %v191
    %v804 = vunpack.c.l.b16 %v192
    %v805 = vunpack.c.h.b16 %v192
    %v806 = vunpack.c.l.b16 %v193
    %v807 = vunpack.c.h.b16 %v193
    %v808 = vunpack.c.l.b16 %v194
    %v809 = vunpack.c.h.b16 %v194
    %v810 = vunpack.c.l.b16 %v195
    %v811 = vunpack.c.h.b16 %v195
    %v812 = vunpack.c.l.b16 %v196
    %v813 = vunpack.c.h.b16 %v196
    %v814 = vunpack.c.l.b16 %v197
    %v815 = vunpack.c.h.b16 %v197
    %v816 = vunpack.c.l.b16 %v198
    %v817 = vunpack.c.h.b16 %v198
    %v818 = vunpack.c.l.b16 %v199
    %v819 = vunpack.c.h.b16 %v199
    %v820 = vunpack.c.l.b16 %v200
    %v821 = vunpack.c.h.b16 %v200
    %v822 = vunpack.c.l.b16 %v201
    %v823 = vunpack.c.h.b16 %v201
    %v824 = vunpack.c.l.b16 %v202
    %v825 = vunpack.c.h.b16 %v202
    %v826 = vunpack.c.l.b16 %v203
    %v827 = vunpack.c.h.b16 %v203
    %v828 = vunpack.c.l.b16 %v204
    %v829 = vunpack.c.h.b16 %v204
    %v830 = vunpack.c.l.b16 %v205
    %v831 = vunpack.c.h.b16 %v205
    %v832 = vunpack.c.l.b16 %v206
    %v833 = vunpack.c.h.b16 %v206
    %v834 = vunpack.c.l.b16 %v207
    %v835 = vunpack.c.h.b16 %v207
    %v836 = vunpack.c.l.b16 %v208
    %v837 = vunpack.c.h.b16 %v208
    %v838 = vunpack.c.l.b16 %v209
    %v839 = vunpack.c.h.b16 %v209
    %v840 = vunpack.c.l.b16 %v210
    %v841 = vunpack.c.h.b16 %v210
    %v842 = vunpack.c.l.b16 %v211
    %v843 = vunpack.c.h.b16 %v211
    %v844 = vunpack.c.l.b16 %v212
    %v845 = vunpack.c.h.b16 %v212
    %v846 = vunpack.c.l.b16 %v213
    %v847 = vunpack.c.h.b16 %v213
    %v848 = vunpack.c.l.b16 %v214
    %v849 = vunpack.c.h.b16 %v214
    %v850 = vunpack.c.l.b16 %v215
    %v851 = vunpack.c.h.b16 %v215
    %v852 = vunpack.c.l.b16 %v216
    %v853 = vunpack.c.h.b16 %v216
    %v854 = vunpack.c.l.b16 %v217
    %v855 = vunpack.c.h.b16 %v217
    %v856 = vunpack.c.l.b16 %v218
    %v857 = vunpack.c.h.b16 %v218
    %v858 = vunpack.c.l.b16 %v219
    %v859 = vunpack.c.h.b16 %v219
    %v860 = vunpack.c.l.b16 %v220
    %v861 = vunpack.c.h.b16 %v220
    %v862 = vunpack.c.l.b16 %v221
    %v863 = vunpack.c.h.b16 %v221
    %v864 = vunpack.c.l.b16 %v222
    %v865 = vunpack.c.h.b16 %v222
    %v866 = vunpack.c.l.b16 %v223
    %v867 = vunpack.c.h.b16 %v223
    %v868 = vunpack.c.l.b16 %v224
    %v869 = vunpack.c.h.b16 %v224
    %v870 = vunpack.c.l.b16 %v225
    %v871 = vunpack.c.h.b16 %v225
    %v872 = vunpack.c.l.b16 %v226
    %v873 = vunpack.c.h.b16 %v226
    %v874 = vunpack.c.l.b16 %v227
    %v875 = vunpack.c.h.b16 %v227
    %v876 = vunpack.c.l.b16 %v228
    %v877 = vunpack.c.h.b16 %v228
    %v878 = vunpack.c.l.b16 %v229
    %v879 = vunpack.c.h.b16 %v229
    %v880 = vunpack.c.l.b16 %v230
    %v881 = vunpack.c.h.b16 %v230
    %v882 = vunpack.c.l.b16 %v231
    %v883 = vunpack.c.h.b16 %v231
    %v884 = vunpack.c.l.b16 %v232
    %v885 = vunpack.c.h.b16 %v232
    %v886 = vunpack.c.l.b16 %v233
    %v887 = vunpack.c.h.b16 %v233
    %v888 = vunpack.c.l.b16 %v234
    %v889 = vunpack.c.h.b16 %v234
    %v890 = vunpack.c.l.b16 %v235
    %v891 = vunpack.c.h.b16 %v235
    %v892 = vunpack.c.l.b16 %v236
    %v893 = vunpack.c.h.b16 %v236
    %v894 = vunpack.c.l.b16 %v237
    %v895 = vunpack.c.h.b16 %v237
    %v896 = vunpack.c.l.b16 %v238
    %v897 = vunpack.c.h.b16 %v238
    %v898 = vunpack.c.l.b16 %v239
    %v899 = vunpack.c.h.b16 %v239
    %v900 = vunpack.c.l.b16 %v240
    %v901 = vunpack.c.h.b16 %v240
    %v902 = vunpack.c.l.b16 %v241
    %v903 = vunpack.c.h.b16 %v241
    %v904 = vunpack.c.l.b16 %v242
    %v905 = vunpack.c.h.b16 %v242
    %v906 = vunpack.c.l.b16 %v243
    %v907 = vunpack.c.h.b16 %v243
    %v908 = vunpack.c.l.b16 %v244
    %v909 = vunpack.c.h.b16 %v244
    %v910 = vunpack.c.l.b16 %v245
    %v911 = vunpack.c.h.b16 %v245
    %v912 = vunpack.c.l.b16 %v246
    %v913 = vunpack.c.h.b16 %v246
    %v914 = vunpack.c.l.b16 %v247
    %v915 = vunpack.c.h.b16 %v247
    %v916 = vunpack.c.l.b16 %v248
    %v917 = vunpack.c.h.b16 %v248
    %v918 = vunpack.c.l.b16 %v249
    %v919 = vunpack.c.h.b16 %v249
    %v920 = vunpack.c.l.b16 %v250
    %v921 = vunpack.c.h.b16 %v250
    %v922 = vunpack.c.l.b16 %v251
    %v923 = vunpack.c.h.b16 %v251
    %v924 = vunpack.c.l.b16 %v252
    %v925 = vunpack.c.h.b16 %v252
    %v926 = vunpack.c.l.b16 %v253
    %v927 = vunpack.c.h.b16 %v253
    %v928 = vunpack.c.l.b16 %v254
    %v929 = vunpack.c.h.b16 %v254
    %v930 = vunpack.c.l.b16 %v255
    %v931 = vunpack.c.h.b16 %v255
    %v932 = vunpack.c.l.b16 %v256
    %v933 = vunpack.c.h.b16 %v256
    %v934 = vunpack.c.l.b16 %v257
    %v935 = vunpack.c.h.b16 %v257
    %v936 = vunpack.c.l.b16 %v258
    %v937 = vunpack.c.h.b16 %v258
    %v938 = vunpack.c.l.b16 %v259
    %v939 = vunpack.c.h.b16 %v259
    %v940 = vunpack.c.l.b16 %v260
    %v941 = vunpack.c.h.b16 %v260
    %v942 = vunpack.c.l.b16 %v261
    %v943 = vunpack.c.h.b16 %v261
    %v944 = vunpack.c.l.b16 %v262
    %v945 = vunpack.c.h.b16 %v262
    %v946 = vunpack.c.l.b16 %v263
    %v947 = vunpack.c.h.b16 %v263
    %v948 = vunpack.c.l.b16 %v264
    %v949 = vunpack.c.h.b16 %v264
    %v950 = vunpack.c.l.b16 %v265
    %v951 = vunpack.c.h.b16 %v265
    %v952 = vunpack.c.l.b16 %v266
    %v953 = vunpack.c.h.b16 %v266
    %v954 = vunpack.c.l.b16 %v267
    %v955 = vunpack.c.h.b16 %v267
    %v956 = vunpack.c.l.b16 %v268
    %v957 = vunpack.c.h.b16 %v268
    %v958 = vunpack.c.l.b16 %v269
    %v959 = vunpack.c.h.b16 %v269
    %v960 = vunpack.c.l.b16 %v270
    %v961 = vunpack.c.h.b16 %v270
    %v962 = vunpack.c.l.b16 %v271
    %v963 = vunpack.c.h.b16 %v271
    %v964 = vunpack.c.l.b16 %v272
    %v965 = vunpack.c.h.b16 %v272
    %v966 = vunpack.c.l.b16 %v273
    %v967 = vunpack.c.h.b16 %v273
    %v968 = vunpack.c.l.b16 %v274
    %v969 = vunpack.c.h.b16 %v274
    %v970 = vunpack.c.l.b16 %v275
    %v971 = vunpack.c.h.b16 %v275
    %v972 = vunpack.c.l.b16 %v276
    %v973 = vunpack.c.h.b16 %v276
    %v974 = vunpack.c.l.b16 %v277
    %v975 = vunpack.c.h.b16 %v277
    %v976 = vunpack.c.l.b16 %v278
    %v977 = vunpack.c.h.b16 %v278
    %v978 = vunpack.c.l.b16 %v279
    %v979 = vunpack.c.h.b16 %v279
    %v980 = vunpack.c.l.b16 %v280
    %v981 = vunpack.c.h.b16 %v280
    %v982 = vunpack.c.l.b16 %v281
    %v983 = vunpack.c.h.b16 %v281
    %v984 = vunpack.c.l.b16 %v282
    %v985 = vunpack.c.h.b16 %v282
    %v986 = vunpack.c.l.b16 %v283
    %v987 = vunpack.c.h.b16 %v283
    %v988 = vunpack.c.l.b16 %v284
    %v989 = vunpack.c.h.b16 %v284
    %v990 = vunpack.c.l.b16 %v285
    %v991 = vunpack.c.h.b16 %v285
    %v992 = vunpack.c.l.b16 %v286
    %v993 = vunpack.c.h.b16 %v286
    %v994 = vunpack.c.l.b16 %v287
    %v995 = vunpack.c.h.b16 %v287
    %v996 = vunpack.c.l.b16 %v288
    %v997 = vunpack.c.h.b16 %v288
    %v998 = vunpack.c.l.b16 %v289
    %v999 = vunpack.c.h.b16 %v289
    %v1000 = vunpack.c.l.b16 %v290
    %v1001 = vunpack.c.h.b16 %v290
    %v1002 = vunpack.c.l.b16 %v291
    %v1003 = vunpack.c.h.b16 %v291
    %v1004 = vunpack.c.l.b16 %v292
    %v1005 = vunpack.c.h.b16 %v292
    %v1006 = vunpack.c.l.b16 %v293
    %v1007 = vunpack.c.h.b16 %v293
    %v1008 = vunpack.c.l.b16 %v294
    %v1009 = vunpack.c.h.b16 %v294
    %v1010 = vunpack.c.l.b16 %v295
    %v1011 = vunpack.c.h.b16 %v295
    %v1012 = vunpack.c.l.b16 %v296
    %v1013 = vunpack.c.h.b16 %v296
    %v1014 = vunpack.c.l.b16 %v297
    %v1015 = vunpack.c.h.b16 %v297
    %v1016 = vunpack.c.l.b16 %v298
    %v1017 = vunpack.c.h.b16 %v298
    %v1018 = vunpack.c.l.b16 %v299
    %v1019 = vunpack.c.h.b16 %v299
    %v1020 = vunpack.c.l.b16 %v300
    %v1021 = vunpack.c.h.b16 %v300
    %v1022 = vunpack.c.l.b16 %v301
    %v1023 = vunpack.c.h.b16 %v301
    %v1024 = vunpack.c.l.b16 %v302
    %v1025 = vunpack.c.h.b16 %v302
    %v1026 = vunpack.c.l.b16 %v303
    %v1027 = vunpack.c.h.b16 %v303
    %v1028 = vunpack.c.l.b16 %v304
    %v1029 = vunpack.c.h.b16 %v304
    %v1030 = vunpack.c.l.b16 %v305
    %v1031 = vunpack.c.h.b16 %v305
    %v1032 = vunpack.c.l.b16 %v306
    %v1033 = vunpack.c.h.b16 %v306
    %v1034 = vunpack.c.l.b16 %v307
    %v1035 = vunpack.c.h.b16 %v307
    %v1036 = vunpack.c.l.b16 %v308
    %v1037 = vunpack.c.h.b16 %v308
    %v1038 = vunpack.c.l.b16 %v309
    %v1039 = vunpack.c.h.b16 %v309
    %v1040 = vunpack.c.l.b16 %v310
    %v1041 = vunpack.c.h.b16 %v310
    %v1042 = vunpack.c.l.b16 %v311
    %v1043 = vunpack.c.h.b16 %v311
    %v1044 = vunpack.c.l.b16 %v312
    %v1045 = vunpack.c.h.b16 %v312
    %v1046 = vunpack.c.l.b16 %v313
    %v1047 = vunpack.c.h.b16 %v313
    %v1048 = vunpack.c.l.b16 %v314
    %v1049 = vunpack.c.h.b16 %v314
    %v1050 = vunpack.c.l.b16 %v315
    %v1051 = vunpack.c.h.b16 %v315
    %v1052 = vunpack.c.l.b16 %v316
    %v1053 = vunpack.c.h.b16 %v316
    %v1054 = vunpack.c.l.b16 %v317
    %v1055 = vunpack.c.h.b16 %v317
    %v1056 = vunpack.c.l.b16 %v318
    %v1057 = vunpack.c.h.b16 %v318
    %v1058 = vunpack.c.l.b16 %v319
    %v1059 = vunpack.c.h.b16 %v319
    %v1060 = vunpack.c.l.b16 %v320
    %v1061 = vunpack.c.h.b16 %v320
    %v1062 = vunpack.c.l.b16 %v321
    %v1063 = vunpack.c.h.b16 %v321
    %v1064 = vunpack.c.l.b16 %v322
    %v1065 = vunpack.c.h.b16 %v322
    %v1066 = vunpack.c.l.b16 %v323
    %v1067 = vunpack.c.h.b16 %v323
    %v1068 = vunpack.c.l.b16 %v324
    %v1069 = vunpack.c.h.b16 %v324
    %v1070 = vunpack.c.l.b16 %v325
    %v1071 = vunpack.c.h.b16 %v325
    %v1072 = vunpack.c.l.b16 %v326
    %v1073 = vunpack.c.h.b16 %v326
    %v1074 = vunpack.c.l.b16 %v327
    %v1075 = vunpack.c.h.b16 %v327
    %v1076 = vunpack.c.l.b16 %v328
    %v1077 = vunpack.c.h.b16 %v328
    %v1078 = vunpack.c.l.b16 %v329
    %v1079 = vunpack.c.h.b16 %v329
    %v1080 = vunpack.c.l.b16 %v330
    %v1081 = vunpack.c.h.b16 %v330
    %v1082 = vunpack.c.l.b16 %v331
    %v1083 = vunpack.c.h.b16 %v331
    %v1084 = vunpack.c.l.b16 %v332
    %v1085 = vunpack.c.h.b16 %v332
    %v1086 = vunpack.c.l.b16 %v333
    %v1087 = vunpack.c.h.b16 %v333
    %v1088 = vunpack.c.l.b16 %v334
    %v1089 = vunpack.c.h.b16 %v334
    %v1090 = vunpack.c.l.b16 %v335
    %v1091 = vunpack.c.h.b16 %v335
    %v1092 = vunpack.c.l.b16 %v336
    %v1093 = vunpack.c.h.b16 %v336
    %v1094 = vunpack.c.l.b16 %v337
    %v1095 = vunpack.c.h.b16 %v337
    %v1096 = vunpack.c.l.b16 %v338
    %v1097 = vunpack.c.h.b16 %v338
    %v1098 = vunpack.c.l.b16 %v339
    %v1099 = vunpack.c.h.b16 %v339
    %v1100 = vunpack.c.l.b16 %v340
    %v1101 = vunpack.c.h.b16 %v340
    %v1102 = vunpack.c.l.b16 %v341
    %v1103 = vunpack.c.h.b16 %v341
    %v1104 = vunpack.c.l.b16 %v342
    %v1105 = vunpack.c.h.b16 %v342
    %v1106 = vunpack.c.l.b16 %v343
    %v1107 = vunpack.c.h.b16 %v343
    %v1108 = vunpack.c.l.b16 %v344
    %v1109 = vunpack.c.h.b16 %v344
    %v1110 = vunpack.c.l.b16 %v345
    %v1111 = vunpack.c.h.b16 %v345
    %v1112 = vunpack.c.l.b16 %v346
    %v1113 = vunpack.c.h.b16 %v346
    %v1114 = vunpack.c.l.b16 %v347
    %v1115 = vunpack.c.h.b16 %v347
    %v1116 = vunpack.c.l.b16 %v348
    %v1117 = vunpack.c.h.b16 %v348
    %v1118 = vunpack.c.l.b16 %v349
    %v1119 = vunpack.c.h.b16 %v349
    %v1120 = vunpack.c.l.b16 %v350
    %v1121 = vunpack.c.h.b16 %v350
    %v1122 = vunpack.c.l.b16 %v351
    %v1123 = vunpack.c.h.b16 %v351
    %v1124 = vunpack.c.l.b16 %v352
    %v1125 = vunpack.c.h.b16 %v352
    %v1126 = vunpack.c.l.b16 %v353
    %v1127 = vunpack.c.h.b16 %v353
    %v1128 = vunpack.c.l.b16 %v354
    %v1129 = vunpack.c.h.b16 %v354
    %v1130 = vunpack.c.l.b16 %v355
    %v1131 = vunpack.c.h.b16 %v355
    %v1132 = vunpack.c.l.b16 %v356
    %v1133 = vunpack.c.h.b16 %v356
    %v1134 = vunpack.c.l.b16 %v357
    %v1135 = vunpack.c.h.b16 %v357
    %v1136 = vpack.c.b16 %v628, %v624
    %v1137 = vpack.c.b16 %v629, %v625
    %v1138 = vpack.c.b16 %v630, %v626
    %v1139 = vpack.c.b16 %v631, %v627
    %v1140 = vpack.c.b16 %v636, %v632
    %v1141 = vpack.c.b16 %v637, %v633
    %v1142 = vpack.c.b16 %v638, %v634
    %v1143 = vpack.c.b16 %v639, %v635
    %v1144 = vpack.c.b16 %v644, %v640
    %v1145 = vpack.c.b16 %v645, %v641
    %v1146 = vpack.c.b16 %v646, %v642
    %v1147 = vpack.c.b16 %v647, %v643
    %v1148 = vpack.c.b16 %v652, %v648
    %v1149 = vpack.c.b16 %v653, %v649
    %v1150 = vpack.c.b16 %v654, %v650
    %v1151 = vpack.c.b16 %v655, %v651
    %v1152 = vpack.c.b16 %v660, %v656
    %v1153 = vpack.c.b16 %v661, %v657
    %v1154 = vpack.c.b16 %v662, %v658
    %v1155 = vpack.c.b16 %v663, %v659
    %v1156 = vpack.c.b16 %v668, %v664
    %v1157 = vpack.c.b16 %v669, %v665
    %v1158 = vpack.c.b16 %v670, %v666
    %v1159 = vpack.c.b16 %v671, %v667
    %v1160 = vpack.c.b16 %v676, %v672
    %v1161 = vpack.c.b16 %v677, %v673
    %v1162 = vpack.c.b16 %v678, %v674
    %v1163 = vpack.c.b16 %v679, %v675
    %v1164 = vpack.c.b16 %v684, %v680
    %v1165 = vpack.c.b16 %v685, %v681
    %v1166 = vpack.c.b16 %v686, %v682
    %v1167 = vpack.c.b16 %v687, %v683
    %v1168 = vpack.c.b16 %v692, %v688
    %v1169 = vpack.c.b16 %v693, %v689
    %v1170 = vpack.c.b16 %v694, %v690
    %v1171 = vpack.c.b16 %v695, %v691
    %v1172 = vpack.c.b16 %v700, %v696
    %v1173 = vpack.c.b16 %v701, %v697
    %v1174 = vpack.c.b16 %v702, %v698
    %v1175 = vpack.c.b16 %v703, %v699
    %v1176 = vpack.c.b16 %v708, %v704
    %v1177 = vpack.c.b16 %v709, %v705
    %v1178 = vpack.c.b16 %v710, %v706
    %v1179 = vpack.c.b16 %v711, %v707
    %v1180 = vpack.c.b16 %v716, %v712
    %v1181 = vpack.c.b16 %v717, %v713
    %v1182 = vpack.c.b16 %v718, %v714
    %v1183 = vpack.c.b16 %v719, %v715
    %v1184 = vpack.c.b16 %v724, %v720
    %v1185 = vpack.c.b16 %v725, %v721
    %v1186 = vpack.c.b16 %v726, %v722
    %v1187 = vpack.c.b16 %v727, %v723
    %v1188 = vpack.c.b16 %v732, %v728
    %v1189 = vpack.c.b16 %v733, %v729
    %v1190 = vpack.c.b16 %v734, %v730
    %v1191 = vpack.c.b16 %v735, %v731
    %v1192 = vpack.c.b16 %v740, %v736
    %v1193 = vpack.c.b16 %v741, %v737
    %v1194 = vpack.c.b16 %v742, %v738
    %v1195 = vpack.c.b16 %v743, %v739
    %v1196 = vpack.c.b16 %v748, %v744
    %v1197 = vpack.c.b16 %v749, %v745
    %v1198 = vpack.c.b16 %v750, %v746
    %v1199 = vpack.c.b16 %v751, %v747
    %v1200 = vpack.c.b16 %v756, %v752
    %v1201 = vpack.c.b16 %v757, %v753
    %v1202 = vpack.c.b16 %v758, %v754
    %v1203 = vpack.c.b16 %v759, %v755
    %v1204 = vpack.c.b16 %v764, %v760
    %v1205 = vpack.c.b16 %v765, %v761
    %v1206 = vpack.c.b16 %v766, %v762
    %v1207 = vpack.c.b16 %v767, %v763
    %v1208 = vpack.c.b16 %v772, %v768
    %v1209 = vpack.c.b16 %v773, %v769
    %v1210 = vpack.c.b16 %v774, %v770
    %v1211 = vpack.c.b16 %v775, %v771
    %v1212 = vpack.c.b16 %v780, %v776
    %v1213 = vpack.c.b16 %v781, %v777
    %v1214 = vpack.c.b16 %v782, %v778
    %v1215 = vpack.c.b16 %v783, %v779
    %v1216 = vpack.c.b16 %v788, %v784
    %v1217 = vpack.c.b16 %v789, %v785
    %v1218 = vpack.c.b16 %v790, %v786
    %v1219 = vpack.c.b16 %v791, %v787
    %v1220 = vpack.c.b16 %v796, %v792
    %v1221 = vpack.c.b16 %v797, %v793
    %v1222 = vpack.c.b16 %v798, %v794
    %v1223 = vpack.c.b16 %v799, %v795
    %v1224 = vpack.c.b16 %v804, %v800
    %v1225 = vpack.c.b16 %v805, %v801
    %v1226 = vpack.c.b16 %v806, %v802
    %v1227 = vpack.c.b16 %v807, %v803
    %v1228 = vpack.c.b16 %v812, %v808
    %v1229 = vpack.c.b16 %v813, %v809
    %v1230 = vpack.c.b16 %v814, %v810
    %v1231 = vpack.c.b16 %v815, %v811
    %v1232 = vpack.c.b16 %v820, %v816
    %v1233 = vpack.c.b16 %v821, %v817
    %v1234 = vpack.c.b16 %v822, %v818
    %v1235 = vpack.c.b16 %v823, %v819
    %v1236 = vpack.c.b16 %v828, %v824
    %v1237 = vpack.c.b16 %v829, %v825
    %v1238 = vpack.c.b16 %v830, %v826
    %v1239 = vpack.c.b16 %v831, %v827
    %v1240 = vpack.c.b16 %v836, %v832
    %v1241 = vpack.c.b16 %v837, %v833
    %v1242 = vpack.c.b16 %v838, %v834
    %v1243 = vpack.c.b16 %v839, %v835
    %v1244 = vpack.c.b16 %v844, %v840
    %v1245 = vpack.c.b16 %v845, %v841
    %v1246 = vpack.c.b16 %v846, %v842
    %v1247 = vpack.c.b16 %v847, %v843
    %v1248 = vpack.c.b16 %v852, %v848
    %v1249 = vpack.c.b16 %v853, %v849
    %v1250 = vpack.c.b16 %v854, %v850
    %v1251 = vpack.c.b16 %v855, %v851
    %v1252 = vpack.c.b16 %v860, %v856
    %v1253 = vpack.c.b16 %v861, %v857
    %v1254 = vpack.c.b16 %v862, %v858
    %v1255 = vpack.c.b16 %v863, %v859
    %v1256 = vpack.c.b16 %v868, %v864
    %v1257 = vpack.c.b16 %v869, %v865
    %v1258 = vpack.c.b16 %v870, %v866
    %v1259 = vpack.c.b16 %v871, %v867
    %v1260 = vpack.c.b16 %v876, %v872
    %v1261 = vpack.c.b16 %v877, %v873
    %v1262 = vpack.c.b16 %v878, %v874
    %v1263 = vpack.c.b16 %v879, %v875
    %v1264 = vpack.c.b16 %v884, %v880
    %v1265 = vpack.c.b16 %v885, %v881
    %v1266 = vpack.c.b16 %v886, %v882
    %v1267 = vpack.c.b16 %v887, %v883
    %v1268 = vpack.c.b16 %v892, %v888
    %v1269 = vpack.c.b16 %v893, %v889
    %v1270 = vpack.c.b16 %v894, %v890
    %v1271 = vpack.c.b16 %v895, %v891
    %v1272 = vpack.c.b16 %v900, %v896
    %v1273 = vpack.c.b16 %v901, %v897
    %v1274 = vpack.c.b16 %v902, %v898
    %v1275 = vpack.c.b16 %v903, %v899
    %v1276 = vpack.c.b16 %v908, %v904
    %v1277 = vpack.c.b16 %v909, %v905
    %v1278 = vpack.c.b16 %v910, %v906
    %v1279 = vpack.c.b16 %v911, %v907
    %v1280 = vpack.c.b16 %v916, %v912
    %v1281 = vpack.c.b16 %v917, %v913
    %v1282 = vpack.c.b16 %v918, %v914
    %v1283 = vpack.c.b16 %v919, %v915
    %v1284 = vpack.c.b16 %v924, %v920
    %v1285 = vpack.c.b16 %v925, %v921
    %v1286 = vpack.c.b16 %v926, %v922
    %v1287 = vpack.c.b16 %v927, %v923
    %v1288 = vpack.c.b16 %v932, %v928
    %v1289 = vpack.c.b16 %v933, %v929
    %v1290 = vpack.c.b16 %v934, %v930
    %v1291 = vpack.c.b16 %v935, %v931
    %v1292 = vpack.c.b16 %v940, %v936
    %v1293 = vpack.c.b16 %v941, %v937
    %v1294 = vpack.c.b16 %v942, %v938
    %v1295 = vpack.c.b16 %v943, %v939
    %v1296 = vpack.c.b16 %v948, %v944
    %v1297 = vpack.c.b16 %v949, %v945
    %v1298 = vpack.c.b16 %v950, %v946
    %v1299 = vpack.c.b16 %v951, %v947
    %v1300 = vpack.c.b16 %v956, %v952
    %v1301 = vpack.c.b16 %v957, %v953
    %v1302 = vpack.c.b16 %v958, %v954
    %v1303 = vpack.c.b16 %v959, %v955
    %v1304 = vpack.c.b16 %v964, %v960
    %v1305 = vpack.c.b16 %v965, %v961
    %v1306 = vpack.c.b16 %v966, %v962
    %v1307 = vpack.c.b16 %v967, %v963
    %v1308 = vpack.c.b16 %v972, %v968
    %v1309 = vpack.c.b16 %v973, %v969
    %v1310 = vpack.c.b16 %v974, %v970
    %v1311 = vpack.c.b16 %v975, %v971
    %v1312 = vpack.c.b16 %v980, %v976
    %v1313 = vpack.c.b16 %v981, %v977
    %v1314 = vpack.c.b16 %v982, %v978
    %v1315 = vpack.c.b16 %v983, %v979
    %v1316 = vpack.c.b16 %v988, %v984
    %v1317 = vpack.c.b16 %v989, %v985
    %v1318 = vpack.c.b16 %v990, %v986
    %v1319 = vpack.c.b16 %v991, %v987
    %v1320 = vpack.c.b16 %v996, %v992
    %v1321 = vpack.c.b16 %v997, %v993
    %v1322 = vpack.c.b16 %v998, %v994
    %v1323 = vpack.c.b16 %v999, %v995
    %v1324 = vpack.c.b16 %v1004, %v1000
    %v1325 = vpack.c.b16 %v1005, %v1001
    %v1326 = vpack.c.b16 %v1006, %v1002
    %v1327 = vpack.c.b16 %v1007, %v1003
    %v1328 = vpack.c.b16 %v1012, %v1008
    %v1329 = vpack.c.b16 %v1013, %v1009
    %v1330 = vpack.c.b16 %v1014, %v1010
    %v1331 = vpack.c.b16 %v1015, %v1011
    %v1332 = vpack.c.b16 %v1020, %v1016
    %v1333 = vpack.c.b16 %v1021, %v1017
    %v1334 = vpack.c.b16 %v1022, %v1018
    %v1335 = vpack.c.b16 %v1023, %v1019
    %v1336 = vpack.c.b16 %v1028, %v1024
    %v1337 = vpack.c.b16 %v1029, %v1025
    %v1338 = vpack.c.b16 %v1030, %v1026
    %v1339 = vpack.c.b16 %v1031, %v1027
    %v1340 = vpack.c.b16 %v1036, %v1032
    %v1341 = vpack.c.b16 %v1037, %v1033
    %v1342 = vpack.c.b16 %v1038, %v1034
    %v1343 = vpack.c.b16 %v1039, %v1035
    %v1344 = vpack.c.b16 %v1044, %v1040
    %v1345 = vpack.c.b16 %v1045, %v1041
    %v1346 = vpack.c.b16 %v1046, %v1042
    %v1347 = vpack.c.b16 %v1047, %v1043
    %v1348 = vpack.c.b16 %v1052, %v1048
    %v1349 = vpack.c.b16 %v1053, %v1049
    %v1350 = vpack.c.b16 %v1054, %v1050
    %v1351 = vpack.c.b16 %v1055, %v1051
    %v1352 = vpack.c.b16 %v1060, %v1056
    %v1353 = vpack.c.b16 %v1061, %v1057
    %v1354 = vpack.c.b16 %v1062, %v1058
    %v1355 = vpack.c.b16 %v1063, %v1059
    %v1356 = vpack.c.b16 %v1068, %v1064
    %v1357 = vpack.c.b16 %v1069, %v1065
    %v1358 = vpack.c.b16 %v1070, %v1066
    %v1359 = vpack.c.b16 %v1071, %v1067
    %v1360 = vpack.c.b16 %v1076, %v1072
    %v1361 = vpack.c.b16 %v1077, %v1073
    %v1362 = vpack.c.b16 %v1078, %v1074
    %v1363 = vpack.c.b16 %v1079, %v1075
    %v1364 = vpack.c.b16 %v1084, %v1080
    %v1365 = vpack.c.b16 %v1085, %v1081
    %v1366 = vpack.c.b16 %v1086, %v1082
    %v1367 = vpack.c.b16 %v1087, %v1083
    %v1368 = vpack.c.b16 %v1092, %v1088
    %v1369 = vpack.c.b16 %v1093, %v1089
    %v1370 = vpack.c.b16 %v1094, %v1090
    %v1371 = vpack.c.b16 %v1095, %v1091
    %v1372 = vpack.c.b16 %v1100, %v1096
    %v1373 = vpack.c.b16 %v1101, %v1097
    %v1374 = vpack.c.b16 %v1102, %v1098
    %v1375 = vpack.c.b16 %v1103, %v1099
    %v1376 = vpack.c.b16 %v1108, %v1104
    %v1377 = vpack.c.b16 %v1109, %v1105
    %v1378 = vpack.c.b16 %v1110, %v1106
    %v1379 = vpack.c.b16 %v1111, %v1107
    %v1380 = vpack.c.b16 %v1116, %v1112
    %v1381 = vpack.c.b16 %v1117, %v1113
    %v1382 = vpack.c.b16 %v1118, %v1114
    %v1383 = vpack.c.b16 %v1119, %v1115
    %v1384 = vpack.c.b16 %v1124, %v1120
    %v1385 = vpack.c.b16 %v1125, %v1121
    %v1386 = vpack.c.b16 %v1126, %v1122
    %v1387 = vpack.c.b16 %v1127, %v1123
    %v1388 = vpack.c.b16 %v1132, %v1128
    %v1389 = vpack.c.b16 %v1133, %v1129
    %v1390 = vpack.c.b16 %v1134, %v1130
    %v1391 = vpack.c.b16 %v1135, %v1131
    %1648 = vmatpush.bf16.msra.mxu0 %v1164
    %1649 = vmatpush.bf16.msra.mxu0 %v1160
    %1650 = vmatpush.bf16.msra.mxu0 %v1156
    %1651 = vmatpush.bf16.msra.mxu0 %v1152
    %1652 = vmatpush.bf16.msra.mxu0 %v1148
    %1653 = vmatpush.bf16.msra.mxu0 %v1144
    %1654 = vmatpush.bf16.msra.mxu0 %v1140
    %1655 = vmatpush.bf16.msra.mxu0 %v1136
    %1656 = vmatmul.bf16.gmra.mxu0 %v94
    %v1657 = vpop.f32.mrf.mxu0
    %v1658 = vadd.f32 %v360, %v1657
    %v1659 = vpop.f32.mrf.mxu0
    %v1660 = vadd.f32 %v360, %v1659
    %1661 = vdwg.mxu0
    %1662 = vmatpush.bf16.msra.mxu0 %v1196
    %1663 = vmatpush.bf16.msra.mxu0 %v1192
    %1664 = vmatpush.bf16.msra.mxu0 %v1188
    %1665 = vmatpush.bf16.msra.mxu0 %v1184
    %1666 = vmatpush.bf16.msra.mxu0 %v1180
    %1667 = vmatpush.bf16.msra.mxu0 %v1176
    %1668 = vmatpush.bf16.msra.mxu0 %v1172
    %1669 = vmatpush.bf16.msra.mxu0 %v1168
    %1670 = vmatmul.bf16.gmra.mxu0 %v95
    %v1671 = vpop.f32.mrf.mxu0
    %v1672 = vadd.f32 %v1658, %v1671
    %v1673 = vpop.f32.mrf.mxu0
    %v1674 = vadd.f32 %v1660, %v1673
    %1675 = vdwg.mxu0
    %1676 = vmatpush.bf16.msra.mxu0 %v1228
    %1677 = vmatpush.bf16.msra.mxu0 %v1224
    %1678 = vmatpush.bf16.msra.mxu0 %v1220
    %1679 = vmatpush.bf16.msra.mxu0 %v1216
    %1680 = vmatpush.bf16.msra.mxu0 %v1212
    %1681 = vmatpush.bf16.msra.mxu0 %v1208
    %1682 = vmatpush.bf16.msra.mxu0 %v1204
    %1683 = vmatpush.bf16.msra.mxu0 %v1200
    %1684 = vmatmul.bf16.gmra.mxu0 %v96
    %v1685 = vpop.f32.mrf.mxu0
    %v1686 = vadd.f32 %v1672, %v1685
    %v1687 = vpop.f32.mrf.mxu0
    %v1688 = vadd.f32 %v1674, %v1687
    %1689 = vdwg.mxu0
    %1690 = vmatpush.bf16.msra.mxu0 %v1260
    %1691 = vmatpush.bf16.msra.mxu0 %v1256
    %1692 = vmatpush.bf16.msra.mxu0 %v1252
    %1693 = vmatpush.bf16.msra.mxu0 %v1248
    %1694 = vmatpush.bf16.msra.mxu0 %v1244
    %1695 = vmatpush.bf16.msra.mxu0 %v1240
    %1696 = vmatpush.bf16.msra.mxu0 %v1236
    %1697 = vmatpush.bf16.msra.mxu0 %v1232
    %1698 = vmatmul.bf16.gmra.mxu0 %v97
    %v1699 = vpop.f32.mrf.mxu0
    %v1700 = vadd.f32 %v1686, %v1699
    %v1701 = vpop.f32.mrf.mxu0
    %v1702 = vadd.f32 %v1688, %v1701
    %1703 = vdwg.mxu0
    %1704 = vmatpush.bf16.msra.mxu0 %v1292
    %1705 = vmatpush.bf16.msra.mxu0 %v1288
    %1706 = vmatpush.bf16.msra.mxu0 %v1284
    %1707 = vmatpush.bf16.msra.mxu0 %v1280
    %1708 = vmatpush.bf16.msra.mxu0 %v1276
    %1709 = vmatpush.bf16.msra.mxu0 %v1272
    %1710 = vmatpush.bf16.msra.mxu0 %v1268
    %1711 = vmatpush.bf16.msra.mxu0 %v1264
    %1712 = vmatmul.bf16.gmra.mxu0 %v98
    %v1713 = vpop.f32.mrf.mxu0
    %v1714 = vadd.f32 %v1700, %v1713
    %v1715 = vpop.f32.mrf.mxu0
    %v1716 = vadd.f32 %v1702, %v1715
    %1717 = vdwg.mxu0
    %1718 = vmatpush.bf16.msra.mxu0 %v1324
    %1719 = vmatpush.bf16.msra.mxu0 %v1320
    %1720 = vmatpush.bf16.msra.mxu0 %v1316
    %1721 = vmatpush.bf16.msra.mxu0 %v1312
    %1722 = vmatpush.bf16.msra.mxu0 %v1308
    %1723 = vmatpush.bf16.msra.mxu0 %v1304
    %1724 = vmatpush.bf16.msra.mxu0 %v1300
    %1725 = vmatpush.bf16.msra.mxu0 %v1296
    %1726 = vmatmul.bf16.gmra.mxu0 %v99
    %v1727 = vpop.f32.mrf.mxu0
    %v1728 = vadd.f32 %v1714, %v1727
    %v1729 = vpop.f32.mrf.mxu0
    %v1730 = vadd.f32 %v1716, %v1729
    %1731 = vdwg.mxu0
    %1732 = vmatpush.bf16.msra.mxu0 %v1356
    %1733 = vmatpush.bf16.msra.mxu0 %v1352
    %1734 = vmatpush.bf16.msra.mxu0 %v1348
    %1735 = vmatpush.bf16.msra.mxu0 %v1344
    %1736 = vmatpush.bf16.msra.mxu0 %v1340
    %1737 = vmatpush.bf16.msra.mxu0 %v1336
    %1738 = vmatpush.bf16.msra.mxu0 %v1332
    %1739 = vmatpush.bf16.msra.mxu0 %v1328
    %1740 = vmatmul.bf16.gmra.mxu0 %v100
    %v1741 = vpop.f32.mrf.mxu0
    %v1742 = vadd.f32 %v1728, %v1741
    %v1743 = vpop.f32.mrf.mxu0
    %v1744 = vadd.f32 %v1730, %v1743
    %1745 = vdwg.mxu0
    %1746 = vmatpush.bf16.msra.mxu0 %v1388
    %1747 = vmatpush.bf16.msra.mxu0 %v1384
    %1748 = vmatpush.bf16.msra.mxu0 %v1380
    %1749 = vmatpush.bf16.msra.mxu0 %v1376
    %1750 = vmatpush.bf16.msra.mxu0 %v1372
    %1751 = vmatpush.bf16.msra.mxu0 %v1368
    %1752 = vmatpush.bf16.msra.mxu0 %v1364
    %1753 = vmatpush.bf16.msra.mxu0 %v1360
    %1754 = vmatmul.bf16.gmra.mxu0 %v101
    %v1755 = vpop.f32.mrf.mxu0
    %v1756 = vadd.f32 %v1742, %v1755
    %v1757 = vpop.f32.mrf.mxu0
    %v1758 = vadd.f32 %v1744, %v1757
    %1759 = vdwg.mxu0
    %1760 = vmatpush.bf16.msra.mxu0 %v1165
    %1761 = vmatpush.bf16.msra.mxu0 %v1161
    %1762 = vmatpush.bf16.msra.mxu0 %v1157
    %1763 = vmatpush.bf16.msra.mxu0 %v1153
    %1764 = vmatpush.bf16.msra.mxu0 %v1149
    %1765 = vmatpush.bf16.msra.mxu0 %v1145
    %1766 = vmatpush.bf16.msra.mxu0 %v1141
    %1767 = vmatpush.bf16.msra.mxu0 %v1137
    %1768 = vmatmul.bf16.gmra.mxu0 %v94
    %v1769 = vpop.f32.mrf.mxu0
    %v1770 = vadd.f32 %v361, %v1769
    %v1771 = vpop.f32.mrf.mxu0
    %v1772 = vadd.f32 %v361, %v1771
    %1773 = vdwg.mxu0
    %1774 = vmatpush.bf16.msra.mxu0 %v1197
    %1775 = vmatpush.bf16.msra.mxu0 %v1193
    %1776 = vmatpush.bf16.msra.mxu0 %v1189
    %1777 = vmatpush.bf16.msra.mxu0 %v1185
    %1778 = vmatpush.bf16.msra.mxu0 %v1181
    %1779 = vmatpush.bf16.msra.mxu0 %v1177
    %1780 = vmatpush.bf16.msra.mxu0 %v1173
    %1781 = vmatpush.bf16.msra.mxu0 %v1169
    %1782 = vmatmul.bf16.gmra.mxu0 %v95
    %v1783 = vpop.f32.mrf.mxu0
    %v1784 = vadd.f32 %v1770, %v1783
    %v1785 = vpop.f32.mrf.mxu0
    %v1786 = vadd.f32 %v1772, %v1785
    %1787 = vdwg.mxu0
    %1788 = vmatpush.bf16.msra.mxu0 %v1229
    %1789 = vmatpush.bf16.msra.mxu0 %v1225
    %1790 = vmatpush.bf16.msra.mxu0 %v1221
    %1791 = vmatpush.bf16.msra.mxu0 %v1217
    %1792 = vmatpush.bf16.msra.mxu0 %v1213
    %1793 = vmatpush.bf16.msra.mxu0 %v1209
    %1794 = vmatpush.bf16.msra.mxu0 %v1205
    %1795 = vmatpush.bf16.msra.mxu0 %v1201
    %1796 = vmatmul.bf16.gmra.mxu0 %v96
    %v1797 = vpop.f32.mrf.mxu0
    %v1798 = vadd.f32 %v1784, %v1797
    %v1799 = vpop.f32.mrf.mxu0
    %v1800 = vadd.f32 %v1786, %v1799
    %1801 = vdwg.mxu0
    %1802 = vmatpush.bf16.msra.mxu0 %v1261
    %1803 = vmatpush.bf16.msra.mxu0 %v1257
    %1804 = vmatpush.bf16.msra.mxu0 %v1253
    %1805 = vmatpush.bf16.msra.mxu0 %v1249
    %1806 = vmatpush.bf16.msra.mxu0 %v1245
    %1807 = vmatpush.bf16.msra.mxu0 %v1241
    %1808 = vmatpush.bf16.msra.mxu0 %v1237
    %1809 = vmatpush.bf16.msra.mxu0 %v1233
    %1810 = vmatmul.bf16.gmra.mxu0 %v97
    %v1811 = vpop.f32.mrf.mxu0
    %v1812 = vadd.f32 %v1798, %v1811
    %v1813 = vpop.f32.mrf.mxu0
    %v1814 = vadd.f32 %v1800, %v1813
    %1815 = vdwg.mxu0
    %1816 = vmatpush.bf16.msra.mxu0 %v1293
    %1817 = vmatpush.bf16.msra.mxu0 %v1289
    %1818 = vmatpush.bf16.msra.mxu0 %v1285
    %1819 = vmatpush.bf16.msra.mxu0 %v1281
    %1820 = vmatpush.bf16.msra.mxu0 %v1277
    %1821 = vmatpush.bf16.msra.mxu0 %v1273
    %1822 = vmatpush.bf16.msra.mxu0 %v1269
    %1823 = vmatpush.bf16.msra.mxu0 %v1265
    %1824 = vmatmul.bf16.gmra.mxu0 %v98
    %v1825 = vpop.f32.mrf.mxu0
    %v1826 = vadd.f32 %v1812, %v1825
    %v1827 = vpop.f32.mrf.mxu0
    %v1828 = vadd.f32 %v1814, %v1827
    %1829 = vdwg.mxu0
    %1830 = vmatpush.bf16.msra.mxu0 %v1325
    %1831 = vmatpush.bf16.msra.mxu0 %v1321
    %1832 = vmatpush.bf16.msra.mxu0 %v1317
    %1833 = vmatpush.bf16.msra.mxu0 %v1313
    %1834 = vmatpush.bf16.msra.mxu0 %v1309
    %1835 = vmatpush.bf16.msra.mxu0 %v1305
    %1836 = vmatpush.bf16.msra.mxu0 %v1301
    %1837 = vmatpush.bf16.msra.mxu0 %v1297
    %1838 = vmatmul.bf16.gmra.mxu0 %v99
    %v1839 = vpop.f32.mrf.mxu0
    %v1840 = vadd.f32 %v1826, %v1839
    %v1841 = vpop.f32.mrf.mxu0
    %v1842 = vadd.f32 %v1828, %v1841
    %1843 = vdwg.mxu0
    %1844 = vmatpush.bf16.msra.mxu0 %v1357
    %1845 = vmatpush.bf16.msra.mxu0 %v1353
    %1846 = vmatpush.bf16.msra.mxu0 %v1349
    %1847 = vmatpush.bf16.msra.mxu0 %v1345
    %1848 = vmatpush.bf16.msra.mxu0 %v1341
    %1849 = vmatpush.bf16.msra.mxu0 %v1337
    %1850 = vmatpush.bf16.msra.mxu0 %v1333
    %1851 = vmatpush.bf16.msra.mxu0 %v1329
    %1852 = vmatmul.bf16.gmra.mxu0 %v100
    %v1853 = vpop.f32.mrf.mxu0
    %v1854 = vadd.f32 %v1840, %v1853
    %v1855 = vpop.f32.mrf.mxu0
    %v1856 = vadd.f32 %v1842, %v1855
    %1857 = vdwg.mxu0
    %1858 = vmatpush.bf16.msra.mxu0 %v1389
    %1859 = vmatpush.bf16.msra.mxu0 %v1385
    %1860 = vmatpush.bf16.msra.mxu0 %v1381
    %1861 = vmatpush.bf16.msra.mxu0 %v1377
    %1862 = vmatpush.bf16.msra.mxu0 %v1373
    %1863 = vmatpush.bf16.msra.mxu0 %v1369
    %1864 = vmatpush.bf16.msra.mxu0 %v1365
    %1865 = vmatpush.bf16.msra.mxu0 %v1361
    %1866 = vmatmul.bf16.gmra.mxu0 %v101
    %v1867 = vpop.f32.mrf.mxu0
    %v1868 = vadd.f32 %v1854, %v1867
    %v1869 = vpop.f32.mrf.mxu0
    %v1870 = vadd.f32 %v1856, %v1869
    %1871 = vdwg.mxu0
    %1872 = vmatpush.bf16.msra.mxu0 %v1166
    %1873 = vmatpush.bf16.msra.mxu0 %v1162
    %1874 = vmatpush.bf16.msra.mxu0 %v1158
    %1875 = vmatpush.bf16.msra.mxu0 %v1154
    %1876 = vmatpush.bf16.msra.mxu0 %v1150
    %1877 = vmatpush.bf16.msra.mxu0 %v1146
    %1878 = vmatpush.bf16.msra.mxu0 %v1142
    %1879 = vmatpush.bf16.msra.mxu0 %v1138
    %1880 = vmatmul.bf16.gmra.mxu0 %v94
    %v1881 = vpop.f32.mrf.mxu0
    %v1882 = vadd.f32 %v362, %v1881
    %v1883 = vpop.f32.mrf.mxu0
    %v1884 = vadd.f32 %v362, %v1883
    %1885 = vdwg.mxu0
    %1886 = vmatpush.bf16.msra.mxu0 %v1198
    %1887 = vmatpush.bf16.msra.mxu0 %v1194
    %1888 = vmatpush.bf16.msra.mxu0 %v1190
    %1889 = vmatpush.bf16.msra.mxu0 %v1186
    %1890 = vmatpush.bf16.msra.mxu0 %v1182
    %1891 = vmatpush.bf16.msra.mxu0 %v1178
    %1892 = vmatpush.bf16.msra.mxu0 %v1174
    %1893 = vmatpush.bf16.msra.mxu0 %v1170
    %1894 = vmatmul.bf16.gmra.mxu0 %v95
    %v1895 = vpop.f32.mrf.mxu0
    %v1896 = vadd.f32 %v1882, %v1895
    %v1897 = vpop.f32.mrf.mxu0
    %v1898 = vadd.f32 %v1884, %v1897
    %1899 = vdwg.mxu0
    %1900 = vmatpush.bf16.msra.mxu0 %v1230
    %1901 = vmatpush.bf16.msra.mxu0 %v1226
    %1902 = vmatpush.bf16.msra.mxu0 %v1222
    %1903 = vmatpush.bf16.msra.mxu0 %v1218
    %1904 = vmatpush.bf16.msra.mxu0 %v1214
    %1905 = vmatpush.bf16.msra.mxu0 %v1210
    %1906 = vmatpush.bf16.msra.mxu0 %v1206
    %1907 = vmatpush.bf16.msra.mxu0 %v1202
    %1908 = vmatmul.bf16.gmra.mxu0 %v96
    %v1909 = vpop.f32.mrf.mxu0
    %v1910 = vadd.f32 %v1896, %v1909
    %v1911 = vpop.f32.mrf.mxu0
    %v1912 = vadd.f32 %v1898, %v1911
    %1913 = vdwg.mxu0
    %1914 = vmatpush.bf16.msra.mxu0 %v1262
    %1915 = vmatpush.bf16.msra.mxu0 %v1258
    %1916 = vmatpush.bf16.msra.mxu0 %v1254
    %1917 = vmatpush.bf16.msra.mxu0 %v1250
    %1918 = vmatpush.bf16.msra.mxu0 %v1246
    %1919 = vmatpush.bf16.msra.mxu0 %v1242
    %1920 = vmatpush.bf16.msra.mxu0 %v1238
    %1921 = vmatpush.bf16.msra.mxu0 %v1234
    %1922 = vmatmul.bf16.gmra.mxu0 %v97
    %v1923 = vpop.f32.mrf.mxu0
    %v1924 = vadd.f32 %v1910, %v1923
    %v1925 = vpop.f32.mrf.mxu0
    %v1926 = vadd.f32 %v1912, %v1925
    %1927 = vdwg.mxu0
    %1928 = vmatpush.bf16.msra.mxu0 %v1294
    %1929 = vmatpush.bf16.msra.mxu0 %v1290
    %1930 = vmatpush.bf16.msra.mxu0 %v1286
    %1931 = vmatpush.bf16.msra.mxu0 %v1282
    %1932 = vmatpush.bf16.msra.mxu0 %v1278
    %1933 = vmatpush.bf16.msra.mxu0 %v1274
    %1934 = vmatpush.bf16.msra.mxu0 %v1270
    %1935 = vmatpush.bf16.msra.mxu0 %v1266
    %1936 = vmatmul.bf16.gmra.mxu0 %v98
    %v1937 = vpop.f32.mrf.mxu0
    %v1938 = vadd.f32 %v1924, %v1937
    %v1939 = vpop.f32.mrf.mxu0
    %v1940 = vadd.f32 %v1926, %v1939
    %1941 = vdwg.mxu0
    %1942 = vmatpush.bf16.msra.mxu0 %v1326
    %1943 = vmatpush.bf16.msra.mxu0 %v1322
    %1944 = vmatpush.bf16.msra.mxu0 %v1318
    %1945 = vmatpush.bf16.msra.mxu0 %v1314
    %1946 = vmatpush.bf16.msra.mxu0 %v1310
    %1947 = vmatpush.bf16.msra.mxu0 %v1306
    %1948 = vmatpush.bf16.msra.mxu0 %v1302
    %1949 = vmatpush.bf16.msra.mxu0 %v1298
    %1950 = vmatmul.bf16.gmra.mxu0 %v99
    %v1951 = vpop.f32.mrf.mxu0
    %v1952 = vadd.f32 %v1938, %v1951
    %v1953 = vpop.f32.mrf.mxu0
    %v1954 = vadd.f32 %v1940, %v1953
    %1955 = vdwg.mxu0
    %1956 = vmatpush.bf16.msra.mxu0 %v1358
    %1957 = vmatpush.bf16.msra.mxu0 %v1354
    %1958 = vmatpush.bf16.msra.mxu0 %v1350
    %1959 = vmatpush.bf16.msra.mxu0 %v1346
    %1960 = vmatpush.bf16.msra.mxu0 %v1342
    %1961 = vmatpush.bf16.msra.mxu0 %v1338
    %1962 = vmatpush.bf16.msra.mxu0 %v1334
    %1963 = vmatpush.bf16.msra.mxu0 %v1330
    %1964 = vmatmul.bf16.gmra.mxu0 %v100
    %v1965 = vpop.f32.mrf.mxu0
    %v1966 = vadd.f32 %v1952, %v1965
    %v1967 = vpop.f32.mrf.mxu0
    %v1968 = vadd.f32 %v1954, %v1967
    %1969 = vdwg.mxu0
    %1970 = vmatpush.bf16.msra.mxu0 %v1390
    %1971 = vmatpush.bf16.msra.mxu0 %v1386
    %1972 = vmatpush.bf16.msra.mxu0 %v1382
    %1973 = vmatpush.bf16.msra.mxu0 %v1378
    %1974 = vmatpush.bf16.msra.mxu0 %v1374
    %1975 = vmatpush.bf16.msra.mxu0 %v1370
    %1976 = vmatpush.bf16.msra.mxu0 %v1366
    %1977 = vmatpush.bf16.msra.mxu0 %v1362
    %1978 = vmatmul.bf16.gmra.mxu0 %v101
    %v1979 = vpop.f32.mrf.mxu0
    %v1980 = vadd.f32 %v1966, %v1979
    %v1981 = vpop.f32.mrf.mxu0
    %v1982 = vadd.f32 %v1968, %v1981
    %1983 = vdwg.mxu0
    %1984 = vmatpush.bf16.msra.mxu0 %v1167
    %1985 = vmatpush.bf16.msra.mxu0 %v1163
    %1986 = vmatpush.bf16.msra.mxu0 %v1159
    %1987 = vmatpush.bf16.msra.mxu0 %v1155
    %1988 = vmatpush.bf16.msra.mxu0 %v1151
    %1989 = vmatpush.bf16.msra.mxu0 %v1147
    %1990 = vmatpush.bf16.msra.mxu0 %v1143
    %1991 = vmatpush.bf16.msra.mxu0 %v1139
    %1992 = vmatmul.bf16.gmra.mxu0 %v94
    %v1993 = vpop.f32.mrf.mxu0
    %v1994 = vadd.f32 %v363, %v1993
    %v1995 = vpop.f32.mrf.mxu0
    %v1996 = vadd.f32 %v363, %v1995
    %1997 = vdwg.mxu0
    %1998 = vmatpush.bf16.msra.mxu0 %v1199
    %1999 = vmatpush.bf16.msra.mxu0 %v1195
    %2000 = vmatpush.bf16.msra.mxu0 %v1191
    %2001 = vmatpush.bf16.msra.mxu0 %v1187
    %2002 = vmatpush.bf16.msra.mxu0 %v1183
    %2003 = vmatpush.bf16.msra.mxu0 %v1179
    %2004 = vmatpush.bf16.msra.mxu0 %v1175
    %2005 = vmatpush.bf16.msra.mxu0 %v1171
    %2006 = vmatmul.bf16.gmra.mxu0 %v95
    %v2007 = vpop.f32.mrf.mxu0
    %v2008 = vadd.f32 %v1994, %v2007
    %v2009 = vpop.f32.mrf.mxu0
    %v2010 = vadd.f32 %v1996, %v2009
    %2011 = vdwg.mxu0
    %2012 = vmatpush.bf16.msra.mxu0 %v1231
    %2013 = vmatpush.bf16.msra.mxu0 %v1227
    %2014 = vmatpush.bf16.msra.mxu0 %v1223
    %2015 = vmatpush.bf16.msra.mxu0 %v1219
    %2016 = vmatpush.bf16.msra.mxu0 %v1215
    %2017 = vmatpush.bf16.msra.mxu0 %v1211
    %2018 = vmatpush.bf16.msra.mxu0 %v1207
    %2019 = vmatpush.bf16.msra.mxu0 %v1203
    %2020 = vmatmul.bf16.gmra.mxu0 %v96
    %v2021 = vpop.f32.mrf.mxu0
    %v2022 = vadd.f32 %v2008, %v2021
    %v2023 = vpop.f32.mrf.mxu0
    %v2024 = vadd.f32 %v2010, %v2023
    %2025 = vdwg.mxu0
    %2026 = vmatpush.bf16.msra.mxu0 %v1263
    %2027 = vmatpush.bf16.msra.mxu0 %v1259
    %2028 = vmatpush.bf16.msra.mxu0 %v1255
    %2029 = vmatpush.bf16.msra.mxu0 %v1251
    %2030 = vmatpush.bf16.msra.mxu0 %v1247
    %2031 = vmatpush.bf16.msra.mxu0 %v1243
    %2032 = vmatpush.bf16.msra.mxu0 %v1239
    %2033 = vmatpush.bf16.msra.mxu0 %v1235
    %2034 = vmatmul.bf16.gmra.mxu0 %v97
    %v2035 = vpop.f32.mrf.mxu0
    %v2036 = vadd.f32 %v2022, %v2035
    %v2037 = vpop.f32.mrf.mxu0
    %v2038 = vadd.f32 %v2024, %v2037
    %2039 = vdwg.mxu0
    %2040 = vmatpush.bf16.msra.mxu0 %v1295
    %2041 = vmatpush.bf16.msra.mxu0 %v1291
    %2042 = vmatpush.bf16.msra.mxu0 %v1287
    %2043 = vmatpush.bf16.msra.mxu0 %v1283
    %2044 = vmatpush.bf16.msra.mxu0 %v1279
    %2045 = vmatpush.bf16.msra.mxu0 %v1275
    %2046 = vmatpush.bf16.msra.mxu0 %v1271
    %2047 = vmatpush.bf16.msra.mxu0 %v1267
    %2048 = vmatmul.bf16.gmra.mxu0 %v98
    %v2049 = vpop.f32.mrf.mxu0
    %v2050 = vadd.f32 %v2036, %v2049
    %v2051 = vpop.f32.mrf.mxu0
    %v2052 = vadd.f32 %v2038, %v2051
    %2053 = vdwg.mxu0
    %2054 = vmatpush.bf16.msra.mxu0 %v1327
    %2055 = vmatpush.bf16.msra.mxu0 %v1323
    %2056 = vmatpush.bf16.msra.mxu0 %v1319
    %2057 = vmatpush.bf16.msra.mxu0 %v1315
    %2058 = vmatpush.bf16.msra.mxu0 %v1311
    %2059 = vmatpush.bf16.msra.mxu0 %v1307
    %2060 = vmatpush.bf16.msra.mxu0 %v1303
    %2061 = vmatpush.bf16.msra.mxu0 %v1299
    %2062 = vmatmul.bf16.gmra.mxu0 %v99
    %v2063 = vpop.f32.mrf.mxu0
    %v2064 = vadd.f32 %v2050, %v2063
    %v2065 = vpop.f32.mrf.mxu0
    %v2066 = vadd.f32 %v2052, %v2065
    %2067 = vdwg.mxu0
    %2068 = vmatpush.bf16.msra.mxu0 %v1359
    %2069 = vmatpush.bf16.msra.mxu0 %v1355
    %2070 = vmatpush.bf16.msra.mxu0 %v1351
    %2071 = vmatpush.bf16.msra.mxu0 %v1347
    %2072 = vmatpush.bf16.msra.mxu0 %v1343
    %2073 = vmatpush.bf16.msra.mxu0 %v1339
    %2074 = vmatpush.bf16.msra.mxu0 %v1335
    %2075 = vmatpush.bf16.msra.mxu0 %v1331
    %2076 = vmatmul.bf16.gmra.mxu0 %v100
    %v2077 = vpop.f32.mrf.mxu0
    %v2078 = vadd.f32 %v2064, %v2077
    %v2079 = vpop.f32.mrf.mxu0
    %v2080 = vadd.f32 %v2066, %v2079
    %2081 = vdwg.mxu0
    %2082 = vmatpush.bf16.msra.mxu0 %v1391
    %2083 = vmatpush.bf16.msra.mxu0 %v1387
    %2084 = vmatpush.bf16.msra.mxu0 %v1383
    %2085 = vmatpush.bf16.msra.mxu0 %v1379
    %2086 = vmatpush.bf16.msra.mxu0 %v1375
    %2087 = vmatpush.bf16.msra.mxu0 %v1371
    %2088 = vmatpush.bf16.msra.mxu0 %v1367
    %2089 = vmatpush.bf16.msra.mxu0 %v1363
    %2090 = vmatmul.bf16.gmra.mxu0 %v101
    %v2091 = vpop.f32.mrf.mxu0
    %v2092 = vadd.f32 %v2078, %v2091
    %v2093 = vpop.f32.mrf.mxu0
    %v2094 = vadd.f32 %v2080, %v2093
    %2095 = vdwg.mxu0
    %v2096 = vmax.f32 %v1756, 0.0
    %v2097 = vmax.f32 %v1868, 0.0
    %v2098 = vmax.f32 %v1980, 0.0
    %v2099 = vmax.f32 %v2092, 0.0
    %v2100 = vmax.f32 %v1758, 0.0
    %v2101 = vmax.f32 %v1870, 0.0
    %v2102 = vmax.f32 %v1982, 0.0
    %v2103 = vmax.f32 %v2094, 0.0
    %s2104 = smul.u32 4, 64
    %s2105 = smul.u32 %s2104, 27
    %s2106 = sshll.u32 %s2105, 4
    %2107 = dma.done %s46, %s2106
    %v2108 = vpack.c.bf16 %v2100, %v2096
    %v2109 = vpack.c.bf16 %v2101, %v2097
    %v2110 = vpack.c.bf16 %v2102, %v2098
    %v2111 = vpack.c.bf16 %v2103, %v2099
    %v2112 = vld [vmem:[#allocation3] sm:$0xff]
    %v2113 = vld [vmem:[#allocation3 + $0x8] sm:$0xff]
    %v2114 = vld [vmem:[#allocation3 + $0x6c] sm:$0xff]
    %v2115 = vld [vmem:[#allocation3 + $0x74] sm:$0xff]
    %v2116 = vld [vmem:[#allocation3 + $0xd8] sm:$0xff]
    %v2117 = vld [vmem:[#allocation3 + $0xe0] sm:$0xff]
    %v2118 = vld [vmem:[#allocation3 + $0x144] sm:$0xff]
    %v2119 = vld [vmem:[#allocation3 + $0x14c] sm:$0xff]
    %v2120 = vld [vmem:[#allocation3 + $0x1b0] sm:$0xff]
    %v2121 = vld [vmem:[#allocation3 + $0x1b8] sm:$0xff]
    %v2122 = vld [vmem:[#allocation3 + $0x21c] sm:$0xff]
    %v2123 = vld [vmem:[#allocation3 + $0x224] sm:$0xff]
    %v2124 = vld [vmem:[#allocation3 + $0x288] sm:$0xff]
    %v2125 = vld [vmem:[#allocation3 + $0x290] sm:$0xff]
    %v2126 = vld [vmem:[#allocation3 + $0x2f4] sm:$0xff]
    %v2127 = vld [vmem:[#allocation3 + $0x2fc] sm:$0xff]
    %v2128 = vld [vmem:[#allocation3 + $0x360] sm:$0xff]
    %v2129 = vld [vmem:[#allocation3 + $0x368] sm:$0xff]
    %v2130 = vld [vmem:[#allocation3 + $0x3cc] sm:$0xff]
    %v2131 = vld [vmem:[#allocation3 + $0x3d4] sm:$0xff]
    %v2132 = vld [vmem:[#allocation3 + $0x438] sm:$0xff]
    %v2133 = vld [vmem:[#allocation3 + $0x440] sm:$0xff]
    %v2134 = vld [vmem:[#allocation3 + $0x4a4] sm:$0xff]
    %v2135 = vld [vmem:[#allocation3 + $0x4ac] sm:$0xff]
    %v2136 = vld [vmem:[#allocation3 + $0x510] sm:$0xff]
    %v2137 = vld [vmem:[#allocation3 + $0x518] sm:$0xff]
    %v2138 = vld [vmem:[#allocation3 + $0x57c] sm:$0xff]
    %v2139 = vld [vmem:[#allocation3 + $0x584] sm:$0xff]
    %v2140 = vld [vmem:[#allocation3 + $0x5e8] sm:$0xff]
    %v2141 = vld [vmem:[#allocation3 + $0x5f0] sm:$0xff]
    %v2142 = vld [vmem:[#allocation3 + $0x654] sm:$0xff]
    %v2143 = vld [vmem:[#allocation3 + $0x65c] sm:$0xff]
    %v2144 = vld [vmem:[#allocation3 + $0x6c0] sm:$0xff]
    %v2145 = vld [vmem:[#allocation3 + $0x6c8] sm:$0xff]
    %v2146 = vld [vmem:[#allocation3 + $0x72c] sm:$0xff]
    %v2147 = vld [vmem:[#allocation3 + $0x734] sm:$0xff]
    %v2148 = vld [vmem:[#allocation3 + $0x798] sm:$0xff]
    %v2149 = vld [vmem:[#allocation3 + $0x7a0] sm:$0xff]
    %v2150 = vld [vmem:[#allocation3 + $0x804] sm:$0xff]
    %v2151 = vld [vmem:[#allocation3 + $0x80c] sm:$0xff]
    %v2152 = vld [vmem:[#allocation3 + $0x870] sm:$0xff]
    %v2153 = vld [vmem:[#allocation3 + $0x878] sm:$0xff]
    %v2154 = vld [vmem:[#allocation3 + $0x8dc] sm:$0xff]
    %v2155 = vld [vmem:[#allocation3 + $0x8e4] sm:$0xff]
    %v2156 = vld [vmem:[#allocation3 + $0x948] sm:$0xff]
    %v2157 = vld [vmem:[#allocation3 + $0x950] sm:$0xff]
    %v2158 = vld [vmem:[#allocation3 + $0x9b4] sm:$0xff]
    %v2159 = vld [vmem:[#allocation3 + $0x9bc] sm:$0xff]
    %v2160 = vld [vmem:[#allocation3 + $0xa20] sm:$0xff]
    %v2161 = vld [vmem:[#allocation3 + $0xa28] sm:$0xff]
    %v2162 = vld [vmem:[#allocation3 + $0xa8c] sm:$0xff]
    %v2163 = vld [vmem:[#allocation3 + $0xa94] sm:$0xff]
    %v2164 = vld [vmem:[#allocation3 + $0xaf8] sm:$0xff]
    %v2165 = vld [vmem:[#allocation3 + $0xb00] sm:$0xff]
    %v2166 = vld [vmem:[#allocation3 + $0xb64] sm:$0xff]
    %v2167 = vld [vmem:[#allocation3 + $0xb6c] sm:$0xff]
    %v2168 = vld [vmem:[#allocation3 + $0xbd0] sm:$0xff]
    %v2169 = vld [vmem:[#allocation3 + $0xbd8] sm:$0xff]
    %v2170 = vld [vmem:[#allocation3 + $0xc3c] sm:$0xff]
    %v2171 = vld [vmem:[#allocation3 + $0xc44] sm:$0xff]
    %v2172 = vld [vmem:[#allocation3 + $0xca8] sm:$0xff]
    %v2173 = vld [vmem:[#allocation3 + $0xcb0] sm:$0xff]
    %v2174 = vld [vmem:[#allocation3 + $0xd14] sm:$0xff]
    %v2175 = vld [vmem:[#allocation3 + $0xd1c] sm:$0xff]
    %v2176 = vld [vmem:[#allocation3 + $0xd80] sm:$0xff]
    %v2177 = vld [vmem:[#allocation3 + $0xd88] sm:$0xff]
    %v2178 = vld [vmem:[#allocation3 + $0xdec] sm:$0xff]
    %v2179 = vld [vmem:[#allocation3 + $0xdf4] sm:$0xff]
    %v2180 = vld [vmem:[#allocation3 + $0xe58] sm:$0xff]
    %v2181 = vld [vmem:[#allocation3 + $0xe60] sm:$0xff]
    %v2182 = vld [vmem:[#allocation3 + $0xec4] sm:$0xff]
    %v2183 = vld [vmem:[#allocation3 + $0xecc] sm:$0xff]
    %v2184 = vld [vmem:[#allocation3 + $0xf30] sm:$0xff]
    %v2185 = vld [vmem:[#allocation3 + $0xf38] sm:$0xff]
    %v2186 = vld [vmem:[#allocation3 + $0xf9c] sm:$0xff]
    %v2187 = vld [vmem:[#allocation3 + $0xfa4] sm:$0xff]
    %v2188 = vld [vmem:[#allocation3 + $0x1008] sm:$0xff]
    %v2189 = vld [vmem:[#allocation3 + $0x1010] sm:$0xff]
    %v2190 = vld [vmem:[#allocation3 + $0x1074] sm:$0xff]
    %v2191 = vld [vmem:[#allocation3 + $0x107c] sm:$0xff]
    %v2192 = vld [vmem:[#allocation3 + $0x10e0] sm:$0xff]
    %v2193 = vld [vmem:[#allocation3 + $0x10e8] sm:$0xff]
    %v2194 = vld [vmem:[#allocation3 + $0x114c] sm:$0xff]
    %v2195 = vld [vmem:[#allocation3 + $0x1154] sm:$0xff]
    %v2196 = vld [vmem:[#allocation3 + $0x11b8] sm:$0xff]
    %v2197 = vld [vmem:[#allocation3 + $0x11c0] sm:$0xff]
    %v2198 = vld [vmem:[#allocation3 + $0x1224] sm:$0xff]
    %v2199 = vld [vmem:[#allocation3 + $0x122c] sm:$0xff]
    %v2200 = vld [vmem:[#allocation3 + $0x1290] sm:$0xff]
    %v2201 = vld [vmem:[#allocation3 + $0x1298] sm:$0xff]
    %v2202 = vld [vmem:[#allocation3 + $0x12fc] sm:$0xff]
    %v2203 = vld [vmem:[#allocation3 + $0x1304] sm:$0xff]
    %v2204 = vld [vmem:[#allocation3 + $0x1368] sm:$0xff]
    %v2205 = vld [vmem:[#allocation3 + $0x1370] sm:$0xff]
    %v2206 = vld [vmem:[#allocation3 + $0x13d4] sm:$0xff]
    %v2207 = vld [vmem:[#allocation3 + $0x13dc] sm:$0xff]
    %v2208 = vld [vmem:[#allocation3 + $0x1440] sm:$0xff]
    %v2209 = vld [vmem:[#allocation3 + $0x1448] sm:$0xff]
    %v2210 = vld [vmem:[#allocation3 + $0x14ac] sm:$0xff]
    %v2211 = vld [vmem:[#allocation3 + $0x14b4] sm:$0xff]
    %v2212 = vld [vmem:[#allocation3 + $0x1518] sm:$0xff]
    %v2213 = vld [vmem:[#allocation3 + $0x1520] sm:$0xff]
    %v2214 = vld [vmem:[#allocation3 + $0x1584] sm:$0xff]
    %v2215 = vld [vmem:[#allocation3 + $0x158c] sm:$0xff]
    %v2216 = vld [vmem:[#allocation3 + $0x15f0] sm:$0xff]
    %v2217 = vld [vmem:[#allocation3 + $0x15f8] sm:$0xff]
    %v2218 = vld [vmem:[#allocation3 + $0x165c] sm:$0xff]
    %v2219 = vld [vmem:[#allocation3 + $0x1664] sm:$0xff]
    %v2220 = vld [vmem:[#allocation3 + $0x16c8] sm:$0xff]
    %v2221 = vld [vmem:[#allocation3 + $0x16d0] sm:$0xff]
    %v2222 = vld [vmem:[#allocation3 + $0x1734] sm:$0xff]
    %v2223 = vld [vmem:[#allocation3 + $0x173c] sm:$0xff]
    %v2224 = vld [vmem:[#allocation3 + $0x17a0] sm:$0xff]
    %v2225 = vld [vmem:[#allocation3 + $0x17a8] sm:$0xff]
    %v2226 = vld [vmem:[#allocation3 + $0x180c] sm:$0xff]
    %v2227 = vld [vmem:[#allocation3 + $0x1814] sm:$0xff]
    %v2228 = vld [vmem:[#allocation3 + $0x1878] sm:$0xff]
    %v2229 = vld [vmem:[#allocation3 + $0x1880] sm:$0xff]
    %v2230 = vld [vmem:[#allocation3 + $0x18e4] sm:$0xff]
    %v2231 = vld [vmem:[#allocation3 + $0x18ec] sm:$0xff]
    %v2232 = vld [vmem:[#allocation3 + $0x1950] sm:$0xff]
    %v2233 = vld [vmem:[#allocation3 + $0x1958] sm:$0xff]
    %v2234 = vld [vmem:[#allocation3 + $0x19bc] sm:$0xff]
    %v2235 = vld [vmem:[#allocation3 + $0x19c4] sm:$0xff]
    %v2236 = vld [vmem:[#allocation3 + $0x1a28] sm:$0xff]
    %v2237 = vld [vmem:[#allocation3 + $0x1a30] sm:$0xff]
    %v2238 = vld [vmem:[#allocation3 + $0x1a94] sm:$0xff]
    %v2239 = vld [vmem:[#allocation3 + $0x1a9c] sm:$0xff]
    %s2240 = scalar_lea.vmem [#allocation6], 1
    %v2241 = vld [vmem:[%s2240] ss:$8 sm:$0xf]
    %v2243 = vperm.slane %v2241, 0
    %v2244 = vperm.slane %v2241, 1
    %v2245 = vperm.slane %v2241, 2
    %v2246 = vperm.slane %v2241, 3
    %v2379 = vunpack.c.l.b16 %v2112
    %v2380 = vunpack.c.h.b16 %v2112
    %v2381 = vunpack.c.l.b16 %v2113
    %v2382 = vunpack.c.h.b16 %v2113
    %v2383 = vunpack.c.l.b16 %v2114
    %v2384 = vunpack.c.h.b16 %v2114
    %v2385 = vunpack.c.l.b16 %v2115
    %v2386 = vunpack.c.h.b16 %v2115
    %v2387 = vunpack.c.l.b16 %v2116
    %v2388 = vunpack.c.h.b16 %v2116
    %v2389 = vunpack.c.l.b16 %v2117
    %v2390 = vunpack.c.h.b16 %v2117
    %v2391 = vunpack.c.l.b16 %v2118
    %v2392 = vunpack.c.h.b16 %v2118
    %v2393 = vunpack.c.l.b16 %v2119
    %v2394 = vunpack.c.h.b16 %v2119
    %v2395 = vunpack.c.l.b16 %v2120
    %v2396 = vunpack.c.h.b16 %v2120
    %v2397 = vunpack.c.l.b16 %v2121
    %v2398 = vunpack.c.h.b16 %v2121
    %v2399 = vunpack.c.l.b16 %v2122
    %v2400 = vunpack.c.h.b16 %v2122
    %v2401 = vunpack.c.l.b16 %v2123
    %v2402 = vunpack.c.h.b16 %v2123
    %v2403 = vunpack.c.l.b16 %v2124
    %v2404 = vunpack.c.h.b16 %v2124
    %v2405 = vunpack.c.l.b16 %v2125
    %v2406 = vunpack.c.h.b16 %v2125
    %v2407 = vunpack.c.l.b16 %v2126
    %v2408 = vunpack.c.h.b16 %v2126
    %v2409 = vunpack.c.l.b16 %v2127
    %v2410 = vunpack.c.h.b16 %v2127
    %v2411 = vunpack.c.l.b16 %v2128
    %v2412 = vunpack.c.h.b16 %v2128
    %v2413 = vunpack.c.l.b16 %v2129
    %v2414 = vunpack.c.h.b16 %v2129
    %v2415 = vunpack.c.l.b16 %v2130
    %v2416 = vunpack.c.h.b16 %v2130
    %v2417 = vunpack.c.l.b16 %v2131
    %v2418 = vunpack.c.h.b16 %v2131
    %v2419 = vunpack.c.l.b16 %v2132
    %v2420 = vunpack.c.h.b16 %v2132
    %v2421 = vunpack.c.l.b16 %v2133
    %v2422 = vunpack.c.h.b16 %v2133
    %v2423 = vunpack.c.l.b16 %v2134
    %v2424 = vunpack.c.h.b16 %v2134
    %v2425 = vunpack.c.l.b16 %v2135
    %v2426 = vunpack.c.h.b16 %v2135
    %v2427 = vunpack.c.l.b16 %v2136
    %v2428 = vunpack.c.h.b16 %v2136
    %v2429 = vunpack.c.l.b16 %v2137
    %v2430 = vunpack.c.h.b16 %v2137
    %v2431 = vunpack.c.l.b16 %v2138
    %v2432 = vunpack.c.h.b16 %v2138
    %v2433 = vunpack.c.l.b16 %v2139
    %v2434 = vunpack.c.h.b16 %v2139
    %v2435 = vunpack.c.l.b16 %v2140
    %v2436 = vunpack.c.h.b16 %v2140
    %v2437 = vunpack.c.l.b16 %v2141
    %v2438 = vunpack.c.h.b16 %v2141
    %v2439 = vunpack.c.l.b16 %v2142
    %v2440 = vunpack.c.h.b16 %v2142
    %v2441 = vunpack.c.l.b16 %v2143
    %v2442 = vunpack.c.h.b16 %v2143
    %v2443 = vunpack.c.l.b16 %v2144
    %v2444 = vunpack.c.h.b16 %v2144
    %v2445 = vunpack.c.l.b16 %v2145
    %v2446 = vunpack.c.h.b16 %v2145
    %v2447 = vunpack.c.l.b16 %v2146
    %v2448 = vunpack.c.h.b16 %v2146
    %v2449 = vunpack.c.l.b16 %v2147
    %v2450 = vunpack.c.h.b16 %v2147
    %v2451 = vunpack.c.l.b16 %v2148
    %v2452 = vunpack.c.h.b16 %v2148
    %v2453 = vunpack.c.l.b16 %v2149
    %v2454 = vunpack.c.h.b16 %v2149
    %v2455 = vunpack.c.l.b16 %v2150
    %v2456 = vunpack.c.h.b16 %v2150
    %v2457 = vunpack.c.l.b16 %v2151
    %v2458 = vunpack.c.h.b16 %v2151
    %v2459 = vunpack.c.l.b16 %v2152
    %v2460 = vunpack.c.h.b16 %v2152
    %v2461 = vunpack.c.l.b16 %v2153
    %v2462 = vunpack.c.h.b16 %v2153
    %v2463 = vunpack.c.l.b16 %v2154
    %v2464 = vunpack.c.h.b16 %v2154
    %v2465 = vunpack.c.l.b16 %v2155
    %v2466 = vunpack.c.h.b16 %v2155
    %v2467 = vunpack.c.l.b16 %v2156
    %v2468 = vunpack.c.h.b16 %v2156
    %v2469 = vunpack.c.l.b16 %v2157
    %v2470 = vunpack.c.h.b16 %v2157
    %v2471 = vunpack.c.l.b16 %v2158
    %v2472 = vunpack.c.h.b16 %v2158
    %v2473 = vunpack.c.l.b16 %v2159
    %v2474 = vunpack.c.h.b16 %v2159
    %v2475 = vunpack.c.l.b16 %v2160
    %v2476 = vunpack.c.h.b16 %v2160
    %v2477 = vunpack.c.l.b16 %v2161
    %v2478 = vunpack.c.h.b16 %v2161
    %v2479 = vunpack.c.l.b16 %v2162
    %v2480 = vunpack.c.h.b16 %v2162
    %v2481 = vunpack.c.l.b16 %v2163
    %v2482 = vunpack.c.h.b16 %v2163
    %v2483 = vunpack.c.l.b16 %v2164
    %v2484 = vunpack.c.h.b16 %v2164
    %v2485 = vunpack.c.l.b16 %v2165
    %v2486 = vunpack.c.h.b16 %v2165
    %v2487 = vunpack.c.l.b16 %v2166
    %v2488 = vunpack.c.h.b16 %v2166
    %v2489 = vunpack.c.l.b16 %v2167
    %v2490 = vunpack.c.h.b16 %v2167
    %v2491 = vunpack.c.l.b16 %v2168
    %v2492 = vunpack.c.h.b16 %v2168
    %v2493 = vunpack.c.l.b16 %v2169
    %v2494 = vunpack.c.h.b16 %v2169
    %v2495 = vunpack.c.l.b16 %v2170
    %v2496 = vunpack.c.h.b16 %v2170
    %v2497 = vunpack.c.l.b16 %v2171
    %v2498 = vunpack.c.h.b16 %v2171
    %v2499 = vunpack.c.l.b16 %v2172
    %v2500 = vunpack.c.h.b16 %v2172
    %v2501 = vunpack.c.l.b16 %v2173
    %v2502 = vunpack.c.h.b16 %v2173
    %v2503 = vunpack.c.l.b16 %v2174
    %v2504 = vunpack.c.h.b16 %v2174
    %v2505 = vunpack.c.l.b16 %v2175
    %v2506 = vunpack.c.h.b16 %v2175
    %v2507 = vunpack.c.l.b16 %v2176
    %v2508 = vunpack.c.h.b16 %v2176
    %v2509 = vunpack.c.l.b16 %v2177
    %v2510 = vunpack.c.h.b16 %v2177
    %v2511 = vunpack.c.l.b16 %v2178
    %v2512 = vunpack.c.h.b16 %v2178
    %v2513 = vunpack.c.l.b16 %v2179
    %v2514 = vunpack.c.h.b16 %v2179
    %v2515 = vunpack.c.l.b16 %v2180
    %v2516 = vunpack.c.h.b16 %v2180
    %v2517 = vunpack.c.l.b16 %v2181
    %v2518 = vunpack.c.h.b16 %v2181
    %v2519 = vunpack.c.l.b16 %v2182
    %v2520 = vunpack.c.h.b16 %v2182
    %v2521 = vunpack.c.l.b16 %v2183
    %v2522 = vunpack.c.h.b16 %v2183
    %v2523 = vunpack.c.l.b16 %v2184
    %v2524 = vunpack.c.h.b16 %v2184
    %v2525 = vunpack.c.l.b16 %v2185
    %v2526 = vunpack.c.h.b16 %v2185
    %v2527 = vunpack.c.l.b16 %v2186
    %v2528 = vunpack.c.h.b16 %v2186
    %v2529 = vunpack.c.l.b16 %v2187
    %v2530 = vunpack.c.h.b16 %v2187
    %v2531 = vunpack.c.l.b16 %v2188
    %v2532 = vunpack.c.h.b16 %v2188
    %v2533 = vunpack.c.l.b16 %v2189
    %v2534 = vunpack.c.h.b16 %v2189
    %v2535 = vunpack.c.l.b16 %v2190
    %v2536 = vunpack.c.h.b16 %v2190
    %v2537 = vunpack.c.l.b16 %v2191
    %v2538 = vunpack.c.h.b16 %v2191
    %v2539 = vunpack.c.l.b16 %v2192
    %v2540 = vunpack.c.h.b16 %v2192
    %v2541 = vunpack.c.l.b16 %v2193
    %v2542 = vunpack.c.h.b16 %v2193
    %v2543 = vunpack.c.l.b16 %v2194
    %v2544 = vunpack.c.h.b16 %v2194
    %v2545 = vunpack.c.l.b16 %v2195
    %v2546 = vunpack.c.h.b16 %v2195
    %v2547 = vunpack.c.l.b16 %v2196
    %v2548 = vunpack.c.h.b16 %v2196
    %v2549 = vunpack.c.l.b16 %v2197
    %v2550 = vunpack.c.h.b16 %v2197
    %v2551 = vunpack.c.l.b16 %v2198
    %v2552 = vunpack.c.h.b16 %v2198
    %v2553 = vunpack.c.l.b16 %v2199
    %v2554 = vunpack.c.h.b16 %v2199
    %v2555 = vunpack.c.l.b16 %v2200
    %v2556 = vunpack.c.h.b16 %v2200
    %v2557 = vunpack.c.l.b16 %v2201
    %v2558 = vunpack.c.h.b16 %v2201
    %v2559 = vunpack.c.l.b16 %v2202
    %v2560 = vunpack.c.h.b16 %v2202
    %v2561 = vunpack.c.l.b16 %v2203
    %v2562 = vunpack.c.h.b16 %v2203
    %v2563 = vunpack.c.l.b16 %v2204
    %v2564 = vunpack.c.h.b16 %v2204
    %v2565 = vunpack.c.l.b16 %v2205
    %v2566 = vunpack.c.h.b16 %v2205
    %v2567 = vunpack.c.l.b16 %v2206
    %v2568 = vunpack.c.h.b16 %v2206
    %v2569 = vunpack.c.l.b16 %v2207
    %v2570 = vunpack.c.h.b16 %v2207
    %v2571 = vunpack.c.l.b16 %v2208
    %v2572 = vunpack.c.h.b16 %v2208
    %v2573 = vunpack.c.l.b16 %v2209
    %v2574 = vunpack.c.h.b16 %v2209
    %v2575 = vunpack.c.l.b16 %v2210
    %v2576 = vunpack.c.h.b16 %v2210
    %v2577 = vunpack.c.l.b16 %v2211
    %v2578 = vunpack.c.h.b16 %v2211
    %v2579 = vunpack.c.l.b16 %v2212
    %v2580 = vunpack.c.h.b16 %v2212
    %v2581 = vunpack.c.l.b16 %v2213
    %v2582 = vunpack.c.h.b16 %v2213
    %v2583 = vunpack.c.l.b16 %v2214
    %v2584 = vunpack.c.h.b16 %v2214
    %v2585 = vunpack.c.l.b16 %v2215
    %v2586 = vunpack.c.h.b16 %v2215
    %v2587 = vunpack.c.l.b16 %v2216
    %v2588 = vunpack.c.h.b16 %v2216
    %v2589 = vunpack.c.l.b16 %v2217
    %v2590 = vunpack.c.h.b16 %v2217
    %v2591 = vunpack.c.l.b16 %v2218
    %v2592 = vunpack.c.h.b16 %v2218
    %v2593 = vunpack.c.l.b16 %v2219
    %v2594 = vunpack.c.h.b16 %v2219
    %v2595 = vunpack.c.l.b16 %v2220
    %v2596 = vunpack.c.h.b16 %v2220
    %v2597 = vunpack.c.l.b16 %v2221
    %v2598 = vunpack.c.h.b16 %v2221
    %v2599 = vunpack.c.l.b16 %v2222
    %v2600 = vunpack.c.h.b16 %v2222
    %v2601 = vunpack.c.l.b16 %v2223
    %v2602 = vunpack.c.h.b16 %v2223
    %v2603 = vunpack.c.l.b16 %v2224
    %v2604 = vunpack.c.h.b16 %v2224
    %v2605 = vunpack.c.l.b16 %v2225
    %v2606 = vunpack.c.h.b16 %v2225
    %v2607 = vunpack.c.l.b16 %v2226
    %v2608 = vunpack.c.h.b16 %v2226
    %v2609 = vunpack.c.l.b16 %v2227
    %v2610 = vunpack.c.h.b16 %v2227
    %v2611 = vunpack.c.l.b16 %v2228
    %v2612 = vunpack.c.h.b16 %v2228
    %v2613 = vunpack.c.l.b16 %v2229
    %v2614 = vunpack.c.h.b16 %v2229
    %v2615 = vunpack.c.l.b16 %v2230
    %v2616 = vunpack.c.h.b16 %v2230
    %v2617 = vunpack.c.l.b16 %v2231
    %v2618 = vunpack.c.h.b16 %v2231
    %v2619 = vunpack.c.l.b16 %v2232
    %v2620 = vunpack.c.h.b16 %v2232
    %v2621 = vunpack.c.l.b16 %v2233
    %v2622 = vunpack.c.h.b16 %v2233
    %v2623 = vunpack.c.l.b16 %v2234
    %v2624 = vunpack.c.h.b16 %v2234
    %v2625 = vunpack.c.l.b16 %v2235
    %v2626 = vunpack.c.h.b16 %v2235
    %v2627 = vunpack.c.l.b16 %v2236
    %v2628 = vunpack.c.h.b16 %v2236
    %v2629 = vunpack.c.l.b16 %v2237
    %v2630 = vunpack.c.h.b16 %v2237
    %v2631 = vunpack.c.l.b16 %v2238
    %v2632 = vunpack.c.h.b16 %v2238
    %v2633 = vunpack.c.l.b16 %v2239
    %v2634 = vunpack.c.h.b16 %v2239
    %v2635 = vpack.c.b16 %v2383, %v2379
    %v2636 = vpack.c.b16 %v2384, %v2380
    %v2637 = vpack.c.b16 %v2385, %v2381
    %v2638 = vpack.c.b16 %v2386, %v2382
    %v2639 = vpack.c.b16 %v2391, %v2387
    %v2640 = vpack.c.b16 %v2392, %v2388
    %v2641 = vpack.c.b16 %v2393, %v2389
    %v2642 = vpack.c.b16 %v2394, %v2390
    %v2643 = vpack.c.b16 %v2399, %v2395
    %v2644 = vpack.c.b16 %v2400, %v2396
    %v2645 = vpack.c.b16 %v2401, %v2397
    %v2646 = vpack.c.b16 %v2402, %v2398
    %v2647 = vpack.c.b16 %v2407, %v2403
    %v2648 = vpack.c.b16 %v2408, %v2404
    %v2649 = vpack.c.b16 %v2409, %v2405
    %v2650 = vpack.c.b16 %v2410, %v2406
    %v2651 = vpack.c.b16 %v2415, %v2411
    %v2652 = vpack.c.b16 %v2416, %v2412
    %v2653 = vpack.c.b16 %v2417, %v2413
    %v2654 = vpack.c.b16 %v2418, %v2414
    %v2655 = vpack.c.b16 %v2423, %v2419
    %v2656 = vpack.c.b16 %v2424, %v2420
    %v2657 = vpack.c.b16 %v2425, %v2421
    %v2658 = vpack.c.b16 %v2426, %v2422
    %v2659 = vpack.c.b16 %v2431, %v2427
    %v2660 = vpack.c.b16 %v2432, %v2428
    %v2661 = vpack.c.b16 %v2433, %v2429
    %v2662 = vpack.c.b16 %v2434, %v2430
    %v2663 = vpack.c.b16 %v2439, %v2435
    %v2664 = vpack.c.b16 %v2440, %v2436
    %v2665 = vpack.c.b16 %v2441, %v2437
    %v2666 = vpack.c.b16 %v2442, %v2438
    %v2667 = vpack.c.b16 %v2447, %v2443
    %v2668 = vpack.c.b16 %v2448, %v2444
    %v2669 = vpack.c.b16 %v2449, %v2445
    %v2670 = vpack.c.b16 %v2450, %v2446
    %v2671 = vpack.c.b16 %v2455, %v2451
    %v2672 = vpack.c.b16 %v2456, %v2452
    %v2673 = vpack.c.b16 %v2457, %v2453
    %v2674 = vpack.c.b16 %v2458, %v2454
    %v2675 = vpack.c.b16 %v2463, %v2459
    %v2676 = vpack.c.b16 %v2464, %v2460
    %v2677 = vpack.c.b16 %v2465, %v2461
    %v2678 = vpack.c.b16 %v2466, %v2462
    %v2679 = vpack.c.b16 %v2471, %v2467
    %v2680 = vpack.c.b16 %v2472, %v2468
    %v2681 = vpack.c.b16 %v2473, %v2469
    %v2682 = vpack.c.b16 %v2474, %v2470
    %v2683 = vpack.c.b16 %v2479, %v2475
    %v2684 = vpack.c.b16 %v2480, %v2476
    %v2685 = vpack.c.b16 %v2481, %v2477
    %v2686 = vpack.c.b16 %v2482, %v2478
    %v2687 = vpack.c.b16 %v2487, %v2483
    %v2688 = vpack.c.b16 %v2488, %v2484
    %v2689 = vpack.c.b16 %v2489, %v2485
    %v2690 = vpack.c.b16 %v2490, %v2486
    %v2691 = vpack.c.b16 %v2495, %v2491
    %v2692 = vpack.c.b16 %v2496, %v2492
    %v2693 = vpack.c.b16 %v2497, %v2493
    %v2694 = vpack.c.b16 %v2498, %v2494
    %v2695 = vpack.c.b16 %v2503, %v2499
    %v2696 = vpack.c.b16 %v2504, %v2500
    %v2697 = vpack.c.b16 %v2505, %v2501
    %v2698 = vpack.c.b16 %v2506, %v2502
    %v2699 = vpack.c.b16 %v2511, %v2507
    %v2700 = vpack.c.b16 %v2512, %v2508
    %v2701 = vpack.c.b16 %v2513, %v2509
    %v2702 = vpack.c.b16 %v2514, %v2510
    %v2703 = vpack.c.b16 %v2519, %v2515
    %v2704 = vpack.c.b16 %v2520, %v2516
    %v2705 = vpack.c.b16 %v2521, %v2517
    %v2706 = vpack.c.b16 %v2522, %v2518
    %v2707 = vpack.c.b16 %v2527, %v2523
    %v2708 = vpack.c.b16 %v2528, %v2524
    %v2709 = vpack.c.b16 %v2529, %v2525
    %v2710 = vpack.c.b16 %v2530, %v2526
    %v2711 = vpack.c.b16 %v2535, %v2531
    %v2712 = vpack.c.b16 %v2536, %v2532
    %v2713 = vpack.c.b16 %v2537, %v2533
    %v2714 = vpack.c.b16 %v2538, %v2534
    %v2715 = vpack.c.b16 %v2543, %v2539
    %v2716 = vpack.c.b16 %v2544, %v2540
    %v2717 = vpack.c.b16 %v2545, %v2541
    %v2718 = vpack.c.b16 %v2546, %v2542
    %v2719 = vpack.c.b16 %v2551, %v2547
    %v2720 = vpack.c.b16 %v2552, %v2548
    %v2721 = vpack.c.b16 %v2553, %v2549
    %v2722 = vpack.c.b16 %v2554, %v2550
    %v2723 = vpack.c.b16 %v2559, %v2555
    %v2724 = vpack.c.b16 %v2560, %v2556
    %v2725 = vpack.c.b16 %v2561, %v2557
    %v2726 = vpack.c.b16 %v2562, %v2558
    %v2727 = vpack.c.b16 %v2567, %v2563
    %v2728 = vpack.c.b16 %v2568, %v2564
    %v2729 = vpack.c.b16 %v2569, %v2565
    %v2730 = vpack.c.b16 %v2570, %v2566
    %v2731 = vpack.c.b16 %v2575, %v2571
    %v2732 = vpack.c.b16 %v2576, %v2572
    %v2733 = vpack.c.b16 %v2577, %v2573
    %v2734 = vpack.c.b16 %v2578, %v2574
    %v2735 = vpack.c.b16 %v2583, %v2579
    %v2736 = vpack.c.b16 %v2584, %v2580
    %v2737 = vpack.c.b16 %v2585, %v2581
    %v2738 = vpack.c.b16 %v2586, %v2582
    %v2739 = vpack.c.b16 %v2591, %v2587
    %v2740 = vpack.c.b16 %v2592, %v2588
    %v2741 = vpack.c.b16 %v2593, %v2589
    %v2742 = vpack.c.b16 %v2594, %v2590
    %v2743 = vpack.c.b16 %v2599, %v2595
    %v2744 = vpack.c.b16 %v2600, %v2596
    %v2745 = vpack.c.b16 %v2601, %v2597
    %v2746 = vpack.c.b16 %v2602, %v2598
    %v2747 = vpack.c.b16 %v2607, %v2603
    %v2748 = vpack.c.b16 %v2608, %v2604
    %v2749 = vpack.c.b16 %v2609, %v2605
    %v2750 = vpack.c.b16 %v2610, %v2606
    %v2751 = vpack.c.b16 %v2615, %v2611
    %v2752 = vpack.c.b16 %v2616, %v2612
    %v2753 = vpack.c.b16 %v2617, %v2613
    %v2754 = vpack.c.b16 %v2618, %v2614
    %v2755 = vpack.c.b16 %v2623, %v2619
    %v2756 = vpack.c.b16 %v2624, %v2620
    %v2757 = vpack.c.b16 %v2625, %v2621
    %v2758 = vpack.c.b16 %v2626, %v2622
    %v2759 = vpack.c.b16 %v2631, %v2627
    %v2760 = vpack.c.b16 %v2632, %v2628
    %v2761 = vpack.c.b16 %v2633, %v2629
    %v2762 = vpack.c.b16 %v2634, %v2630
    %2891 = vmatpush.bf16.msra.mxu0 %v2663
    %2892 = vmatpush.bf16.msra.mxu0 %v2659
    %2893 = vmatpush.bf16.msra.mxu0 %v2655
    %2894 = vmatpush.bf16.msra.mxu0 %v2651
    %2895 = vmatpush.bf16.msra.mxu0 %v2647
    %2896 = vmatpush.bf16.msra.mxu0 %v2643
    %2897 = vmatpush.bf16.msra.mxu0 %v2639
    %2898 = vmatpush.bf16.msra.mxu0 %v2635
    %2899 = vmatmul.bf16.gmra.mxu0 %v2108
    %v2900 = vpop.f32.mrf.mxu0
    %v2901 = vadd.f32 %v2243, %v2900
    %v2902 = vpop.f32.mrf.mxu0
    %v2903 = vadd.f32 %v2243, %v2902
    %2904 = vdwg.mxu0
    %2905 = vmatpush.bf16.msra.mxu0 %v2695
    %2906 = vmatpush.bf16.msra.mxu0 %v2691
    %2907 = vmatpush.bf16.msra.mxu0 %v2687
    %2908 = vmatpush.bf16.msra.mxu0 %v2683
    %2909 = vmatpush.bf16.msra.mxu0 %v2679
    %2910 = vmatpush.bf16.msra.mxu0 %v2675
    %2911 = vmatpush.bf16.msra.mxu0 %v2671
    %2912 = vmatpush.bf16.msra.mxu0 %v2667
    %2913 = vmatmul.bf16.gmra.mxu0 %v2109
    %v2914 = vpop.f32.mrf.mxu0
    %v2915 = vadd.f32 %v2901, %v2914
    %v2916 = vpop.f32.mrf.mxu0
    %v2917 = vadd.f32 %v2903, %v2916
    %2918 = vdwg.mxu0
    %2919 = vmatpush.bf16.msra.mxu0 %v2727
    %2920 = vmatpush.bf16.msra.mxu0 %v2723
    %2921 = vmatpush.bf16.msra.mxu0 %v2719
    %2922 = vmatpush.bf16.msra.mxu0 %v2715
    %2923 = vmatpush.bf16.msra.mxu0 %v2711
    %2924 = vmatpush.bf16.msra.mxu0 %v2707
    %2925 = vmatpush.bf16.msra.mxu0 %v2703
    %2926 = vmatpush.bf16.msra.mxu0 %v2699
    %2927 = vmatmul.bf16.gmra.mxu0 %v2110
    %v2928 = vpop.f32.mrf.mxu0
    %v2929 = vadd.f32 %v2915, %v2928
    %v2930 = vpop.f32.mrf.mxu0
    %v2931 = vadd.f32 %v2917, %v2930
    %2932 = vdwg.mxu0
    %2933 = vmatpush.bf16.msra.mxu0 %v2759
    %2934 = vmatpush.bf16.msra.mxu0 %v2755
    %2935 = vmatpush.bf16.msra.mxu0 %v2751
    %2936 = vmatpush.bf16.msra.mxu0 %v2747
    %2937 = vmatpush.bf16.msra.mxu0 %v2743
    %2938 = vmatpush.bf16.msra.mxu0 %v2739
    %2939 = vmatpush.bf16.msra.mxu0 %v2735
    %2940 = vmatpush.bf16.msra.mxu0 %v2731
    %2941 = vmatmul.bf16.gmra.mxu0 %v2111
    %v2942 = vpop.f32.mrf.mxu0
    %v2943 = vadd.f32 %v2929, %v2942
    %v2944 = vpop.f32.mrf.mxu0
    %v2945 = vadd.f32 %v2931, %v2944
    %2946 = vdwg.mxu0
    %2947 = vmatpush.bf16.msra.mxu0 %v2664
    %2948 = vmatpush.bf16.msra.mxu0 %v2660
    %2949 = vmatpush.bf16.msra.mxu0 %v2656
    %2950 = vmatpush.bf16.msra.mxu0 %v2652
    %2951 = vmatpush.bf16.msra.mxu0 %v2648
    %2952 = vmatpush.bf16.msra.mxu0 %v2644
    %2953 = vmatpush.bf16.msra.mxu0 %v2640
    %2954 = vmatpush.bf16.msra.mxu0 %v2636
    %2955 = vmatmul.bf16.gmra.mxu0 %v2108
    %v2956 = vpop.f32.mrf.mxu0
    %v2957 = vadd.f32 %v2244, %v2956
    %v2958 = vpop.f32.mrf.mxu0
    %v2959 = vadd.f32 %v2244, %v2958
    %2960 = vdwg.mxu0
    %2961 = vmatpush.bf16.msra.mxu0 %v2696
    %2962 = vmatpush.bf16.msra.mxu0 %v2692
    %2963 = vmatpush.bf16.msra.mxu0 %v2688
    %2964 = vmatpush.bf16.msra.mxu0 %v2684
    %2965 = vmatpush.bf16.msra.mxu0 %v2680
    %2966 = vmatpush.bf16.msra.mxu0 %v2676
    %2967 = vmatpush.bf16.msra.mxu0 %v2672
    %2968 = vmatpush.bf16.msra.mxu0 %v2668
    %2969 = vmatmul.bf16.gmra.mxu0 %v2109
    %v2970 = vpop.f32.mrf.mxu0
    %v2971 = vadd.f32 %v2957, %v2970
    %v2972 = vpop.f32.mrf.mxu0
    %v2973 = vadd.f32 %v2959, %v2972
    %2974 = vdwg.mxu0
    %2975 = vmatpush.bf16.msra.mxu0 %v2728
    %2976 = vmatpush.bf16.msra.mxu0 %v2724
    %2977 = vmatpush.bf16.msra.mxu0 %v2720
    %2978 = vmatpush.bf16.msra.mxu0 %v2716
    %2979 = vmatpush.bf16.msra.mxu0 %v2712
    %2980 = vmatpush.bf16.msra.mxu0 %v2708
    %2981 = vmatpush.bf16.msra.mxu0 %v2704
    %2982 = vmatpush.bf16.msra.mxu0 %v2700
    %2983 = vmatmul.bf16.gmra.mxu0 %v2110
    %v2984 = vpop.f32.mrf.mxu0
    %v2985 = vadd.f32 %v2971, %v2984
    %v2986 = vpop.f32.mrf.mxu0
    %v2987 = vadd.f32 %v2973, %v2986
    %2988 = vdwg.mxu0
    %2989 = vmatpush.bf16.msra.mxu0 %v2760
    %2990 = vmatpush.bf16.msra.mxu0 %v2756
    %2991 = vmatpush.bf16.msra.mxu0 %v2752
    %2992 = vmatpush.bf16.msra.mxu0 %v2748
    %2993 = vmatpush.bf16.msra.mxu0 %v2744
    %2994 = vmatpush.bf16.msra.mxu0 %v2740
    %2995 = vmatpush.bf16.msra.mxu0 %v2736
    %2996 = vmatpush.bf16.msra.mxu0 %v2732
    %2997 = vmatmul.bf16.gmra.mxu0 %v2111
    %v2998 = vpop.f32.mrf.mxu0
    %v2999 = vadd.f32 %v2985, %v2998
    %v3000 = vpop.f32.mrf.mxu0
    %v3001 = vadd.f32 %v2987, %v3000
    %3002 = vdwg.mxu0
    %3003 = vmatpush.bf16.msra.mxu0 %v2665
    %3004 = vmatpush.bf16.msra.mxu0 %v2661
    %3005 = vmatpush.bf16.msra.mxu0 %v2657
    %3006 = vmatpush.bf16.msra.mxu0 %v2653
    %3007 = vmatpush.bf16.msra.mxu0 %v2649
    %3008 = vmatpush.bf16.msra.mxu0 %v2645
    %3009 = vmatpush.bf16.msra.mxu0 %v2641
    %3010 = vmatpush.bf16.msra.mxu0 %v2637
    %3011 = vmatmul.bf16.gmra.mxu0 %v2108
    %v3012 = vpop.f32.mrf.mxu0
    %v3013 = vadd.f32 %v2245, %v3012
    %v3014 = vpop.f32.mrf.mxu0
    %v3015 = vadd.f32 %v2245, %v3014
    %3016 = vdwg.mxu0
    %3017 = vmatpush.bf16.msra.mxu0 %v2697
    %3018 = vmatpush.bf16.msra.mxu0 %v2693
    %3019 = vmatpush.bf16.msra.mxu0 %v2689
    %3020 = vmatpush.bf16.msra.mxu0 %v2685
    %3021 = vmatpush.bf16.msra.mxu0 %v2681
    %3022 = vmatpush.bf16.msra.mxu0 %v2677
    %3023 = vmatpush.bf16.msra.mxu0 %v2673
    %3024 = vmatpush.bf16.msra.mxu0 %v2669
    %3025 = vmatmul.bf16.gmra.mxu0 %v2109
    %v3026 = vpop.f32.mrf.mxu0
    %v3027 = vadd.f32 %v3013, %v3026
    %v3028 = vpop.f32.mrf.mxu0
    %v3029 = vadd.f32 %v3015, %v3028
    %3030 = vdwg.mxu0
    %3031 = vmatpush.bf16.msra.mxu0 %v2729
    %3032 = vmatpush.bf16.msra.mxu0 %v2725
    %3033 = vmatpush.bf16.msra.mxu0 %v2721
    %3034 = vmatpush.bf16.msra.mxu0 %v2717
    %3035 = vmatpush.bf16.msra.mxu0 %v2713
    %3036 = vmatpush.bf16.msra.mxu0 %v2709
    %3037 = vmatpush.bf16.msra.mxu0 %v2705
    %3038 = vmatpush.bf16.msra.mxu0 %v2701
    %3039 = vmatmul.bf16.gmra.mxu0 %v2110
    %v3040 = vpop.f32.mrf.mxu0
    %v3041 = vadd.f32 %v3027, %v3040
    %v3042 = vpop.f32.mrf.mxu0
    %v3043 = vadd.f32 %v3029, %v3042
    %3044 = vdwg.mxu0
    %3045 = vmatpush.bf16.msra.mxu0 %v2761
    %3046 = vmatpush.bf16.msra.mxu0 %v2757
    %3047 = vmatpush.bf16.msra.mxu0 %v2753
    %3048 = vmatpush.bf16.msra.mxu0 %v2749
    %3049 = vmatpush.bf16.msra.mxu0 %v2745
    %3050 = vmatpush.bf16.msra.mxu0 %v2741
    %3051 = vmatpush.bf16.msra.mxu0 %v2737
    %3052 = vmatpush.bf16.msra.mxu0 %v2733
    %3053 = vmatmul.bf16.gmra.mxu0 %v2111
    %v3054 = vpop.f32.mrf.mxu0
    %v3055 = vadd.f32 %v3041, %v3054
    %v3056 = vpop.f32.mrf.mxu0
    %v3057 = vadd.f32 %v3043, %v3056
    %3058 = vdwg.mxu0
    %3059 = vmatpush.bf16.msra.mxu0 %v2666
    %3060 = vmatpush.bf16.msra.mxu0 %v2662
    %3061 = vmatpush.bf16.msra.mxu0 %v2658
    %3062 = vmatpush.bf16.msra.mxu0 %v2654
    %3063 = vmatpush.bf16.msra.mxu0 %v2650
    %3064 = vmatpush.bf16.msra.mxu0 %v2646
    %3065 = vmatpush.bf16.msra.mxu0 %v2642
    %3066 = vmatpush.bf16.msra.mxu0 %v2638
    %3067 = vmatmul.bf16.gmra.mxu0 %v2108
    %v3068 = vpop.f32.mrf.mxu0
    %v3069 = vadd.f32 %v2246, %v3068
    %v3070 = vpop.f32.mrf.mxu0
    %v3071 = vadd.f32 %v2246, %v3070
    %3072 = vdwg.mxu0
    %3073 = vmatpush.bf16.msra.mxu0 %v2698
    %3074 = vmatpush.bf16.msra.mxu0 %v2694
    %3075 = vmatpush.bf16.msra.mxu0 %v2690
    %3076 = vmatpush.bf16.msra.mxu0 %v2686
    %3077 = vmatpush.bf16.msra.mxu0 %v2682
    %3078 = vmatpush.bf16.msra.mxu0 %v2678
    %3079 = vmatpush.bf16.msra.mxu0 %v2674
    %3080 = vmatpush.bf16.msra.mxu0 %v2670
    %3081 = vmatmul.bf16.gmra.mxu0 %v2109
    %v3082 = vpop.f32.mrf.mxu0
    %v3083 = vadd.f32 %v3069, %v3082
    %v3084 = vpop.f32.mrf.mxu0
    %v3085 = vadd.f32 %v3071, %v3084
    %3086 = vdwg.mxu0
    %3087 = vmatpush.bf16.msra.mxu0 %v2730
    %3088 = vmatpush.bf16.msra.mxu0 %v2726
    %3089 = vmatpush.bf16.msra.mxu0 %v2722
    %3090 = vmatpush.bf16.msra.mxu0 %v2718
    %3091 = vmatpush.bf16.msra.mxu0 %v2714
    %3092 = vmatpush.bf16.msra.mxu0 %v2710
    %3093 = vmatpush.bf16.msra.mxu0 %v2706
    %3094 = vmatpush.bf16.msra.mxu0 %v2702
    %3095 = vmatmul.bf16.gmra.mxu0 %v2110
    %v3096 = vpop.f32.mrf.mxu0
    %v3097 = vadd.f32 %v3083, %v3096
    %v3098 = vpop.f32.mrf.mxu0
    %v3099 = vadd.f32 %v3085, %v3098
    %3100 = vdwg.mxu0
    %3101 = vmatpush.bf16.msra.mxu0 %v2762
    %3102 = vmatpush.bf16.msra.mxu0 %v2758
    %3103 = vmatpush.bf16.msra.mxu0 %v2754
    %3104 = vmatpush.bf16.msra.mxu0 %v2750
    %3105 = vmatpush.bf16.msra.mxu0 %v2746
    %3106 = vmatpush.bf16.msra.mxu0 %v2742
    %3107 = vmatpush.bf16.msra.mxu0 %v2738
    %3108 = vmatpush.bf16.msra.mxu0 %v2734
    %3109 = vmatmul.bf16.gmra.mxu0 %v2111
    %v3110 = vpop.f32.mrf.mxu0
    %v3111 = vadd.f32 %v3097, %v3110
    %v3112 = vpop.f32.mrf.mxu0
    %v3113 = vadd.f32 %v3099, %v3112
    %3114 = vdwg.mxu0
    %v3115 = vmax.f32 %v2943, 0.0
    %v3116 = vmax.f32 %v2999, 0.0
    %v3117 = vmax.f32 %v3055, 0.0
    %v3118 = vmax.f32 %v3111, 0.0
    %v3119 = vmax.f32 %v2945, 0.0
    %v3120 = vmax.f32 %v3001, 0.0
    %v3121 = vmax.f32 %v3057, 0.0
    %v3122 = vmax.f32 %v3113, 0.0
    %v3123 = vpack.c.bf16 %v3119, %v3115
    %v3124 = vpack.c.bf16 %v3120, %v3116
    %v3125 = vpack.c.bf16 %v3121, %v3117
    %v3126 = vpack.c.bf16 %v3122, %v3118
    %v3127 = vld [vmem:[#allocation3 + $0x10] sm:$0xff]
    %v3128 = vld [vmem:[#allocation3 + $0x18] sm:$0xff]
    %v3129 = vld [vmem:[#allocation3 + $0x7c] sm:$0xff]
    %v3130 = vld [vmem:[#allocation3 + $0x84] sm:$0xff]
    %v3131 = vld [vmem:[#allocation3 + $0xe8] sm:$0xff]
    %v3132 = vld [vmem:[#allocation3 + $0xf0] sm:$0xff]
    %v3133 = vld [vmem:[#allocation3 + $0x154] sm:$0xff]
    %v3134 = vld [vmem:[#allocation3 + $0x15c] sm:$0xff]
    %v3135 = vld [vmem:[#allocation3 + $0x1c0] sm:$0xff]
    %v3136 = vld [vmem:[#allocation3 + $0x1c8] sm:$0xff]
    %v3137 = vld [vmem:[#allocation3 + $0x22c] sm:$0xff]
    %v3138 = vld [vmem:[#allocation3 + $0x234] sm:$0xff]
    %v3139 = vld [vmem:[#allocation3 + $0x298] sm:$0xff]
    %v3140 = vld [vmem:[#allocation3 + $0x2a0] sm:$0xff]
    %v3141 = vld [vmem:[#allocation3 + $0x304] sm:$0xff]
    %v3142 = vld [vmem:[#allocation3 + $0x30c] sm:$0xff]
    %v3143 = vld [vmem:[#allocation3 + $0x370] sm:$0xff]
    %v3144 = vld [vmem:[#allocation3 + $0x378] sm:$0xff]
    %v3145 = vld [vmem:[#allocation3 + $0x3dc] sm:$0xff]
    %v3146 = vld [vmem:[#allocation3 + $0x3e4] sm:$0xff]
    %v3147 = vld [vmem:[#allocation3 + $0x448] sm:$0xff]
    %v3148 = vld [vmem:[#allocation3 + $0x450] sm:$0xff]
    %v3149 = vld [vmem:[#allocation3 + $0x4b4] sm:$0xff]
    %v3150 = vld [vmem:[#allocation3 + $0x4bc] sm:$0xff]
    %v3151 = vld [vmem:[#allocation3 + $0x520] sm:$0xff]
    %v3152 = vld [vmem:[#allocation3 + $0x528] sm:$0xff]
    %v3153 = vld [vmem:[#allocation3 + $0x58c] sm:$0xff]
    %v3154 = vld [vmem:[#allocation3 + $0x594] sm:$0xff]
    %v3155 = vld [vmem:[#allocation3 + $0x5f8] sm:$0xff]
    %v3156 = vld [vmem:[#allocation3 + $0x600] sm:$0xff]
    %v3157 = vld [vmem:[#allocation3 + $0x664] sm:$0xff]
    %v3158 = vld [vmem:[#allocation3 + $0x66c] sm:$0xff]
    %v3159 = vld [vmem:[#allocation3 + $0x6d0] sm:$0xff]
    %v3160 = vld [vmem:[#allocation3 + $0x6d8] sm:$0xff]
    %v3161 = vld [vmem:[#allocation3 + $0x73c] sm:$0xff]
    %v3162 = vld [vmem:[#allocation3 + $0x744] sm:$0xff]
    %v3163 = vld [vmem:[#allocation3 + $0x7a8] sm:$0xff]
    %v3164 = vld [vmem:[#allocation3 + $0x7b0] sm:$0xff]
    %v3165 = vld [vmem:[#allocation3 + $0x814] sm:$0xff]
    %v3166 = vld [vmem:[#allocation3 + $0x81c] sm:$0xff]
    %v3167 = vld [vmem:[#allocation3 + $0x880] sm:$0xff]
    %v3168 = vld [vmem:[#allocation3 + $0x888] sm:$0xff]
    %v3169 = vld [vmem:[#allocation3 + $0x8ec] sm:$0xff]
    %v3170 = vld [vmem:[#allocation3 + $0x8f4] sm:$0xff]
    %v3171 = vld [vmem:[#allocation3 + $0x958] sm:$0xff]
    %v3172 = vld [vmem:[#allocation3 + $0x960] sm:$0xff]
    %v3173 = vld [vmem:[#allocation3 + $0x9c4] sm:$0xff]
    %v3174 = vld [vmem:[#allocation3 + $0x9cc] sm:$0xff]
    %v3175 = vld [vmem:[#allocation3 + $0xa30] sm:$0xff]
    %v3176 = vld [vmem:[#allocation3 + $0xa38] sm:$0xff]
    %v3177 = vld [vmem:[#allocation3 + $0xa9c] sm:$0xff]
    %v3178 = vld [vmem:[#allocation3 + $0xaa4] sm:$0xff]
    %v3179 = vld [vmem:[#allocation3 + $0xb08] sm:$0xff]
    %v3180 = vld [vmem:[#allocation3 + $0xb10] sm:$0xff]
    %v3181 = vld [vmem:[#allocation3 + $0xb74] sm:$0xff]
    %v3182 = vld [vmem:[#allocation3 + $0xb7c] sm:$0xff]
    %v3183 = vld [vmem:[#allocation3 + $0xbe0] sm:$0xff]
    %v3184 = vld [vmem:[#allocation3 + $0xbe8] sm:$0xff]
    %v3185 = vld [vmem:[#allocation3 + $0xc4c] sm:$0xff]
    %v3186 = vld [vmem:[#allocation3 + $0xc54] sm:$0xff]
    %v3187 = vld [vmem:[#allocation3 + $0xcb8] sm:$0xff]
    %v3188 = vld [vmem:[#allocation3 + $0xcc0] sm:$0xff]
    %v3189 = vld [vmem:[#allocation3 + $0xd24] sm:$0xff]
    %v3190 = vld [vmem:[#allocation3 + $0xd2c] sm:$0xff]
    %v3191 = vld [vmem:[#allocation3 + $0xd90] sm:$0xff]
    %v3192 = vld [vmem:[#allocation3 + $0xd98] sm:$0xff]
    %v3193 = vld [vmem:[#allocation3 + $0xdfc] sm:$0xff]
    %v3194 = vld [vmem:[#allocation3 + $0xe04] sm:$0xff]
    %v3195 = vld [vmem:[#allocation3 + $0xe68] sm:$0xff]
    %v3196 = vld [vmem:[#allocation3 + $0xe70] sm:$0xff]
    %v3197 = vld [vmem:[#allocation3 + $0xed4] sm:$0xff]
    %v3198 = vld [vmem:[#allocation3 + $0xedc] sm:$0xff]
    %v3199 = vld [vmem:[#allocation3 + $0xf40] sm:$0xff]
    %v3200 = vld [vmem:[#allocation3 + $0xf48] sm:$0xff]
    %v3201 = vld [vmem:[#allocation3 + $0xfac] sm:$0xff]
    %v3202 = vld [vmem:[#allocation3 + $0xfb4] sm:$0xff]
    %v3203 = vld [vmem:[#allocation3 + $0x1018] sm:$0xff]
    %v3204 = vld [vmem:[#allocation3 + $0x1020] sm:$0xff]
    %v3205 = vld [vmem:[#allocation3 + $0x1084] sm:$0xff]
    %v3206 = vld [vmem:[#allocation3 + $0x108c] sm:$0xff]
    %v3207 = vld [vmem:[#allocation3 + $0x10f0] sm:$0xff]
    %v3208 = vld [vmem:[#allocation3 + $0x10f8] sm:$0xff]
    %v3209 = vld [vmem:[#allocation3 + $0x115c] sm:$0xff]
    %v3210 = vld [vmem:[#allocation3 + $0x1164] sm:$0xff]
    %v3211 = vld [vmem:[#allocation3 + $0x11c8] sm:$0xff]
    %v3212 = vld [vmem:[#allocation3 + $0x11d0] sm:$0xff]
    %v3213 = vld [vmem:[#allocation3 + $0x1234] sm:$0xff]
    %v3214 = vld [vmem:[#allocation3 + $0x123c] sm:$0xff]
    %v3215 = vld [vmem:[#allocation3 + $0x12a0] sm:$0xff]
    %v3216 = vld [vmem:[#allocation3 + $0x12a8] sm:$0xff]
    %v3217 = vld [vmem:[#allocation3 + $0x130c] sm:$0xff]
    %v3218 = vld [vmem:[#allocation3 + $0x1314] sm:$0xff]
    %v3219 = vld [vmem:[#allocation3 + $0x1378] sm:$0xff]
    %v3220 = vld [vmem:[#allocation3 + $0x1380] sm:$0xff]
    %v3221 = vld [vmem:[#allocation3 + $0x13e4] sm:$0xff]
    %v3222 = vld [vmem:[#allocation3 + $0x13ec] sm:$0xff]
    %v3223 = vld [vmem:[#allocation3 + $0x1450] sm:$0xff]
    %v3224 = vld [vmem:[#allocation3 + $0x1458] sm:$0xff]
    %v3225 = vld [vmem:[#allocation3 + $0x14bc] sm:$0xff]
    %v3226 = vld [vmem:[#allocation3 + $0x14c4] sm:$0xff]
    %v3227 = vld [vmem:[#allocation3 + $0x1528] sm:$0xff]
    %v3228 = vld [vmem:[#allocation3 + $0x1530] sm:$0xff]
    %v3229 = vld [vmem:[#allocation3 + $0x1594] sm:$0xff]
    %v3230 = vld [vmem:[#allocation3 + $0x159c] sm:$0xff]
    %v3231 = vld [vmem:[#allocation3 + $0x1600] sm:$0xff]
    %v3232 = vld [vmem:[#allocation3 + $0x1608] sm:$0xff]
    %v3233 = vld [vmem:[#allocation3 + $0x166c] sm:$0xff]
    %v3234 = vld [vmem:[#allocation3 + $0x1674] sm:$0xff]
    %v3235 = vld [vmem:[#allocation3 + $0x16d8] sm:$0xff]
    %v3236 = vld [vmem:[#allocation3 + $0x16e0] sm:$0xff]
    %v3237 = vld [vmem:[#allocation3 + $0x1744] sm:$0xff]
    %v3238 = vld [vmem:[#allocation3 + $0x174c] sm:$0xff]
    %v3239 = vld [vmem:[#allocation3 + $0x17b0] sm:$0xff]
    %v3240 = vld [vmem:[#allocation3 + $0x17b8] sm:$0xff]
    %v3241 = vld [vmem:[#allocation3 + $0x181c] sm:$0xff]
    %v3242 = vld [vmem:[#allocation3 + $0x1824] sm:$0xff]
    %v3243 = vld [vmem:[#allocation3 + $0x1888] sm:$0xff]
    %v3244 = vld [vmem:[#allocation3 + $0x1890] sm:$0xff]
    %v3245 = vld [vmem:[#allocation3 + $0x18f4] sm:$0xff]
    %v3246 = vld [vmem:[#allocation3 + $0x18fc] sm:$0xff]
    %v3247 = vld [vmem:[#allocation3 + $0x1960] sm:$0xff]
    %v3248 = vld [vmem:[#allocation3 + $0x1968] sm:$0xff]
    %v3249 = vld [vmem:[#allocation3 + $0x19cc] sm:$0xff]
    %v3250 = vld [vmem:[#allocation3 + $0x19d4] sm:$0xff]
    %v3251 = vld [vmem:[#allocation3 + $0x1a38] sm:$0xff]
    %v3252 = vld [vmem:[#allocation3 + $0x1a40] sm:$0xff]
    %v3253 = vld [vmem:[#allocation3 + $0x1aa4] sm:$0xff]
    %v3254 = vld [vmem:[#allocation3 + $0x1aac] sm:$0xff]
    %s3255 = scalar_lea.vmem [#allocation6], 2
    %v3256 = vld [vmem:[%s3255] ss:$8 sm:$0xf]
    %v3258 = vperm.slane %v3256, 0
    %v3259 = vperm.slane %v3256, 1
    %v3260 = vperm.slane %v3256, 2
    %v3261 = vperm.slane %v3256, 3
    %v3394 = vunpack.c.l.b16 %v3127
    %v3395 = vunpack.c.h.b16 %v3127
    %v3396 = vunpack.c.l.b16 %v3128
    %v3397 = vunpack.c.h.b16 %v3128
    %v3398 = vunpack.c.l.b16 %v3129
    %v3399 = vunpack.c.h.b16 %v3129
    %v3400 = vunpack.c.l.b16 %v3130
    %v3401 = vunpack.c.h.b16 %v3130
    %v3402 = vunpack.c.l.b16 %v3131
    %v3403 = vunpack.c.h.b16 %v3131
    %v3404 = vunpack.c.l.b16 %v3132
    %v3405 = vunpack.c.h.b16 %v3132
    %v3406 = vunpack.c.l.b16 %v3133
    %v3407 = vunpack.c.h.b16 %v3133
    %v3408 = vunpack.c.l.b16 %v3134
    %v3409 = vunpack.c.h.b16 %v3134
    %v3410 = vunpack.c.l.b16 %v3135
    %v3411 = vunpack.c.h.b16 %v3135
    %v3412 = vunpack.c.l.b16 %v3136
    %v3413 = vunpack.c.h.b16 %v3136
    %v3414 = vunpack.c.l.b16 %v3137
    %v3415 = vunpack.c.h.b16 %v3137
    %v3416 = vunpack.c.l.b16 %v3138
    %v3417 = vunpack.c.h.b16 %v3138
    %v3418 = vunpack.c.l.b16 %v3139
    %v3419 = vunpack.c.h.b16 %v3139
    %v3420 = vunpack.c.l.b16 %v3140
    %v3421 = vunpack.c.h.b16 %v3140
    %v3422 = vunpack.c.l.b16 %v3141
    %v3423 = vunpack.c.h.b16 %v3141
    %v3424 = vunpack.c.l.b16 %v3142
    %v3425 = vunpack.c.h.b16 %v3142
    %v3426 = vunpack.c.l.b16 %v3143
    %v3427 = vunpack.c.h.b16 %v3143
    %v3428 = vunpack.c.l.b16 %v3144
    %v3429 = vunpack.c.h.b16 %v3144
    %v3430 = vunpack.c.l.b16 %v3145
    %v3431 = vunpack.c.h.b16 %v3145
    %v3432 = vunpack.c.l.b16 %v3146
    %v3433 = vunpack.c.h.b16 %v3146
    %v3434 = vunpack.c.l.b16 %v3147
    %v3435 = vunpack.c.h.b16 %v3147
    %v3436 = vunpack.c.l.b16 %v3148
    %v3437 = vunpack.c.h.b16 %v3148
    %v3438 = vunpack.c.l.b16 %v3149
    %v3439 = vunpack.c.h.b16 %v3149
    %v3440 = vunpack.c.l.b16 %v3150
    %v3441 = vunpack.c.h.b16 %v3150
    %v3442 = vunpack.c.l.b16 %v3151
    %v3443 = vunpack.c.h.b16 %v3151
    %v3444 = vunpack.c.l.b16 %v3152
    %v3445 = vunpack.c.h.b16 %v3152
    %v3446 = vunpack.c.l.b16 %v3153
    %v3447 = vunpack.c.h.b16 %v3153
    %v3448 = vunpack.c.l.b16 %v3154
    %v3449 = vunpack.c.h.b16 %v3154
    %v3450 = vunpack.c.l.b16 %v3155
    %v3451 = vunpack.c.h.b16 %v3155
    %v3452 = vunpack.c.l.b16 %v3156
    %v3453 = vunpack.c.h.b16 %v3156
    %v3454 = vunpack.c.l.b16 %v3157
    %v3455 = vunpack.c.h.b16 %v3157
    %v3456 = vunpack.c.l.b16 %v3158
    %v3457 = vunpack.c.h.b16 %v3158
    %v3458 = vunpack.c.l.b16 %v3159
    %v3459 = vunpack.c.h.b16 %v3159
    %v3460 = vunpack.c.l.b16 %v3160
    %v3461 = vunpack.c.h.b16 %v3160
    %v3462 = vunpack.c.l.b16 %v3161
    %v3463 = vunpack.c.h.b16 %v3161
    %v3464 = vunpack.c.l.b16 %v3162
    %v3465 = vunpack.c.h.b16 %v3162
    %v3466 = vunpack.c.l.b16 %v3163
    %v3467 = vunpack.c.h.b16 %v3163
    %v3468 = vunpack.c.l.b16 %v3164
    %v3469 = vunpack.c.h.b16 %v3164
    %v3470 = vunpack.c.l.b16 %v3165
    %v3471 = vunpack.c.h.b16 %v3165
    %v3472 = vunpack.c.l.b16 %v3166
    %v3473 = vunpack.c.h.b16 %v3166
    %v3474 = vunpack.c.l.b16 %v3167
    %v3475 = vunpack.c.h.b16 %v3167
    %v3476 = vunpack.c.l.b16 %v3168
    %v3477 = vunpack.c.h.b16 %v3168
    %v3478 = vunpack.c.l.b16 %v3169
    %v3479 = vunpack.c.h.b16 %v3169
    %v3480 = vunpack.c.l.b16 %v3170
    %v3481 = vunpack.c.h.b16 %v3170
    %v3482 = vunpack.c.l.b16 %v3171
    %v3483 = vunpack.c.h.b16 %v3171
    %v3484 = vunpack.c.l.b16 %v3172
    %v3485 = vunpack.c.h.b16 %v3172
    %v3486 = vunpack.c.l.b16 %v3173
    %v3487 = vunpack.c.h.b16 %v3173
    %v3488 = vunpack.c.l.b16 %v3174
    %v3489 = vunpack.c.h.b16 %v3174
    %v3490 = vunpack.c.l.b16 %v3175
    %v3491 = vunpack.c.h.b16 %v3175
    %v3492 = vunpack.c.l.b16 %v3176
    %v3493 = vunpack.c.h.b16 %v3176
    %v3494 = vunpack.c.l.b16 %v3177
    %v3495 = vunpack.c.h.b16 %v3177
    %v3496 = vunpack.c.l.b16 %v3178
    %v3497 = vunpack.c.h.b16 %v3178
    %v3498 = vunpack.c.l.b16 %v3179
    %v3499 = vunpack.c.h.b16 %v3179
    %v3500 = vunpack.c.l.b16 %v3180
    %v3501 = vunpack.c.h.b16 %v3180
    %v3502 = vunpack.c.l.b16 %v3181
    %v3503 = vunpack.c.h.b16 %v3181
    %v3504 = vunpack.c.l.b16 %v3182
    %v3505 = vunpack.c.h.b16 %v3182
    %v3506 = vunpack.c.l.b16 %v3183
    %v3507 = vunpack.c.h.b16 %v3183
    %v3508 = vunpack.c.l.b16 %v3184
    %v3509 = vunpack.c.h.b16 %v3184
    %v3510 = vunpack.c.l.b16 %v3185
    %v3511 = vunpack.c.h.b16 %v3185
    %v3512 = vunpack.c.l.b16 %v3186
    %v3513 = vunpack.c.h.b16 %v3186
    %v3514 = vunpack.c.l.b16 %v3187
    %v3515 = vunpack.c.h.b16 %v3187
    %v3516 = vunpack.c.l.b16 %v3188
    %v3517 = vunpack.c.h.b16 %v3188
    %v3518 = vunpack.c.l.b16 %v3189
    %v3519 = vunpack.c.h.b16 %v3189
    %v3520 = vunpack.c.l.b16 %v3190
    %v3521 = vunpack.c.h.b16 %v3190
    %v3522 = vunpack.c.l.b16 %v3191
    %v3523 = vunpack.c.h.b16 %v3191
    %v3524 = vunpack.c.l.b16 %v3192
    %v3525 = vunpack.c.h.b16 %v3192
    %v3526 = vunpack.c.l.b16 %v3193
    %v3527 = vunpack.c.h.b16 %v3193
    %v3528 = vunpack.c.l.b16 %v3194
    %v3529 = vunpack.c.h.b16 %v3194
    %v3530 = vunpack.c.l.b16 %v3195
    %v3531 = vunpack.c.h.b16 %v3195
    %v3532 = vunpack.c.l.b16 %v3196
    %v3533 = vunpack.c.h.b16 %v3196
    %v3534 = vunpack.c.l.b16 %v3197
    %v3535 = vunpack.c.h.b16 %v3197
    %v3536 = vunpack.c.l.b16 %v3198
    %v3537 = vunpack.c.h.b16 %v3198
    %v3538 = vunpack.c.l.b16 %v3199
    %v3539 = vunpack.c.h.b16 %v3199
    %v3540 = vunpack.c.l.b16 %v3200
    %v3541 = vunpack.c.h.b16 %v3200
    %v3542 = vunpack.c.l.b16 %v3201
    %v3543 = vunpack.c.h.b16 %v3201
    %v3544 = vunpack.c.l.b16 %v3202
    %v3545 = vunpack.c.h.b16 %v3202
    %v3546 = vunpack.c.l.b16 %v3203
    %v3547 = vunpack.c.h.b16 %v3203
    %v3548 = vunpack.c.l.b16 %v3204
    %v3549 = vunpack.c.h.b16 %v3204
    %v3550 = vunpack.c.l.b16 %v3205
    %v3551 = vunpack.c.h.b16 %v3205
    %v3552 = vunpack.c.l.b16 %v3206
    %v3553 = vunpack.c.h.b16 %v3206
    %v3554 = vunpack.c.l.b16 %v3207
    %v3555 = vunpack.c.h.b16 %v3207
    %v3556 = vunpack.c.l.b16 %v3208
    %v3557 = vunpack.c.h.b16 %v3208
    %v3558 = vunpack.c.l.b16 %v3209
    %v3559 = vunpack.c.h.b16 %v3209
    %v3560 = vunpack.c.l.b16 %v3210
    %v3561 = vunpack.c.h.b16 %v3210
    %v3562 = vunpack.c.l.b16 %v3211
    %v3563 = vunpack.c.h.b16 %v3211
    %v3564 = vunpack.c.l.b16 %v3212
    %v3565 = vunpack.c.h.b16 %v3212
    %v3566 = vunpack.c.l.b16 %v3213
    %v3567 = vunpack.c.h.b16 %v3213
    %v3568 = vunpack.c.l.b16 %v3214
    %v3569 = vunpack.c.h.b16 %v3214
    %v3570 = vunpack.c.l.b16 %v3215
    %v3571 = vunpack.c.h.b16 %v3215
    %v3572 = vunpack.c.l.b16 %v3216
    %v3573 = vunpack.c.h.b16 %v3216
    %v3574 = vunpack.c.l.b16 %v3217
    %v3575 = vunpack.c.h.b16 %v3217
    %v3576 = vunpack.c.l.b16 %v3218
    %v3577 = vunpack.c.h.b16 %v3218
    %v3578 = vunpack.c.l.b16 %v3219
    %v3579 = vunpack.c.h.b16 %v3219
    %v3580 = vunpack.c.l.b16 %v3220
    %v3581 = vunpack.c.h.b16 %v3220
    %v3582 = vunpack.c.l.b16 %v3221
    %v3583 = vunpack.c.h.b16 %v3221
    %v3584 = vunpack.c.l.b16 %v3222
    %v3585 = vunpack.c.h.b16 %v3222
    %v3586 = vunpack.c.l.b16 %v3223
    %v3587 = vunpack.c.h.b16 %v3223
    %v3588 = vunpack.c.l.b16 %v3224
    %v3589 = vunpack.c.h.b16 %v3224
    %v3590 = vunpack.c.l.b16 %v3225
    %v3591 = vunpack.c.h.b16 %v3225
    %v3592 = vunpack.c.l.b16 %v3226
    %v3593 = vunpack.c.h.b16 %v3226
    %v3594 = vunpack.c.l.b16 %v3227
    %v3595 = vunpack.c.h.b16 %v3227
    %v3596 = vunpack.c.l.b16 %v3228
    %v3597 = vunpack.c.h.b16 %v3228
    %v3598 = vunpack.c.l.b16 %v3229
    %v3599 = vunpack.c.h.b16 %v3229
    %v3600 = vunpack.c.l.b16 %v3230
    %v3601 = vunpack.c.h.b16 %v3230
    %v3602 = vunpack.c.l.b16 %v3231
    %v3603 = vunpack.c.h.b16 %v3231
    %v3604 = vunpack.c.l.b16 %v3232
    %v3605 = vunpack.c.h.b16 %v3232
    %v3606 = vunpack.c.l.b16 %v3233
    %v3607 = vunpack.c.h.b16 %v3233
    %v3608 = vunpack.c.l.b16 %v3234
    %v3609 = vunpack.c.h.b16 %v3234
    %v3610 = vunpack.c.l.b16 %v3235
    %v3611 = vunpack.c.h.b16 %v3235
    %v3612 = vunpack.c.l.b16 %v3236
    %v3613 = vunpack.c.h.b16 %v3236
    %v3614 = vunpack.c.l.b16 %v3237
    %v3615 = vunpack.c.h.b16 %v3237
    %v3616 = vunpack.c.l.b16 %v3238
    %v3617 = vunpack.c.h.b16 %v3238
    %v3618 = vunpack.c.l.b16 %v3239
    %v3619 = vunpack.c.h.b16 %v3239
    %v3620 = vunpack.c.l.b16 %v3240
    %v3621 = vunpack.c.h.b16 %v3240
    %v3622 = vunpack.c.l.b16 %v3241
    %v3623 = vunpack.c.h.b16 %v3241
    %v3624 = vunpack.c.l.b16 %v3242
    %v3625 = vunpack.c.h.b16 %v3242
    %v3626 = vunpack.c.l.b16 %v3243
    %v3627 = vunpack.c.h.b16 %v3243
    %v3628 = vunpack.c.l.b16 %v3244
    %v3629 = vunpack.c.h.b16 %v3244
    %v3630 = vunpack.c.l.b16 %v3245
    %v3631 = vunpack.c.h.b16 %v3245
    %v3632 = vunpack.c.l.b16 %v3246
    %v3633 = vunpack.c.h.b16 %v3246
    %v3634 = vunpack.c.l.b16 %v3247
    %v3635 = vunpack.c.h.b16 %v3247
    %v3636 = vunpack.c.l.b16 %v3248
    %v3637 = vunpack.c.h.b16 %v3248
    %v3638 = vunpack.c.l.b16 %v3249
    %v3639 = vunpack.c.h.b16 %v3249
    %v3640 = vunpack.c.l.b16 %v3250
    %v3641 = vunpack.c.h.b16 %v3250
    %v3642 = vunpack.c.l.b16 %v3251
    %v3643 = vunpack.c.h.b16 %v3251
    %v3644 = vunpack.c.l.b16 %v3252
    %v3645 = vunpack.c.h.b16 %v3252
    %v3646 = vunpack.c.l.b16 %v3253
    %v3647 = vunpack.c.h.b16 %v3253
    %v3648 = vunpack.c.l.b16 %v3254
    %v3649 = vunpack.c.h.b16 %v3254
    %v3650 = vpack.c.b16 %v3398, %v3394
    %v3651 = vpack.c.b16 %v3399, %v3395
    %v3652 = vpack.c.b16 %v3400, %v3396
    %v3653 = vpack.c.b16 %v3401, %v3397
    %v3654 = vpack.c.b16 %v3406, %v3402
    %v3655 = vpack.c.b16 %v3407, %v3403
    %v3656 = vpack.c.b16 %v3408, %v3404
    %v3657 = vpack.c.b16 %v3409, %v3405
    %v3658 = vpack.c.b16 %v3414, %v3410
    %v3659 = vpack.c.b16 %v3415, %v3411
    %v3660 = vpack.c.b16 %v3416, %v3412
    %v3661 = vpack.c.b16 %v3417, %v3413
    %v3662 = vpack.c.b16 %v3422, %v3418
    %v3663 = vpack.c.b16 %v3423, %v3419
    %v3664 = vpack.c.b16 %v3424, %v3420
    %v3665 = vpack.c.b16 %v3425, %v3421
    %v3666 = vpack.c.b16 %v3430, %v3426
    %v3667 = vpack.c.b16 %v3431, %v3427
    %v3668 = vpack.c.b16 %v3432, %v3428
    %v3669 = vpack.c.b16 %v3433, %v3429
    %v3670 = vpack.c.b16 %v3438, %v3434
    %v3671 = vpack.c.b16 %v3439, %v3435
    %v3672 = vpack.c.b16 %v3440, %v3436
    %v3673 = vpack.c.b16 %v3441, %v3437
    %v3674 = vpack.c.b16 %v3446, %v3442
    %v3675 = vpack.c.b16 %v3447, %v3443
    %v3676 = vpack.c.b16 %v3448, %v3444
    %v3677 = vpack.c.b16 %v3449, %v3445
    %v3678 = vpack.c.b16 %v3454, %v3450
    %v3679 = vpack.c.b16 %v3455, %v3451
    %v3680 = vpack.c.b16 %v3456, %v3452
    %v3681 = vpack.c.b16 %v3457, %v3453
    %v3682 = vpack.c.b16 %v3462, %v3458
    %v3683 = vpack.c.b16 %v3463, %v3459
    %v3684 = vpack.c.b16 %v3464, %v3460
    %v3685 = vpack.c.b16 %v3465, %v3461
    %v3686 = vpack.c.b16 %v3470, %v3466
    %v3687 = vpack.c.b16 %v3471, %v3467
    %v3688 = vpack.c.b16 %v3472, %v3468
    %v3689 = vpack.c.b16 %v3473, %v3469
    %v3690 = vpack.c.b16 %v3478, %v3474
    %v3691 = vpack.c.b16 %v3479, %v3475
    %v3692 = vpack.c.b16 %v3480, %v3476
    %v3693 = vpack.c.b16 %v3481, %v3477
    %v3694 = vpack.c.b16 %v3486, %v3482
    %v3695 = vpack.c.b16 %v3487, %v3483
    %v3696 = vpack.c.b16 %v3488, %v3484
    %v3697 = vpack.c.b16 %v3489, %v3485
    %v3698 = vpack.c.b16 %v3494, %v3490
    %v3699 = vpack.c.b16 %v3495, %v3491
    %v3700 = vpack.c.b16 %v3496, %v3492
    %v3701 = vpack.c.b16 %v3497, %v3493
    %v3702 = vpack.c.b16 %v3502, %v3498
    %v3703 = vpack.c.b16 %v3503, %v3499
    %v3704 = vpack.c.b16 %v3504, %v3500
    %v3705 = vpack.c.b16 %v3505, %v3501
    %v3706 = vpack.c.b16 %v3510, %v3506
    %v3707 = vpack.c.b16 %v3511, %v3507
    %v3708 = vpack.c.b16 %v3512, %v3508
    %v3709 = vpack.c.b16 %v3513, %v3509
    %v3710 = vpack.c.b16 %v3518, %v3514
    %v3711 = vpack.c.b16 %v3519, %v3515
    %v3712 = vpack.c.b16 %v3520, %v3516
    %v3713 = vpack.c.b16 %v3521, %v3517
    %v3714 = vpack.c.b16 %v3526, %v3522
    %v3715 = vpack.c.b16 %v3527, %v3523
    %v3716 = vpack.c.b16 %v3528, %v3524
    %v3717 = vpack.c.b16 %v3529, %v3525
    %v3718 = vpack.c.b16 %v3534, %v3530
    %v3719 = vpack.c.b16 %v3535, %v3531
    %v3720 = vpack.c.b16 %v3536, %v3532
    %v3721 = vpack.c.b16 %v3537, %v3533
    %v3722 = vpack.c.b16 %v3542, %v3538
    %v3723 = vpack.c.b16 %v3543, %v3539
    %v3724 = vpack.c.b16 %v3544, %v3540
    %v3725 = vpack.c.b16 %v3545, %v3541
    %v3726 = vpack.c.b16 %v3550, %v3546
    %v3727 = vpack.c.b16 %v3551, %v3547
    %v3728 = vpack.c.b16 %v3552, %v3548
    %v3729 = vpack.c.b16 %v3553, %v3549
    %v3730 = vpack.c.b16 %v3558, %v3554
    %v3731 = vpack.c.b16 %v3559, %v3555
    %v3732 = vpack.c.b16 %v3560, %v3556
    %v3733 = vpack.c.b16 %v3561, %v3557
    %v3734 = vpack.c.b16 %v3566, %v3562
    %v3735 = vpack.c.b16 %v3567, %v3563
    %v3736 = vpack.c.b16 %v3568, %v3564
    %v3737 = vpack.c.b16 %v3569, %v3565
    %v3738 = vpack.c.b16 %v3574, %v3570
    %v3739 = vpack.c.b16 %v3575, %v3571
    %v3740 = vpack.c.b16 %v3576, %v3572
    %v3741 = vpack.c.b16 %v3577, %v3573
    %v3742 = vpack.c.b16 %v3582, %v3578
    %v3743 = vpack.c.b16 %v3583, %v3579
    %v3744 = vpack.c.b16 %v3584, %v3580
    %v3745 = vpack.c.b16 %v3585, %v3581
    %v3746 = vpack.c.b16 %v3590, %v3586
    %v3747 = vpack.c.b16 %v3591, %v3587
    %v3748 = vpack.c.b16 %v3592, %v3588
    %v3749 = vpack.c.b16 %v3593, %v3589
    %v3750 = vpack.c.b16 %v3598, %v3594
    %v3751 = vpack.c.b16 %v3599, %v3595
    %v3752 = vpack.c.b16 %v3600, %v3596
    %v3753 = vpack.c.b16 %v3601, %v3597
    %v3754 = vpack.c.b16 %v3606, %v3602
    %v3755 = vpack.c.b16 %v3607, %v3603
    %v3756 = vpack.c.b16 %v3608, %v3604
    %v3757 = vpack.c.b16 %v3609, %v3605
    %v3758 = vpack.c.b16 %v3614, %v3610
    %v3759 = vpack.c.b16 %v3615, %v3611
    %v3760 = vpack.c.b16 %v3616, %v3612
    %v3761 = vpack.c.b16 %v3617, %v3613
    %v3762 = vpack.c.b16 %v3622, %v3618
    %v3763 = vpack.c.b16 %v3623, %v3619
    %v3764 = vpack.c.b16 %v3624, %v3620
    %v3765 = vpack.c.b16 %v3625, %v3621
    %v3766 = vpack.c.b16 %v3630, %v3626
    %v3767 = vpack.c.b16 %v3631, %v3627
    %v3768 = vpack.c.b16 %v3632, %v3628
    %v3769 = vpack.c.b16 %v3633, %v3629
    %v3770 = vpack.c.b16 %v3638, %v3634
    %v3771 = vpack.c.b16 %v3639, %v3635
    %v3772 = vpack.c.b16 %v3640, %v3636
    %v3773 = vpack.c.b16 %v3641, %v3637
    %v3774 = vpack.c.b16 %v3646, %v3642
    %v3775 = vpack.c.b16 %v3647, %v3643
    %v3776 = vpack.c.b16 %v3648, %v3644
    %v3777 = vpack.c.b16 %v3649, %v3645
    %3906 = vmatpush.bf16.msra.mxu0 %v3678
    %3907 = vmatpush.bf16.msra.mxu0 %v3674
    %3908 = vmatpush.bf16.msra.mxu0 %v3670
    %3909 = vmatpush.bf16.msra.mxu0 %v3666
    %3910 = vmatpush.bf16.msra.mxu0 %v3662
    %3911 = vmatpush.bf16.msra.mxu0 %v3658
    %3912 = vmatpush.bf16.msra.mxu0 %v3654
    %3913 = vmatpush.bf16.msra.mxu0 %v3650
    %3914 = vmatmul.bf16.gmra.mxu0 %v3123
    %v3915 = vpop.f32.mrf.mxu0
    %v3916 = vadd.f32 %v3258, %v3915
    %v3917 = vpop.f32.mrf.mxu0
    %v3918 = vadd.f32 %v3258, %v3917
    %3919 = vdwg.mxu0
    %3920 = vmatpush.bf16.msra.mxu0 %v3710
    %3921 = vmatpush.bf16.msra.mxu0 %v3706
    %3922 = vmatpush.bf16.msra.mxu0 %v3702
    %3923 = vmatpush.bf16.msra.mxu0 %v3698
    %3924 = vmatpush.bf16.msra.mxu0 %v3694
    %3925 = vmatpush.bf16.msra.mxu0 %v3690
    %3926 = vmatpush.bf16.msra.mxu0 %v3686
    %3927 = vmatpush.bf16.msra.mxu0 %v3682
    %3928 = vmatmul.bf16.gmra.mxu0 %v3124
    %v3929 = vpop.f32.mrf.mxu0
    %v3930 = vadd.f32 %v3916, %v3929
    %v3931 = vpop.f32.mrf.mxu0
    %v3932 = vadd.f32 %v3918, %v3931
    %3933 = vdwg.mxu0
    %3934 = vmatpush.bf16.msra.mxu0 %v3742
    %3935 = vmatpush.bf16.msra.mxu0 %v3738
    %3936 = vmatpush.bf16.msra.mxu0 %v3734
    %3937 = vmatpush.bf16.msra.mxu0 %v3730
    %3938 = vmatpush.bf16.msra.mxu0 %v3726
    %3939 = vmatpush.bf16.msra.mxu0 %v3722
    %3940 = vmatpush.bf16.msra.mxu0 %v3718
    %3941 = vmatpush.bf16.msra.mxu0 %v3714
    %3942 = vmatmul.bf16.gmra.mxu0 %v3125
    %v3943 = vpop.f32.mrf.mxu0
    %v3944 = vadd.f32 %v3930, %v3943
    %v3945 = vpop.f32.mrf.mxu0
    %v3946 = vadd.f32 %v3932, %v3945
    %3947 = vdwg.mxu0
    %3948 = vmatpush.bf16.msra.mxu0 %v3774
    %3949 = vmatpush.bf16.msra.mxu0 %v3770
    %3950 = vmatpush.bf16.msra.mxu0 %v3766
    %3951 = vmatpush.bf16.msra.mxu0 %v3762
    %3952 = vmatpush.bf16.msra.mxu0 %v3758
    %3953 = vmatpush.bf16.msra.mxu0 %v3754
    %3954 = vmatpush.bf16.msra.mxu0 %v3750
    %3955 = vmatpush.bf16.msra.mxu0 %v3746
    %3956 = vmatmul.bf16.gmra.mxu0 %v3126
    %v3957 = vpop.f32.mrf.mxu0
    %v3958 = vadd.f32 %v3944, %v3957
    %v3959 = vpop.f32.mrf.mxu0
    %v3960 = vadd.f32 %v3946, %v3959
    %3961 = vdwg.mxu0
    %3962 = vmatpush.bf16.msra.mxu0 %v3679
    %3963 = vmatpush.bf16.msra.mxu0 %v3675
    %3964 = vmatpush.bf16.msra.mxu0 %v3671
    %3965 = vmatpush.bf16.msra.mxu0 %v3667
    %3966 = vmatpush.bf16.msra.mxu0 %v3663
    %3967 = vmatpush.bf16.msra.mxu0 %v3659
    %3968 = vmatpush.bf16.msra.mxu0 %v3655
    %3969 = vmatpush.bf16.msra.mxu0 %v3651
    %3970 = vmatmul.bf16.gmra.mxu0 %v3123
    %v3971 = vpop.f32.mrf.mxu0
    %v3972 = vadd.f32 %v3259, %v3971
    %v3973 = vpop.f32.mrf.mxu0
    %v3974 = vadd.f32 %v3259, %v3973
    %3975 = vdwg.mxu0
    %3976 = vmatpush.bf16.msra.mxu0 %v3711
    %3977 = vmatpush.bf16.msra.mxu0 %v3707
    %3978 = vmatpush.bf16.msra.mxu0 %v3703
    %3979 = vmatpush.bf16.msra.mxu0 %v3699
    %3980 = vmatpush.bf16.msra.mxu0 %v3695
    %3981 = vmatpush.bf16.msra.mxu0 %v3691
    %3982 = vmatpush.bf16.msra.mxu0 %v3687
    %3983 = vmatpush.bf16.msra.mxu0 %v3683
    %3984 = vmatmul.bf16.gmra.mxu0 %v3124
    %v3985 = vpop.f32.mrf.mxu0
    %v3986 = vadd.f32 %v3972, %v3985
    %v3987 = vpop.f32.mrf.mxu0
    %v3988 = vadd.f32 %v3974, %v3987
    %3989 = vdwg.mxu0
    %3990 = vmatpush.bf16.msra.mxu0 %v3743
    %3991 = vmatpush.bf16.msra.mxu0 %v3739
    %3992 = vmatpush.bf16.msra.mxu0 %v3735
    %3993 = vmatpush.bf16.msra.mxu0 %v3731
    %3994 = vmatpush.bf16.msra.mxu0 %v3727
    %3995 = vmatpush.bf16.msra.mxu0 %v3723
    %3996 = vmatpush.bf16.msra.mxu0 %v3719
    %3997 = vmatpush.bf16.msra.mxu0 %v3715
    %3998 = vmatmul.bf16.gmra.mxu0 %v3125
    %v3999 = vpop.f32.mrf.mxu0
    %v4000 = vadd.f32 %v3986, %v3999
    %v4001 = vpop.f32.mrf.mxu0
    %v4002 = vadd.f32 %v3988, %v4001
    %4003 = vdwg.mxu0
    %4004 = vmatpush.bf16.msra.mxu0 %v3775
    %4005 = vmatpush.bf16.msra.mxu0 %v3771
    %4006 = vmatpush.bf16.msra.mxu0 %v3767
    %4007 = vmatpush.bf16.msra.mxu0 %v3763
    %4008 = vmatpush.bf16.msra.mxu0 %v3759
    %4009 = vmatpush.bf16.msra.mxu0 %v3755
    %4010 = vmatpush.bf16.msra.mxu0 %v3751
    %4011 = vmatpush.bf16.msra.mxu0 %v3747
    %4012 = vmatmul.bf16.gmra.mxu0 %v3126
    %v4013 = vpop.f32.mrf.mxu0
    %v4014 = vadd.f32 %v4000, %v4013
    %v4015 = vpop.f32.mrf.mxu0
    %v4016 = vadd.f32 %v4002, %v4015
    %4017 = vdwg.mxu0
    %4018 = vmatpush.bf16.msra.mxu0 %v3680
    %4019 = vmatpush.bf16.msra.mxu0 %v3676
    %4020 = vmatpush.bf16.msra.mxu0 %v3672
    %4021 = vmatpush.bf16.msra.mxu0 %v3668
    %4022 = vmatpush.bf16.msra.mxu0 %v3664
    %4023 = vmatpush.bf16.msra.mxu0 %v3660
    %4024 = vmatpush.bf16.msra.mxu0 %v3656
    %4025 = vmatpush.bf16.msra.mxu0 %v3652
    %4026 = vmatmul.bf16.gmra.mxu0 %v3123
    %v4027 = vpop.f32.mrf.mxu0
    %v4028 = vadd.f32 %v3260, %v4027
    %v4029 = vpop.f32.mrf.mxu0
    %v4030 = vadd.f32 %v3260, %v4029
    %4031 = vdwg.mxu0
    %4032 = vmatpush.bf16.msra.mxu0 %v3712
    %4033 = vmatpush.bf16.msra.mxu0 %v3708
    %4034 = vmatpush.bf16.msra.mxu0 %v3704
    %4035 = vmatpush.bf16.msra.mxu0 %v3700
    %4036 = vmatpush.bf16.msra.mxu0 %v3696
    %4037 = vmatpush.bf16.msra.mxu0 %v3692
    %4038 = vmatpush.bf16.msra.mxu0 %v3688
    %4039 = vmatpush.bf16.msra.mxu0 %v3684
    %4040 = vmatmul.bf16.gmra.mxu0 %v3124
    %v4041 = vpop.f32.mrf.mxu0
    %v4042 = vadd.f32 %v4028, %v4041
    %v4043 = vpop.f32.mrf.mxu0
    %v4044 = vadd.f32 %v4030, %v4043
    %4045 = vdwg.mxu0
    %4046 = vmatpush.bf16.msra.mxu0 %v3744
    %4047 = vmatpush.bf16.msra.mxu0 %v3740
    %4048 = vmatpush.bf16.msra.mxu0 %v3736
    %4049 = vmatpush.bf16.msra.mxu0 %v3732
    %4050 = vmatpush.bf16.msra.mxu0 %v3728
    %4051 = vmatpush.bf16.msra.mxu0 %v3724
    %4052 = vmatpush.bf16.msra.mxu0 %v3720
    %4053 = vmatpush.bf16.msra.mxu0 %v3716
    %4054 = vmatmul.bf16.gmra.mxu0 %v3125
    %v4055 = vpop.f32.mrf.mxu0
    %v4056 = vadd.f32 %v4042, %v4055
    %v4057 = vpop.f32.mrf.mxu0
    %v4058 = vadd.f32 %v4044, %v4057
    %4059 = vdwg.mxu0
    %4060 = vmatpush.bf16.msra.mxu0 %v3776
    %4061 = vmatpush.bf16.msra.mxu0 %v3772
    %4062 = vmatpush.bf16.msra.mxu0 %v3768
    %4063 = vmatpush.bf16.msra.mxu0 %v3764
    %4064 = vmatpush.bf16.msra.mxu0 %v3760
    %4065 = vmatpush.bf16.msra.mxu0 %v3756
    %4066 = vmatpush.bf16.msra.mxu0 %v3752
    %4067 = vmatpush.bf16.msra.mxu0 %v3748
    %4068 = vmatmul.bf16.gmra.mxu0 %v3126
    %v4069 = vpop.f32.mrf.mxu0
    %v4070 = vadd.f32 %v4056, %v4069
    %v4071 = vpop.f32.mrf.mxu0
    %v4072 = vadd.f32 %v4058, %v4071
    %4073 = vdwg.mxu0
    %4074 = vmatpush.bf16.msra.mxu0 %v3681
    %4075 = vmatpush.bf16.msra.mxu0 %v3677
    %4076 = vmatpush.bf16.msra.mxu0 %v3673
    %4077 = vmatpush.bf16.msra.mxu0 %v3669
    %4078 = vmatpush.bf16.msra.mxu0 %v3665
    %4079 = vmatpush.bf16.msra.mxu0 %v3661
    %4080 = vmatpush.bf16.msra.mxu0 %v3657
    %4081 = vmatpush.bf16.msra.mxu0 %v3653
    %4082 = vmatmul.bf16.gmra.mxu0 %v3123
    %v4083 = vpop.f32.mrf.mxu0
    %v4084 = vadd.f32 %v3261, %v4083
    %v4085 = vpop.f32.mrf.mxu0
    %v4086 = vadd.f32 %v3261, %v4085
    %4087 = vdwg.mxu0
    %4088 = vmatpush.bf16.msra.mxu0 %v3713
    %4089 = vmatpush.bf16.msra.mxu0 %v3709
    %4090 = vmatpush.bf16.msra.mxu0 %v3705
    %4091 = vmatpush.bf16.msra.mxu0 %v3701
    %4092 = vmatpush.bf16.msra.mxu0 %v3697
    %4093 = vmatpush.bf16.msra.mxu0 %v3693
    %4094 = vmatpush.bf16.msra.mxu0 %v3689
    %4095 = vmatpush.bf16.msra.mxu0 %v3685
    %4096 = vmatmul.bf16.gmra.mxu0 %v3124
    %v4097 = vpop.f32.mrf.mxu0
    %v4098 = vadd.f32 %v4084, %v4097
    %v4099 = vpop.f32.mrf.mxu0
    %v4100 = vadd.f32 %v4086, %v4099
    %4101 = vdwg.mxu0
    %4102 = vmatpush.bf16.msra.mxu0 %v3745
    %4103 = vmatpush.bf16.msra.mxu0 %v3741
    %4104 = vmatpush.bf16.msra.mxu0 %v3737
    %4105 = vmatpush.bf16.msra.mxu0 %v3733
    %4106 = vmatpush.bf16.msra.mxu0 %v3729
    %4107 = vmatpush.bf16.msra.mxu0 %v3725
    %4108 = vmatpush.bf16.msra.mxu0 %v3721
    %4109 = vmatpush.bf16.msra.mxu0 %v3717
    %4110 = vmatmul.bf16.gmra.mxu0 %v3125
    %v4111 = vpop.f32.mrf.mxu0
    %v4112 = vadd.f32 %v4098, %v4111
    %v4113 = vpop.f32.mrf.mxu0
    %v4114 = vadd.f32 %v4100, %v4113
    %4115 = vdwg.mxu0
    %4116 = vmatpush.bf16.msra.mxu0 %v3777
    %4117 = vmatpush.bf16.msra.mxu0 %v3773
    %4118 = vmatpush.bf16.msra.mxu0 %v3769
    %4119 = vmatpush.bf16.msra.mxu0 %v3765
    %4120 = vmatpush.bf16.msra.mxu0 %v3761
    %4121 = vmatpush.bf16.msra.mxu0 %v3757
    %4122 = vmatpush.bf16.msra.mxu0 %v3753
    %4123 = vmatpush.bf16.msra.mxu0 %v3749
    %4124 = vmatmul.bf16.gmra.mxu0 %v3126
    %v4125 = vpop.f32.mrf.mxu0
    %v4126 = vadd.f32 %v4112, %v4125
    %v4127 = vpop.f32.mrf.mxu0
    %v4128 = vadd.f32 %v4114, %v4127
    %4129 = vdwg.mxu0
    %v4130 = vmax.f32 %v3958, 0.0
    %v4131 = vmax.f32 %v4014, 0.0
    %v4132 = vmax.f32 %v4070, 0.0
    %v4133 = vmax.f32 %v4126, 0.0
    %v4134 = vmax.f32 %v3960, 0.0
    %v4135 = vmax.f32 %v4016, 0.0
    %v4136 = vmax.f32 %v4072, 0.0
    %v4137 = vmax.f32 %v4128, 0.0
    %v4138 = vpack.c.bf16 %v4134, %v4130
    %v4139 = vpack.c.bf16 %v4135, %v4131
    %v4140 = vpack.c.bf16 %v4136, %v4132
    %v4141 = vpack.c.bf16 %v4137, %v4133
    %v4142 = vld [vmem:[#allocation3 + $0x20] sm:$0xff]
    %v4143 = vld [vmem:[#allocation3 + $0x28] sm:$0xf]
    %v4144 = vld [vmem:[#allocation3 + $0x8c] sm:$0xff]
    %v4145 = vld [vmem:[#allocation3 + $0x94] sm:$0xf]
    %v4146 = vld [vmem:[#allocation3 + $0xf8] sm:$0xff]
    %v4147 = vld [vmem:[#allocation3 + $0x100] sm:$0xf]
    %v4148 = vld [vmem:[#allocation3 + $0x164] sm:$0xff]
    %v4149 = vld [vmem:[#allocation3 + $0x16c] sm:$0xf]
    %v4150 = vld [vmem:[#allocation3 + $0x1d0] sm:$0xff]
    %v4151 = vld [vmem:[#allocation3 + $0x1d8] sm:$0xf]
    %v4152 = vld [vmem:[#allocation3 + $0x23c] sm:$0xff]
    %v4153 = vld [vmem:[#allocation3 + $0x244] sm:$0xf]
    %v4154 = vld [vmem:[#allocation3 + $0x2a8] sm:$0xff]
    %v4155 = vld [vmem:[#allocation3 + $0x2b0] sm:$0xf]
    %v4156 = vld [vmem:[#allocation3 + $0x314] sm:$0xff]
    %v4157 = vld [vmem:[#allocation3 + $0x31c] sm:$0xf]
    %v4158 = vld [vmem:[#allocation3 + $0x380] sm:$0xff]
    %v4159 = vld [vmem:[#allocation3 + $0x388] sm:$0xf]
    %v4160 = vld [vmem:[#allocation3 + $0x3ec] sm:$0xff]
    %v4161 = vld [vmem:[#allocation3 + $0x3f4] sm:$0xf]
    %v4162 = vld [vmem:[#allocation3 + $0x458] sm:$0xff]
    %v4163 = vld [vmem:[#allocation3 + $0x460] sm:$0xf]
    %v4164 = vld [vmem:[#allocation3 + $0x4c4] sm:$0xff]
    %v4165 = vld [vmem:[#allocation3 + $0x4cc] sm:$0xf]
    %v4166 = vld [vmem:[#allocation3 + $0x530] sm:$0xff]
    %v4167 = vld [vmem:[#allocation3 + $0x538] sm:$0xf]
    %v4168 = vld [vmem:[#allocation3 + $0x59c] sm:$0xff]
    %v4169 = vld [vmem:[#allocation3 + $0x5a4] sm:$0xf]
    %v4170 = vld [vmem:[#allocation3 + $0x608] sm:$0xff]
    %v4171 = vld [vmem:[#allocation3 + $0x610] sm:$0xf]
    %v4172 = vld [vmem:[#allocation3 + $0x674] sm:$0xff]
    %v4173 = vld [vmem:[#allocation3 + $0x67c] sm:$0xf]
    %v4174 = vld [vmem:[#allocation3 + $0x6e0] sm:$0xff]
    %v4175 = vld [vmem:[#allocation3 + $0x6e8] sm:$0xf]
    %v4176 = vld [vmem:[#allocation3 + $0x74c] sm:$0xff]
    %v4177 = vld [vmem:[#allocation3 + $0x754] sm:$0xf]
    %v4178 = vld [vmem:[#allocation3 + $0x7b8] sm:$0xff]
    %v4179 = vld [vmem:[#allocation3 + $0x7c0] sm:$0xf]
    %v4180 = vld [vmem:[#allocation3 + $0x824] sm:$0xff]
    %v4181 = vld [vmem:[#allocation3 + $0x82c] sm:$0xf]
    %v4182 = vld [vmem:[#allocation3 + $0x890] sm:$0xff]
    %v4183 = vld [vmem:[#allocation3 + $0x898] sm:$0xf]
    %v4184 = vld [vmem:[#allocation3 + $0x8fc] sm:$0xff]
    %v4185 = vld [vmem:[#allocation3 + $0x904] sm:$0xf]
    %v4186 = vld [vmem:[#allocation3 + $0x968] sm:$0xff]
    %v4187 = vld [vmem:[#allocation3 + $0x970] sm:$0xf]
    %v4188 = vld [vmem:[#allocation3 + $0x9d4] sm:$0xff]
    %v4189 = vld [vmem:[#allocation3 + $0x9dc] sm:$0xf]
    %v4190 = vld [vmem:[#allocation3 + $0xa40] sm:$0xff]
    %v4191 = vld [vmem:[#allocation3 + $0xa48] sm:$0xf]
    %v4192 = vld [vmem:[#allocation3 + $0xaac] sm:$0xff]
    %v4193 = vld [vmem:[#allocation3 + $0xab4] sm:$0xf]
    %v4194 = vld [vmem:[#allocation3 + $0xb18] sm:$0xff]
    %v4195 = vld [vmem:[#allocation3 + $0xb20] sm:$0xf]
    %v4196 = vld [vmem:[#allocation3 + $0xb84] sm:$0xff]
    %v4197 = vld [vmem:[#allocation3 + $0xb8c] sm:$0xf]
    %v4198 = vld [vmem:[#allocation3 + $0xbf0] sm:$0xff]
    %v4199 = vld [vmem:[#allocation3 + $0xbf8] sm:$0xf]
    %v4200 = vld [vmem:[#allocation3 + $0xc5c] sm:$0xff]
    %v4201 = vld [vmem:[#allocation3 + $0xc64] sm:$0xf]
    %v4202 = vld [vmem:[#allocation3 + $0xcc8] sm:$0xff]
    %v4203 = vld [vmem:[#allocation3 + $0xcd0] sm:$0xf]
    %v4204 = vld [vmem:[#allocation3 + $0xd34] sm:$0xff]
    %v4205 = vld [vmem:[#allocation3 + $0xd3c] sm:$0xf]
    %v4206 = vld [vmem:[#allocation3 + $0xda0] sm:$0xff]
    %v4207 = vld [vmem:[#allocation3 + $0xda8] sm:$0xf]
    %v4208 = vld [vmem:[#allocation3 + $0xe0c] sm:$0xff]
    %v4209 = vld [vmem:[#allocation3 + $0xe14] sm:$0xf]
    %v4210 = vld [vmem:[#allocation3 + $0xe78] sm:$0xff]
    %v4211 = vld [vmem:[#allocation3 + $0xe80] sm:$0xf]
    %v4212 = vld [vmem:[#allocation3 + $0xee4] sm:$0xff]
    %v4213 = vld [vmem:[#allocation3 + $0xeec] sm:$0xf]
    %v4214 = vld [vmem:[#allocation3 + $0xf50] sm:$0xff]
    %v4215 = vld [vmem:[#allocation3 + $0xf58] sm:$0xf]
    %v4216 = vld [vmem:[#allocation3 + $0xfbc] sm:$0xff]
    %v4217 = vld [vmem:[#allocation3 + $0xfc4] sm:$0xf]
    %v4218 = vld [vmem:[#allocation3 + $0x1028] sm:$0xff]
    %v4219 = vld [vmem:[#allocation3 + $0x1030] sm:$0xf]
    %v4220 = vld [vmem:[#allocation3 + $0x1094] sm:$0xff]
    %v4221 = vld [vmem:[#allocation3 + $0x109c] sm:$0xf]
    %v4222 = vld [vmem:[#allocation3 + $0x1100] sm:$0xff]
    %v4223 = vld [vmem:[#allocation3 + $0x1108] sm:$0xf]
    %v4224 = vld [vmem:[#allocation3 + $0x116c] sm:$0xff]
    %v4225 = vld [vmem:[#allocation3 + $0x1174] sm:$0xf]
    %v4226 = vld [vmem:[#allocation3 + $0x11d8] sm:$0xff]
    %v4227 = vld [vmem:[#allocation3 + $0x11e0] sm:$0xf]
    %v4228 = vld [vmem:[#allocation3 + $0x1244] sm:$0xff]
    %v4229 = vld [vmem:[#allocation3 + $0x124c] sm:$0xf]
    %v4230 = vld [vmem:[#allocation3 + $0x12b0] sm:$0xff]
    %v4231 = vld [vmem:[#allocation3 + $0x12b8] sm:$0xf]
    %v4232 = vld [vmem:[#allocation3 + $0x131c] sm:$0xff]
    %v4233 = vld [vmem:[#allocation3 + $0x1324] sm:$0xf]
    %v4234 = vld [vmem:[#allocation3 + $0x1388] sm:$0xff]
    %v4235 = vld [vmem:[#allocation3 + $0x1390] sm:$0xf]
    %v4236 = vld [vmem:[#allocation3 + $0x13f4] sm:$0xff]
    %v4237 = vld [vmem:[#allocation3 + $0x13fc] sm:$0xf]
    %v4238 = vld [vmem:[#allocation3 + $0x1460] sm:$0xff]
    %v4239 = vld [vmem:[#allocation3 + $0x1468] sm:$0xf]
    %v4240 = vld [vmem:[#allocation3 + $0x14cc] sm:$0xff]
    %v4241 = vld [vmem:[#allocation3 + $0x14d4] sm:$0xf]
    %v4242 = vld [vmem:[#allocation3 + $0x1538] sm:$0xff]
    %v4243 = vld [vmem:[#allocation3 + $0x1540] sm:$0xf]
    %v4244 = vld [vmem:[#allocation3 + $0x15a4] sm:$0xff]
    %v4245 = vld [vmem:[#allocation3 + $0x15ac] sm:$0xf]
    %v4246 = vld [vmem:[#allocation3 + $0x1610] sm:$0xff]
    %v4247 = vld [vmem:[#allocation3 + $0x1618] sm:$0xf]
    %v4248 = vld [vmem:[#allocation3 + $0x167c] sm:$0xff]
    %v4249 = vld [vmem:[#allocation3 + $0x1684] sm:$0xf]
    %v4250 = vld [vmem:[#allocation3 + $0x16e8] sm:$0xff]
    %v4251 = vld [vmem:[#allocation3 + $0x16f0] sm:$0xf]
    %v4252 = vld [vmem:[#allocation3 + $0x1754] sm:$0xff]
    %v4253 = vld [vmem:[#allocation3 + $0x175c] sm:$0xf]
    %v4254 = vld [vmem:[#allocation3 + $0x17c0] sm:$0xff]
    %v4255 = vld [vmem:[#allocation3 + $0x17c8] sm:$0xf]
    %v4256 = vld [vmem:[#allocation3 + $0x182c] sm:$0xff]
    %v4257 = vld [vmem:[#allocation3 + $0x1834] sm:$0xf]
    %v4258 = vld [vmem:[#allocation3 + $0x1898] sm:$0xff]
    %v4259 = vld [vmem:[#allocation3 + $0x18a0] sm:$0xf]
    %v4260 = vld [vmem:[#allocation3 + $0x1904] sm:$0xff]
    %v4261 = vld [vmem:[#allocation3 + $0x190c] sm:$0xf]
    %v4262 = vld [vmem:[#allocation3 + $0x1970] sm:$0xff]
    %v4263 = vld [vmem:[#allocation3 + $0x1978] sm:$0xf]
    %v4264 = vld [vmem:[#allocation3 + $0x19dc] sm:$0xff]
    %v4265 = vld [vmem:[#allocation3 + $0x19e4] sm:$0xf]
    %v4266 = vld [vmem:[#allocation3 + $0x1a48] sm:$0xff]
    %v4267 = vld [vmem:[#allocation3 + $0x1a50] sm:$0xf]
    %v4268 = vld [vmem:[#allocation3 + $0x1ab4] sm:$0xff]
    %v4269 = vld [vmem:[#allocation3 + $0x1abc] sm:$0xf]
    %s4270 = scalar_lea.vmem [#allocation6], 3
    %v4271 = vld [vmem:[%s4270] ss:$8 sm:$0x7]
    %v4273 = vperm.slane %v4271, 0
    %v4274 = vperm.slane %v4271, 1
    %v4275 = vperm.slane %v4271, 2
    %v4407 = vunpack.c.l.b16 %v4142
    %v4408 = vunpack.c.h.b16 %v4142
    %v4409 = vunpack.c.l.b16 %v4143
    %v4410 = vunpack.c.l.b16 %v4144
    %v4411 = vunpack.c.h.b16 %v4144
    %v4412 = vunpack.c.l.b16 %v4145
    %v4413 = vunpack.c.l.b16 %v4146
    %v4414 = vunpack.c.h.b16 %v4146
    %v4415 = vunpack.c.l.b16 %v4147
    %v4416 = vunpack.c.l.b16 %v4148
    %v4417 = vunpack.c.h.b16 %v4148
    %v4418 = vunpack.c.l.b16 %v4149
    %v4419 = vunpack.c.l.b16 %v4150
    %v4420 = vunpack.c.h.b16 %v4150
    %v4421 = vunpack.c.l.b16 %v4151
    %v4422 = vunpack.c.l.b16 %v4152
    %v4423 = vunpack.c.h.b16 %v4152
    %v4424 = vunpack.c.l.b16 %v4153
    %v4425 = vunpack.c.l.b16 %v4154
    %v4426 = vunpack.c.h.b16 %v4154
    %v4427 = vunpack.c.l.b16 %v4155
    %v4428 = vunpack.c.l.b16 %v4156
    %v4429 = vunpack.c.h.b16 %v4156
    %v4430 = vunpack.c.l.b16 %v4157
    %v4431 = vunpack.c.l.b16 %v4158
    %v4432 = vunpack.c.h.b16 %v4158
    %v4433 = vunpack.c.l.b16 %v4159
    %v4434 = vunpack.c.l.b16 %v4160
    %v4435 = vunpack.c.h.b16 %v4160
    %v4436 = vunpack.c.l.b16 %v4161
    %v4437 = vunpack.c.l.b16 %v4162
    %v4438 = vunpack.c.h.b16 %v4162
    %v4439 = vunpack.c.l.b16 %v4163
    %v4440 = vunpack.c.l.b16 %v4164
    %v4441 = vunpack.c.h.b16 %v4164
    %v4442 = vunpack.c.l.b16 %v4165
    %v4443 = vunpack.c.l.b16 %v4166
    %v4444 = vunpack.c.h.b16 %v4166
    %v4445 = vunpack.c.l.b16 %v4167
    %v4446 = vunpack.c.l.b16 %v4168
    %v4447 = vunpack.c.h.b16 %v4168
    %v4448 = vunpack.c.l.b16 %v4169
    %v4449 = vunpack.c.l.b16 %v4170
    %v4450 = vunpack.c.h.b16 %v4170
    %v4451 = vunpack.c.l.b16 %v4171
    %v4452 = vunpack.c.l.b16 %v4172
    %v4453 = vunpack.c.h.b16 %v4172
    %v4454 = vunpack.c.l.b16 %v4173
    %v4455 = vunpack.c.l.b16 %v4174
    %v4456 = vunpack.c.h.b16 %v4174
    %v4457 = vunpack.c.l.b16 %v4175
    %v4458 = vunpack.c.l.b16 %v4176
    %v4459 = vunpack.c.h.b16 %v4176
    %v4460 = vunpack.c.l.b16 %v4177
    %v4461 = vunpack.c.l.b16 %v4178
    %v4462 = vunpack.c.h.b16 %v4178
    %v4463 = vunpack.c.l.b16 %v4179
    %v4464 = vunpack.c.l.b16 %v4180
    %v4465 = vunpack.c.h.b16 %v4180
    %v4466 = vunpack.c.l.b16 %v4181
    %v4467 = vunpack.c.l.b16 %v4182
    %v4468 = vunpack.c.h.b16 %v4182
    %v4469 = vunpack.c.l.b16 %v4183
    %v4470 = vunpack.c.l.b16 %v4184
    %v4471 = vunpack.c.h.b16 %v4184
    %v4472 = vunpack.c.l.b16 %v4185
    %v4473 = vunpack.c.l.b16 %v4186
    %v4474 = vunpack.c.h.b16 %v4186
    %v4475 = vunpack.c.l.b16 %v4187
    %v4476 = vunpack.c.l.b16 %v4188
    %v4477 = vunpack.c.h.b16 %v4188
    %v4478 = vunpack.c.l.b16 %v4189
    %v4479 = vunpack.c.l.b16 %v4190
    %v4480 = vunpack.c.h.b16 %v4190
    %v4481 = vunpack.c.l.b16 %v4191
    %v4482 = vunpack.c.l.b16 %v4192
    %v4483 = vunpack.c.h.b16 %v4192
    %v4484 = vunpack.c.l.b16 %v4193
    %v4485 = vunpack.c.l.b16 %v4194
    %v4486 = vunpack.c.h.b16 %v4194
    %v4487 = vunpack.c.l.b16 %v4195
    %v4488 = vunpack.c.l.b16 %v4196
    %v4489 = vunpack.c.h.b16 %v4196
    %v4490 = vunpack.c.l.b16 %v4197
    %v4491 = vunpack.c.l.b16 %v4198
    %v4492 = vunpack.c.h.b16 %v4198
    %v4493 = vunpack.c.l.b16 %v4199
    %v4494 = vunpack.c.l.b16 %v4200
    %v4495 = vunpack.c.h.b16 %v4200
    %v4496 = vunpack.c.l.b16 %v4201
    %v4497 = vunpack.c.l.b16 %v4202
    %v4498 = vunpack.c.h.b16 %v4202
    %v4499 = vunpack.c.l.b16 %v4203
    %v4500 = vunpack.c.l.b16 %v4204
    %v4501 = vunpack.c.h.b16 %v4204
    %v4502 = vunpack.c.l.b16 %v4205
    %v4503 = vunpack.c.l.b16 %v4206
    %v4504 = vunpack.c.h.b16 %v4206
    %v4505 = vunpack.c.l.b16 %v4207
    %v4506 = vunpack.c.l.b16 %v4208
    %v4507 = vunpack.c.h.b16 %v4208
    %v4508 = vunpack.c.l.b16 %v4209
    %v4509 = vunpack.c.l.b16 %v4210
    %v4510 = vunpack.c.h.b16 %v4210
    %v4511 = vunpack.c.l.b16 %v4211
    %v4512 = vunpack.c.l.b16 %v4212
    %v4513 = vunpack.c.h.b16 %v4212
    %v4514 = vunpack.c.l.b16 %v4213
    %v4515 = vunpack.c.l.b16 %v4214
    %v4516 = vunpack.c.h.b16 %v4214
    %v4517 = vunpack.c.l.b16 %v4215
    %v4518 = vunpack.c.l.b16 %v4216
    %v4519 = vunpack.c.h.b16 %v4216
    %v4520 = vunpack.c.l.b16 %v4217
    %v4521 = vunpack.c.l.b16 %v4218
    %v4522 = vunpack.c.h.b16 %v4218
    %v4523 = vunpack.c.l.b16 %v4219
    %v4524 = vunpack.c.l.b16 %v4220
    %v4525 = vunpack.c.h.b16 %v4220
    %v4526 = vunpack.c.l.b16 %v4221
    %v4527 = vunpack.c.l.b16 %v4222
    %v4528 = vunpack.c.h.b16 %v4222
    %v4529 = vunpack.c.l.b16 %v4223
    %v4530 = vunpack.c.l.b16 %v4224
    %v4531 = vunpack.c.h.b16 %v4224
    %v4532 = vunpack.c.l.b16 %v4225
    %v4533 = vunpack.c.l.b16 %v4226
    %v4534 = vunpack.c.h.b16 %v4226
    %v4535 = vunpack.c.l.b16 %v4227
    %v4536 = vunpack.c.l.b16 %v4228
    %v4537 = vunpack.c.h.b16 %v4228
    %v4538 = vunpack.c.l.b16 %v4229
    %v4539 = vunpack.c.l.b16 %v4230
    %v4540 = vunpack.c.h.b16 %v4230
    %v4541 = vunpack.c.l.b16 %v4231
    %v4542 = vunpack.c.l.b16 %v4232
    %v4543 = vunpack.c.h.b16 %v4232
    %v4544 = vunpack.c.l.b16 %v4233
    %v4545 = vunpack.c.l.b16 %v4234
    %v4546 = vunpack.c.h.b16 %v4234
    %v4547 = vunpack.c.l.b16 %v4235
    %v4548 = vunpack.c.l.b16 %v4236
    %v4549 = vunpack.c.h.b16 %v4236
    %v4550 = vunpack.c.l.b16 %v4237
    %v4551 = vunpack.c.l.b16 %v4238
    %v4552 = vunpack.c.h.b16 %v4238
    %v4553 = vunpack.c.l.b16 %v4239
    %v4554 = vunpack.c.l.b16 %v4240
    %v4555 = vunpack.c.h.b16 %v4240
    %v4556 = vunpack.c.l.b16 %v4241
    %v4557 = vunpack.c.l.b16 %v4242
    %v4558 = vunpack.c.h.b16 %v4242
    %v4559 = vunpack.c.l.b16 %v4243
    %v4560 = vunpack.c.l.b16 %v4244
    %v4561 = vunpack.c.h.b16 %v4244
    %v4562 = vunpack.c.l.b16 %v4245
    %v4563 = vunpack.c.l.b16 %v4246
    %v4564 = vunpack.c.h.b16 %v4246
    %v4565 = vunpack.c.l.b16 %v4247
    %v4566 = vunpack.c.l.b16 %v4248
    %v4567 = vunpack.c.h.b16 %v4248
    %v4568 = vunpack.c.l.b16 %v4249
    %v4569 = vunpack.c.l.b16 %v4250
    %v4570 = vunpack.c.h.b16 %v4250
    %v4571 = vunpack.c.l.b16 %v4251
    %v4572 = vunpack.c.l.b16 %v4252
    %v4573 = vunpack.c.h.b16 %v4252
    %v4574 = vunpack.c.l.b16 %v4253
    %v4575 = vunpack.c.l.b16 %v4254
    %v4576 = vunpack.c.h.b16 %v4254
    %v4577 = vunpack.c.l.b16 %v4255
    %v4578 = vunpack.c.l.b16 %v4256
    %v4579 = vunpack.c.h.b16 %v4256
    %v4580 = vunpack.c.l.b16 %v4257
    %v4581 = vunpack.c.l.b16 %v4258
    %v4582 = vunpack.c.h.b16 %v4258
    %v4583 = vunpack.c.l.b16 %v4259
    %v4584 = vunpack.c.l.b16 %v4260
    %v4585 = vunpack.c.h.b16 %v4260
    %v4586 = vunpack.c.l.b16 %v4261
    %v4587 = vunpack.c.l.b16 %v4262
    %v4588 = vunpack.c.h.b16 %v4262
    %v4589 = vunpack.c.l.b16 %v4263
    %v4590 = vunpack.c.l.b16 %v4264
    %v4591 = vunpack.c.h.b16 %v4264
    %v4592 = vunpack.c.l.b16 %v4265
    %v4593 = vunpack.c.l.b16 %v4266
    %v4594 = vunpack.c.h.b16 %v4266
    %v4595 = vunpack.c.l.b16 %v4267
    %v4596 = vunpack.c.l.b16 %v4268
    %v4597 = vunpack.c.h.b16 %v4268
    %v4598 = vunpack.c.l.b16 %v4269
    %v4599 = vpack.c.b16 %v4410, %v4407
    %v4600 = vpack.c.b16 %v4411, %v4408
    %v4601 = vpack.c.b16 %v4412, %v4409
    %v4602 = vpack.c.b16 %v4416, %v4413
    %v4603 = vpack.c.b16 %v4417, %v4414
    %v4604 = vpack.c.b16 %v4418, %v4415
    %v4605 = vpack.c.b16 %v4422, %v4419
    %v4606 = vpack.c.b16 %v4423, %v4420
    %v4607 = vpack.c.b16 %v4424, %v4421
    %v4608 = vpack.c.b16 %v4428, %v4425
    %v4609 = vpack.c.b16 %v4429, %v4426
    %v4610 = vpack.c.b16 %v4430, %v4427
    %v4611 = vpack.c.b16 %v4434, %v4431
    %v4612 = vpack.c.b16 %v4435, %v4432
    %v4613 = vpack.c.b16 %v4436, %v4433
    %v4614 = vpack.c.b16 %v4440, %v4437
    %v4615 = vpack.c.b16 %v4441, %v4438
    %v4616 = vpack.c.b16 %v4442, %v4439
    %v4617 = vpack.c.b16 %v4446, %v4443
    %v4618 = vpack.c.b16 %v4447, %v4444
    %v4619 = vpack.c.b16 %v4448, %v4445
    %v4620 = vpack.c.b16 %v4452, %v4449
    %v4621 = vpack.c.b16 %v4453, %v4450
    %v4622 = vpack.c.b16 %v4454, %v4451
    %v4623 = vpack.c.b16 %v4458, %v4455
    %v4624 = vpack.c.b16 %v4459, %v4456
    %v4625 = vpack.c.b16 %v4460, %v4457
    %v4626 = vpack.c.b16 %v4464, %v4461
    %v4627 = vpack.c.b16 %v4465, %v4462
    %v4628 = vpack.c.b16 %v4466, %v4463
    %v4629 = vpack.c.b16 %v4470, %v4467
    %v4630 = vpack.c.b16 %v4471, %v4468
    %v4631 = vpack.c.b16 %v4472, %v4469
    %v4632 = vpack.c.b16 %v4476, %v4473
    %v4633 = vpack.c.b16 %v4477, %v4474
    %v4634 = vpack.c.b16 %v4478, %v4475
    %v4635 = vpack.c.b16 %v4482, %v4479
    %v4636 = vpack.c.b16 %v4483, %v4480
    %v4637 = vpack.c.b16 %v4484, %v4481
    %v4638 = vpack.c.b16 %v4488, %v4485
    %v4639 = vpack.c.b16 %v4489, %v4486
    %v4640 = vpack.c.b16 %v4490, %v4487
    %v4641 = vpack.c.b16 %v4494, %v4491
    %v4642 = vpack.c.b16 %v4495, %v4492
    %v4643 = vpack.c.b16 %v4496, %v4493
    %v4644 = vpack.c.b16 %v4500, %v4497
    %v4645 = vpack.c.b16 %v4501, %v4498
    %v4646 = vpack.c.b16 %v4502, %v4499
    %v4647 = vpack.c.b16 %v4506, %v4503
    %v4648 = vpack.c.b16 %v4507, %v4504
    %v4649 = vpack.c.b16 %v4508, %v4505
    %v4650 = vpack.c.b16 %v4512, %v4509
    %v4651 = vpack.c.b16 %v4513, %v4510
    %v4652 = vpack.c.b16 %v4514, %v4511
    %v4653 = vpack.c.b16 %v4518, %v4515
    %v4654 = vpack.c.b16 %v4519, %v4516
    %v4655 = vpack.c.b16 %v4520, %v4517
    %v4656 = vpack.c.b16 %v4524, %v4521
    %v4657 = vpack.c.b16 %v4525, %v4522
    %v4658 = vpack.c.b16 %v4526, %v4523
    %v4659 = vpack.c.b16 %v4530, %v4527
    %v4660 = vpack.c.b16 %v4531, %v4528
    %v4661 = vpack.c.b16 %v4532, %v4529
    %v4662 = vpack.c.b16 %v4536, %v4533
    %v4663 = vpack.c.b16 %v4537, %v4534
    %v4664 = vpack.c.b16 %v4538, %v4535
    %v4665 = vpack.c.b16 %v4542, %v4539
    %v4666 = vpack.c.b16 %v4543, %v4540
    %v4667 = vpack.c.b16 %v4544, %v4541
    %v4668 = vpack.c.b16 %v4548, %v4545
    %v4669 = vpack.c.b16 %v4549, %v4546
    %v4670 = vpack.c.b16 %v4550, %v4547
    %v4671 = vpack.c.b16 %v4554, %v4551
    %v4672 = vpack.c.b16 %v4555, %v4552
    %v4673 = vpack.c.b16 %v4556, %v4553
    %v4674 = vpack.c.b16 %v4560, %v4557
    %v4675 = vpack.c.b16 %v4561, %v4558
    %v4676 = vpack.c.b16 %v4562, %v4559
    %v4677 = vpack.c.b16 %v4566, %v4563
    %v4678 = vpack.c.b16 %v4567, %v4564
    %v4679 = vpack.c.b16 %v4568, %v4565
    %v4680 = vpack.c.b16 %v4572, %v4569
    %v4681 = vpack.c.b16 %v4573, %v4570
    %v4682 = vpack.c.b16 %v4574, %v4571
    %v4683 = vpack.c.b16 %v4578, %v4575
    %v4684 = vpack.c.b16 %v4579, %v4576
    %v4685 = vpack.c.b16 %v4580, %v4577
    %v4686 = vpack.c.b16 %v4584, %v4581
    %v4687 = vpack.c.b16 %v4585, %v4582
    %v4688 = vpack.c.b16 %v4586, %v4583
    %v4689 = vpack.c.b16 %v4590, %v4587
    %v4690 = vpack.c.b16 %v4591, %v4588
    %v4691 = vpack.c.b16 %v4592, %v4589
    %v4692 = vpack.c.b16 %v4596, %v4593
    %v4693 = vpack.c.b16 %v4597, %v4594
    %v4694 = vpack.c.b16 %v4598, %v4595
    %4791 = vmatpush.bf16.msra.mxu0 %v4620
    %4792 = vmatpush.bf16.msra.mxu0 %v4617
    %4793 = vmatpush.bf16.msra.mxu0 %v4614
    %4794 = vmatpush.bf16.msra.mxu0 %v4611
    %4795 = vmatpush.bf16.msra.mxu0 %v4608
    %4796 = vmatpush.bf16.msra.mxu0 %v4605
    %4797 = vmatpush.bf16.msra.mxu0 %v4602
    %4798 = vmatpush.bf16.msra.mxu0 %v4599
    %4799 = vmatmul.bf16.gmra.mxu0 %v4138
    %v4800 = vpop.f32.mrf.mxu0
    %v4801 = vadd.f32 %v4273, %v4800
    %v4802 = vpop.f32.mrf.mxu0
    %v4803 = vadd.f32 %v4273, %v4802
    %4804 = vdwg.mxu0
    %4805 = vmatpush.bf16.msra.mxu0 %v4644
    %4806 = vmatpush.bf16.msra.mxu0 %v4641
    %4807 = vmatpush.bf16.msra.mxu0 %v4638
    %4808 = vmatpush.bf16.msra.mxu0 %v4635
    %4809 = vmatpush.bf16.msra.mxu0 %v4632
    %4810 = vmatpush.bf16.msra.mxu0 %v4629
    %4811 = vmatpush.bf16.msra.mxu0 %v4626
    %4812 = vmatpush.bf16.msra.mxu0 %v4623
    %4813 = vmatmul.bf16.gmra.mxu0 %v4139
    %v4814 = vpop.f32.mrf.mxu0
    %v4815 = vadd.f32 %v4801, %v4814
    %v4816 = vpop.f32.mrf.mxu0
    %v4817 = vadd.f32 %v4803, %v4816
    %4818 = vdwg.mxu0
    %4819 = vmatpush.bf16.msra.mxu0 %v4668
    %4820 = vmatpush.bf16.msra.mxu0 %v4665
    %4821 = vmatpush.bf16.msra.mxu0 %v4662
    %4822 = vmatpush.bf16.msra.mxu0 %v4659
    %4823 = vmatpush.bf16.msra.mxu0 %v4656
    %4824 = vmatpush.bf16.msra.mxu0 %v4653
    %4825 = vmatpush.bf16.msra.mxu0 %v4650
    %4826 = vmatpush.bf16.msra.mxu0 %v4647
    %4827 = vmatmul.bf16.gmra.mxu0 %v4140
    %v4828 = vpop.f32.mrf.mxu0
    %v4829 = vadd.f32 %v4815, %v4828
    %v4830 = vpop.f32.mrf.mxu0
    %v4831 = vadd.f32 %v4817, %v4830
    %4832 = vdwg.mxu0
    %4833 = vmatpush.bf16.msra.mxu0 %v4692
    %4834 = vmatpush.bf16.msra.mxu0 %v4689
    %4835 = vmatpush.bf16.msra.mxu0 %v4686
    %4836 = vmatpush.bf16.msra.mxu0 %v4683
    %4837 = vmatpush.bf16.msra.mxu0 %v4680
    %4838 = vmatpush.bf16.msra.mxu0 %v4677
    %4839 = vmatpush.bf16.msra.mxu0 %v4674
    %4840 = vmatpush.bf16.msra.mxu0 %v4671
    %4841 = vmatmul.bf16.gmra.mxu0 %v4141
    %v4842 = vpop.f32.mrf.mxu0
    %v4843 = vadd.f32 %v4829, %v4842
    %v4844 = vpop.f32.mrf.mxu0
    %v4845 = vadd.f32 %v4831, %v4844
    %4846 = vdwg.mxu0
    %4847 = vmatpush.bf16.msra.mxu0 %v4621
    %4848 = vmatpush.bf16.msra.mxu0 %v4618
    %4849 = vmatpush.bf16.msra.mxu0 %v4615
    %4850 = vmatpush.bf16.msra.mxu0 %v4612
    %4851 = vmatpush.bf16.msra.mxu0 %v4609
    %4852 = vmatpush.bf16.msra.mxu0 %v4606
    %4853 = vmatpush.bf16.msra.mxu0 %v4603
    %4854 = vmatpush.bf16.msra.mxu0 %v4600
    %4855 = vmatmul.bf16.gmra.mxu0 %v4138
    %v4856 = vpop.f32.mrf.mxu0
    %v4857 = vadd.f32 %v4274, %v4856
    %v4858 = vpop.f32.mrf.mxu0
    %v4859 = vadd.f32 %v4274, %v4858
    %4860 = vdwg.mxu0
    %4861 = vmatpush.bf16.msra.mxu0 %v4645
    %4862 = vmatpush.bf16.msra.mxu0 %v4642
    %4863 = vmatpush.bf16.msra.mxu0 %v4639
    %4864 = vmatpush.bf16.msra.mxu0 %v4636
    %4865 = vmatpush.bf16.msra.mxu0 %v4633
    %4866 = vmatpush.bf16.msra.mxu0 %v4630
    %4867 = vmatpush.bf16.msra.mxu0 %v4627
    %4868 = vmatpush.bf16.msra.mxu0 %v4624
    %4869 = vmatmul.bf16.gmra.mxu0 %v4139
    %v4870 = vpop.f32.mrf.mxu0
    %v4871 = vadd.f32 %v4857, %v4870
    %v4872 = vpop.f32.mrf.mxu0
    %v4873 = vadd.f32 %v4859, %v4872
    %4874 = vdwg.mxu0
    %4875 = vmatpush.bf16.msra.mxu0 %v4669
    %4876 = vmatpush.bf16.msra.mxu0 %v4666
    %4877 = vmatpush.bf16.msra.mxu0 %v4663
    %4878 = vmatpush.bf16.msra.mxu0 %v4660
    %4879 = vmatpush.bf16.msra.mxu0 %v4657
    %4880 = vmatpush.bf16.msra.mxu0 %v4654
    %4881 = vmatpush.bf16.msra.mxu0 %v4651
    %4882 = vmatpush.bf16.msra.mxu0 %v4648
    %4883 = vmatmul.bf16.gmra.mxu0 %v4140
    %v4884 = vpop.f32.mrf.mxu0
    %v4885 = vadd.f32 %v4871, %v4884
    %v4886 = vpop.f32.mrf.mxu0
    %v4887 = vadd.f32 %v4873, %v4886
    %4888 = vdwg.mxu0
    %4889 = vmatpush.bf16.msra.mxu0 %v4693
    %4890 = vmatpush.bf16.msra.mxu0 %v4690
    %4891 = vmatpush.bf16.msra.mxu0 %v4687
    %4892 = vmatpush.bf16.msra.mxu0 %v4684
    %4893 = vmatpush.bf16.msra.mxu0 %v4681
    %4894 = vmatpush.bf16.msra.mxu0 %v4678
    %4895 = vmatpush.bf16.msra.mxu0 %v4675
    %4896 = vmatpush.bf16.msra.mxu0 %v4672
    %4897 = vmatmul.bf16.gmra.mxu0 %v4141
    %v4898 = vpop.f32.mrf.mxu0
    %v4899 = vadd.f32 %v4885, %v4898
    %v4900 = vpop.f32.mrf.mxu0
    %v4901 = vadd.f32 %v4887, %v4900
    %4902 = vdwg.mxu0
    %4903 = vmatpush.bf16.msra.mxu0 %v4622
    %4904 = vmatpush.bf16.msra.mxu0 %v4619
    %4905 = vmatpush.bf16.msra.mxu0 %v4616
    %4906 = vmatpush.bf16.msra.mxu0 %v4613
    %4907 = vmatpush.bf16.msra.mxu0 %v4610
    %4908 = vmatpush.bf16.msra.mxu0 %v4607
    %4909 = vmatpush.bf16.msra.mxu0 %v4604
    %4910 = vmatpush.bf16.msra.mxu0 %v4601
    %4911 = vmatmul.bf16.gmra.mxu0 %v4138
    %v4912 = vpop.f32.mrf.mxu0
    %v4913 = vadd.f32 %v4275, %v4912
    %v4914 = vpop.f32.mrf.mxu0
    %v4915 = vadd.f32 %v4275, %v4914
    %4916 = vdwg.mxu0
    %4917 = vmatpush.bf16.msra.mxu0 %v4646
    %4918 = vmatpush.bf16.msra.mxu0 %v4643
    %4919 = vmatpush.bf16.msra.mxu0 %v4640
    %4920 = vmatpush.bf16.msra.mxu0 %v4637
    %4921 = vmatpush.bf16.msra.mxu0 %v4634
    %4922 = vmatpush.bf16.msra.mxu0 %v4631
    %4923 = vmatpush.bf16.msra.mxu0 %v4628
    %4924 = vmatpush.bf16.msra.mxu0 %v4625
    %4925 = vmatmul.bf16.gmra.mxu0 %v4139
    %v4926 = vpop.f32.mrf.mxu0
    %v4927 = vadd.f32 %v4913, %v4926
    %v4928 = vpop.f32.mrf.mxu0
    %v4929 = vadd.f32 %v4915, %v4928
    %4930 = vdwg.mxu0
    %4931 = vmatpush.bf16.msra.mxu0 %v4670
    %4932 = vmatpush.bf16.msra.mxu0 %v4667
    %4933 = vmatpush.bf16.msra.mxu0 %v4664
    %4934 = vmatpush.bf16.msra.mxu0 %v4661
    %4935 = vmatpush.bf16.msra.mxu0 %v4658
    %4936 = vmatpush.bf16.msra.mxu0 %v4655
    %4937 = vmatpush.bf16.msra.mxu0 %v4652
    %4938 = vmatpush.bf16.msra.mxu0 %v4649
    %4939 = vmatmul.bf16.gmra.mxu0 %v4140
    %v4940 = vpop.f32.mrf.mxu0
    %v4941 = vadd.f32 %v4927, %v4940
    %v4942 = vpop.f32.mrf.mxu0
    %v4943 = vadd.f32 %v4929, %v4942
    %4944 = vdwg.mxu0
    %4945 = vmatpush.bf16.msra.mxu0 %v4694
    %4946 = vmatpush.bf16.msra.mxu0 %v4691
    %4947 = vmatpush.bf16.msra.mxu0 %v4688
    %4948 = vmatpush.bf16.msra.mxu0 %v4685
    %4949 = vmatpush.bf16.msra.mxu0 %v4682
    %4950 = vmatpush.bf16.msra.mxu0 %v4679
    %4951 = vmatpush.bf16.msra.mxu0 %v4676
    %4952 = vmatpush.bf16.msra.mxu0 %v4673
    %4953 = vmatmul.bf16.gmra.mxu0 %v4141
    %v4954 = vpop.f32.mrf.mxu0
    %v4955 = vadd.f32 %v4941, %v4954
    %v4956 = vpop.f32.mrf.mxu0
    %v4957 = vadd.f32 %v4943, %v4956
    %4958 = vdwg.mxu0
    %v4959 = vmax.f32 %v4843, 0.0
    %v4960 = vmax.f32 %v4899, 0.0
    %v4961 = vmax.f32 %v4955, 0.0
    %v4962 = vmax.f32 %v4845, 0.0
    %v4963 = vmax.f32 %v4901, 0.0
    %v4964 = vmax.f32 %v4957, 0.0
    %s4965 = smul.u32 4, 48
    %s4966 = smul.u32 %s4965, 13
    %s4967 = sshll.u32 %s4966, 4
    %4968 = dma.done %s60, %s4967
    %v4969 = vpack.c.bf16 %v4962, %v4959
    %v4970 = vpack.c.bf16 %v4963, %v4960
    %v4971 = vpack.c.bf16 %v4964, %v4961
    %v4972 = vld [vmem:[#allocation4] sm:$0xff]
    %v4973 = vld [vmem:[#allocation4 + $0x8] sm:$0xff]
    %v4974 = vld [vmem:[#allocation4 + $0x10] sm:$0xff]
    %v4975 = vld [vmem:[#allocation4 + $0x34] sm:$0xff]
    %v4976 = vld [vmem:[#allocation4 + $0x3c] sm:$0xff]
    %v4977 = vld [vmem:[#allocation4 + $0x44] sm:$0xff]
    %v4978 = vld [vmem:[#allocation4 + $0x68] sm:$0xff]
    %v4979 = vld [vmem:[#allocation4 + $0x70] sm:$0xff]
    %v4980 = vld [vmem:[#allocation4 + $0x78] sm:$0xff]
    %v4981 = vld [vmem:[#allocation4 + $0x9c] sm:$0xff]
    %v4982 = vld [vmem:[#allocation4 + $0xa4] sm:$0xff]
    %v4983 = vld [vmem:[#allocation4 + $0xac] sm:$0xff]
    %v4984 = vld [vmem:[#allocation4 + $0xd0] sm:$0xff]
    %v4985 = vld [vmem:[#allocation4 + $0xd8] sm:$0xff]
    %v4986 = vld [vmem:[#allocation4 + $0xe0] sm:$0xff]
    %v4987 = vld [vmem:[#allocation4 + $0x104] sm:$0xff]
    %v4988 = vld [vmem:[#allocation4 + $0x10c] sm:$0xff]
    %v4989 = vld [vmem:[#allocation4 + $0x114] sm:$0xff]
    %v4990 = vld [vmem:[#allocation4 + $0x138] sm:$0xff]
    %v4991 = vld [vmem:[#allocation4 + $0x140] sm:$0xff]
    %v4992 = vld [vmem:[#allocation4 + $0x148] sm:$0xff]
    %v4993 = vld [vmem:[#allocation4 + $0x16c] sm:$0xff]
    %v4994 = vld [vmem:[#allocation4 + $0x174] sm:$0xff]
    %v4995 = vld [vmem:[#allocation4 + $0x17c] sm:$0xff]
    %v4996 = vld [vmem:[#allocation4 + $0x1a0] sm:$0xff]
    %v4997 = vld [vmem:[#allocation4 + $0x1a8] sm:$0xff]
    %v4998 = vld [vmem:[#allocation4 + $0x1b0] sm:$0xff]
    %v4999 = vld [vmem:[#allocation4 + $0x1d4] sm:$0xff]
    %v5000 = vld [vmem:[#allocation4 + $0x1dc] sm:$0xff]
    %v5001 = vld [vmem:[#allocation4 + $0x1e4] sm:$0xff]
    %v5002 = vld [vmem:[#allocation4 + $0x208] sm:$0xff]
    %v5003 = vld [vmem:[#allocation4 + $0x210] sm:$0xff]
    %v5004 = vld [vmem:[#allocation4 + $0x218] sm:$0xff]
    %v5005 = vld [vmem:[#allocation4 + $0x23c] sm:$0xff]
    %v5006 = vld [vmem:[#allocation4 + $0x244] sm:$0xff]
    %v5007 = vld [vmem:[#allocation4 + $0x24c] sm:$0xff]
    %v5008 = vld [vmem:[#allocation4 + $0x270] sm:$0xff]
    %v5009 = vld [vmem:[#allocation4 + $0x278] sm:$0xff]
    %v5010 = vld [vmem:[#allocation4 + $0x280] sm:$0xff]
    %v5011 = vld [vmem:[#allocation4 + $0x2a4] sm:$0xff]
    %v5012 = vld [vmem:[#allocation4 + $0x2ac] sm:$0xff]
    %v5013 = vld [vmem:[#allocation4 + $0x2b4] sm:$0xff]
    %v5014 = vld [vmem:[#allocation4 + $0x2d8] sm:$0xff]
    %v5015 = vld [vmem:[#allocation4 + $0x2e0] sm:$0xff]
    %v5016 = vld [vmem:[#allocation4 + $0x2e8] sm:$0xff]
    %v5017 = vld [vmem:[#allocation4 + $0x30c] sm:$0xff]
    %v5018 = vld [vmem:[#allocation4 + $0x314] sm:$0xff]
    %v5019 = vld [vmem:[#allocation4 + $0x31c] sm:$0xff]
    %v5020 = vld [vmem:[#allocation4 + $0x340] sm:$0xff]
    %v5021 = vld [vmem:[#allocation4 + $0x348] sm:$0xff]
    %v5022 = vld [vmem:[#allocation4 + $0x350] sm:$0xff]
    %v5023 = vld [vmem:[#allocation4 + $0x374] sm:$0xff]
    %v5024 = vld [vmem:[#allocation4 + $0x37c] sm:$0xff]
    %v5025 = vld [vmem:[#allocation4 + $0x384] sm:$0xff]
    %v5026 = vld [vmem:[#allocation4 + $0x3a8] sm:$0xff]
    %v5027 = vld [vmem:[#allocation4 + $0x3b0] sm:$0xff]
    %v5028 = vld [vmem:[#allocation4 + $0x3b8] sm:$0xff]
    %v5029 = vld [vmem:[#allocation4 + $0x3dc] sm:$0xff]
    %v5030 = vld [vmem:[#allocation4 + $0x3e4] sm:$0xff]
    %v5031 = vld [vmem:[#allocation4 + $0x3ec] sm:$0xff]
    %v5032 = vld [vmem:[#allocation4 + $0x410] sm:$0xff]
    %v5033 = vld [vmem:[#allocation4 + $0x418] sm:$0xff]
    %v5034 = vld [vmem:[#allocation4 + $0x420] sm:$0xff]
    %v5035 = vld [vmem:[#allocation4 + $0x444] sm:$0xff]
    %v5036 = vld [vmem:[#allocation4 + $0x44c] sm:$0xff]
    %v5037 = vld [vmem:[#allocation4 + $0x454] sm:$0xff]
    %v5038 = vld [vmem:[#allocation4 + $0x478] sm:$0xff]
    %v5039 = vld [vmem:[#allocation4 + $0x480] sm:$0xff]
    %v5040 = vld [vmem:[#allocation4 + $0x488] sm:$0xff]
    %v5041 = vld [vmem:[#allocation4 + $0x4ac] sm:$0xff]
    %v5042 = vld [vmem:[#allocation4 + $0x4b4] sm:$0xff]
    %v5043 = vld [vmem:[#allocation4 + $0x4bc] sm:$0xff]
    %v5044 = vld [vmem:[#allocation4 + $0x4e0] sm:$0xff]
    %v5045 = vld [vmem:[#allocation4 + $0x4e8] sm:$0xff]
    %v5046 = vld [vmem:[#allocation4 + $0x4f0] sm:$0xff]
    %v5047 = vld [vmem:[#allocation4 + $0x514] sm:$0xff]
    %v5048 = vld [vmem:[#allocation4 + $0x51c] sm:$0xff]
    %v5049 = vld [vmem:[#allocation4 + $0x524] sm:$0xff]
    %v5050 = vld [vmem:[#allocation4 + $0x548] sm:$0xff]
    %v5051 = vld [vmem:[#allocation4 + $0x550] sm:$0xff]
    %v5052 = vld [vmem:[#allocation4 + $0x558] sm:$0xff]
    %v5053 = vld [vmem:[#allocation4 + $0x57c] sm:$0xff]
    %v5054 = vld [vmem:[#allocation4 + $0x584] sm:$0xff]
    %v5055 = vld [vmem:[#allocation4 + $0x58c] sm:$0xff]
    %v5056 = vld [vmem:[#allocation4 + $0x5b0] sm:$0xff]
    %v5057 = vld [vmem:[#allocation4 + $0x5b8] sm:$0xff]
    %v5058 = vld [vmem:[#allocation4 + $0x5c0] sm:$0xff]
    %v5059 = vld [vmem:[#allocation4 + $0x5e4] sm:$0xff]
    %v5060 = vld [vmem:[#allocation4 + $0x5ec] sm:$0xff]
    %v5061 = vld [vmem:[#allocation4 + $0x5f4] sm:$0xff]
    %v5062 = vld [vmem:[#allocation4 + $0x618] sm:$0xff]
    %v5063 = vld [vmem:[#allocation4 + $0x620] sm:$0xff]
    %v5064 = vld [vmem:[#allocation4 + $0x628] sm:$0xff]
    %v5065 = vld [vmem:[#allocation4 + $0x64c] sm:$0xff]
    %v5066 = vld [vmem:[#allocation4 + $0x654] sm:$0xff]
    %v5067 = vld [vmem:[#allocation4 + $0x65c] sm:$0xff]
    %v5068 = vld [vmem:[#allocation4 + $0x680] sm:$0xff]
    %v5069 = vld [vmem:[#allocation4 + $0x688] sm:$0xff]
    %v5070 = vld [vmem:[#allocation4 + $0x690] sm:$0xff]
    %v5071 = vld [vmem:[#allocation4 + $0x6b4] sm:$0xff]
    %v5072 = vld [vmem:[#allocation4 + $0x6bc] sm:$0xff]
    %v5073 = vld [vmem:[#allocation4 + $0x6c4] sm:$0xff]
    %v5074 = vld [vmem:[#allocation4 + $0x6e8] sm:$0xff]
    %v5075 = vld [vmem:[#allocation4 + $0x6f0] sm:$0xff]
    %v5076 = vld [vmem:[#allocation4 + $0x6f8] sm:$0xff]
    %v5077 = vld [vmem:[#allocation4 + $0x71c] sm:$0xff]
    %v5078 = vld [vmem:[#allocation4 + $0x724] sm:$0xff]
    %v5079 = vld [vmem:[#allocation4 + $0x72c] sm:$0xff]
    %v5080 = vld [vmem:[#allocation4 + $0x750] sm:$0xff]
    %v5081 = vld [vmem:[#allocation4 + $0x758] sm:$0xff]
    %v5082 = vld [vmem:[#allocation4 + $0x760] sm:$0xff]
    %v5083 = vld [vmem:[#allocation4 + $0x784] sm:$0xff]
    %v5084 = vld [vmem:[#allocation4 + $0x78c] sm:$0xff]
    %v5085 = vld [vmem:[#allocation4 + $0x794] sm:$0xff]
    %v5086 = vld [vmem:[#allocation4 + $0x7b8] sm:$0xff]
    %v5087 = vld [vmem:[#allocation4 + $0x7c0] sm:$0xff]
    %v5088 = vld [vmem:[#allocation4 + $0x7c8] sm:$0xff]
    %v5089 = vld [vmem:[#allocation4 + $0x7ec] sm:$0xff]
    %v5090 = vld [vmem:[#allocation4 + $0x7f4] sm:$0xff]
    %v5091 = vld [vmem:[#allocation4 + $0x7fc] sm:$0xff]
    %v5092 = vld [vmem:[#allocation4 + $0x820] sm:$0xff]
    %v5093 = vld [vmem:[#allocation4 + $0x828] sm:$0xff]
    %v5094 = vld [vmem:[#allocation4 + $0x830] sm:$0xff]
    %v5095 = vld [vmem:[#allocation4 + $0x854] sm:$0xff]
    %v5096 = vld [vmem:[#allocation4 + $0x85c] sm:$0xff]
    %v5097 = vld [vmem:[#allocation4 + $0x864] sm:$0xff]
    %v5098 = vld [vmem:[#allocation4 + $0x888] sm:$0xff]
    %v5099 = vld [vmem:[#allocation4 + $0x890] sm:$0xff]
    %v5100 = vld [vmem:[#allocation4 + $0x898] sm:$0xff]
    %v5101 = vld [vmem:[#allocation4 + $0x8bc] sm:$0xff]
    %v5102 = vld [vmem:[#allocation4 + $0x8c4] sm:$0xff]
    %v5103 = vld [vmem:[#allocation4 + $0x8cc] sm:$0xff]
    %v5104 = vld [vmem:[#allocation4 + $0x8f0] sm:$0xff]
    %v5105 = vld [vmem:[#allocation4 + $0x8f8] sm:$0xff]
    %v5106 = vld [vmem:[#allocation4 + $0x900] sm:$0xff]
    %v5107 = vld [vmem:[#allocation4 + $0x924] sm:$0xff]
    %v5108 = vld [vmem:[#allocation4 + $0x92c] sm:$0xff]
    %v5109 = vld [vmem:[#allocation4 + $0x934] sm:$0xff]
    %v5110 = vld [vmem:[#allocation4 + $0x958] sm:$0xff]
    %v5111 = vld [vmem:[#allocation4 + $0x960] sm:$0xff]
    %v5112 = vld [vmem:[#allocation4 + $0x968] sm:$0xff]
    %v5113 = vld [vmem:[#allocation4 + $0x98c] sm:$0xff]
    %v5114 = vld [vmem:[#allocation4 + $0x994] sm:$0xff]
    %v5115 = vld [vmem:[#allocation4 + $0x99c] sm:$0xff]
    %v5260 = vunpack.c.l.b16 %v4972
    %v5261 = vunpack.c.h.b16 %v4972
    %v5262 = vunpack.c.l.b16 %v4973
    %v5263 = vunpack.c.h.b16 %v4973
    %v5264 = vunpack.c.l.b16 %v4974
    %v5265 = vunpack.c.h.b16 %v4974
    %v5266 = vunpack.c.l.b16 %v4975
    %v5267 = vunpack.c.h.b16 %v4975
    %v5268 = vunpack.c.l.b16 %v4976
    %v5269 = vunpack.c.h.b16 %v4976
    %v5270 = vunpack.c.l.b16 %v4977
    %v5271 = vunpack.c.h.b16 %v4977
    %v5272 = vunpack.c.l.b16 %v4978
    %v5273 = vunpack.c.h.b16 %v4978
    %v5274 = vunpack.c.l.b16 %v4979
    %v5275 = vunpack.c.h.b16 %v4979
    %v5276 = vunpack.c.l.b16 %v4980
    %v5277 = vunpack.c.h.b16 %v4980
    %v5278 = vunpack.c.l.b16 %v4981
    %v5279 = vunpack.c.h.b16 %v4981
    %v5280 = vunpack.c.l.b16 %v4982
    %v5281 = vunpack.c.h.b16 %v4982
    %v5282 = vunpack.c.l.b16 %v4983
    %v5283 = vunpack.c.h.b16 %v4983
    %v5284 = vunpack.c.l.b16 %v4984
    %v5285 = vunpack.c.h.b16 %v4984
    %v5286 = vunpack.c.l.b16 %v4985
    %v5287 = vunpack.c.h.b16 %v4985
    %v5288 = vunpack.c.l.b16 %v4986
    %v5289 = vunpack.c.h.b16 %v4986
    %v5290 = vunpack.c.l.b16 %v4987
    %v5291 = vunpack.c.h.b16 %v4987
    %v5292 = vunpack.c.l.b16 %v4988
    %v5293 = vunpack.c.h.b16 %v4988
    %v5294 = vunpack.c.l.b16 %v4989
    %v5295 = vunpack.c.h.b16 %v4989
    %v5296 = vunpack.c.l.b16 %v4990
    %v5297 = vunpack.c.h.b16 %v4990
    %v5298 = vunpack.c.l.b16 %v4991
    %v5299 = vunpack.c.h.b16 %v4991
    %v5300 = vunpack.c.l.b16 %v4992
    %v5301 = vunpack.c.h.b16 %v4992
    %v5302 = vunpack.c.l.b16 %v4993
    %v5303 = vunpack.c.h.b16 %v4993
    %v5304 = vunpack.c.l.b16 %v4994
    %v5305 = vunpack.c.h.b16 %v4994
    %v5306 = vunpack.c.l.b16 %v4995
    %v5307 = vunpack.c.h.b16 %v4995
    %v5308 = vunpack.c.l.b16 %v4996
    %v5309 = vunpack.c.h.b16 %v4996
    %v5310 = vunpack.c.l.b16 %v4997
    %v5311 = vunpack.c.h.b16 %v4997
    %v5312 = vunpack.c.l.b16 %v4998
    %v5313 = vunpack.c.h.b16 %v4998
    %v5314 = vunpack.c.l.b16 %v4999
    %v5315 = vunpack.c.h.b16 %v4999
    %v5316 = vunpack.c.l.b16 %v5000
    %v5317 = vunpack.c.h.b16 %v5000
    %v5318 = vunpack.c.l.b16 %v5001
    %v5319 = vunpack.c.h.b16 %v5001
    %v5320 = vunpack.c.l.b16 %v5002
    %v5321 = vunpack.c.h.b16 %v5002
    %v5322 = vunpack.c.l.b16 %v5003
    %v5323 = vunpack.c.h.b16 %v5003
    %v5324 = vunpack.c.l.b16 %v5004
    %v5325 = vunpack.c.h.b16 %v5004
    %v5326 = vunpack.c.l.b16 %v5005
    %v5327 = vunpack.c.h.b16 %v5005
    %v5328 = vunpack.c.l.b16 %v5006
    %v5329 = vunpack.c.h.b16 %v5006
    %v5330 = vunpack.c.l.b16 %v5007
    %v5331 = vunpack.c.h.b16 %v5007
    %v5332 = vunpack.c.l.b16 %v5008
    %v5333 = vunpack.c.h.b16 %v5008
    %v5334 = vunpack.c.l.b16 %v5009
    %v5335 = vunpack.c.h.b16 %v5009
    %v5336 = vunpack.c.l.b16 %v5010
    %v5337 = vunpack.c.h.b16 %v5010
    %v5338 = vunpack.c.l.b16 %v5011
    %v5339 = vunpack.c.h.b16 %v5011
    %v5340 = vunpack.c.l.b16 %v5012
    %v5341 = vunpack.c.h.b16 %v5012
    %v5342 = vunpack.c.l.b16 %v5013
    %v5343 = vunpack.c.h.b16 %v5013
    %v5344 = vunpack.c.l.b16 %v5014
    %v5345 = vunpack.c.h.b16 %v5014
    %v5346 = vunpack.c.l.b16 %v5015
    %v5347 = vunpack.c.h.b16 %v5015
    %v5348 = vunpack.c.l.b16 %v5016
    %v5349 = vunpack.c.h.b16 %v5016
    %v5350 = vunpack.c.l.b16 %v5017
    %v5351 = vunpack.c.h.b16 %v5017
    %v5352 = vunpack.c.l.b16 %v5018
    %v5353 = vunpack.c.h.b16 %v5018
    %v5354 = vunpack.c.l.b16 %v5019
    %v5355 = vunpack.c.h.b16 %v5019
    %v5356 = vunpack.c.l.b16 %v5020
    %v5357 = vunpack.c.h.b16 %v5020
    %v5358 = vunpack.c.l.b16 %v5021
    %v5359 = vunpack.c.h.b16 %v5021
    %v5360 = vunpack.c.l.b16 %v5022
    %v5361 = vunpack.c.h.b16 %v5022
    %v5362 = vunpack.c.l.b16 %v5023
    %v5363 = vunpack.c.h.b16 %v5023
    %v5364 = vunpack.c.l.b16 %v5024
    %v5365 = vunpack.c.h.b16 %v5024
    %v5366 = vunpack.c.l.b16 %v5025
    %v5367 = vunpack.c.h.b16 %v5025
    %v5368 = vunpack.c.l.b16 %v5026
    %v5369 = vunpack.c.h.b16 %v5026
    %v5370 = vunpack.c.l.b16 %v5027
    %v5371 = vunpack.c.h.b16 %v5027
    %v5372 = vunpack.c.l.b16 %v5028
    %v5373 = vunpack.c.h.b16 %v5028
    %v5374 = vunpack.c.l.b16 %v5029
    %v5375 = vunpack.c.h.b16 %v5029
    %v5376 = vunpack.c.l.b16 %v5030
    %v5377 = vunpack.c.h.b16 %v5030
    %v5378 = vunpack.c.l.b16 %v5031
    %v5379 = vunpack.c.h.b16 %v5031
    %v5380 = vunpack.c.l.b16 %v5032
    %v5381 = vunpack.c.h.b16 %v5032
    %v5382 = vunpack.c.l.b16 %v5033
    %v5383 = vunpack.c.h.b16 %v5033
    %v5384 = vunpack.c.l.b16 %v5034
    %v5385 = vunpack.c.h.b16 %v5034
    %v5386 = vunpack.c.l.b16 %v5035
    %v5387 = vunpack.c.h.b16 %v5035
    %v5388 = vunpack.c.l.b16 %v5036
    %v5389 = vunpack.c.h.b16 %v5036
    %v5390 = vunpack.c.l.b16 %v5037
    %v5391 = vunpack.c.h.b16 %v5037
    %v5392 = vunpack.c.l.b16 %v5038
    %v5393 = vunpack.c.h.b16 %v5038
    %v5394 = vunpack.c.l.b16 %v5039
    %v5395 = vunpack.c.h.b16 %v5039
    %v5396 = vunpack.c.l.b16 %v5040
    %v5397 = vunpack.c.h.b16 %v5040
    %v5398 = vunpack.c.l.b16 %v5041
    %v5399 = vunpack.c.h.b16 %v5041
    %v5400 = vunpack.c.l.b16 %v5042
    %v5401 = vunpack.c.h.b16 %v5042
    %v5402 = vunpack.c.l.b16 %v5043
    %v5403 = vunpack.c.h.b16 %v5043
    %v5404 = vunpack.c.l.b16 %v5044
    %v5405 = vunpack.c.h.b16 %v5044
    %v5406 = vunpack.c.l.b16 %v5045
    %v5407 = vunpack.c.h.b16 %v5045
    %v5408 = vunpack.c.l.b16 %v5046
    %v5409 = vunpack.c.h.b16 %v5046
    %v5410 = vunpack.c.l.b16 %v5047
    %v5411 = vunpack.c.h.b16 %v5047
    %v5412 = vunpack.c.l.b16 %v5048
    %v5413 = vunpack.c.h.b16 %v5048
    %v5414 = vunpack.c.l.b16 %v5049
    %v5415 = vunpack.c.h.b16 %v5049
    %v5416 = vunpack.c.l.b16 %v5050
    %v5417 = vunpack.c.h.b16 %v5050
    %v5418 = vunpack.c.l.b16 %v5051
    %v5419 = vunpack.c.h.b16 %v5051
    %v5420 = vunpack.c.l.b16 %v5052
    %v5421 = vunpack.c.h.b16 %v5052
    %v5422 = vunpack.c.l.b16 %v5053
    %v5423 = vunpack.c.h.b16 %v5053
    %v5424 = vunpack.c.l.b16 %v5054
    %v5425 = vunpack.c.h.b16 %v5054
    %v5426 = vunpack.c.l.b16 %v5055
    %v5427 = vunpack.c.h.b16 %v5055
    %v5428 = vunpack.c.l.b16 %v5056
    %v5429 = vunpack.c.h.b16 %v5056
    %v5430 = vunpack.c.l.b16 %v5057
    %v5431 = vunpack.c.h.b16 %v5057
    %v5432 = vunpack.c.l.b16 %v5058
    %v5433 = vunpack.c.h.b16 %v5058
    %v5434 = vunpack.c.l.b16 %v5059
    %v5435 = vunpack.c.h.b16 %v5059
    %v5436 = vunpack.c.l.b16 %v5060
    %v5437 = vunpack.c.h.b16 %v5060
    %v5438 = vunpack.c.l.b16 %v5061
    %v5439 = vunpack.c.h.b16 %v5061
    %v5440 = vunpack.c.l.b16 %v5062
    %v5441 = vunpack.c.h.b16 %v5062
    %v5442 = vunpack.c.l.b16 %v5063
    %v5443 = vunpack.c.h.b16 %v5063
    %v5444 = vunpack.c.l.b16 %v5064
    %v5445 = vunpack.c.h.b16 %v5064
    %v5446 = vunpack.c.l.b16 %v5065
    %v5447 = vunpack.c.h.b16 %v5065
    %v5448 = vunpack.c.l.b16 %v5066
    %v5449 = vunpack.c.h.b16 %v5066
    %v5450 = vunpack.c.l.b16 %v5067
    %v5451 = vunpack.c.h.b16 %v5067
    %v5452 = vunpack.c.l.b16 %v5068
    %v5453 = vunpack.c.h.b16 %v5068
    %v5454 = vunpack.c.l.b16 %v5069
    %v5455 = vunpack.c.h.b16 %v5069
    %v5456 = vunpack.c.l.b16 %v5070
    %v5457 = vunpack.c.h.b16 %v5070
    %v5458 = vunpack.c.l.b16 %v5071
    %v5459 = vunpack.c.h.b16 %v5071
    %v5460 = vunpack.c.l.b16 %v5072
    %v5461 = vunpack.c.h.b16 %v5072
    %v5462 = vunpack.c.l.b16 %v5073
    %v5463 = vunpack.c.h.b16 %v5073
    %v5464 = vunpack.c.l.b16 %v5074
    %v5465 = vunpack.c.h.b16 %v5074
    %v5466 = vunpack.c.l.b16 %v5075
    %v5467 = vunpack.c.h.b16 %v5075
    %v5468 = vunpack.c.l.b16 %v5076
    %v5469 = vunpack.c.h.b16 %v5076
    %v5470 = vunpack.c.l.b16 %v5077
    %v5471 = vunpack.c.h.b16 %v5077
    %v5472 = vunpack.c.l.b16 %v5078
    %v5473 = vunpack.c.h.b16 %v5078
    %v5474 = vunpack.c.l.b16 %v5079
    %v5475 = vunpack.c.h.b16 %v5079
    %v5476 = vunpack.c.l.b16 %v5080
    %v5477 = vunpack.c.h.b16 %v5080
    %v5478 = vunpack.c.l.b16 %v5081
    %v5479 = vunpack.c.h.b16 %v5081
    %v5480 = vunpack.c.l.b16 %v5082
    %v5481 = vunpack.c.h.b16 %v5082
    %v5482 = vunpack.c.l.b16 %v5083
    %v5483 = vunpack.c.h.b16 %v5083
    %v5484 = vunpack.c.l.b16 %v5084
    %v5485 = vunpack.c.h.b16 %v5084
    %v5486 = vunpack.c.l.b16 %v5085
    %v5487 = vunpack.c.h.b16 %v5085
    %v5488 = vunpack.c.l.b16 %v5086
    %v5489 = vunpack.c.h.b16 %v5086
    %v5490 = vunpack.c.l.b16 %v5087
    %v5491 = vunpack.c.h.b16 %v5087
    %v5492 = vunpack.c.l.b16 %v5088
    %v5493 = vunpack.c.h.b16 %v5088
    %v5494 = vunpack.c.l.b16 %v5089
    %v5495 = vunpack.c.h.b16 %v5089
    %v5496 = vunpack.c.l.b16 %v5090
    %v5497 = vunpack.c.h.b16 %v5090
    %v5498 = vunpack.c.l.b16 %v5091
    %v5499 = vunpack.c.h.b16 %v5091
    %v5500 = vunpack.c.l.b16 %v5092
    %v5501 = vunpack.c.h.b16 %v5092
    %v5502 = vunpack.c.l.b16 %v5093
    %v5503 = vunpack.c.h.b16 %v5093
    %v5504 = vunpack.c.l.b16 %v5094
    %v5505 = vunpack.c.h.b16 %v5094
    %v5506 = vunpack.c.l.b16 %v5095
    %v5507 = vunpack.c.h.b16 %v5095
    %v5508 = vunpack.c.l.b16 %v5096
    %v5509 = vunpack.c.h.b16 %v5096
    %v5510 = vunpack.c.l.b16 %v5097
    %v5511 = vunpack.c.h.b16 %v5097
    %v5512 = vunpack.c.l.b16 %v5098
    %v5513 = vunpack.c.h.b16 %v5098
    %v5514 = vunpack.c.l.b16 %v5099
    %v5515 = vunpack.c.h.b16 %v5099
    %v5516 = vunpack.c.l.b16 %v5100
    %v5517 = vunpack.c.h.b16 %v5100
    %v5518 = vunpack.c.l.b16 %v5101
    %v5519 = vunpack.c.h.b16 %v5101
    %v5520 = vunpack.c.l.b16 %v5102
    %v5521 = vunpack.c.h.b16 %v5102
    %v5522 = vunpack.c.l.b16 %v5103
    %v5523 = vunpack.c.h.b16 %v5103
    %v5524 = vunpack.c.l.b16 %v5104
    %v5525 = vunpack.c.h.b16 %v5104
    %v5526 = vunpack.c.l.b16 %v5105
    %v5527 = vunpack.c.h.b16 %v5105
    %v5528 = vunpack.c.l.b16 %v5106
    %v5529 = vunpack.c.h.b16 %v5106
    %v5530 = vunpack.c.l.b16 %v5107
    %v5531 = vunpack.c.h.b16 %v5107
    %v5532 = vunpack.c.l.b16 %v5108
    %v5533 = vunpack.c.h.b16 %v5108
    %v5534 = vunpack.c.l.b16 %v5109
    %v5535 = vunpack.c.h.b16 %v5109
    %v5536 = vunpack.c.l.b16 %v5110
    %v5537 = vunpack.c.h.b16 %v5110
    %v5538 = vunpack.c.l.b16 %v5111
    %v5539 = vunpack.c.h.b16 %v5111
    %v5540 = vunpack.c.l.b16 %v5112
    %v5541 = vunpack.c.h.b16 %v5112
    %v5542 = vunpack.c.l.b16 %v5113
    %v5543 = vunpack.c.h.b16 %v5113
    %v5544 = vunpack.c.l.b16 %v5114
    %v5545 = vunpack.c.h.b16 %v5114
    %v5546 = vunpack.c.l.b16 %v5115
    %v5547 = vunpack.c.h.b16 %v5115
    %v5548 = vpack.c.b16 %v5266, %v5260
    %v5549 = vpack.c.b16 %v5267, %v5261
    %v5550 = vpack.c.b16 %v5268, %v5262
    %v5551 = vpack.c.b16 %v5269, %v5263
    %v5552 = vpack.c.b16 %v5270, %v5264
    %v5553 = vpack.c.b16 %v5271, %v5265
    %v5554 = vpack.c.b16 %v5278, %v5272
    %v5555 = vpack.c.b16 %v5279, %v5273
    %v5556 = vpack.c.b16 %v5280, %v5274
    %v5557 = vpack.c.b16 %v5281, %v5275
    %v5558 = vpack.c.b16 %v5282, %v5276
    %v5559 = vpack.c.b16 %v5283, %v5277
    %v5560 = vpack.c.b16 %v5290, %v5284
    %v5561 = vpack.c.b16 %v5291, %v5285
    %v5562 = vpack.c.b16 %v5292, %v5286
    %v5563 = vpack.c.b16 %v5293, %v5287
    %v5564 = vpack.c.b16 %v5294, %v5288
    %v5565 = vpack.c.b16 %v5295, %v5289
    %v5566 = vpack.c.b16 %v5302, %v5296
    %v5567 = vpack.c.b16 %v5303, %v5297
    %v5568 = vpack.c.b16 %v5304, %v5298
    %v5569 = vpack.c.b16 %v5305, %v5299
    %v5570 = vpack.c.b16 %v5306, %v5300
    %v5571 = vpack.c.b16 %v5307, %v5301
    %v5572 = vpack.c.b16 %v5314, %v5308
    %v5573 = vpack.c.b16 %v5315, %v5309
    %v5574 = vpack.c.b16 %v5316, %v5310
    %v5575 = vpack.c.b16 %v5317, %v5311
    %v5576 = vpack.c.b16 %v5318, %v5312
    %v5577 = vpack.c.b16 %v5319, %v5313
    %v5578 = vpack.c.b16 %v5326, %v5320
    %v5579 = vpack.c.b16 %v5327, %v5321
    %v5580 = vpack.c.b16 %v5328, %v5322
    %v5581 = vpack.c.b16 %v5329, %v5323
    %v5582 = vpack.c.b16 %v5330, %v5324
    %v5583 = vpack.c.b16 %v5331, %v5325
    %v5584 = vpack.c.b16 %v5338, %v5332
    %v5585 = vpack.c.b16 %v5339, %v5333
    %v5586 = vpack.c.b16 %v5340, %v5334
    %v5587 = vpack.c.b16 %v5341, %v5335
    %v5588 = vpack.c.b16 %v5342, %v5336
    %v5589 = vpack.c.b16 %v5343, %v5337
    %v5590 = vpack.c.b16 %v5350, %v5344
    %v5591 = vpack.c.b16 %v5351, %v5345
    %v5592 = vpack.c.b16 %v5352, %v5346
    %v5593 = vpack.c.b16 %v5353, %v5347
    %v5594 = vpack.c.b16 %v5354, %v5348
    %v5595 = vpack.c.b16 %v5355, %v5349
    %v5596 = vpack.c.b16 %v5362, %v5356
    %v5597 = vpack.c.b16 %v5363, %v5357
    %v5598 = vpack.c.b16 %v5364, %v5358
    %v5599 = vpack.c.b16 %v5365, %v5359
    %v5600 = vpack.c.b16 %v5366, %v5360
    %v5601 = vpack.c.b16 %v5367, %v5361
    %v5602 = vpack.c.b16 %v5374, %v5368
    %v5603 = vpack.c.b16 %v5375, %v5369
    %v5604 = vpack.c.b16 %v5376, %v5370
    %v5605 = vpack.c.b16 %v5377, %v5371
    %v5606 = vpack.c.b16 %v5378, %v5372
    %v5607 = vpack.c.b16 %v5379, %v5373
    %v5608 = vpack.c.b16 %v5386, %v5380
    %v5609 = vpack.c.b16 %v5387, %v5381
    %v5610 = vpack.c.b16 %v5388, %v5382
    %v5611 = vpack.c.b16 %v5389, %v5383
    %v5612 = vpack.c.b16 %v5390, %v5384
    %v5613 = vpack.c.b16 %v5391, %v5385
    %v5614 = vpack.c.b16 %v5398, %v5392
    %v5615 = vpack.c.b16 %v5399, %v5393
    %v5616 = vpack.c.b16 %v5400, %v5394
    %v5617 = vpack.c.b16 %v5401, %v5395
    %v5618 = vpack.c.b16 %v5402, %v5396
    %v5619 = vpack.c.b16 %v5403, %v5397
    %v5620 = vpack.c.b16 %v5410, %v5404
    %v5621 = vpack.c.b16 %v5411, %v5405
    %v5622 = vpack.c.b16 %v5412, %v5406
    %v5623 = vpack.c.b16 %v5413, %v5407
    %v5624 = vpack.c.b16 %v5414, %v5408
    %v5625 = vpack.c.b16 %v5415, %v5409
    %v5626 = vpack.c.b16 %v5422, %v5416
    %v5627 = vpack.c.b16 %v5423, %v5417
    %v5628 = vpack.c.b16 %v5424, %v5418
    %v5629 = vpack.c.b16 %v5425, %v5419
    %v5630 = vpack.c.b16 %v5426, %v5420
    %v5631 = vpack.c.b16 %v5427, %v5421
    %v5632 = vpack.c.b16 %v5434, %v5428
    %v5633 = vpack.c.b16 %v5435, %v5429
    %v5634 = vpack.c.b16 %v5436, %v5430
    %v5635 = vpack.c.b16 %v5437, %v5431
    %v5636 = vpack.c.b16 %v5438, %v5432
    %v5637 = vpack.c.b16 %v5439, %v5433
    %v5638 = vpack.c.b16 %v5446, %v5440
    %v5639 = vpack.c.b16 %v5447, %v5441
    %v5640 = vpack.c.b16 %v5448, %v5442
    %v5641 = vpack.c.b16 %v5449, %v5443
    %v5642 = vpack.c.b16 %v5450, %v5444
    %v5643 = vpack.c.b16 %v5451, %v5445
    %v5644 = vpack.c.b16 %v5458, %v5452
    %v5645 = vpack.c.b16 %v5459, %v5453
    %v5646 = vpack.c.b16 %v5460, %v5454
    %v5647 = vpack.c.b16 %v5461, %v5455
    %v5648 = vpack.c.b16 %v5462, %v5456
    %v5649 = vpack.c.b16 %v5463, %v5457
    %v5650 = vpack.c.b16 %v5470, %v5464
    %v5651 = vpack.c.b16 %v5471, %v5465
    %v5652 = vpack.c.b16 %v5472, %v5466
    %v5653 = vpack.c.b16 %v5473, %v5467
    %v5654 = vpack.c.b16 %v5474, %v5468
    %v5655 = vpack.c.b16 %v5475, %v5469
    %v5656 = vpack.c.b16 %v5482, %v5476
    %v5657 = vpack.c.b16 %v5483, %v5477
    %v5658 = vpack.c.b16 %v5484, %v5478
    %v5659 = vpack.c.b16 %v5485, %v5479
    %v5660 = vpack.c.b16 %v5486, %v5480
    %v5661 = vpack.c.b16 %v5487, %v5481
    %v5662 = vpack.c.b16 %v5494, %v5488
    %v5663 = vpack.c.b16 %v5495, %v5489
    %v5664 = vpack.c.b16 %v5496, %v5490
    %v5665 = vpack.c.b16 %v5497, %v5491
    %v5666 = vpack.c.b16 %v5498, %v5492
    %v5667 = vpack.c.b16 %v5499, %v5493
    %v5668 = vpack.c.b16 %v5506, %v5500
    %v5669 = vpack.c.b16 %v5507, %v5501
    %v5670 = vpack.c.b16 %v5508, %v5502
    %v5671 = vpack.c.b16 %v5509, %v5503
    %v5672 = vpack.c.b16 %v5510, %v5504
    %v5673 = vpack.c.b16 %v5511, %v5505
    %v5674 = vpack.c.b16 %v5518, %v5512
    %v5675 = vpack.c.b16 %v5519, %v5513
    %v5676 = vpack.c.b16 %v5520, %v5514
    %v5677 = vpack.c.b16 %v5521, %v5515
    %v5678 = vpack.c.b16 %v5522, %v5516
    %v5679 = vpack.c.b16 %v5523, %v5517
    %v5680 = vpack.c.b16 %v5530, %v5524
    %v5681 = vpack.c.b16 %v5531, %v5525
    %v5682 = vpack.c.b16 %v5532, %v5526
    %v5683 = vpack.c.b16 %v5533, %v5527
    %v5684 = vpack.c.b16 %v5534, %v5528
    %v5685 = vpack.c.b16 %v5535, %v5529
    %v5686 = vpack.c.b16 %v5542, %v5536
    %v5687 = vpack.c.b16 %v5543, %v5537
    %v5688 = vpack.c.b16 %v5544, %v5538
    %v5689 = vpack.c.b16 %v5545, %v5539
    %v5690 = vpack.c.b16 %v5546, %v5540
    %v5691 = vpack.c.b16 %v5547, %v5541
    %5836 = vmatpush.bf16.msra.mxu0 %v5590
    %5837 = vmatpush.bf16.msra.mxu0 %v5584
    %5838 = vmatpush.bf16.msra.mxu0 %v5578
    %5839 = vmatpush.bf16.msra.mxu0 %v5572
    %5840 = vmatpush.bf16.msra.mxu0 %v5566
    %5841 = vmatpush.bf16.msra.mxu0 %v5560
    %5842 = vmatpush.bf16.msra.mxu0 %v5554
    %5843 = vmatpush.bf16.msra.mxu0 %v5548
    %5844 = vmatmul.bf16.gmra.mxu0 %v4969
    %v5845 = vpop.f32.mrf.mxu0
    %v5846 = vadd.f32 0.0, %v5845
    %v5847 = vpop.f32.mrf.mxu0
    %v5848 = vadd.f32 0.0, %v5847
    %5849 = vdwg.mxu0
    %5850 = vmatpush.bf16.msra.mxu0 %v5638
    %5851 = vmatpush.bf16.msra.mxu0 %v5632
    %5852 = vmatpush.bf16.msra.mxu0 %v5626
    %5853 = vmatpush.bf16.msra.mxu0 %v5620
    %5854 = vmatpush.bf16.msra.mxu0 %v5614
    %5855 = vmatpush.bf16.msra.mxu0 %v5608
    %5856 = vmatpush.bf16.msra.mxu0 %v5602
    %5857 = vmatpush.bf16.msra.mxu0 %v5596
    %5858 = vmatmul.bf16.gmra.mxu0 %v4970
    %v5859 = vpop.f32.mrf.mxu0
    %v5860 = vadd.f32 %v5846, %v5859
    %v5861 = vpop.f32.mrf.mxu0
    %v5862 = vadd.f32 %v5848, %v5861
    %5863 = vdwg.mxu0
    %5864 = vmatpush.bf16.msra.mxu0 %v5686
    %5865 = vmatpush.bf16.msra.mxu0 %v5680
    %5866 = vmatpush.bf16.msra.mxu0 %v5674
    %5867 = vmatpush.bf16.msra.mxu0 %v5668
    %5868 = vmatpush.bf16.msra.mxu0 %v5662
    %5869 = vmatpush.bf16.msra.mxu0 %v5656
    %5870 = vmatpush.bf16.msra.mxu0 %v5650
    %5871 = vmatpush.bf16.msra.mxu0 %v5644
    %5872 = vmatmul.bf16.gmra.mxu0 %v4971
    %v5873 = vpop.f32.mrf.mxu0
    %v5874 = vadd.f32 %v5860, %v5873
    %v5875 = vpop.f32.mrf.mxu0
    %v5876 = vadd.f32 %v5862, %v5875
    %5877 = vdwg.mxu0
    %5878 = vmatpush.bf16.msra.mxu0 %v5591
    %5879 = vmatpush.bf16.msra.mxu0 %v5585
    %5880 = vmatpush.bf16.msra.mxu0 %v5579
    %5881 = vmatpush.bf16.msra.mxu0 %v5573
    %5882 = vmatpush.bf16.msra.mxu0 %v5567
    %5883 = vmatpush.bf16.msra.mxu0 %v5561
    %5884 = vmatpush.bf16.msra.mxu0 %v5555
    %5885 = vmatpush.bf16.msra.mxu0 %v5549
    %5886 = vmatmul.bf16.gmra.mxu0 %v4969
    %v5887 = vpop.f32.mrf.mxu0
    %v5888 = vadd.f32 0.0, %v5887
    %v5889 = vpop.f32.mrf.mxu0
    %v5890 = vadd.f32 0.0, %v5889
    %5891 = vdwg.mxu0
    %5892 = vmatpush.bf16.msra.mxu0 %v5639
    %5893 = vmatpush.bf16.msra.mxu0 %v5633
    %5894 = vmatpush.bf16.msra.mxu0 %v5627
    %5895 = vmatpush.bf16.msra.mxu0 %v5621
    %5896 = vmatpush.bf16.msra.mxu0 %v5615
    %5897 = vmatpush.bf16.msra.mxu0 %v5609
    %5898 = vmatpush.bf16.msra.mxu0 %v5603
    %5899 = vmatpush.bf16.msra.mxu0 %v5597
    %5900 = vmatmul.bf16.gmra.mxu0 %v4970
    %v5901 = vpop.f32.mrf.mxu0
    %v5902 = vadd.f32 %v5888, %v5901
    %v5903 = vpop.f32.mrf.mxu0
    %v5904 = vadd.f32 %v5890, %v5903
    %5905 = vdwg.mxu0
    %5906 = vmatpush.bf16.msra.mxu0 %v5687
    %5907 = vmatpush.bf16.msra.mxu0 %v5681
    %5908 = vmatpush.bf16.msra.mxu0 %v5675
    %5909 = vmatpush.bf16.msra.mxu0 %v5669
    %5910 = vmatpush.bf16.msra.mxu0 %v5663
    %5911 = vmatpush.bf16.msra.mxu0 %v5657
    %5912 = vmatpush.bf16.msra.mxu0 %v5651
    %5913 = vmatpush.bf16.msra.mxu0 %v5645
    %5914 = vmatmul.bf16.gmra.mxu0 %v4971
    %v5915 = vpop.f32.mrf.mxu0
    %v5916 = vadd.f32 %v5902, %v5915
    %v5917 = vpop.f32.mrf.mxu0
    %v5918 = vadd.f32 %v5904, %v5917
    %5919 = vdwg.mxu0
    %5920 = vmatpush.bf16.msra.mxu0 %v5592
    %5921 = vmatpush.bf16.msra.mxu0 %v5586
    %5922 = vmatpush.bf16.msra.mxu0 %v5580
    %5923 = vmatpush.bf16.msra.mxu0 %v5574
    %5924 = vmatpush.bf16.msra.mxu0 %v5568
    %5925 = vmatpush.bf16.msra.mxu0 %v5562
    %5926 = vmatpush.bf16.msra.mxu0 %v5556
    %5927 = vmatpush.bf16.msra.mxu0 %v5550
    %5928 = vmatmul.bf16.gmra.mxu0 %v4969
    %v5929 = vpop.f32.mrf.mxu0
    %v5930 = vadd.f32 0.0, %v5929
    %v5931 = vpop.f32.mrf.mxu0
    %v5932 = vadd.f32 0.0, %v5931
    %5933 = vdwg.mxu0
    %5934 = vmatpush.bf16.msra.mxu0 %v5640
    %5935 = vmatpush.bf16.msra.mxu0 %v5634
    %5936 = vmatpush.bf16.msra.mxu0 %v5628
    %5937 = vmatpush.bf16.msra.mxu0 %v5622
    %5938 = vmatpush.bf16.msra.mxu0 %v5616
    %5939 = vmatpush.bf16.msra.mxu0 %v5610
    %5940 = vmatpush.bf16.msra.mxu0 %v5604
    %5941 = vmatpush.bf16.msra.mxu0 %v5598
    %5942 = vmatmul.bf16.gmra.mxu0 %v4970
    %v5943 = vpop.f32.mrf.mxu0
    %v5944 = vadd.f32 %v5930, %v5943
    %v5945 = vpop.f32.mrf.mxu0
    %v5946 = vadd.f32 %v5932, %v5945
    %5947 = vdwg.mxu0
    %5948 = vmatpush.bf16.msra.mxu0 %v5688
    %5949 = vmatpush.bf16.msra.mxu0 %v5682
    %5950 = vmatpush.bf16.msra.mxu0 %v5676
    %5951 = vmatpush.bf16.msra.mxu0 %v5670
    %5952 = vmatpush.bf16.msra.mxu0 %v5664
    %5953 = vmatpush.bf16.msra.mxu0 %v5658
    %5954 = vmatpush.bf16.msra.mxu0 %v5652
    %5955 = vmatpush.bf16.msra.mxu0 %v5646
    %5956 = vmatmul.bf16.gmra.mxu0 %v4971
    %v5957 = vpop.f32.mrf.mxu0
    %v5958 = vadd.f32 %v5944, %v5957
    %v5959 = vpop.f32.mrf.mxu0
    %v5960 = vadd.f32 %v5946, %v5959
    %5961 = vdwg.mxu0
    %5962 = vmatpush.bf16.msra.mxu0 %v5593
    %5963 = vmatpush.bf16.msra.mxu0 %v5587
    %5964 = vmatpush.bf16.msra.mxu0 %v5581
    %5965 = vmatpush.bf16.msra.mxu0 %v5575
    %5966 = vmatpush.bf16.msra.mxu0 %v5569
    %5967 = vmatpush.bf16.msra.mxu0 %v5563
    %5968 = vmatpush.bf16.msra.mxu0 %v5557
    %5969 = vmatpush.bf16.msra.mxu0 %v5551
    %5970 = vmatmul.bf16.gmra.mxu0 %v4969
    %v5971 = vpop.f32.mrf.mxu0
    %v5972 = vadd.f32 0.0, %v5971
    %v5973 = vpop.f32.mrf.mxu0
    %v5974 = vadd.f32 0.0, %v5973
    %5975 = vdwg.mxu0
    %5976 = vmatpush.bf16.msra.mxu0 %v5641
    %5977 = vmatpush.bf16.msra.mxu0 %v5635
    %5978 = vmatpush.bf16.msra.mxu0 %v5629
    %5979 = vmatpush.bf16.msra.mxu0 %v5623
    %5980 = vmatpush.bf16.msra.mxu0 %v5617
    %5981 = vmatpush.bf16.msra.mxu0 %v5611
    %5982 = vmatpush.bf16.msra.mxu0 %v5605
    %5983 = vmatpush.bf16.msra.mxu0 %v5599
    %5984 = vmatmul.bf16.gmra.mxu0 %v4970
    %v5985 = vpop.f32.mrf.mxu0
    %v5986 = vadd.f32 %v5972, %v5985
    %v5987 = vpop.f32.mrf.mxu0
    %v5988 = vadd.f32 %v5974, %v5987
    %5989 = vdwg.mxu0
    %5990 = vmatpush.bf16.msra.mxu0 %v5689
    %5991 = vmatpush.bf16.msra.mxu0 %v5683
    %5992 = vmatpush.bf16.msra.mxu0 %v5677
    %5993 = vmatpush.bf16.msra.mxu0 %v5671
    %5994 = vmatpush.bf16.msra.mxu0 %v5665
    %5995 = vmatpush.bf16.msra.mxu0 %v5659
    %5996 = vmatpush.bf16.msra.mxu0 %v5653
    %5997 = vmatpush.bf16.msra.mxu0 %v5647
    %5998 = vmatmul.bf16.gmra.mxu0 %v4971
    %v5999 = vpop.f32.mrf.mxu0
    %v6000 = vadd.f32 %v5986, %v5999
    %v6001 = vpop.f32.mrf.mxu0
    %v6002 = vadd.f32 %v5988, %v6001
    %6003 = vdwg.mxu0
    %6004 = vmatpush.bf16.msra.mxu0 %v5594
    %6005 = vmatpush.bf16.msra.mxu0 %v5588
    %6006 = vmatpush.bf16.msra.mxu0 %v5582
    %6007 = vmatpush.bf16.msra.mxu0 %v5576
    %6008 = vmatpush.bf16.msra.mxu0 %v5570
    %6009 = vmatpush.bf16.msra.mxu0 %v5564
    %6010 = vmatpush.bf16.msra.mxu0 %v5558
    %6011 = vmatpush.bf16.msra.mxu0 %v5552
    %6012 = vmatmul.bf16.gmra.mxu0 %v4969
    %v6013 = vpop.f32.mrf.mxu0
    %v6014 = vadd.f32 0.0, %v6013
    %v6015 = vpop.f32.mrf.mxu0
    %v6016 = vadd.f32 0.0, %v6015
    %6017 = vdwg.mxu0
    %6018 = vmatpush.bf16.msra.mxu0 %v5642
    %6019 = vmatpush.bf16.msra.mxu0 %v5636
    %6020 = vmatpush.bf16.msra.mxu0 %v5630
    %6021 = vmatpush.bf16.msra.mxu0 %v5624
    %6022 = vmatpush.bf16.msra.mxu0 %v5618
    %6023 = vmatpush.bf16.msra.mxu0 %v5612
    %6024 = vmatpush.bf16.msra.mxu0 %v5606
    %6025 = vmatpush.bf16.msra.mxu0 %v5600
    %6026 = vmatmul.bf16.gmra.mxu0 %v4970
    %v6027 = vpop.f32.mrf.mxu0
    %v6028 = vadd.f32 %v6014, %v6027
    %v6029 = vpop.f32.mrf.mxu0
    %v6030 = vadd.f32 %v6016, %v6029
    %6031 = vdwg.mxu0
    %6032 = vmatpush.bf16.msra.mxu0 %v5690
    %6033 = vmatpush.bf16.msra.mxu0 %v5684
    %6034 = vmatpush.bf16.msra.mxu0 %v5678
    %6035 = vmatpush.bf16.msra.mxu0 %v5672
    %6036 = vmatpush.bf16.msra.mxu0 %v5666
    %6037 = vmatpush.bf16.msra.mxu0 %v5660
    %6038 = vmatpush.bf16.msra.mxu0 %v5654
    %6039 = vmatpush.bf16.msra.mxu0 %v5648
    %6040 = vmatmul.bf16.gmra.mxu0 %v4971
    %v6041 = vpop.f32.mrf.mxu0
    %v6042 = vadd.f32 %v6028, %v6041
    %v6043 = vpop.f32.mrf.mxu0
    %v6044 = vadd.f32 %v6030, %v6043
    %6045 = vdwg.mxu0
    %6046 = vmatpush.bf16.msra.mxu0 %v5595
    %6047 = vmatpush.bf16.msra.mxu0 %v5589
    %6048 = vmatpush.bf16.msra.mxu0 %v5583
    %6049 = vmatpush.bf16.msra.mxu0 %v5577
    %6050 = vmatpush.bf16.msra.mxu0 %v5571
    %6051 = vmatpush.bf16.msra.mxu0 %v5565
    %6052 = vmatpush.bf16.msra.mxu0 %v5559
    %6053 = vmatpush.bf16.msra.mxu0 %v5553
    %6054 = vmatmul.bf16.gmra.mxu0 %v4969
    %v6055 = vpop.f32.mrf.mxu0
    %v6056 = vadd.f32 0.0, %v6055
    %v6057 = vpop.f32.mrf.mxu0
    %v6058 = vadd.f32 0.0, %v6057
    %6059 = vdwg.mxu0
    %6060 = vmatpush.bf16.msra.mxu0 %v5643
    %6061 = vmatpush.bf16.msra.mxu0 %v5637
    %6062 = vmatpush.bf16.msra.mxu0 %v5631
    %6063 = vmatpush.bf16.msra.mxu0 %v5625
    %6064 = vmatpush.bf16.msra.mxu0 %v5619
    %6065 = vmatpush.bf16.msra.mxu0 %v5613
    %6066 = vmatpush.bf16.msra.mxu0 %v5607
    %6067 = vmatpush.bf16.msra.mxu0 %v5601
    %6068 = vmatmul.bf16.gmra.mxu0 %v4970
    %v6069 = vpop.f32.mrf.mxu0
    %v6070 = vadd.f32 %v6056, %v6069
    %v6071 = vpop.f32.mrf.mxu0
    %v6072 = vadd.f32 %v6058, %v6071
    %6073 = vdwg.mxu0
    %6074 = vmatpush.bf16.msra.mxu0 %v5691
    %6075 = vmatpush.bf16.msra.mxu0 %v5685
    %6076 = vmatpush.bf16.msra.mxu0 %v5679
    %6077 = vmatpush.bf16.msra.mxu0 %v5673
    %6078 = vmatpush.bf16.msra.mxu0 %v5667
    %6079 = vmatpush.bf16.msra.mxu0 %v5661
    %6080 = vmatpush.bf16.msra.mxu0 %v5655
    %6081 = vmatpush.bf16.msra.mxu0 %v5649
    %6082 = vmatmul.bf16.gmra.mxu0 %v4971
    %v6083 = vpop.f32.mrf.mxu0
    %v6084 = vadd.f32 %v6070, %v6083
    %v6085 = vpop.f32.mrf.mxu0
    %v6086 = vadd.f32 %v6072, %v6085
    %6087 = vdwg.mxu0
    %s6088 = scalar_lea.vmem [#allocation6], 4
    %v6089 = vld [vmem:[%s6088] ss:$8 sm:$0x7]
    %v6091 = vperm.slane %v6089, 0
    %v6092 = vperm.slane %v6089, 1
    %v6093 = vperm.slane %v6089, 2
    %v6097 = vadd.f32 %v5874, %v6091
    %v6098 = vadd.f32 %v5916, %v6092
    %v6099 = vadd.f32 %v5958, %v6093
    %v6100 = vadd.f32 %v5876, %v6091
    %v6101 = vadd.f32 %v5918, %v6092
    %v6102 = vadd.f32 %v5960, %v6093
    %v6103 = vmax.f32 %v6097, 0.0
    %v6104 = vmax.f32 %v6098, 0.0
    %v6105 = vmax.f32 %v6099, 0.0
    %v6106 = vmax.f32 %v6100, 0.0
    %v6107 = vmax.f32 %v6101, 0.0
    %v6108 = vmax.f32 %v6102, 0.0
    %s6109 = scalar_lea.vmem [#allocation6], 5
    %v6110 = vld [vmem:[%s6109] ss:$8 sm:$0x7]
    %v6112 = vperm.slane %v6110, 0
    %v6113 = vperm.slane %v6110, 1
    %v6114 = vperm.slane %v6110, 2
    %v6118 = vadd.f32 %v6000, %v6112
    %v6119 = vadd.f32 %v6042, %v6113
    %v6120 = vadd.f32 %v6084, %v6114
    %v6121 = vadd.f32 %v6002, %v6112
    %v6122 = vadd.f32 %v6044, %v6113
    %v6123 = vadd.f32 %v6086, %v6114
    %v6124 = vmax.f32 %v6118, 0.0
    %v6125 = vmax.f32 %v6119, 0.0
    %v6126 = vmax.f32 %v6120, 0.0
    %v6127 = vmax.f32 %v6121, 0.0
    %v6128 = vmax.f32 %v6122, 0.0
    %v6129 = vmax.f32 %v6123, 0.0
    %v6130 = vld [vmem:[%s1] sm:$0xff]
    %v6131 = vld [vmem:[%s1 + $0x8] sm:$0xff]
    %v6132 = vld [vmem:[%s1 + $0x10] sm:$0xff]
    %v6133 = vld [vmem:[%s1 + $0x18] sm:$0xff]
    %v6134 = vld [vmem:[%s1 + $0x20] sm:$0xff]
    %v6135 = vld [vmem:[%s1 + $0x28] sm:$0xff]
    %v6136 = vmul.f32 %v6124, 0.5
    %v6137 = vmul.f32 %v6125, 0.5
    %v6138 = vmul.f32 %v6126, 0.5
    %v6139 = vmul.f32 %v6127, 0.5
    %v6140 = vmul.f32 %v6128, 0.5
    %v6141 = vmul.f32 %v6129, 0.5
    %v6142 = vmul.f32 %v6136, 1.442695
    %v6143 = vpow.pop %v6142
    %v6144 = vmul.f32 %v6137, 1.442695
    %v6145 = vpow.pop %v6144
    %v6146 = vmul.f32 %v6138, 1.442695
    %v6147 = vpow.pop %v6146
    %v6148 = vmul.f32 %v6139, 1.442695
    %v6149 = vpow.pop %v6148
    %v6150 = vmul.f32 %v6140, 1.442695
    %v6151 = vpow.pop %v6150
    %v6152 = vmul.f32 %v6141, 1.442695
    %v6153 = vpow.pop %v6152
    %v6154 = vmul.f32 %v6130, %v6143
    %v6155 = vmul.f32 %v6131, %v6145
    %v6156 = vmul.f32 %v6132, %v6147
    %v6157 = vmul.f32 %v6133, %v6149
    %v6158 = vmul.f32 %v6134, %v6151
    %v6159 = vmul.f32 %v6135, %v6153
    %v6160 = vadd.f32 %v6103, %v6154
    %v6161 = vadd.f32 %v6104, %v6155
    %v6162 = vadd.f32 %v6105, %v6156
    %v6163 = vadd.f32 %v6106, %v6157
    %v6164 = vadd.f32 %v6107, %v6158
    %v6165 = vadd.f32 %v6108, %v6159
    %v6166 = vpack.c.bf16 %v6163, %v6160
    %v6167 = vpack.c.bf16 %v6164, %v6161
    %v6168 = vpack.c.bf16 %v6165, %v6162
    %v6169 = vld [vmem:[#allocation4 + $0x18] sm:$0xff]
    %v6170 = vld [vmem:[#allocation4 + $0x20] sm:$0xf]
    %v6171 = vld [vmem:[#allocation4 + $0x4c] sm:$0xff]
    %v6172 = vld [vmem:[#allocation4 + $0x54] sm:$0xf]
    %v6173 = vld [vmem:[#allocation4 + $0x80] sm:$0xff]
    %v6174 = vld [vmem:[#allocation4 + $0x88] sm:$0xf]
    %v6175 = vld [vmem:[#allocation4 + $0xb4] sm:$0xff]
    %v6176 = vld [vmem:[#allocation4 + $0xbc] sm:$0xf]
    %v6177 = vld [vmem:[#allocation4 + $0xe8] sm:$0xff]
    %v6178 = vld [vmem:[#allocation4 + $0xf0] sm:$0xf]
    %v6179 = vld [vmem:[#allocation4 + $0x11c] sm:$0xff]
    %v6180 = vld [vmem:[#allocation4 + $0x124] sm:$0xf]
    %v6181 = vld [vmem:[#allocation4 + $0x150] sm:$0xff]
    %v6182 = vld [vmem:[#allocation4 + $0x158] sm:$0xf]
    %v6183 = vld [vmem:[#allocation4 + $0x184] sm:$0xff]
    %v6184 = vld [vmem:[#allocation4 + $0x18c] sm:$0xf]
    %v6185 = vld [vmem:[#allocation4 + $0x1b8] sm:$0xff]
    %v6186 = vld [vmem:[#allocation4 + $0x1c0] sm:$0xf]
    %v6187 = vld [vmem:[#allocation4 + $0x1ec] sm:$0xff]
    %v6188 = vld [vmem:[#allocation4 + $0x1f4] sm:$0xf]
    %v6189 = vld [vmem:[#allocation4 + $0x220] sm:$0xff]
    %v6190 = vld [vmem:[#allocation4 + $0x228] sm:$0xf]
    %v6191 = vld [vmem:[#allocation4 + $0x254] sm:$0xff]
    %v6192 = vld [vmem:[#allocation4 + $0x25c] sm:$0xf]
    %v6193 = vld [vmem:[#allocation4 + $0x288] sm:$0xff]
    %v6194 = vld [vmem:[#allocation4 + $0x290] sm:$0xf]
    %v6195 = vld [vmem:[#allocation4 + $0x2bc] sm:$0xff]
    %v6196 = vld [vmem:[#allocation4 + $0x2c4] sm:$0xf]
    %v6197 = vld [vmem:[#allocation4 + $0x2f0] sm:$0xff]
    %v6198 = vld [vmem:[#allocation4 + $0x2f8] sm:$0xf]
    %v6199 = vld [vmem:[#allocation4 + $0x324] sm:$0xff]
    %v6200 = vld [vmem:[#allocation4 + $0x32c] sm:$0xf]
    %v6201 = vld [vmem:[#allocation4 + $0x358] sm:$0xff]
    %v6202 = vld [vmem:[#allocation4 + $0x360] sm:$0xf]
    %v6203 = vld [vmem:[#allocation4 + $0x38c] sm:$0xff]
    %v6204 = vld [vmem:[#allocation4 + $0x394] sm:$0xf]
    %v6205 = vld [vmem:[#allocation4 + $0x3c0] sm:$0xff]
    %v6206 = vld [vmem:[#allocation4 + $0x3c8] sm:$0xf]
    %v6207 = vld [vmem:[#allocation4 + $0x3f4] sm:$0xff]
    %v6208 = vld [vmem:[#allocation4 + $0x3fc] sm:$0xf]
    %v6209 = vld [vmem:[#allocation4 + $0x428] sm:$0xff]
    %v6210 = vld [vmem:[#allocation4 + $0x430] sm:$0xf]
    %v6211 = vld [vmem:[#allocation4 + $0x45c] sm:$0xff]
    %v6212 = vld [vmem:[#allocation4 + $0x464] sm:$0xf]
    %v6213 = vld [vmem:[#allocation4 + $0x490] sm:$0xff]
    %v6214 = vld [vmem:[#allocation4 + $0x498] sm:$0xf]
    %v6215 = vld [vmem:[#allocation4 + $0x4c4] sm:$0xff]
    %v6216 = vld [vmem:[#allocation4 + $0x4cc] sm:$0xf]
    %v6217 = vld [vmem:[#allocation4 + $0x4f8] sm:$0xff]
    %v6218 = vld [vmem:[#allocation4 + $0x500] sm:$0xf]
    %v6219 = vld [vmem:[#allocation4 + $0x52c] sm:$0xff]
    %v6220 = vld [vmem:[#allocation4 + $0x534] sm:$0xf]
    %v6221 = vld [vmem:[#allocation4 + $0x560] sm:$0xff]
    %v6222 = vld [vmem:[#allocation4 + $0x568] sm:$0xf]
    %v6223 = vld [vmem:[#allocation4 + $0x594] sm:$0xff]
    %v6224 = vld [vmem:[#allocation4 + $0x59c] sm:$0xf]
    %v6225 = vld [vmem:[#allocation4 + $0x5c8] sm:$0xff]
    %v6226 = vld [vmem:[#allocation4 + $0x5d0] sm:$0xf]
    %v6227 = vld [vmem:[#allocation4 + $0x5fc] sm:$0xff]
    %v6228 = vld [vmem:[#allocation4 + $0x604] sm:$0xf]
    %v6229 = vld [vmem:[#allocation4 + $0x630] sm:$0xff]
    %v6230 = vld [vmem:[#allocation4 + $0x638] sm:$0xf]
    %v6231 = vld [vmem:[#allocation4 + $0x664] sm:$0xff]
    %v6232 = vld [vmem:[#allocation4 + $0x66c] sm:$0xf]
    %v6233 = vld [vmem:[#allocation4 + $0x698] sm:$0xff]
    %v6234 = vld [vmem:[#allocation4 + $0x6a0] sm:$0xf]
    %v6235 = vld [vmem:[#allocation4 + $0x6cc] sm:$0xff]
    %v6236 = vld [vmem:[#allocation4 + $0x6d4] sm:$0xf]
    %v6237 = vld [vmem:[#allocation4 + $0x700] sm:$0xff]
    %v6238 = vld [vmem:[#allocation4 + $0x708] sm:$0xf]
    %v6239 = vld [vmem:[#allocation4 + $0x734] sm:$0xff]
    %v6240 = vld [vmem:[#allocation4 + $0x73c] sm:$0xf]
    %v6241 = vld [vmem:[#allocation4 + $0x768] sm:$0xff]
    %v6242 = vld [vmem:[#allocation4 + $0x770] sm:$0xf]
    %v6243 = vld [vmem:[#allocation4 + $0x79c] sm:$0xff]
    %v6244 = vld [vmem:[#allocation4 + $0x7a4] sm:$0xf]
    %v6245 = vld [vmem:[#allocation4 + $0x7d0] sm:$0xff]
    %v6246 = vld [vmem:[#allocation4 + $0x7d8] sm:$0xf]
    %v6247 = vld [vmem:[#allocation4 + $0x804] sm:$0xff]
    %v6248 = vld [vmem:[#allocation4 + $0x80c] sm:$0xf]
    %v6249 = vld [vmem:[#allocation4 + $0x838] sm:$0xff]
    %v6250 = vld [vmem:[#allocation4 + $0x840] sm:$0xf]
    %v6251 = vld [vmem:[#allocation4 + $0x86c] sm:$0xff]
    %v6252 = vld [vmem:[#allocation4 + $0x874] sm:$0xf]
    %v6253 = vld [vmem:[#allocation4 + $0x8a0] sm:$0xff]
    %v6254 = vld [vmem:[#allocation4 + $0x8a8] sm:$0xf]
    %v6255 = vld [vmem:[#allocation4 + $0x8d4] sm:$0xff]
    %v6256 = vld [vmem:[#allocation4 + $0x8dc] sm:$0xf]
    %v6257 = vld [vmem:[#allocation4 + $0x908] sm:$0xff]
    %v6258 = vld [vmem:[#allocation4 + $0x910] sm:$0xf]
    %v6259 = vld [vmem:[#allocation4 + $0x93c] sm:$0xff]
    %v6260 = vld [vmem:[#allocation4 + $0x944] sm:$0xf]
    %v6261 = vld [vmem:[#allocation4 + $0x970] sm:$0xff]
    %v6262 = vld [vmem:[#allocation4 + $0x978] sm:$0xf]
    %v6263 = vld [vmem:[#allocation4 + $0x9a4] sm:$0xff]
    %v6264 = vld [vmem:[#allocation4 + $0x9ac] sm:$0xf]
    %s6265 = scalar_lea.vmem [#allocation6], 6
    %v6266 = vld [vmem:[%s6265] ss:$8 sm:$0x7]
    %v6268 = vperm.slane %v6266, 0
    %v6269 = vperm.slane %v6266, 1
    %v6270 = vperm.slane %v6266, 2
    %v6370 = vunpack.c.l.b16 %v6169
    %v6371 = vunpack.c.h.b16 %v6169
    %v6372 = vunpack.c.l.b16 %v6170
    %v6373 = vunpack.c.l.b16 %v6171
    %v6374 = vunpack.c.h.b16 %v6171
    %v6375 = vunpack.c.l.b16 %v6172
    %v6376 = vunpack.c.l.b16 %v6173
    %v6377 = vunpack.c.h.b16 %v6173
    %v6378 = vunpack.c.l.b16 %v6174
    %v6379 = vunpack.c.l.b16 %v6175
    %v6380 = vunpack.c.h.b16 %v6175
    %v6381 = vunpack.c.l.b16 %v6176
    %v6382 = vunpack.c.l.b16 %v6177
    %v6383 = vunpack.c.h.b16 %v6177
    %v6384 = vunpack.c.l.b16 %v6178
    %v6385 = vunpack.c.l.b16 %v6179
    %v6386 = vunpack.c.h.b16 %v6179
    %v6387 = vunpack.c.l.b16 %v6180
    %v6388 = vunpack.c.l.b16 %v6181
    %v6389 = vunpack.c.h.b16 %v6181
    %v6390 = vunpack.c.l.b16 %v6182
    %v6391 = vunpack.c.l.b16 %v6183
    %v6392 = vunpack.c.h.b16 %v6183
    %v6393 = vunpack.c.l.b16 %v6184
    %v6394 = vunpack.c.l.b16 %v6185
    %v6395 = vunpack.c.h.b16 %v6185
    %v6396 = vunpack.c.l.b16 %v6186
    %v6397 = vunpack.c.l.b16 %v6187
    %v6398 = vunpack.c.h.b16 %v6187
    %v6399 = vunpack.c.l.b16 %v6188
    %v6400 = vunpack.c.l.b16 %v6189
    %v6401 = vunpack.c.h.b16 %v6189
    %v6402 = vunpack.c.l.b16 %v6190
    %v6403 = vunpack.c.l.b16 %v6191
    %v6404 = vunpack.c.h.b16 %v6191
    %v6405 = vunpack.c.l.b16 %v6192
    %v6406 = vunpack.c.l.b16 %v6193
    %v6407 = vunpack.c.h.b16 %v6193
    %v6408 = vunpack.c.l.b16 %v6194
    %v6409 = vunpack.c.l.b16 %v6195
    %v6410 = vunpack.c.h.b16 %v6195
    %v6411 = vunpack.c.l.b16 %v6196
    %v6412 = vunpack.c.l.b16 %v6197
    %v6413 = vunpack.c.h.b16 %v6197
    %v6414 = vunpack.c.l.b16 %v6198
    %v6415 = vunpack.c.l.b16 %v6199
    %v6416 = vunpack.c.h.b16 %v6199
    %v6417 = vunpack.c.l.b16 %v6200
    %v6418 = vunpack.c.l.b16 %v6201
    %v6419 = vunpack.c.h.b16 %v6201
    %v6420 = vunpack.c.l.b16 %v6202
    %v6421 = vunpack.c.l.b16 %v6203
    %v6422 = vunpack.c.h.b16 %v6203
    %v6423 = vunpack.c.l.b16 %v6204
    %v6424 = vunpack.c.l.b16 %v6205
    %v6425 = vunpack.c.h.b16 %v6205
    %v6426 = vunpack.c.l.b16 %v6206
    %v6427 = vunpack.c.l.b16 %v6207
    %v6428 = vunpack.c.h.b16 %v6207
    %v6429 = vunpack.c.l.b16 %v6208
    %v6430 = vunpack.c.l.b16 %v6209
    %v6431 = vunpack.c.h.b16 %v6209
    %v6432 = vunpack.c.l.b16 %v6210
    %v6433 = vunpack.c.l.b16 %v6211
    %v6434 = vunpack.c.h.b16 %v6211
    %v6435 = vunpack.c.l.b16 %v6212
    %v6436 = vunpack.c.l.b16 %v6213
    %v6437 = vunpack.c.h.b16 %v6213
    %v6438 = vunpack.c.l.b16 %v6214
    %v6439 = vunpack.c.l.b16 %v6215
    %v6440 = vunpack.c.h.b16 %v6215
    %v6441 = vunpack.c.l.b16 %v6216
    %v6442 = vunpack.c.l.b16 %v6217
    %v6443 = vunpack.c.h.b16 %v6217
    %v6444 = vunpack.c.l.b16 %v6218
    %v6445 = vunpack.c.l.b16 %v6219
    %v6446 = vunpack.c.h.b16 %v6219
    %v6447 = vunpack.c.l.b16 %v6220
    %v6448 = vunpack.c.l.b16 %v6221
    %v6449 = vunpack.c.h.b16 %v6221
    %v6450 = vunpack.c.l.b16 %v6222
    %v6451 = vunpack.c.l.b16 %v6223
    %v6452 = vunpack.c.h.b16 %v6223
    %v6453 = vunpack.c.l.b16 %v6224
    %v6454 = vunpack.c.l.b16 %v6225
    %v6455 = vunpack.c.h.b16 %v6225
    %v6456 = vunpack.c.l.b16 %v6226
    %v6457 = vunpack.c.l.b16 %v6227
    %v6458 = vunpack.c.h.b16 %v6227
    %v6459 = vunpack.c.l.b16 %v6228
    %v6460 = vunpack.c.l.b16 %v6229
    %v6461 = vunpack.c.h.b16 %v6229
    %v6462 = vunpack.c.l.b16 %v6230
    %v6463 = vunpack.c.l.b16 %v6231
    %v6464 = vunpack.c.h.b16 %v6231
    %v6465 = vunpack.c.l.b16 %v6232
    %v6466 = vunpack.c.l.b16 %v6233
    %v6467 = vunpack.c.h.b16 %v6233
    %v6468 = vunpack.c.l.b16 %v6234
    %v6469 = vunpack.c.l.b16 %v6235
    %v6470 = vunpack.c.h.b16 %v6235
    %v6471 = vunpack.c.l.b16 %v6236
    %v6472 = vunpack.c.l.b16 %v6237
    %v6473 = vunpack.c.h.b16 %v6237
    %v6474 = vunpack.c.l.b16 %v6238
    %v6475 = vunpack.c.l.b16 %v6239
    %v6476 = vunpack.c.h.b16 %v6239
    %v6477 = vunpack.c.l.b16 %v6240
    %v6478 = vunpack.c.l.b16 %v6241
    %v6479 = vunpack.c.h.b16 %v6241
    %v6480 = vunpack.c.l.b16 %v6242
    %v6481 = vunpack.c.l.b16 %v6243
    %v6482 = vunpack.c.h.b16 %v6243
    %v6483 = vunpack.c.l.b16 %v6244
    %v6484 = vunpack.c.l.b16 %v6245
    %v6485 = vunpack.c.h.b16 %v6245
    %v6486 = vunpack.c.l.b16 %v6246
    %v6487 = vunpack.c.l.b16 %v6247
    %v6488 = vunpack.c.h.b16 %v6247
    %v6489 = vunpack.c.l.b16 %v6248
    %v6490 = vunpack.c.l.b16 %v6249
    %v6491 = vunpack.c.h.b16 %v6249
    %v6492 = vunpack.c.l.b16 %v6250
    %v6493 = vunpack.c.l.b16 %v6251
    %v6494 = vunpack.c.h.b16 %v6251
    %v6495 = vunpack.c.l.b16 %v6252
    %v6496 = vunpack.c.l.b16 %v6253
    %v6497 = vunpack.c.h.b16 %v6253
    %v6498 = vunpack.c.l.b16 %v6254
    %v6499 = vunpack.c.l.b16 %v6255
    %v6500 = vunpack.c.h.b16 %v6255
    %v6501 = vunpack.c.l.b16 %v6256
    %v6502 = vunpack.c.l.b16 %v6257
    %v6503 = vunpack.c.h.b16 %v6257
    %v6504 = vunpack.c.l.b16 %v6258
    %v6505 = vunpack.c.l.b16 %v6259
    %v6506 = vunpack.c.h.b16 %v6259
    %v6507 = vunpack.c.l.b16 %v6260
    %v6508 = vunpack.c.l.b16 %v6261
    %v6509 = vunpack.c.h.b16 %v6261
    %v6510 = vunpack.c.l.b16 %v6262
    %v6511 = vunpack.c.l.b16 %v6263
    %v6512 = vunpack.c.h.b16 %v6263
    %v6513 = vunpack.c.l.b16 %v6264
    %v6514 = vpack.c.b16 %v6373, %v6370
    %v6515 = vpack.c.b16 %v6374, %v6371
    %v6516 = vpack.c.b16 %v6375, %v6372
    %v6517 = vpack.c.b16 %v6379, %v6376
    %v6518 = vpack.c.b16 %v6380, %v6377
    %v6519 = vpack.c.b16 %v6381, %v6378
    %v6520 = vpack.c.b16 %v6385, %v6382
    %v6521 = vpack.c.b16 %v6386, %v6383
    %v6522 = vpack.c.b16 %v6387, %v6384
    %v6523 = vpack.c.b16 %v6391, %v6388
    %v6524 = vpack.c.b16 %v6392, %v6389
    %v6525 = vpack.c.b16 %v6393, %v6390
    %v6526 = vpack.c.b16 %v6397, %v6394
    %v6527 = vpack.c.b16 %v6398, %v6395
    %v6528 = vpack.c.b16 %v6399, %v6396
    %v6529 = vpack.c.b16 %v6403, %v6400
    %v6530 = vpack.c.b16 %v6404, %v6401
    %v6531 = vpack.c.b16 %v6405, %v6402
    %v6532 = vpack.c.b16 %v6409, %v6406
    %v6533 = vpack.c.b16 %v6410, %v6407
    %v6534 = vpack.c.b16 %v6411, %v6408
    %v6535 = vpack.c.b16 %v6415, %v6412
    %v6536 = vpack.c.b16 %v6416, %v6413
    %v6537 = vpack.c.b16 %v6417, %v6414
    %v6538 = vpack.c.b16 %v6421, %v6418
    %v6539 = vpack.c.b16 %v6422, %v6419
    %v6540 = vpack.c.b16 %v6423, %v6420
    %v6541 = vpack.c.b16 %v6427, %v6424
    %v6542 = vpack.c.b16 %v6428, %v6425
    %v6543 = vpack.c.b16 %v6429, %v6426
    %v6544 = vpack.c.b16 %v6433, %v6430
    %v6545 = vpack.c.b16 %v6434, %v6431
    %v6546 = vpack.c.b16 %v6435, %v6432
    %v6547 = vpack.c.b16 %v6439, %v6436
    %v6548 = vpack.c.b16 %v6440, %v6437
    %v6549 = vpack.c.b16 %v6441, %v6438
    %v6550 = vpack.c.b16 %v6445, %v6442
    %v6551 = vpack.c.b16 %v6446, %v6443
    %v6552 = vpack.c.b16 %v6447, %v6444
    %v6553 = vpack.c.b16 %v6451, %v6448
    %v6554 = vpack.c.b16 %v6452, %v6449
    %v6555 = vpack.c.b16 %v6453, %v6450
    %v6556 = vpack.c.b16 %v6457, %v6454
    %v6557 = vpack.c.b16 %v6458, %v6455
    %v6558 = vpack.c.b16 %v6459, %v6456
    %v6559 = vpack.c.b16 %v6463, %v6460
    %v6560 = vpack.c.b16 %v6464, %v6461
    %v6561 = vpack.c.b16 %v6465, %v6462
    %v6562 = vpack.c.b16 %v6469, %v6466
    %v6563 = vpack.c.b16 %v6470, %v6467
    %v6564 = vpack.c.b16 %v6471, %v6468
    %v6565 = vpack.c.b16 %v6475, %v6472
    %v6566 = vpack.c.b16 %v6476, %v6473
    %v6567 = vpack.c.b16 %v6477, %v6474
    %v6568 = vpack.c.b16 %v6481, %v6478
    %v6569 = vpack.c.b16 %v6482, %v6479
    %v6570 = vpack.c.b16 %v6483, %v6480
    %v6571 = vpack.c.b16 %v6487, %v6484
    %v6572 = vpack.c.b16 %v6488, %v6485
    %v6573 = vpack.c.b16 %v6489, %v6486
    %v6574 = vpack.c.b16 %v6493, %v6490
    %v6575 = vpack.c.b16 %v6494, %v6491
    %v6576 = vpack.c.b16 %v6495, %v6492
    %v6577 = vpack.c.b16 %v6499, %v6496
    %v6578 = vpack.c.b16 %v6500, %v6497
    %v6579 = vpack.c.b16 %v6501, %v6498
    %v6580 = vpack.c.b16 %v6505, %v6502
    %v6581 = vpack.c.b16 %v6506, %v6503
    %v6582 = vpack.c.b16 %v6507, %v6504
    %v6583 = vpack.c.b16 %v6511, %v6508
    %v6584 = vpack.c.b16 %v6512, %v6509
    %v6585 = vpack.c.b16 %v6513, %v6510
    %6658 = vmatpush.bf16.msra.mxu0 %v6535
    %6659 = vmatpush.bf16.msra.mxu0 %v6532
    %6660 = vmatpush.bf16.msra.mxu0 %v6529
    %6661 = vmatpush.bf16.msra.mxu0 %v6526
    %6662 = vmatpush.bf16.msra.mxu0 %v6523
    %6663 = vmatpush.bf16.msra.mxu0 %v6520
    %6664 = vmatpush.bf16.msra.mxu0 %v6517
    %6665 = vmatpush.bf16.msra.mxu0 %v6514
    %6666 = vmatmul.bf16.gmra.mxu0 %v6166
    %v6667 = vpop.f32.mrf.mxu0
    %v6668 = vadd.f32 %v6268, %v6667
    %v6669 = vpop.f32.mrf.mxu0
    %v6670 = vadd.f32 %v6268, %v6669
    %6671 = vdwg.mxu0
    %6672 = vmatpush.bf16.msra.mxu0 %v6559
    %6673 = vmatpush.bf16.msra.mxu0 %v6556
    %6674 = vmatpush.bf16.msra.mxu0 %v6553
    %6675 = vmatpush.bf16.msra.mxu0 %v6550
    %6676 = vmatpush.bf16.msra.mxu0 %v6547
    %6677 = vmatpush.bf16.msra.mxu0 %v6544
    %6678 = vmatpush.bf16.msra.mxu0 %v6541
    %6679 = vmatpush.bf16.msra.mxu0 %v6538
    %6680 = vmatmul.bf16.gmra.mxu0 %v6167
    %v6681 = vpop.f32.mrf.mxu0
    %v6682 = vadd.f32 %v6668, %v6681
    %v6683 = vpop.f32.mrf.mxu0
    %v6684 = vadd.f32 %v6670, %v6683
    %6685 = vdwg.mxu0
    %6686 = vmatpush.bf16.msra.mxu0 %v6583
    %6687 = vmatpush.bf16.msra.mxu0 %v6580
    %6688 = vmatpush.bf16.msra.mxu0 %v6577
    %6689 = vmatpush.bf16.msra.mxu0 %v6574
    %6690 = vmatpush.bf16.msra.mxu0 %v6571
    %6691 = vmatpush.bf16.msra.mxu0 %v6568
    %6692 = vmatpush.bf16.msra.mxu0 %v6565
    %6693 = vmatpush.bf16.msra.mxu0 %v6562
    %6694 = vmatmul.bf16.gmra.mxu0 %v6168
    %v6695 = vpop.f32.mrf.mxu0
    %v6696 = vadd.f32 %v6682, %v6695
    %v6697 = vpop.f32.mrf.mxu0
    %v6698 = vadd.f32 %v6684, %v6697
    %6699 = vdwg.mxu0
    %6700 = vmatpush.bf16.msra.mxu0 %v6536
    %6701 = vmatpush.bf16.msra.mxu0 %v6533
    %6702 = vmatpush.bf16.msra.mxu0 %v6530
    %6703 = vmatpush.bf16.msra.mxu0 %v6527
    %6704 = vmatpush.bf16.msra.mxu0 %v6524
    %6705 = vmatpush.bf16.msra.mxu0 %v6521
    %6706 = vmatpush.bf16.msra.mxu0 %v6518
    %6707 = vmatpush.bf16.msra.mxu0 %v6515
    %6708 = vmatmul.bf16.gmra.mxu0 %v6166
    %v6709 = vpop.f32.mrf.mxu0
    %v6710 = vadd.f32 %v6269, %v6709
    %v6711 = vpop.f32.mrf.mxu0
    %v6712 = vadd.f32 %v6269, %v6711
    %6713 = vdwg.mxu0
    %6714 = vmatpush.bf16.msra.mxu0 %v6560
    %6715 = vmatpush.bf16.msra.mxu0 %v6557
    %6716 = vmatpush.bf16.msra.mxu0 %v6554
    %6717 = vmatpush.bf16.msra.mxu0 %v6551
    %6718 = vmatpush.bf16.msra.mxu0 %v6548
    %6719 = vmatpush.bf16.msra.mxu0 %v6545
    %6720 = vmatpush.bf16.msra.mxu0 %v6542
    %6721 = vmatpush.bf16.msra.mxu0 %v6539
    %6722 = vmatmul.bf16.gmra.mxu0 %v6167
    %v6723 = vpop.f32.mrf.mxu0
    %v6724 = vadd.f32 %v6710, %v6723
    %v6725 = vpop.f32.mrf.mxu0
    %v6726 = vadd.f32 %v6712, %v6725
    %6727 = vdwg.mxu0
    %6728 = vmatpush.bf16.msra.mxu0 %v6584
    %6729 = vmatpush.bf16.msra.mxu0 %v6581
    %6730 = vmatpush.bf16.msra.mxu0 %v6578
    %6731 = vmatpush.bf16.msra.mxu0 %v6575
    %6732 = vmatpush.bf16.msra.mxu0 %v6572
    %6733 = vmatpush.bf16.msra.mxu0 %v6569
    %6734 = vmatpush.bf16.msra.mxu0 %v6566
    %6735 = vmatpush.bf16.msra.mxu0 %v6563
    %6736 = vmatmul.bf16.gmra.mxu0 %v6168
    %v6737 = vpop.f32.mrf.mxu0
    %v6738 = vadd.f32 %v6724, %v6737
    %v6739 = vpop.f32.mrf.mxu0
    %v6740 = vadd.f32 %v6726, %v6739
    %6741 = vdwg.mxu0
    %6742 = vmatpush.bf16.msra.mxu0 %v6537
    %6743 = vmatpush.bf16.msra.mxu0 %v6534
    %6744 = vmatpush.bf16.msra.mxu0 %v6531
    %6745 = vmatpush.bf16.msra.mxu0 %v6528
    %6746 = vmatpush.bf16.msra.mxu0 %v6525
    %6747 = vmatpush.bf16.msra.mxu0 %v6522
    %6748 = vmatpush.bf16.msra.mxu0 %v6519
    %6749 = vmatpush.bf16.msra.mxu0 %v6516
    %6750 = vmatmul.bf16.gmra.mxu0 %v6166
    %v6751 = vpop.f32.mrf.mxu0
    %v6752 = vadd.f32 %v6270, %v6751
    %v6753 = vpop.f32.mrf.mxu0
    %v6754 = vadd.f32 %v6270, %v6753
    %6755 = vdwg.mxu0
    %6756 = vmatpush.bf16.msra.mxu0 %v6561
    %6757 = vmatpush.bf16.msra.mxu0 %v6558
    %6758 = vmatpush.bf16.msra.mxu0 %v6555
    %6759 = vmatpush.bf16.msra.mxu0 %v6552
    %6760 = vmatpush.bf16.msra.mxu0 %v6549
    %6761 = vmatpush.bf16.msra.mxu0 %v6546
    %6762 = vmatpush.bf16.msra.mxu0 %v6543
    %6763 = vmatpush.bf16.msra.mxu0 %v6540
    %6764 = vmatmul.bf16.gmra.mxu0 %v6167
    %v6765 = vpop.f32.mrf.mxu0
    %v6766 = vadd.f32 %v6752, %v6765
    %v6767 = vpop.f32.mrf.mxu0
    %v6768 = vadd.f32 %v6754, %v6767
    %6769 = vdwg.mxu0
    %6770 = vmatpush.bf16.msra.mxu0 %v6585
    %6771 = vmatpush.bf16.msra.mxu0 %v6582
    %6772 = vmatpush.bf16.msra.mxu0 %v6579
    %6773 = vmatpush.bf16.msra.mxu0 %v6576
    %6774 = vmatpush.bf16.msra.mxu0 %v6573
    %6775 = vmatpush.bf16.msra.mxu0 %v6570
    %6776 = vmatpush.bf16.msra.mxu0 %v6567
    %6777 = vmatpush.bf16.msra.mxu0 %v6564
    %6778 = vmatmul.bf16.gmra.mxu0 %v6168
    %v6779 = vpop.f32.mrf.mxu0
    %v6780 = vadd.f32 %v6766, %v6779
    %v6781 = vpop.f32.mrf.mxu0
    %v6782 = vadd.f32 %v6768, %v6781
    %6783 = vdwg.mxu0
    %v6784 = vmax.f32 %v6696, 0.0
    %v6785 = vmax.f32 %v6738, 0.0
    %v6786 = vmax.f32 %v6780, 0.0
    %v6787 = vmax.f32 %v6698, 0.0
    %v6788 = vmax.f32 %v6740, 0.0
    %v6789 = vmax.f32 %v6782, 0.0
    %v6790 = vpack.c.bf16 %v6787, %v6784
    %v6791 = vpack.c.bf16 %v6788, %v6785
    %v6792 = vpack.c.bf16 %v6789, %v6786
    %v6793 = vld [vmem:[#allocation4 + $0x24] sm:$0xff]
    %v6794 = vld [vmem:[#allocation4 + $0x2c] sm:$0xff]
    %v6795 = vld [vmem:[#allocation4 + $0x58] sm:$0xff]
    %v6796 = vld [vmem:[#allocation4 + $0x60] sm:$0xff]
    %v6797 = vld [vmem:[#allocation4 + $0x8c] sm:$0xff]
    %v6798 = vld [vmem:[#allocation4 + $0x94] sm:$0xff]
    %v6799 = vld [vmem:[#allocation4 + $0xc0] sm:$0xff]
    %v6800 = vld [vmem:[#allocation4 + $0xc8] sm:$0xff]
    %v6801 = vld [vmem:[#allocation4 + $0xf4] sm:$0xff]
    %v6802 = vld [vmem:[#allocation4 + $0xfc] sm:$0xff]
    %v6803 = vld [vmem:[#allocation4 + $0x128] sm:$0xff]
    %v6804 = vld [vmem:[#allocation4 + $0x130] sm:$0xff]
    %v6805 = vld [vmem:[#allocation4 + $0x15c] sm:$0xff]
    %v6806 = vld [vmem:[#allocation4 + $0x164] sm:$0xff]
    %v6807 = vld [vmem:[#allocation4 + $0x190] sm:$0xff]
    %v6808 = vld [vmem:[#allocation4 + $0x198] sm:$0xff]
    %v6809 = vld [vmem:[#allocation4 + $0x1c4] sm:$0xff]
    %v6810 = vld [vmem:[#allocation4 + $0x1cc] sm:$0xff]
    %v6811 = vld [vmem:[#allocation4 + $0x1f8] sm:$0xff]
    %v6812 = vld [vmem:[#allocation4 + $0x200] sm:$0xff]
    %v6813 = vld [vmem:[#allocation4 + $0x22c] sm:$0xff]
    %v6814 = vld [vmem:[#allocation4 + $0x234] sm:$0xff]
    %v6815 = vld [vmem:[#allocation4 + $0x260] sm:$0xff]
    %v6816 = vld [vmem:[#allocation4 + $0x268] sm:$0xff]
    %v6817 = vld [vmem:[#allocation4 + $0x294] sm:$0xff]
    %v6818 = vld [vmem:[#allocation4 + $0x29c] sm:$0xff]
    %v6819 = vld [vmem:[#allocation4 + $0x2c8] sm:$0xff]
    %v6820 = vld [vmem:[#allocation4 + $0x2d0] sm:$0xff]
    %v6821 = vld [vmem:[#allocation4 + $0x2fc] sm:$0xff]
    %v6822 = vld [vmem:[#allocation4 + $0x304] sm:$0xff]
    %v6823 = vld [vmem:[#allocation4 + $0x330] sm:$0xff]
    %v6824 = vld [vmem:[#allocation4 + $0x338] sm:$0xff]
    %v6825 = vld [vmem:[#allocation4 + $0x364] sm:$0xff]
    %v6826 = vld [vmem:[#allocation4 + $0x36c] sm:$0xff]
    %v6827 = vld [vmem:[#allocation4 + $0x398] sm:$0xff]
    %v6828 = vld [vmem:[#allocation4 + $0x3a0] sm:$0xff]
    %v6829 = vld [vmem:[#allocation4 + $0x3cc] sm:$0xff]
    %v6830 = vld [vmem:[#allocation4 + $0x3d4] sm:$0xff]
    %v6831 = vld [vmem:[#allocation4 + $0x400] sm:$0xff]
    %v6832 = vld [vmem:[#allocation4 + $0x408] sm:$0xff]
    %v6833 = vld [vmem:[#allocation4 + $0x434] sm:$0xff]
    %v6834 = vld [vmem:[#allocation4 + $0x43c] sm:$0xff]
    %v6835 = vld [vmem:[#allocation4 + $0x468] sm:$0xff]
    %v6836 = vld [vmem:[#allocation4 + $0x470] sm:$0xff]
    %v6837 = vld [vmem:[#allocation4 + $0x49c] sm:$0xff]
    %v6838 = vld [vmem:[#allocation4 + $0x4a4] sm:$0xff]
    %v6839 = vld [vmem:[#allocation4 + $0x4d0] sm:$0xff]
    %v6840 = vld [vmem:[#allocation4 + $0x4d8] sm:$0xff]
    %v6841 = vld [vmem:[#allocation4 + $0x504] sm:$0xff]
    %v6842 = vld [vmem:[#allocation4 + $0x50c] sm:$0xff]
    %v6843 = vld [vmem:[#allocation4 + $0x538] sm:$0xff]
    %v6844 = vld [vmem:[#allocation4 + $0x540] sm:$0xff]
    %v6845 = vld [vmem:[#allocation4 + $0x56c] sm:$0xff]
    %v6846 = vld [vmem:[#allocation4 + $0x574] sm:$0xff]
    %v6847 = vld [vmem:[#allocation4 + $0x5a0] sm:$0xff]
    %v6848 = vld [vmem:[#allocation4 + $0x5a8] sm:$0xff]
    %v6849 = vld [vmem:[#allocation4 + $0x5d4] sm:$0xff]
    %v6850 = vld [vmem:[#allocation4 + $0x5dc] sm:$0xff]
    %v6851 = vld [vmem:[#allocation4 + $0x608] sm:$0xff]
    %v6852 = vld [vmem:[#allocation4 + $0x610] sm:$0xff]
    %v6853 = vld [vmem:[#allocation4 + $0x63c] sm:$0xff]
    %v6854 = vld [vmem:[#allocation4 + $0x644] sm:$0xff]
    %v6855 = vld [vmem:[#allocation4 + $0x670] sm:$0xff]
    %v6856 = vld [vmem:[#allocation4 + $0x678] sm:$0xff]
    %v6857 = vld [vmem:[#allocation4 + $0x6a4] sm:$0xff]
    %v6858 = vld [vmem:[#allocation4 + $0x6ac] sm:$0xff]
    %v6859 = vld [vmem:[#allocation4 + $0x6d8] sm:$0xff]
    %v6860 = vld [vmem:[#allocation4 + $0x6e0] sm:$0xff]
    %v6861 = vld [vmem:[#allocation4 + $0x70c] sm:$0xff]
    %v6862 = vld [vmem:[#allocation4 + $0x714] sm:$0xff]
    %v6863 = vld [vmem:[#allocation4 + $0x740] sm:$0xff]
    %v6864 = vld [vmem:[#allocation4 + $0x748] sm:$0xff]
    %v6865 = vld [vmem:[#allocation4 + $0x774] sm:$0xff]
    %v6866 = vld [vmem:[#allocation4 + $0x77c] sm:$0xff]
    %v6867 = vld [vmem:[#allocation4 + $0x7a8] sm:$0xff]
    %v6868 = vld [vmem:[#allocation4 + $0x7b0] sm:$0xff]
    %v6869 = vld [vmem:[#allocation4 + $0x7dc] sm:$0xff]
    %v6870 = vld [vmem:[#allocation4 + $0x7e4] sm:$0xff]
    %v6871 = vld [vmem:[#allocation4 + $0x810] sm:$0xff]
    %v6872 = vld [vmem:[#allocation4 + $0x818] sm:$0xff]
    %v6873 = vld [vmem:[#allocation4 + $0x844] sm:$0xff]
    %v6874 = vld [vmem:[#allocation4 + $0x84c] sm:$0xff]
    %v6875 = vld [vmem:[#allocation4 + $0x878] sm:$0xff]
    %v6876 = vld [vmem:[#allocation4 + $0x880] sm:$0xff]
    %v6877 = vld [vmem:[#allocation4 + $0x8ac] sm:$0xff]
    %v6878 = vld [vmem:[#allocation4 + $0x8b4] sm:$0xff]
    %v6879 = vld [vmem:[#allocation4 + $0x8e0] sm:$0xff]
    %v6880 = vld [vmem:[#allocation4 + $0x8e8] sm:$0xff]
    %v6881 = vld [vmem:[#allocation4 + $0x914] sm:$0xff]
    %v6882 = vld [vmem:[#allocation4 + $0x91c] sm:$0xff]
    %v6883 = vld [vmem:[#allocation4 + $0x948] sm:$0xff]
    %v6884 = vld [vmem:[#allocation4 + $0x950] sm:$0xff]
    %v6885 = vld [vmem:[#allocation4 + $0x97c] sm:$0xff]
    %v6886 = vld [vmem:[#allocation4 + $0x984] sm:$0xff]
    %v6887 = vld [vmem:[#allocation4 + $0x9b0] sm:$0xff]
    %v6888 = vld [vmem:[#allocation4 + $0x9b8] sm:$0xff]
    %s6889 = scalar_lea.vmem [#allocation6], 7
    %v6890 = vld [vmem:[%s6889] ss:$8 sm:$0xf]
    %v6892 = vperm.slane %v6890, 0
    %v6893 = vperm.slane %v6890, 1
    %v6894 = vperm.slane %v6890, 2
    %v6895 = vperm.slane %v6890, 3
    %v6996 = vunpack.c.l.b16 %v6793
    %v6997 = vunpack.c.h.b16 %v6793
    %v6998 = vunpack.c.l.b16 %v6794
    %v6999 = vunpack.c.h.b16 %v6794
    %v7000 = vunpack.c.l.b16 %v6795
    %v7001 = vunpack.c.h.b16 %v6795
    %v7002 = vunpack.c.l.b16 %v6796
    %v7003 = vunpack.c.h.b16 %v6796
    %v7004 = vunpack.c.l.b16 %v6797
    %v7005 = vunpack.c.h.b16 %v6797
    %v7006 = vunpack.c.l.b16 %v6798
    %v7007 = vunpack.c.h.b16 %v6798
    %v7008 = vunpack.c.l.b16 %v6799
    %v7009 = vunpack.c.h.b16 %v6799
    %v7010 = vunpack.c.l.b16 %v6800
    %v7011 = vunpack.c.h.b16 %v6800
    %v7012 = vunpack.c.l.b16 %v6801
    %v7013 = vunpack.c.h.b16 %v6801
    %v7014 = vunpack.c.l.b16 %v6802
    %v7015 = vunpack.c.h.b16 %v6802
    %v7016 = vunpack.c.l.b16 %v6803
    %v7017 = vunpack.c.h.b16 %v6803
    %v7018 = vunpack.c.l.b16 %v6804
    %v7019 = vunpack.c.h.b16 %v6804
    %v7020 = vunpack.c.l.b16 %v6805
    %v7021 = vunpack.c.h.b16 %v6805
    %v7022 = vunpack.c.l.b16 %v6806
    %v7023 = vunpack.c.h.b16 %v6806
    %v7024 = vunpack.c.l.b16 %v6807
    %v7025 = vunpack.c.h.b16 %v6807
    %v7026 = vunpack.c.l.b16 %v6808
    %v7027 = vunpack.c.h.b16 %v6808
    %v7028 = vunpack.c.l.b16 %v6809
    %v7029 = vunpack.c.h.b16 %v6809
    %v7030 = vunpack.c.l.b16 %v6810
    %v7031 = vunpack.c.h.b16 %v6810
    %v7032 = vunpack.c.l.b16 %v6811
    %v7033 = vunpack.c.h.b16 %v6811
    %v7034 = vunpack.c.l.b16 %v6812
    %v7035 = vunpack.c.h.b16 %v6812
    %v7036 = vunpack.c.l.b16 %v6813
    %v7037 = vunpack.c.h.b16 %v6813
    %v7038 = vunpack.c.l.b16 %v6814
    %v7039 = vunpack.c.h.b16 %v6814
    %v7040 = vunpack.c.l.b16 %v6815
    %v7041 = vunpack.c.h.b16 %v6815
    %v7042 = vunpack.c.l.b16 %v6816
    %v7043 = vunpack.c.h.b16 %v6816
    %v7044 = vunpack.c.l.b16 %v6817
    %v7045 = vunpack.c.h.b16 %v6817
    %v7046 = vunpack.c.l.b16 %v6818
    %v7047 = vunpack.c.h.b16 %v6818
    %v7048 = vunpack.c.l.b16 %v6819
    %v7049 = vunpack.c.h.b16 %v6819
    %v7050 = vunpack.c.l.b16 %v6820
    %v7051 = vunpack.c.h.b16 %v6820
    %v7052 = vunpack.c.l.b16 %v6821
    %v7053 = vunpack.c.h.b16 %v6821
    %v7054 = vunpack.c.l.b16 %v6822
    %v7055 = vunpack.c.h.b16 %v6822
    %v7056 = vunpack.c.l.b16 %v6823
    %v7057 = vunpack.c.h.b16 %v6823
    %v7058 = vunpack.c.l.b16 %v6824
    %v7059 = vunpack.c.h.b16 %v6824
    %v7060 = vunpack.c.l.b16 %v6825
    %v7061 = vunpack.c.h.b16 %v6825
    %v7062 = vunpack.c.l.b16 %v6826
    %v7063 = vunpack.c.h.b16 %v6826
    %v7064 = vunpack.c.l.b16 %v6827
    %v7065 = vunpack.c.h.b16 %v6827
    %v7066 = vunpack.c.l.b16 %v6828
    %v7067 = vunpack.c.h.b16 %v6828
    %v7068 = vunpack.c.l.b16 %v6829
    %v7069 = vunpack.c.h.b16 %v6829
    %v7070 = vunpack.c.l.b16 %v6830
    %v7071 = vunpack.c.h.b16 %v6830
    %v7072 = vunpack.c.l.b16 %v6831
    %v7073 = vunpack.c.h.b16 %v6831
    %v7074 = vunpack.c.l.b16 %v6832
    %v7075 = vunpack.c.h.b16 %v6832
    %v7076 = vunpack.c.l.b16 %v6833
    %v7077 = vunpack.c.h.b16 %v6833
    %v7078 = vunpack.c.l.b16 %v6834
    %v7079 = vunpack.c.h.b16 %v6834
    %v7080 = vunpack.c.l.b16 %v6835
    %v7081 = vunpack.c.h.b16 %v6835
    %v7082 = vunpack.c.l.b16 %v6836
    %v7083 = vunpack.c.h.b16 %v6836
    %v7084 = vunpack.c.l.b16 %v6837
    %v7085 = vunpack.c.h.b16 %v6837
    %v7086 = vunpack.c.l.b16 %v6838
    %v7087 = vunpack.c.h.b16 %v6838
    %v7088 = vunpack.c.l.b16 %v6839
    %v7089 = vunpack.c.h.b16 %v6839
    %v7090 = vunpack.c.l.b16 %v6840
    %v7091 = vunpack.c.h.b16 %v6840
    %v7092 = vunpack.c.l.b16 %v6841
    %v7093 = vunpack.c.h.b16 %v6841
    %v7094 = vunpack.c.l.b16 %v6842
    %v7095 = vunpack.c.h.b16 %v6842
    %v7096 = vunpack.c.l.b16 %v6843
    %v7097 = vunpack.c.h.b16 %v6843
    %v7098 = vunpack.c.l.b16 %v6844
    %v7099 = vunpack.c.h.b16 %v6844
    %v7100 = vunpack.c.l.b16 %v6845
    %v7101 = vunpack.c.h.b16 %v6845
    %v7102 = vunpack.c.l.b16 %v6846
    %v7103 = vunpack.c.h.b16 %v6846
    %v7104 = vunpack.c.l.b16 %v6847
    %v7105 = vunpack.c.h.b16 %v6847
    %v7106 = vunpack.c.l.b16 %v6848
    %v7107 = vunpack.c.h.b16 %v6848
    %v7108 = vunpack.c.l.b16 %v6849
    %v7109 = vunpack.c.h.b16 %v6849
    %v7110 = vunpack.c.l.b16 %v6850
    %v7111 = vunpack.c.h.b16 %v6850
    %v7112 = vunpack.c.l.b16 %v6851
    %v7113 = vunpack.c.h.b16 %v6851
    %v7114 = vunpack.c.l.b16 %v6852
    %v7115 = vunpack.c.h.b16 %v6852
    %v7116 = vunpack.c.l.b16 %v6853
    %v7117 = vunpack.c.h.b16 %v6853
    %v7118 = vunpack.c.l.b16 %v6854
    %v7119 = vunpack.c.h.b16 %v6854
    %v7120 = vunpack.c.l.b16 %v6855
    %v7121 = vunpack.c.h.b16 %v6855
    %v7122 = vunpack.c.l.b16 %v6856
    %v7123 = vunpack.c.h.b16 %v6856
    %v7124 = vunpack.c.l.b16 %v6857
    %v7125 = vunpack.c.h.b16 %v6857
    %v7126 = vunpack.c.l.b16 %v6858
    %v7127 = vunpack.c.h.b16 %v6858
    %v7128 = vunpack.c.l.b16 %v6859
    %v7129 = vunpack.c.h.b16 %v6859
    %v7130 = vunpack.c.l.b16 %v6860
    %v7131 = vunpack.c.h.b16 %v6860
    %v7132 = vunpack.c.l.b16 %v6861
    %v7133 = vunpack.c.h.b16 %v6861
    %v7134 = vunpack.c.l.b16 %v6862
    %v7135 = vunpack.c.h.b16 %v6862
    %v7136 = vunpack.c.l.b16 %v6863
    %v7137 = vunpack.c.h.b16 %v6863
    %v7138 = vunpack.c.l.b16 %v6864
    %v7139 = vunpack.c.h.b16 %v6864
    %v7140 = vunpack.c.l.b16 %v6865
    %v7141 = vunpack.c.h.b16 %v6865
    %v7142 = vunpack.c.l.b16 %v6866
    %v7143 = vunpack.c.h.b16 %v6866
    %v7144 = vunpack.c.l.b16 %v6867
    %v7145 = vunpack.c.h.b16 %v6867
    %v7146 = vunpack.c.l.b16 %v6868
    %v7147 = vunpack.c.h.b16 %v6868
    %v7148 = vunpack.c.l.b16 %v6869
    %v7149 = vunpack.c.h.b16 %v6869
    %v7150 = vunpack.c.l.b16 %v6870
    %v7151 = vunpack.c.h.b16 %v6870
    %v7152 = vunpack.c.l.b16 %v6871
    %v7153 = vunpack.c.h.b16 %v6871
    %v7154 = vunpack.c.l.b16 %v6872
    %v7155 = vunpack.c.h.b16 %v6872
    %v7156 = vunpack.c.l.b16 %v6873
    %v7157 = vunpack.c.h.b16 %v6873
    %v7158 = vunpack.c.l.b16 %v6874
    %v7159 = vunpack.c.h.b16 %v6874
    %v7160 = vunpack.c.l.b16 %v6875
    %v7161 = vunpack.c.h.b16 %v6875
    %v7162 = vunpack.c.l.b16 %v6876
    %v7163 = vunpack.c.h.b16 %v6876
    %v7164 = vunpack.c.l.b16 %v6877
    %v7165 = vunpack.c.h.b16 %v6877
    %v7166 = vunpack.c.l.b16 %v6878
    %v7167 = vunpack.c.h.b16 %v6878
    %v7168 = vunpack.c.l.b16 %v6879
    %v7169 = vunpack.c.h.b16 %v6879
    %v7170 = vunpack.c.l.b16 %v6880
    %v7171 = vunpack.c.h.b16 %v6880
    %v7172 = vunpack.c.l.b16 %v6881
    %v7173 = vunpack.c.h.b16 %v6881
    %v7174 = vunpack.c.l.b16 %v6882
    %v7175 = vunpack.c.h.b16 %v6882
    %v7176 = vunpack.c.l.b16 %v6883
    %v7177 = vunpack.c.h.b16 %v6883
    %v7178 = vunpack.c.l.b16 %v6884
    %v7179 = vunpack.c.h.b16 %v6884
    %v7180 = vunpack.c.l.b16 %v6885
    %v7181 = vunpack.c.h.b16 %v6885
    %v7182 = vunpack.c.l.b16 %v6886
    %v7183 = vunpack.c.h.b16 %v6886
    %v7184 = vunpack.c.l.b16 %v6887
    %v7185 = vunpack.c.h.b16 %v6887
    %v7186 = vunpack.c.l.b16 %v6888
    %v7187 = vunpack.c.h.b16 %v6888
    %v7188 = vpack.c.b16 %v7000, %v6996
    %v7189 = vpack.c.b16 %v7001, %v6997
    %v7190 = vpack.c.b16 %v7002, %v6998
    %v7191 = vpack.c.b16 %v7003, %v6999
    %v7192 = vpack.c.b16 %v7008, %v7004
    %v7193 = vpack.c.b16 %v7009, %v7005
    %v7194 = vpack.c.b16 %v7010, %v7006
    %v7195 = vpack.c.b16 %v7011, %v7007
    %v7196 = vpack.c.b16 %v7016, %v7012
    %v7197 = vpack.c.b16 %v7017, %v7013
    %v7198 = vpack.c.b16 %v7018, %v7014
    %v7199 = vpack.c.b16 %v7019, %v7015
    %v7200 = vpack.c.b16 %v7024, %v7020
    %v7201 = vpack.c.b16 %v7025, %v7021
    %v7202 = vpack.c.b16 %v7026, %v7022
    %v7203 = vpack.c.b16 %v7027, %v7023
    %v7204 = vpack.c.b16 %v7032, %v7028
    %v7205 = vpack.c.b16 %v7033, %v7029
    %v7206 = vpack.c.b16 %v7034, %v7030
    %v7207 = vpack.c.b16 %v7035, %v7031
    %v7208 = vpack.c.b16 %v7040, %v7036
    %v7209 = vpack.c.b16 %v7041, %v7037
    %v7210 = vpack.c.b16 %v7042, %v7038
    %v7211 = vpack.c.b16 %v7043, %v7039
    %v7212 = vpack.c.b16 %v7048, %v7044
    %v7213 = vpack.c.b16 %v7049, %v7045
    %v7214 = vpack.c.b16 %v7050, %v7046
    %v7215 = vpack.c.b16 %v7051, %v7047
    %v7216 = vpack.c.b16 %v7056, %v7052
    %v7217 = vpack.c.b16 %v7057, %v7053
    %v7218 = vpack.c.b16 %v7058, %v7054
    %v7219 = vpack.c.b16 %v7059, %v7055
    %v7220 = vpack.c.b16 %v7064, %v7060
    %v7221 = vpack.c.b16 %v7065, %v7061
    %v7222 = vpack.c.b16 %v7066, %v7062
    %v7223 = vpack.c.b16 %v7067, %v7063
    %v7224 = vpack.c.b16 %v7072, %v7068
    %v7225 = vpack.c.b16 %v7073, %v7069
    %v7226 = vpack.c.b16 %v7074, %v7070
    %v7227 = vpack.c.b16 %v7075, %v7071
    %v7228 = vpack.c.b16 %v7080, %v7076
    %v7229 = vpack.c.b16 %v7081, %v7077
    %v7230 = vpack.c.b16 %v7082, %v7078
    %v7231 = vpack.c.b16 %v7083, %v7079
    %v7232 = vpack.c.b16 %v7088, %v7084
    %v7233 = vpack.c.b16 %v7089, %v7085
    %v7234 = vpack.c.b16 %v7090, %v7086
    %v7235 = vpack.c.b16 %v7091, %v7087
    %v7236 = vpack.c.b16 %v7096, %v7092
    %v7237 = vpack.c.b16 %v7097, %v7093
    %v7238 = vpack.c.b16 %v7098, %v7094
    %v7239 = vpack.c.b16 %v7099, %v7095
    %v7240 = vpack.c.b16 %v7104, %v7100
    %v7241 = vpack.c.b16 %v7105, %v7101
    %v7242 = vpack.c.b16 %v7106, %v7102
    %v7243 = vpack.c.b16 %v7107, %v7103
    %v7244 = vpack.c.b16 %v7112, %v7108
    %v7245 = vpack.c.b16 %v7113, %v7109
    %v7246 = vpack.c.b16 %v7114, %v7110
    %v7247 = vpack.c.b16 %v7115, %v7111
    %v7248 = vpack.c.b16 %v7120, %v7116
    %v7249 = vpack.c.b16 %v7121, %v7117
    %v7250 = vpack.c.b16 %v7122, %v7118
    %v7251 = vpack.c.b16 %v7123, %v7119
    %v7252 = vpack.c.b16 %v7128, %v7124
    %v7253 = vpack.c.b16 %v7129, %v7125
    %v7254 = vpack.c.b16 %v7130, %v7126
    %v7255 = vpack.c.b16 %v7131, %v7127
    %v7256 = vpack.c.b16 %v7136, %v7132
    %v7257 = vpack.c.b16 %v7137, %v7133
    %v7258 = vpack.c.b16 %v7138, %v7134
    %v7259 = vpack.c.b16 %v7139, %v7135
    %v7260 = vpack.c.b16 %v7144, %v7140
    %v7261 = vpack.c.b16 %v7145, %v7141
    %v7262 = vpack.c.b16 %v7146, %v7142
    %v7263 = vpack.c.b16 %v7147, %v7143
    %v7264 = vpack.c.b16 %v7152, %v7148
    %v7265 = vpack.c.b16 %v7153, %v7149
    %v7266 = vpack.c.b16 %v7154, %v7150
    %v7267 = vpack.c.b16 %v7155, %v7151
    %v7268 = vpack.c.b16 %v7160, %v7156
    %v7269 = vpack.c.b16 %v7161, %v7157
    %v7270 = vpack.c.b16 %v7162, %v7158
    %v7271 = vpack.c.b16 %v7163, %v7159
    %v7272 = vpack.c.b16 %v7168, %v7164
    %v7273 = vpack.c.b16 %v7169, %v7165
    %v7274 = vpack.c.b16 %v7170, %v7166
    %v7275 = vpack.c.b16 %v7171, %v7167
    %v7276 = vpack.c.b16 %v7176, %v7172
    %v7277 = vpack.c.b16 %v7177, %v7173
    %v7278 = vpack.c.b16 %v7178, %v7174
    %v7279 = vpack.c.b16 %v7179, %v7175
    %v7280 = vpack.c.b16 %v7184, %v7180
    %v7281 = vpack.c.b16 %v7185, %v7181
    %v7282 = vpack.c.b16 %v7186, %v7182
    %v7283 = vpack.c.b16 %v7187, %v7183
    %7380 = vmatpush.bf16.msra.mxu0 %v7216
    %7381 = vmatpush.bf16.msra.mxu0 %v7212
    %7382 = vmatpush.bf16.msra.mxu0 %v7208
    %7383 = vmatpush.bf16.msra.mxu0 %v7204
    %7384 = vmatpush.bf16.msra.mxu0 %v7200
    %7385 = vmatpush.bf16.msra.mxu0 %v7196
    %7386 = vmatpush.bf16.msra.mxu0 %v7192
    %7387 = vmatpush.bf16.msra.mxu0 %v7188
    %7388 = vmatmul.bf16.gmra.mxu0 %v6790
    %v7389 = vpop.f32.mrf.mxu0
    %v7390 = vadd.f32 %v6892, %v7389
    %v7391 = vpop.f32.mrf.mxu0
    %v7392 = vadd.f32 %v6892, %v7391
    %7393 = vdwg.mxu0
    %7394 = vmatpush.bf16.msra.mxu0 %v7248
    %7395 = vmatpush.bf16.msra.mxu0 %v7244
    %7396 = vmatpush.bf16.msra.mxu0 %v7240
    %7397 = vmatpush.bf16.msra.mxu0 %v7236
    %7398 = vmatpush.bf16.msra.mxu0 %v7232
    %7399 = vmatpush.bf16.msra.mxu0 %v7228
    %7400 = vmatpush.bf16.msra.mxu0 %v7224
    %7401 = vmatpush.bf16.msra.mxu0 %v7220
    %7402 = vmatmul.bf16.gmra.mxu0 %v6791
    %v7403 = vpop.f32.mrf.mxu0
    %v7404 = vadd.f32 %v7390, %v7403
    %v7405 = vpop.f32.mrf.mxu0
    %v7406 = vadd.f32 %v7392, %v7405
    %7407 = vdwg.mxu0
    %7408 = vmatpush.bf16.msra.mxu0 %v7280
    %7409 = vmatpush.bf16.msra.mxu0 %v7276
    %7410 = vmatpush.bf16.msra.mxu0 %v7272
    %7411 = vmatpush.bf16.msra.mxu0 %v7268
    %7412 = vmatpush.bf16.msra.mxu0 %v7264
    %7413 = vmatpush.bf16.msra.mxu0 %v7260
    %7414 = vmatpush.bf16.msra.mxu0 %v7256
    %7415 = vmatpush.bf16.msra.mxu0 %v7252
    %7416 = vmatmul.bf16.gmra.mxu0 %v6792
    %v7417 = vpop.f32.mrf.mxu0
    %v7418 = vadd.f32 %v7404, %v7417
    %v7419 = vpop.f32.mrf.mxu0
    %v7420 = vadd.f32 %v7406, %v7419
    %7421 = vdwg.mxu0
    %7422 = vmatpush.bf16.msra.mxu0 %v7217
    %7423 = vmatpush.bf16.msra.mxu0 %v7213
    %7424 = vmatpush.bf16.msra.mxu0 %v7209
    %7425 = vmatpush.bf16.msra.mxu0 %v7205
    %7426 = vmatpush.bf16.msra.mxu0 %v7201
    %7427 = vmatpush.bf16.msra.mxu0 %v7197
    %7428 = vmatpush.bf16.msra.mxu0 %v7193
    %7429 = vmatpush.bf16.msra.mxu0 %v7189
    %7430 = vmatmul.bf16.gmra.mxu0 %v6790
    %v7431 = vpop.f32.mrf.mxu0
    %v7432 = vadd.f32 %v6893, %v7431
    %v7433 = vpop.f32.mrf.mxu0
    %v7434 = vadd.f32 %v6893, %v7433
    %7435 = vdwg.mxu0
    %7436 = vmatpush.bf16.msra.mxu0 %v7249
    %7437 = vmatpush.bf16.msra.mxu0 %v7245
    %7438 = vmatpush.bf16.msra.mxu0 %v7241
    %7439 = vmatpush.bf16.msra.mxu0 %v7237
    %7440 = vmatpush.bf16.msra.mxu0 %v7233
    %7441 = vmatpush.bf16.msra.mxu0 %v7229
    %7442 = vmatpush.bf16.msra.mxu0 %v7225
    %7443 = vmatpush.bf16.msra.mxu0 %v7221
    %7444 = vmatmul.bf16.gmra.mxu0 %v6791
    %v7445 = vpop.f32.mrf.mxu0
    %v7446 = vadd.f32 %v7432, %v7445
    %v7447 = vpop.f32.mrf.mxu0
    %v7448 = vadd.f32 %v7434, %v7447
    %7449 = vdwg.mxu0
    %7450 = vmatpush.bf16.msra.mxu0 %v7281
    %7451 = vmatpush.bf16.msra.mxu0 %v7277
    %7452 = vmatpush.bf16.msra.mxu0 %v7273
    %7453 = vmatpush.bf16.msra.mxu0 %v7269
    %7454 = vmatpush.bf16.msra.mxu0 %v7265
    %7455 = vmatpush.bf16.msra.mxu0 %v7261
    %7456 = vmatpush.bf16.msra.mxu0 %v7257
    %7457 = vmatpush.bf16.msra.mxu0 %v7253
    %7458 = vmatmul.bf16.gmra.mxu0 %v6792
    %v7459 = vpop.f32.mrf.mxu0
    %v7460 = vadd.f32 %v7446, %v7459
    %v7461 = vpop.f32.mrf.mxu0
    %v7462 = vadd.f32 %v7448, %v7461
    %7463 = vdwg.mxu0
    %7464 = vmatpush.bf16.msra.mxu0 %v7218
    %7465 = vmatpush.bf16.msra.mxu0 %v7214
    %7466 = vmatpush.bf16.msra.mxu0 %v7210
    %7467 = vmatpush.bf16.msra.mxu0 %v7206
    %7468 = vmatpush.bf16.msra.mxu0 %v7202
    %7469 = vmatpush.bf16.msra.mxu0 %v7198
    %7470 = vmatpush.bf16.msra.mxu0 %v7194
    %7471 = vmatpush.bf16.msra.mxu0 %v7190
    %7472 = vmatmul.bf16.gmra.mxu0 %v6790
    %v7473 = vpop.f32.mrf.mxu0
    %v7474 = vadd.f32 %v6894, %v7473
    %v7475 = vpop.f32.mrf.mxu0
    %v7476 = vadd.f32 %v6894, %v7475
    %7477 = vdwg.mxu0
    %7478 = vmatpush.bf16.msra.mxu0 %v7250
    %7479 = vmatpush.bf16.msra.mxu0 %v7246
    %7480 = vmatpush.bf16.msra.mxu0 %v7242
    %7481 = vmatpush.bf16.msra.mxu0 %v7238
    %7482 = vmatpush.bf16.msra.mxu0 %v7234
    %7483 = vmatpush.bf16.msra.mxu0 %v7230
    %7484 = vmatpush.bf16.msra.mxu0 %v7226
    %7485 = vmatpush.bf16.msra.mxu0 %v7222
    %7486 = vmatmul.bf16.gmra.mxu0 %v6791
    %v7487 = vpop.f32.mrf.mxu0
    %v7488 = vadd.f32 %v7474, %v7487
    %v7489 = vpop.f32.mrf.mxu0
    %v7490 = vadd.f32 %v7476, %v7489
    %7491 = vdwg.mxu0
    %7492 = vmatpush.bf16.msra.mxu0 %v7282
    %7493 = vmatpush.bf16.msra.mxu0 %v7278
    %7494 = vmatpush.bf16.msra.mxu0 %v7274
    %7495 = vmatpush.bf16.msra.mxu0 %v7270
    %7496 = vmatpush.bf16.msra.mxu0 %v7266
    %7497 = vmatpush.bf16.msra.mxu0 %v7262
    %7498 = vmatpush.bf16.msra.mxu0 %v7258
    %7499 = vmatpush.bf16.msra.mxu0 %v7254
    %7500 = vmatmul.bf16.gmra.mxu0 %v6792
    %v7501 = vpop.f32.mrf.mxu0
    %v7502 = vadd.f32 %v7488, %v7501
    %v7503 = vpop.f32.mrf.mxu0
    %v7504 = vadd.f32 %v7490, %v7503
    %7505 = vdwg.mxu0
    %7506 = vmatpush.bf16.msra.mxu0 %v7219
    %7507 = vmatpush.bf16.msra.mxu0 %v7215
    %7508 = vmatpush.bf16.msra.mxu0 %v7211
    %7509 = vmatpush.bf16.msra.mxu0 %v7207
    %7510 = vmatpush.bf16.msra.mxu0 %v7203
    %7511 = vmatpush.bf16.msra.mxu0 %v7199
    %7512 = vmatpush.bf16.msra.mxu0 %v7195
    %7513 = vmatpush.bf16.msra.mxu0 %v7191
    %7514 = vmatmul.bf16.gmra.mxu0 %v6790
    %v7515 = vpop.f32.mrf.mxu0
    %v7516 = vadd.f32 %v6895, %v7515
    %v7517 = vpop.f32.mrf.mxu0
    %v7518 = vadd.f32 %v6895, %v7517
    %7519 = vdwg.mxu0
    %7520 = vmatpush.bf16.msra.mxu0 %v7251
    %7521 = vmatpush.bf16.msra.mxu0 %v7247
    %7522 = vmatpush.bf16.msra.mxu0 %v7243
    %7523 = vmatpush.bf16.msra.mxu0 %v7239
    %7524 = vmatpush.bf16.msra.mxu0 %v7235
    %7525 = vmatpush.bf16.msra.mxu0 %v7231
    %7526 = vmatpush.bf16.msra.mxu0 %v7227
    %7527 = vmatpush.bf16.msra.mxu0 %v7223
    %7528 = vmatmul.bf16.gmra.mxu0 %v6791
    %v7529 = vpop.f32.mrf.mxu0
    %v7530 = vadd.f32 %v7516, %v7529
    %v7531 = vpop.f32.mrf.mxu0
    %v7532 = vadd.f32 %v7518, %v7531
    %7533 = vdwg.mxu0
    %7534 = vmatpush.bf16.msra.mxu0 %v7283
    %7535 = vmatpush.bf16.msra.mxu0 %v7279
    %7536 = vmatpush.bf16.msra.mxu0 %v7275
    %7537 = vmatpush.bf16.msra.mxu0 %v7271
    %7538 = vmatpush.bf16.msra.mxu0 %v7267
    %7539 = vmatpush.bf16.msra.mxu0 %v7263
    %7540 = vmatpush.bf16.msra.mxu0 %v7259
    %7541 = vmatpush.bf16.msra.mxu0 %v7255
    %7542 = vmatmul.bf16.gmra.mxu0 %v6792
    %v7543 = vpop.f32.mrf.mxu0
    %v7544 = vadd.f32 %v7530, %v7543
    %v7545 = vpop.f32.mrf.mxu0
    %v7546 = vadd.f32 %v7532, %v7545
    %7547 = vdwg.mxu0
    %v7548 = vmax.f32 %v7418, 0.0
    %v7549 = vmax.f32 %v7460, 0.0
    %v7550 = vmax.f32 %v7502, 0.0
    %v7551 = vmax.f32 %v7544, 0.0
    %v7552 = vmax.f32 %v7420, 0.0
    %v7553 = vmax.f32 %v7462, 0.0
    %v7554 = vmax.f32 %v7504, 0.0
    %v7555 = vmax.f32 %v7546, 0.0
    %v7556 = vpack.c.bf16 %v7552, %v7548
    %v7557 = vpack.c.bf16 %v7553, %v7549
    %v7558 = vpack.c.bf16 %v7554, %v7550
    %v7559 = vpack.c.bf16 %v7555, %v7551
    %v7560 = vld [vmem:[#allocation3 + $0x2c] sm:$0xff]
    %v7561 = vld [vmem:[#allocation3 + $0x34] sm:$0xff]
    %v7562 = vld [vmem:[#allocation3 + $0x98] sm:$0xff]
    %v7563 = vld [vmem:[#allocation3 + $0xa0] sm:$0xff]
    %v7564 = vld [vmem:[#allocation3 + $0x104] sm:$0xff]
    %v7565 = vld [vmem:[#allocation3 + $0x10c] sm:$0xff]
    %v7566 = vld [vmem:[#allocation3 + $0x170] sm:$0xff]
    %v7567 = vld [vmem:[#allocation3 + $0x178] sm:$0xff]
    %v7568 = vld [vmem:[#allocation3 + $0x1dc] sm:$0xff]
    %v7569 = vld [vmem:[#allocation3 + $0x1e4] sm:$0xff]
    %v7570 = vld [vmem:[#allocation3 + $0x248] sm:$0xff]
    %v7571 = vld [vmem:[#allocation3 + $0x250] sm:$0xff]
    %v7572 = vld [vmem:[#allocation3 + $0x2b4] sm:$0xff]
    %v7573 = vld [vmem:[#allocation3 + $0x2bc] sm:$0xff]
    %v7574 = vld [vmem:[#allocation3 + $0x320] sm:$0xff]
    %v7575 = vld [vmem:[#allocation3 + $0x328] sm:$0xff]
    %v7576 = vld [vmem:[#allocation3 + $0x38c] sm:$0xff]
    %v7577 = vld [vmem:[#allocation3 + $0x394] sm:$0xff]
    %v7578 = vld [vmem:[#allocation3 + $0x3f8] sm:$0xff]
    %v7579 = vld [vmem:[#allocation3 + $0x400] sm:$0xff]
    %v7580 = vld [vmem:[#allocation3 + $0x464] sm:$0xff]
    %v7581 = vld [vmem:[#allocation3 + $0x46c] sm:$0xff]
    %v7582 = vld [vmem:[#allocation3 + $0x4d0] sm:$0xff]
    %v7583 = vld [vmem:[#allocation3 + $0x4d8] sm:$0xff]
    %v7584 = vld [vmem:[#allocation3 + $0x53c] sm:$0xff]
    %v7585 = vld [vmem:[#allocation3 + $0x544] sm:$0xff]
    %v7586 = vld [vmem:[#allocation3 + $0x5a8] sm:$0xff]
    %v7587 = vld [vmem:[#allocation3 + $0x5b0] sm:$0xff]
    %v7588 = vld [vmem:[#allocation3 + $0x614] sm:$0xff]
    %v7589 = vld [vmem:[#allocation3 + $0x61c] sm:$0xff]
    %v7590 = vld [vmem:[#allocation3 + $0x680] sm:$0xff]
    %v7591 = vld [vmem:[#allocation3 + $0x688] sm:$0xff]
    %v7592 = vld [vmem:[#allocation3 + $0x6ec] sm:$0xff]
    %v7593 = vld [vmem:[#allocation3 + $0x6f4] sm:$0xff]
    %v7594 = vld [vmem:[#allocation3 + $0x758] sm:$0xff]
    %v7595 = vld [vmem:[#allocation3 + $0x760] sm:$0xff]
    %v7596 = vld [vmem:[#allocation3 + $0x7c4] sm:$0xff]
    %v7597 = vld [vmem:[#allocation3 + $0x7cc] sm:$0xff]
    %v7598 = vld [vmem:[#allocation3 + $0x830] sm:$0xff]
    %v7599 = vld [vmem:[#allocation3 + $0x838] sm:$0xff]
    %v7600 = vld [vmem:[#allocation3 + $0x89c] sm:$0xff]
    %v7601 = vld [vmem:[#allocation3 + $0x8a4] sm:$0xff]
    %v7602 = vld [vmem:[#allocation3 + $0x908] sm:$0xff]
    %v7603 = vld [vmem:[#allocation3 + $0x910] sm:$0xff]
    %v7604 = vld [vmem:[#allocation3 + $0x974] sm:$0xff]
    %v7605 = vld [vmem:[#allocation3 + $0x97c] sm:$0xff]
    %v7606 = vld [vmem:[#allocation3 + $0x9e0] sm:$0xff]
    %v7607 = vld [vmem:[#allocation3 + $0x9e8] sm:$0xff]
    %v7608 = vld [vmem:[#allocation3 + $0xa4c] sm:$0xff]
    %v7609 = vld [vmem:[#allocation3 + $0xa54] sm:$0xff]
    %v7610 = vld [vmem:[#allocation3 + $0xab8] sm:$0xff]
    %v7611 = vld [vmem:[#allocation3 + $0xac0] sm:$0xff]
    %v7612 = vld [vmem:[#allocation3 + $0xb24] sm:$0xff]
    %v7613 = vld [vmem:[#allocation3 + $0xb2c] sm:$0xff]
    %v7614 = vld [vmem:[#allocation3 + $0xb90] sm:$0xff]
    %v7615 = vld [vmem:[#allocation3 + $0xb98] sm:$0xff]
    %v7616 = vld [vmem:[#allocation3 + $0xbfc] sm:$0xff]
    %v7617 = vld [vmem:[#allocation3 + $0xc04] sm:$0xff]
    %v7618 = vld [vmem:[#allocation3 + $0xc68] sm:$0xff]
    %v7619 = vld [vmem:[#allocation3 + $0xc70] sm:$0xff]
    %v7620 = vld [vmem:[#allocation3 + $0xcd4] sm:$0xff]
    %v7621 = vld [vmem:[#allocation3 + $0xcdc] sm:$0xff]
    %v7622 = vld [vmem:[#allocation3 + $0xd40] sm:$0xff]
    %v7623 = vld [vmem:[#allocation3 + $0xd48] sm:$0xff]
    %v7624 = vld [vmem:[#allocation3 + $0xdac] sm:$0xff]
    %v7625 = vld [vmem:[#allocation3 + $0xdb4] sm:$0xff]
    %v7626 = vld [vmem:[#allocation3 + $0xe18] sm:$0xff]
    %v7627 = vld [vmem:[#allocation3 + $0xe20] sm:$0xff]
    %v7628 = vld [vmem:[#allocation3 + $0xe84] sm:$0xff]
    %v7629 = vld [vmem:[#allocation3 + $0xe8c] sm:$0xff]
    %v7630 = vld [vmem:[#allocation3 + $0xef0] sm:$0xff]
    %v7631 = vld [vmem:[#allocation3 + $0xef8] sm:$0xff]
    %v7632 = vld [vmem:[#allocation3 + $0xf5c] sm:$0xff]
    %v7633 = vld [vmem:[#allocation3 + $0xf64] sm:$0xff]
    %v7634 = vld [vmem:[#allocation3 + $0xfc8] sm:$0xff]
    %v7635 = vld [vmem:[#allocation3 + $0xfd0] sm:$0xff]
    %v7636 = vld [vmem:[#allocation3 + $0x1034] sm:$0xff]
    %v7637 = vld [vmem:[#allocation3 + $0x103c] sm:$0xff]
    %v7638 = vld [vmem:[#allocation3 + $0x10a0] sm:$0xff]
    %v7639 = vld [vmem:[#allocation3 + $0x10a8] sm:$0xff]
    %v7640 = vld [vmem:[#allocation3 + $0x110c] sm:$0xff]
    %v7641 = vld [vmem:[#allocation3 + $0x1114] sm:$0xff]
    %v7642 = vld [vmem:[#allocation3 + $0x1178] sm:$0xff]
    %v7643 = vld [vmem:[#allocation3 + $0x1180] sm:$0xff]
    %v7644 = vld [vmem:[#allocation3 + $0x11e4] sm:$0xff]
    %v7645 = vld [vmem:[#allocation3 + $0x11ec] sm:$0xff]
    %v7646 = vld [vmem:[#allocation3 + $0x1250] sm:$0xff]
    %v7647 = vld [vmem:[#allocation3 + $0x1258] sm:$0xff]
    %v7648 = vld [vmem:[#allocation3 + $0x12bc] sm:$0xff]
    %v7649 = vld [vmem:[#allocation3 + $0x12c4] sm:$0xff]
    %v7650 = vld [vmem:[#allocation3 + $0x1328] sm:$0xff]
    %v7651 = vld [vmem:[#allocation3 + $0x1330] sm:$0xff]
    %v7652 = vld [vmem:[#allocation3 + $0x1394] sm:$0xff]
    %v7653 = vld [vmem:[#allocation3 + $0x139c] sm:$0xff]
    %v7654 = vld [vmem:[#allocation3 + $0x1400] sm:$0xff]
    %v7655 = vld [vmem:[#allocation3 + $0x1408] sm:$0xff]
    %v7656 = vld [vmem:[#allocation3 + $0x146c] sm:$0xff]
    %v7657 = vld [vmem:[#allocation3 + $0x1474] sm:$0xff]
    %v7658 = vld [vmem:[#allocation3 + $0x14d8] sm:$0xff]
    %v7659 = vld [vmem:[#allocation3 + $0x14e0] sm:$0xff]
    %v7660 = vld [vmem:[#allocation3 + $0x1544] sm:$0xff]
    %v7661 = vld [vmem:[#allocation3 + $0x154c] sm:$0xff]
    %v7662 = vld [vmem:[#allocation3 + $0x15b0] sm:$0xff]
    %v7663 = vld [vmem:[#allocation3 + $0x15b8] sm:$0xff]
    %v7664 = vld [vmem:[#allocation3 + $0x161c] sm:$0xff]
    %v7665 = vld [vmem:[#allocation3 + $0x1624] sm:$0xff]
    %v7666 = vld [vmem:[#allocation3 + $0x1688] sm:$0xff]
    %v7667 = vld [vmem:[#allocation3 + $0x1690] sm:$0xff]
    %v7668 = vld [vmem:[#allocation3 + $0x16f4] sm:$0xff]
    %v7669 = vld [vmem:[#allocation3 + $0x16fc] sm:$0xff]
    %v7670 = vld [vmem:[#allocation3 + $0x1760] sm:$0xff]
    %v7671 = vld [vmem:[#allocation3 + $0x1768] sm:$0xff]
    %v7672 = vld [vmem:[#allocation3 + $0x17cc] sm:$0xff]
    %v7673 = vld [vmem:[#allocation3 + $0x17d4] sm:$0xff]
    %v7674 = vld [vmem:[#allocation3 + $0x1838] sm:$0xff]
    %v7675 = vld [vmem:[#allocation3 + $0x1840] sm:$0xff]
    %v7676 = vld [vmem:[#allocation3 + $0x18a4] sm:$0xff]
    %v7677 = vld [vmem:[#allocation3 + $0x18ac] sm:$0xff]
    %v7678 = vld [vmem:[#allocation3 + $0x1910] sm:$0xff]
    %v7679 = vld [vmem:[#allocation3 + $0x1918] sm:$0xff]
    %v7680 = vld [vmem:[#allocation3 + $0x197c] sm:$0xff]
    %v7681 = vld [vmem:[#allocation3 + $0x1984] sm:$0xff]
    %v7682 = vld [vmem:[#allocation3 + $0x19e8] sm:$0xff]
    %v7683 = vld [vmem:[#allocation3 + $0x19f0] sm:$0xff]
    %v7684 = vld [vmem:[#allocation3 + $0x1a54] sm:$0xff]
    %v7685 = vld [vmem:[#allocation3 + $0x1a5c] sm:$0xff]
    %v7686 = vld [vmem:[#allocation3 + $0x1ac0] sm:$0xff]
    %v7687 = vld [vmem:[#allocation3 + $0x1ac8] sm:$0xff]
    %s7688 = scalar_lea.vmem [#allocation6], 64
    %v7689 = vld [vmem:[%s7688] ss:$8 sm:$0xf]
    %v7691 = vperm.slane %v7689, 0
    %v7692 = vperm.slane %v7689, 1
    %v7693 = vperm.slane %v7689, 2
    %v7694 = vperm.slane %v7689, 3
    %v7827 = vunpack.c.l.b16 %v7560
    %v7828 = vunpack.c.h.b16 %v7560
    %v7829 = vunpack.c.l.b16 %v7561
    %v7830 = vunpack.c.h.b16 %v7561
    %v7831 = vunpack.c.l.b16 %v7562
    %v7832 = vunpack.c.h.b16 %v7562
    %v7833 = vunpack.c.l.b16 %v7563
    %v7834 = vunpack.c.h.b16 %v7563
    %v7835 = vunpack.c.l.b16 %v7564
    %v7836 = vunpack.c.h.b16 %v7564
    %v7837 = vunpack.c.l.b16 %v7565
    %v7838 = vunpack.c.h.b16 %v7565
    %v7839 = vunpack.c.l.b16 %v7566
    %v7840 = vunpack.c.h.b16 %v7566
    %v7841 = vunpack.c.l.b16 %v7567
    %v7842 = vunpack.c.h.b16 %v7567
    %v7843 = vunpack.c.l.b16 %v7568
    %v7844 = vunpack.c.h.b16 %v7568
    %v7845 = vunpack.c.l.b16 %v7569
    %v7846 = vunpack.c.h.b16 %v7569
    %v7847 = vunpack.c.l.b16 %v7570
    %v7848 = vunpack.c.h.b16 %v7570
    %v7849 = vunpack.c.l.b16 %v7571
    %v7850 = vunpack.c.h.b16 %v7571
    %v7851 = vunpack.c.l.b16 %v7572
    %v7852 = vunpack.c.h.b16 %v7572
    %v7853 = vunpack.c.l.b16 %v7573
    %v7854 = vunpack.c.h.b16 %v7573
    %v7855 = vunpack.c.l.b16 %v7574
    %v7856 = vunpack.c.h.b16 %v7574
    %v7857 = vunpack.c.l.b16 %v7575
    %v7858 = vunpack.c.h.b16 %v7575
    %v7859 = vunpack.c.l.b16 %v7576
    %v7860 = vunpack.c.h.b16 %v7576
    %v7861 = vunpack.c.l.b16 %v7577
    %v7862 = vunpack.c.h.b16 %v7577
    %v7863 = vunpack.c.l.b16 %v7578
    %v7864 = vunpack.c.h.b16 %v7578
    %v7865 = vunpack.c.l.b16 %v7579
    %v7866 = vunpack.c.h.b16 %v7579
    %v7867 = vunpack.c.l.b16 %v7580
    %v7868 = vunpack.c.h.b16 %v7580
    %v7869 = vunpack.c.l.b16 %v7581
    %v7870 = vunpack.c.h.b16 %v7581
    %v7871 = vunpack.c.l.b16 %v7582
    %v7872 = vunpack.c.h.b16 %v7582
    %v7873 = vunpack.c.l.b16 %v7583
    %v7874 = vunpack.c.h.b16 %v7583
    %v7875 = vunpack.c.l.b16 %v7584
    %v7876 = vunpack.c.h.b16 %v7584
    %v7877 = vunpack.c.l.b16 %v7585
    %v7878 = vunpack.c.h.b16 %v7585
    %v7879 = vunpack.c.l.b16 %v7586
    %v7880 = vunpack.c.h.b16 %v7586
    %v7881 = vunpack.c.l.b16 %v7587
    %v7882 = vunpack.c.h.b16 %v7587
    %v7883 = vunpack.c.l.b16 %v7588
    %v7884 = vunpack.c.h.b16 %v7588
    %v7885 = vunpack.c.l.b16 %v7589
    %v7886 = vunpack.c.h.b16 %v7589
    %v7887 = vunpack.c.l.b16 %v7590
    %v7888 = vunpack.c.h.b16 %v7590
    %v7889 = vunpack.c.l.b16 %v7591
    %v7890 = vunpack.c.h.b16 %v7591
    %v7891 = vunpack.c.l.b16 %v7592
    %v7892 = vunpack.c.h.b16 %v7592
    %v7893 = vunpack.c.l.b16 %v7593
    %v7894 = vunpack.c.h.b16 %v7593
    %v7895 = vunpack.c.l.b16 %v7594
    %v7896 = vunpack.c.h.b16 %v7594
    %v7897 = vunpack.c.l.b16 %v7595
    %v7898 = vunpack.c.h.b16 %v7595
    %v7899 = vunpack.c.l.b16 %v7596
    %v7900 = vunpack.c.h.b16 %v7596
    %v7901 = vunpack.c.l.b16 %v7597
    %v7902 = vunpack.c.h.b16 %v7597
    %v7903 = vunpack.c.l.b16 %v7598
    %v7904 = vunpack.c.h.b16 %v7598
    %v7905 = vunpack.c.l.b16 %v7599
    %v7906 = vunpack.c.h.b16 %v7599
    %v7907 = vunpack.c.l.b16 %v7600
    %v7908 = vunpack.c.h.b16 %v7600
    %v7909 = vunpack.c.l.b16 %v7601
    %v7910 = vunpack.c.h.b16 %v7601
    %v7911 = vunpack.c.l.b16 %v7602
    %v7912 = vunpack.c.h.b16 %v7602
    %v7913 = vunpack.c.l.b16 %v7603
    %v7914 = vunpack.c.h.b16 %v7603
    %v7915 = vunpack.c.l.b16 %v7604
    %v7916 = vunpack.c.h.b16 %v7604
    %v7917 = vunpack.c.l.b16 %v7605
    %v7918 = vunpack.c.h.b16 %v7605
    %v7919 = vunpack.c.l.b16 %v7606
    %v7920 = vunpack.c.h.b16 %v7606
    %v7921 = vunpack.c.l.b16 %v7607
    %v7922 = vunpack.c.h.b16 %v7607
    %v7923 = vunpack.c.l.b16 %v7608
    %v7924 = vunpack.c.h.b16 %v7608
    %v7925 = vunpack.c.l.b16 %v7609
    %v7926 = vunpack.c.h.b16 %v7609
    %v7927 = vunpack.c.l.b16 %v7610
    %v7928 = vunpack.c.h.b16 %v7610
    %v7929 = vunpack.c.l.b16 %v7611
    %v7930 = vunpack.c.h.b16 %v7611
    %v7931 = vunpack.c.l.b16 %v7612
    %v7932 = vunpack.c.h.b16 %v7612
    %v7933 = vunpack.c.l.b16 %v7613
    %v7934 = vunpack.c.h.b16 %v7613
    %v7935 = vunpack.c.l.b16 %v7614
    %v7936 = vunpack.c.h.b16 %v7614
    %v7937 = vunpack.c.l.b16 %v7615
    %v7938 = vunpack.c.h.b16 %v7615
    %v7939 = vunpack.c.l.b16 %v7616
    %v7940 = vunpack.c.h.b16 %v7616
    %v7941 = vunpack.c.l.b16 %v7617
    %v7942 = vunpack.c.h.b16 %v7617
    %v7943 = vunpack.c.l.b16 %v7618
    %v7944 = vunpack.c.h.b16 %v7618
    %v7945 = vunpack.c.l.b16 %v7619
    %v7946 = vunpack.c.h.b16 %v7619
    %v7947 = vunpack.c.l.b16 %v7620
    %v7948 = vunpack.c.h.b16 %v7620
    %v7949 = vunpack.c.l.b16 %v7621
    %v7950 = vunpack.c.h.b16 %v7621
    %v7951 = vunpack.c.l.b16 %v7622
    %v7952 = vunpack.c.h.b16 %v7622
    %v7953 = vunpack.c.l.b16 %v7623
    %v7954 = vunpack.c.h.b16 %v7623
    %v7955 = vunpack.c.l.b16 %v7624
    %v7956 = vunpack.c.h.b16 %v7624
    %v7957 = vunpack.c.l.b16 %v7625
    %v7958 = vunpack.c.h.b16 %v7625
    %v7959 = vunpack.c.l.b16 %v7626
    %v7960 = vunpack.c.h.b16 %v7626
    %v7961 = vunpack.c.l.b16 %v7627
    %v7962 = vunpack.c.h.b16 %v7627
    %v7963 = vunpack.c.l.b16 %v7628
    %v7964 = vunpack.c.h.b16 %v7628
    %v7965 = vunpack.c.l.b16 %v7629
    %v7966 = vunpack.c.h.b16 %v7629
    %v7967 = vunpack.c.l.b16 %v7630
    %v7968 = vunpack.c.h.b16 %v7630
    %v7969 = vunpack.c.l.b16 %v7631
    %v7970 = vunpack.c.h.b16 %v7631
    %v7971 = vunpack.c.l.b16 %v7632
    %v7972 = vunpack.c.h.b16 %v7632
    %v7973 = vunpack.c.l.b16 %v7633
    %v7974 = vunpack.c.h.b16 %v7633
    %v7975 = vunpack.c.l.b16 %v7634
    %v7976 = vunpack.c.h.b16 %v7634
    %v7977 = vunpack.c.l.b16 %v7635
    %v7978 = vunpack.c.h.b16 %v7635
    %v7979 = vunpack.c.l.b16 %v7636
    %v7980 = vunpack.c.h.b16 %v7636
    %v7981 = vunpack.c.l.b16 %v7637
    %v7982 = vunpack.c.h.b16 %v7637
    %v7983 = vunpack.c.l.b16 %v7638
    %v7984 = vunpack.c.h.b16 %v7638
    %v7985 = vunpack.c.l.b16 %v7639
    %v7986 = vunpack.c.h.b16 %v7639
    %v7987 = vunpack.c.l.b16 %v7640
    %v7988 = vunpack.c.h.b16 %v7640
    %v7989 = vunpack.c.l.b16 %v7641
    %v7990 = vunpack.c.h.b16 %v7641
    %v7991 = vunpack.c.l.b16 %v7642
    %v7992 = vunpack.c.h.b16 %v7642
    %v7993 = vunpack.c.l.b16 %v7643
    %v7994 = vunpack.c.h.b16 %v7643
    %v7995 = vunpack.c.l.b16 %v7644
    %v7996 = vunpack.c.h.b16 %v7644
    %v7997 = vunpack.c.l.b16 %v7645
    %v7998 = vunpack.c.h.b16 %v7645
    %v7999 = vunpack.c.l.b16 %v7646
    %v8000 = vunpack.c.h.b16 %v7646
    %v8001 = vunpack.c.l.b16 %v7647
    %v8002 = vunpack.c.h.b16 %v7647
    %v8003 = vunpack.c.l.b16 %v7648
    %v8004 = vunpack.c.h.b16 %v7648
    %v8005 = vunpack.c.l.b16 %v7649
    %v8006 = vunpack.c.h.b16 %v7649
    %v8007 = vunpack.c.l.b16 %v7650
    %v8008 = vunpack.c.h.b16 %v7650
    %v8009 = vunpack.c.l.b16 %v7651
    %v8010 = vunpack.c.h.b16 %v7651
    %v8011 = vunpack.c.l.b16 %v7652
    %v8012 = vunpack.c.h.b16 %v7652
    %v8013 = vunpack.c.l.b16 %v7653
    %v8014 = vunpack.c.h.b16 %v7653
    %v8015 = vunpack.c.l.b16 %v7654
    %v8016 = vunpack.c.h.b16 %v7654
    %v8017 = vunpack.c.l.b16 %v7655
    %v8018 = vunpack.c.h.b16 %v7655
    %v8019 = vunpack.c.l.b16 %v7656
    %v8020 = vunpack.c.h.b16 %v7656
    %v8021 = vunpack.c.l.b16 %v7657
    %v8022 = vunpack.c.h.b16 %v7657
    %v8023 = vunpack.c.l.b16 %v7658
    %v8024 = vunpack.c.h.b16 %v7658
    %v8025 = vunpack.c.l.b16 %v7659
    %v8026 = vunpack.c.h.b16 %v7659
    %v8027 = vunpack.c.l.b16 %v7660
    %v8028 = vunpack.c.h.b16 %v7660
    %v8029 = vunpack.c.l.b16 %v7661
    %v8030 = vunpack.c.h.b16 %v7661
    %v8031 = vunpack.c.l.b16 %v7662
    %v8032 = vunpack.c.h.b16 %v7662
    %v8033 = vunpack.c.l.b16 %v7663
    %v8034 = vunpack.c.h.b16 %v7663
    %v8035 = vunpack.c.l.b16 %v7664
    %v8036 = vunpack.c.h.b16 %v7664
    %v8037 = vunpack.c.l.b16 %v7665
    %v8038 = vunpack.c.h.b16 %v7665
    %v8039 = vunpack.c.l.b16 %v7666
    %v8040 = vunpack.c.h.b16 %v7666
    %v8041 = vunpack.c.l.b16 %v7667
    %v8042 = vunpack.c.h.b16 %v7667
    %v8043 = vunpack.c.l.b16 %v7668
    %v8044 = vunpack.c.h.b16 %v7668
    %v8045 = vunpack.c.l.b16 %v7669
    %v8046 = vunpack.c.h.b16 %v7669
    %v8047 = vunpack.c.l.b16 %v7670
    %v8048 = vunpack.c.h.b16 %v7670
    %v8049 = vunpack.c.l.b16 %v7671
    %v8050 = vunpack.c.h.b16 %v7671
    %v8051 = vunpack.c.l.b16 %v7672
    %v8052 = vunpack.c.h.b16 %v7672
    %v8053 = vunpack.c.l.b16 %v7673
    %v8054 = vunpack.c.h.b16 %v7673
    %v8055 = vunpack.c.l.b16 %v7674
    %v8056 = vunpack.c.h.b16 %v7674
    %v8057 = vunpack.c.l.b16 %v7675
    %v8058 = vunpack.c.h.b16 %v7675
    %v8059 = vunpack.c.l.b16 %v7676
    %v8060 = vunpack.c.h.b16 %v7676
    %v8061 = vunpack.c.l.b16 %v7677
    %v8062 = vunpack.c.h.b16 %v7677
    %v8063 = vunpack.c.l.b16 %v7678
    %v8064 = vunpack.c.h.b16 %v7678
    %v8065 = vunpack.c.l.b16 %v7679
    %v8066 = vunpack.c.h.b16 %v7679
    %v8067 = vunpack.c.l.b16 %v7680
    %v8068 = vunpack.c.h.b16 %v7680
    %v8069 = vunpack.c.l.b16 %v7681
    %v8070 = vunpack.c.h.b16 %v7681
    %v8071 = vunpack.c.l.b16 %v7682
    %v8072 = vunpack.c.h.b16 %v7682
    %v8073 = vunpack.c.l.b16 %v7683
    %v8074 = vunpack.c.h.b16 %v7683
    %v8075 = vunpack.c.l.b16 %v7684
    %v8076 = vunpack.c.h.b16 %v7684
    %v8077 = vunpack.c.l.b16 %v7685
    %v8078 = vunpack.c.h.b16 %v7685
    %v8079 = vunpack.c.l.b16 %v7686
    %v8080 = vunpack.c.h.b16 %v7686
    %v8081 = vunpack.c.l.b16 %v7687
    %v8082 = vunpack.c.h.b16 %v7687
    %v8083 = vpack.c.b16 %v7831, %v7827
    %v8084 = vpack.c.b16 %v7832, %v7828
    %v8085 = vpack.c.b16 %v7833, %v7829
    %v8086 = vpack.c.b16 %v7834, %v7830
    %v8087 = vpack.c.b16 %v7839, %v7835
    %v8088 = vpack.c.b16 %v7840, %v7836
    %v8089 = vpack.c.b16 %v7841, %v7837
    %v8090 = vpack.c.b16 %v7842, %v7838
    %v8091 = vpack.c.b16 %v7847, %v7843
    %v8092 = vpack.c.b16 %v7848, %v7844
    %v8093 = vpack.c.b16 %v7849, %v7845
    %v8094 = vpack.c.b16 %v7850, %v7846
    %v8095 = vpack.c.b16 %v7855, %v7851
    %v8096 = vpack.c.b16 %v7856, %v7852
    %v8097 = vpack.c.b16 %v7857, %v7853
    %v8098 = vpack.c.b16 %v7858, %v7854
    %v8099 = vpack.c.b16 %v7863, %v7859
    %v8100 = vpack.c.b16 %v7864, %v7860
    %v8101 = vpack.c.b16 %v7865, %v7861
    %v8102 = vpack.c.b16 %v7866, %v7862
    %v8103 = vpack.c.b16 %v7871, %v7867
    %v8104 = vpack.c.b16 %v7872, %v7868
    %v8105 = vpack.c.b16 %v7873, %v7869
    %v8106 = vpack.c.b16 %v7874, %v7870
    %v8107 = vpack.c.b16 %v7879, %v7875
    %v8108 = vpack.c.b16 %v7880, %v7876
    %v8109 = vpack.c.b16 %v7881, %v7877
    %v8110 = vpack.c.b16 %v7882, %v7878
    %v8111 = vpack.c.b16 %v7887, %v7883
    %v8112 = vpack.c.b16 %v7888, %v7884
    %v8113 = vpack.c.b16 %v7889, %v7885
    %v8114 = vpack.c.b16 %v7890, %v7886
    %v8115 = vpack.c.b16 %v7895, %v7891
    %v8116 = vpack.c.b16 %v7896, %v7892
    %v8117 = vpack.c.b16 %v7897, %v7893
    %v8118 = vpack.c.b16 %v7898, %v7894
    %v8119 = vpack.c.b16 %v7903, %v7899
    %v8120 = vpack.c.b16 %v7904, %v7900
    %v8121 = vpack.c.b16 %v7905, %v7901
    %v8122 = vpack.c.b16 %v7906, %v7902
    %v8123 = vpack.c.b16 %v7911, %v7907
    %v8124 = vpack.c.b16 %v7912, %v7908
    %v8125 = vpack.c.b16 %v7913, %v7909
    %v8126 = vpack.c.b16 %v7914, %v7910
    %v8127 = vpack.c.b16 %v7919, %v7915
    %v8128 = vpack.c.b16 %v7920, %v7916
    %v8129 = vpack.c.b16 %v7921, %v7917
    %v8130 = vpack.c.b16 %v7922, %v7918
    %v8131 = vpack.c.b16 %v7927, %v7923
    %v8132 = vpack.c.b16 %v7928, %v7924
    %v8133 = vpack.c.b16 %v7929, %v7925
    %v8134 = vpack.c.b16 %v7930, %v7926
    %v8135 = vpack.c.b16 %v7935, %v7931
    %v8136 = vpack.c.b16 %v7936, %v7932
    %v8137 = vpack.c.b16 %v7937, %v7933
    %v8138 = vpack.c.b16 %v7938, %v7934
    %v8139 = vpack.c.b16 %v7943, %v7939
    %v8140 = vpack.c.b16 %v7944, %v7940
    %v8141 = vpack.c.b16 %v7945, %v7941
    %v8142 = vpack.c.b16 %v7946, %v7942
    %v8143 = vpack.c.b16 %v7951, %v7947
    %v8144 = vpack.c.b16 %v7952, %v7948
    %v8145 = vpack.c.b16 %v7953, %v7949
    %v8146 = vpack.c.b16 %v7954, %v7950
    %v8147 = vpack.c.b16 %v7959, %v7955
    %v8148 = vpack.c.b16 %v7960, %v7956
    %v8149 = vpack.c.b16 %v7961, %v7957
    %v8150 = vpack.c.b16 %v7962, %v7958
    %v8151 = vpack.c.b16 %v7967, %v7963
    %v8152 = vpack.c.b16 %v7968, %v7964
    %v8153 = vpack.c.b16 %v7969, %v7965
    %v8154 = vpack.c.b16 %v7970, %v7966
    %v8155 = vpack.c.b16 %v7975, %v7971
    %v8156 = vpack.c.b16 %v7976, %v7972
    %v8157 = vpack.c.b16 %v7977, %v7973
    %v8158 = vpack.c.b16 %v7978, %v7974
    %v8159 = vpack.c.b16 %v7983, %v7979
    %v8160 = vpack.c.b16 %v7984, %v7980
    %v8161 = vpack.c.b16 %v7985, %v7981
    %v8162 = vpack.c.b16 %v7986, %v7982
    %v8163 = vpack.c.b16 %v7991, %v7987
    %v8164 = vpack.c.b16 %v7992, %v7988
    %v8165 = vpack.c.b16 %v7993, %v7989
    %v8166 = vpack.c.b16 %v7994, %v7990
    %v8167 = vpack.c.b16 %v7999, %v7995
    %v8168 = vpack.c.b16 %v8000, %v7996
    %v8169 = vpack.c.b16 %v8001, %v7997
    %v8170 = vpack.c.b16 %v8002, %v7998
    %v8171 = vpack.c.b16 %v8007, %v8003
    %v8172 = vpack.c.b16 %v8008, %v8004
    %v8173 = vpack.c.b16 %v8009, %v8005
    %v8174 = vpack.c.b16 %v8010, %v8006
    %v8175 = vpack.c.b16 %v8015, %v8011
    %v8176 = vpack.c.b16 %v8016, %v8012
    %v8177 = vpack.c.b16 %v8017, %v8013
    %v8178 = vpack.c.b16 %v8018, %v8014
    %v8179 = vpack.c.b16 %v8023, %v8019
    %v8180 = vpack.c.b16 %v8024, %v8020
    %v8181 = vpack.c.b16 %v8025, %v8021
    %v8182 = vpack.c.b16 %v8026, %v8022
    %v8183 = vpack.c.b16 %v8031, %v8027
    %v8184 = vpack.c.b16 %v8032, %v8028
    %v8185 = vpack.c.b16 %v8033, %v8029
    %v8186 = vpack.c.b16 %v8034, %v8030
    %v8187 = vpack.c.b16 %v8039, %v8035
    %v8188 = vpack.c.b16 %v8040, %v8036
    %v8189 = vpack.c.b16 %v8041, %v8037
    %v8190 = vpack.c.b16 %v8042, %v8038
    %v8191 = vpack.c.b16 %v8047, %v8043
    %v8192 = vpack.c.b16 %v8048, %v8044
    %v8193 = vpack.c.b16 %v8049, %v8045
    %v8194 = vpack.c.b16 %v8050, %v8046
    %v8195 = vpack.c.b16 %v8055, %v8051
    %v8196 = vpack.c.b16 %v8056, %v8052
    %v8197 = vpack.c.b16 %v8057, %v8053
    %v8198 = vpack.c.b16 %v8058, %v8054
    %v8199 = vpack.c.b16 %v8063, %v8059
    %v8200 = vpack.c.b16 %v8064, %v8060
    %v8201 = vpack.c.b16 %v8065, %v8061
    %v8202 = vpack.c.b16 %v8066, %v8062
    %v8203 = vpack.c.b16 %v8071, %v8067
    %v8204 = vpack.c.b16 %v8072, %v8068
    %v8205 = vpack.c.b16 %v8073, %v8069
    %v8206 = vpack.c.b16 %v8074, %v8070
    %v8207 = vpack.c.b16 %v8079, %v8075
    %v8208 = vpack.c.b16 %v8080, %v8076
    %v8209 = vpack.c.b16 %v8081, %v8077
    %v8210 = vpack.c.b16 %v8082, %v8078
    %8339 = vmatpush.bf16.msra.mxu0 %v8111
    %8340 = vmatpush.bf16.msra.mxu0 %v8107
    %8341 = vmatpush.bf16.msra.mxu0 %v8103
    %8342 = vmatpush.bf16.msra.mxu0 %v8099
    %8343 = vmatpush.bf16.msra.mxu0 %v8095
    %8344 = vmatpush.bf16.msra.mxu0 %v8091
    %8345 = vmatpush.bf16.msra.mxu0 %v8087
    %8346 = vmatpush.bf16.msra.mxu0 %v8083
    %8347 = vmatmul.bf16.gmra.mxu0 %v7556
    %v8348 = vpop.f32.mrf.mxu0
    %v8349 = vadd.f32 %v7691, %v8348
    %v8350 = vpop.f32.mrf.mxu0
    %v8351 = vadd.f32 %v7691, %v8350
    %8352 = vdwg.mxu0
    %8353 = vmatpush.bf16.msra.mxu0 %v8143
    %8354 = vmatpush.bf16.msra.mxu0 %v8139
    %8355 = vmatpush.bf16.msra.mxu0 %v8135
    %8356 = vmatpush.bf16.msra.mxu0 %v8131
    %8357 = vmatpush.bf16.msra.mxu0 %v8127
    %8358 = vmatpush.bf16.msra.mxu0 %v8123
    %8359 = vmatpush.bf16.msra.mxu0 %v8119
    %8360 = vmatpush.bf16.msra.mxu0 %v8115
    %8361 = vmatmul.bf16.gmra.mxu0 %v7557
    %v8362 = vpop.f32.mrf.mxu0
    %v8363 = vadd.f32 %v8349, %v8362
    %v8364 = vpop.f32.mrf.mxu0
    %v8365 = vadd.f32 %v8351, %v8364
    %8366 = vdwg.mxu0
    %8367 = vmatpush.bf16.msra.mxu0 %v8175
    %8368 = vmatpush.bf16.msra.mxu0 %v8171
    %8369 = vmatpush.bf16.msra.mxu0 %v8167
    %8370 = vmatpush.bf16.msra.mxu0 %v8163
    %8371 = vmatpush.bf16.msra.mxu0 %v8159
    %8372 = vmatpush.bf16.msra.mxu0 %v8155
    %8373 = vmatpush.bf16.msra.mxu0 %v8151
    %8374 = vmatpush.bf16.msra.mxu0 %v8147
    %8375 = vmatmul.bf16.gmra.mxu0 %v7558
    %v8376 = vpop.f32.mrf.mxu0
    %v8377 = vadd.f32 %v8363, %v8376
    %v8378 = vpop.f32.mrf.mxu0
    %v8379 = vadd.f32 %v8365, %v8378
    %8380 = vdwg.mxu0
    %8381 = vmatpush.bf16.msra.mxu0 %v8207
    %8382 = vmatpush.bf16.msra.mxu0 %v8203
    %8383 = vmatpush.bf16.msra.mxu0 %v8199
    %8384 = vmatpush.bf16.msra.mxu0 %v8195
    %8385 = vmatpush.bf16.msra.mxu0 %v8191
    %8386 = vmatpush.bf16.msra.mxu0 %v8187
    %8387 = vmatpush.bf16.msra.mxu0 %v8183
    %8388 = vmatpush.bf16.msra.mxu0 %v8179
    %8389 = vmatmul.bf16.gmra.mxu0 %v7559
    %v8390 = vpop.f32.mrf.mxu0
    %v8391 = vadd.f32 %v8377, %v8390
    %v8392 = vpop.f32.mrf.mxu0
    %v8393 = vadd.f32 %v8379, %v8392
    %8394 = vdwg.mxu0
    %8395 = vmatpush.bf16.msra.mxu0 %v8112
    %8396 = vmatpush.bf16.msra.mxu0 %v8108
    %8397 = vmatpush.bf16.msra.mxu0 %v8104
    %8398 = vmatpush.bf16.msra.mxu0 %v8100
    %8399 = vmatpush.bf16.msra.mxu0 %v8096
    %8400 = vmatpush.bf16.msra.mxu0 %v8092
    %8401 = vmatpush.bf16.msra.mxu0 %v8088
    %8402 = vmatpush.bf16.msra.mxu0 %v8084
    %8403 = vmatmul.bf16.gmra.mxu0 %v7556
    %v8404 = vpop.f32.mrf.mxu0
    %v8405 = vadd.f32 %v7692, %v8404
    %v8406 = vpop.f32.mrf.mxu0
    %v8407 = vadd.f32 %v7692, %v8406
    %8408 = vdwg.mxu0
    %8409 = vmatpush.bf16.msra.mxu0 %v8144
    %8410 = vmatpush.bf16.msra.mxu0 %v8140
    %8411 = vmatpush.bf16.msra.mxu0 %v8136
    %8412 = vmatpush.bf16.msra.mxu0 %v8132
    %8413 = vmatpush.bf16.msra.mxu0 %v8128
    %8414 = vmatpush.bf16.msra.mxu0 %v8124
    %8415 = vmatpush.bf16.msra.mxu0 %v8120
    %8416 = vmatpush.bf16.msra.mxu0 %v8116
    %8417 = vmatmul.bf16.gmra.mxu0 %v7557
    %v8418 = vpop.f32.mrf.mxu0
    %v8419 = vadd.f32 %v8405, %v8418
    %v8420 = vpop.f32.mrf.mxu0
    %v8421 = vadd.f32 %v8407, %v8420
    %8422 = vdwg.mxu0
    %8423 = vmatpush.bf16.msra.mxu0 %v8176
    %8424 = vmatpush.bf16.msra.mxu0 %v8172
    %8425 = vmatpush.bf16.msra.mxu0 %v8168
    %8426 = vmatpush.bf16.msra.mxu0 %v8164
    %8427 = vmatpush.bf16.msra.mxu0 %v8160
    %8428 = vmatpush.bf16.msra.mxu0 %v8156
    %8429 = vmatpush.bf16.msra.mxu0 %v8152
    %8430 = vmatpush.bf16.msra.mxu0 %v8148
    %8431 = vmatmul.bf16.gmra.mxu0 %v7558
    %v8432 = vpop.f32.mrf.mxu0
    %v8433 = vadd.f32 %v8419, %v8432
    %v8434 = vpop.f32.mrf.mxu0
    %v8435 = vadd.f32 %v8421, %v8434
    %8436 = vdwg.mxu0
    %8437 = vmatpush.bf16.msra.mxu0 %v8208
    %8438 = vmatpush.bf16.msra.mxu0 %v8204
    %8439 = vmatpush.bf16.msra.mxu0 %v8200
    %8440 = vmatpush.bf16.msra.mxu0 %v8196
    %8441 = vmatpush.bf16.msra.mxu0 %v8192
    %8442 = vmatpush.bf16.msra.mxu0 %v8188
    %8443 = vmatpush.bf16.msra.mxu0 %v8184
    %8444 = vmatpush.bf16.msra.mxu0 %v8180
    %8445 = vmatmul.bf16.gmra.mxu0 %v7559
    %v8446 = vpop.f32.mrf.mxu0
    %v8447 = vadd.f32 %v8433, %v8446
    %v8448 = vpop.f32.mrf.mxu0
    %v8449 = vadd.f32 %v8435, %v8448
    %8450 = vdwg.mxu0
    %8451 = vmatpush.bf16.msra.mxu0 %v8113
    %8452 = vmatpush.bf16.msra.mxu0 %v8109
    %8453 = vmatpush.bf16.msra.mxu0 %v8105
    %8454 = vmatpush.bf16.msra.mxu0 %v8101
    %8455 = vmatpush.bf16.msra.mxu0 %v8097
    %8456 = vmatpush.bf16.msra.mxu0 %v8093
    %8457 = vmatpush.bf16.msra.mxu0 %v8089
    %8458 = vmatpush.bf16.msra.mxu0 %v8085
    %8459 = vmatmul.bf16.gmra.mxu0 %v7556
    %v8460 = vpop.f32.mrf.mxu0
    %v8461 = vadd.f32 %v7693, %v8460
    %v8462 = vpop.f32.mrf.mxu0
    %v8463 = vadd.f32 %v7693, %v8462
    %8464 = vdwg.mxu0
    %8465 = vmatpush.bf16.msra.mxu0 %v8145
    %8466 = vmatpush.bf16.msra.mxu0 %v8141
    %8467 = vmatpush.bf16.msra.mxu0 %v8137
    %8468 = vmatpush.bf16.msra.mxu0 %v8133
    %8469 = vmatpush.bf16.msra.mxu0 %v8129
    %8470 = vmatpush.bf16.msra.mxu0 %v8125
    %8471 = vmatpush.bf16.msra.mxu0 %v8121
    %8472 = vmatpush.bf16.msra.mxu0 %v8117
    %8473 = vmatmul.bf16.gmra.mxu0 %v7557
    %v8474 = vpop.f32.mrf.mxu0
    %v8475 = vadd.f32 %v8461, %v8474
    %v8476 = vpop.f32.mrf.mxu0
    %v8477 = vadd.f32 %v8463, %v8476
    %8478 = vdwg.mxu0
    %8479 = vmatpush.bf16.msra.mxu0 %v8177
    %8480 = vmatpush.bf16.msra.mxu0 %v8173
    %8481 = vmatpush.bf16.msra.mxu0 %v8169
    %8482 = vmatpush.bf16.msra.mxu0 %v8165
    %8483 = vmatpush.bf16.msra.mxu0 %v8161
    %8484 = vmatpush.bf16.msra.mxu0 %v8157
    %8485 = vmatpush.bf16.msra.mxu0 %v8153
    %8486 = vmatpush.bf16.msra.mxu0 %v8149
    %8487 = vmatmul.bf16.gmra.mxu0 %v7558
    %v8488 = vpop.f32.mrf.mxu0
    %v8489 = vadd.f32 %v8475, %v8488
    %v8490 = vpop.f32.mrf.mxu0
    %v8491 = vadd.f32 %v8477, %v8490
    %8492 = vdwg.mxu0
    %8493 = vmatpush.bf16.msra.mxu0 %v8209
    %8494 = vmatpush.bf16.msra.mxu0 %v8205
    %8495 = vmatpush.bf16.msra.mxu0 %v8201
    %8496 = vmatpush.bf16.msra.mxu0 %v8197
    %8497 = vmatpush.bf16.msra.mxu0 %v8193
    %8498 = vmatpush.bf16.msra.mxu0 %v8189
    %8499 = vmatpush.bf16.msra.mxu0 %v8185
    %8500 = vmatpush.bf16.msra.mxu0 %v8181
    %8501 = vmatmul.bf16.gmra.mxu0 %v7559
    %v8502 = vpop.f32.mrf.mxu0
    %v8503 = vadd.f32 %v8489, %v8502
    %v8504 = vpop.f32.mrf.mxu0
    %v8505 = vadd.f32 %v8491, %v8504
    %8506 = vdwg.mxu0
    %8507 = vmatpush.bf16.msra.mxu0 %v8114
    %8508 = vmatpush.bf16.msra.mxu0 %v8110
    %8509 = vmatpush.bf16.msra.mxu0 %v8106
    %8510 = vmatpush.bf16.msra.mxu0 %v8102
    %8511 = vmatpush.bf16.msra.mxu0 %v8098
    %8512 = vmatpush.bf16.msra.mxu0 %v8094
    %8513 = vmatpush.bf16.msra.mxu0 %v8090
    %8514 = vmatpush.bf16.msra.mxu0 %v8086
    %8515 = vmatmul.bf16.gmra.mxu0 %v7556
    %v8516 = vpop.f32.mrf.mxu0
    %v8517 = vadd.f32 %v7694, %v8516
    %v8518 = vpop.f32.mrf.mxu0
    %v8519 = vadd.f32 %v7694, %v8518
    %8520 = vdwg.mxu0
    %8521 = vmatpush.bf16.msra.mxu0 %v8146
    %8522 = vmatpush.bf16.msra.mxu0 %v8142
    %8523 = vmatpush.bf16.msra.mxu0 %v8138
    %8524 = vmatpush.bf16.msra.mxu0 %v8134
    %8525 = vmatpush.bf16.msra.mxu0 %v8130
    %8526 = vmatpush.bf16.msra.mxu0 %v8126
    %8527 = vmatpush.bf16.msra.mxu0 %v8122
    %8528 = vmatpush.bf16.msra.mxu0 %v8118
    %8529 = vmatmul.bf16.gmra.mxu0 %v7557
    %v8530 = vpop.f32.mrf.mxu0
    %v8531 = vadd.f32 %v8517, %v8530
    %v8532 = vpop.f32.mrf.mxu0
    %v8533 = vadd.f32 %v8519, %v8532
    %8534 = vdwg.mxu0
    %8535 = vmatpush.bf16.msra.mxu0 %v8178
    %8536 = vmatpush.bf16.msra.mxu0 %v8174
    %8537 = vmatpush.bf16.msra.mxu0 %v8170
    %8538 = vmatpush.bf16.msra.mxu0 %v8166
    %8539 = vmatpush.bf16.msra.mxu0 %v8162
    %8540 = vmatpush.bf16.msra.mxu0 %v8158
    %8541 = vmatpush.bf16.msra.mxu0 %v8154
    %8542 = vmatpush.bf16.msra.mxu0 %v8150
    %8543 = vmatmul.bf16.gmra.mxu0 %v7558
    %v8544 = vpop.f32.mrf.mxu0
    %v8545 = vadd.f32 %v8531, %v8544
    %v8546 = vpop.f32.mrf.mxu0
    %v8547 = vadd.f32 %v8533, %v8546
    %8548 = vdwg.mxu0
    %8549 = vmatpush.bf16.msra.mxu0 %v8210
    %8550 = vmatpush.bf16.msra.mxu0 %v8206
    %8551 = vmatpush.bf16.msra.mxu0 %v8202
    %8552 = vmatpush.bf16.msra.mxu0 %v8198
    %8553 = vmatpush.bf16.msra.mxu0 %v8194
    %8554 = vmatpush.bf16.msra.mxu0 %v8190
    %8555 = vmatpush.bf16.msra.mxu0 %v8186
    %8556 = vmatpush.bf16.msra.mxu0 %v8182
    %8557 = vmatmul.bf16.gmra.mxu0 %v7559
    %v8558 = vpop.f32.mrf.mxu0
    %v8559 = vadd.f32 %v8545, %v8558
    %v8560 = vpop.f32.mrf.mxu0
    %v8561 = vadd.f32 %v8547, %v8560
    %8562 = vdwg.mxu0
    %v8563 = vmax.f32 %v8391, 0.0
    %v8564 = vmax.f32 %v8447, 0.0
    %v8565 = vmax.f32 %v8503, 0.0
    %v8566 = vmax.f32 %v8559, 0.0
    %v8567 = vmax.f32 %v8393, 0.0
    %v8568 = vmax.f32 %v8449, 0.0
    %v8569 = vmax.f32 %v8505, 0.0
    %v8570 = vmax.f32 %v8561, 0.0
    %v8571 = vpack.c.bf16 %v8567, %v8563
    %v8572 = vpack.c.bf16 %v8568, %v8564
    %v8573 = vpack.c.bf16 %v8569, %v8565
    %v8574 = vpack.c.bf16 %v8570, %v8566
    %v8575 = vld [vmem:[#allocation3 + $0x3c] sm:$0xff]
    %v8576 = vld [vmem:[#allocation3 + $0x44] sm:$0xff]
    %v8577 = vld [vmem:[#allocation3 + $0xa8] sm:$0xff]
    %v8578 = vld [vmem:[#allocation3 + $0xb0] sm:$0xff]
    %v8579 = vld [vmem:[#allocation3 + $0x114] sm:$0xff]
    %v8580 = vld [vmem:[#allocation3 + $0x11c] sm:$0xff]
    %v8581 = vld [vmem:[#allocation3 + $0x180] sm:$0xff]
    %v8582 = vld [vmem:[#allocation3 + $0x188] sm:$0xff]
    %v8583 = vld [vmem:[#allocation3 + $0x1ec] sm:$0xff]
    %v8584 = vld [vmem:[#allocation3 + $0x1f4] sm:$0xff]
    %v8585 = vld [vmem:[#allocation3 + $0x258] sm:$0xff]
    %v8586 = vld [vmem:[#allocation3 + $0x260] sm:$0xff]
    %v8587 = vld [vmem:[#allocation3 + $0x2c4] sm:$0xff]
    %v8588 = vld [vmem:[#allocation3 + $0x2cc] sm:$0xff]
    %v8589 = vld [vmem:[#allocation3 + $0x330] sm:$0xff]
    %v8590 = vld [vmem:[#allocation3 + $0x338] sm:$0xff]
    %v8591 = vld [vmem:[#allocation3 + $0x39c] sm:$0xff]
    %v8592 = vld [vmem:[#allocation3 + $0x3a4] sm:$0xff]
    %v8593 = vld [vmem:[#allocation3 + $0x408] sm:$0xff]
    %v8594 = vld [vmem:[#allocation3 + $0x410] sm:$0xff]
    %v8595 = vld [vmem:[#allocation3 + $0x474] sm:$0xff]
    %v8596 = vld [vmem:[#allocation3 + $0x47c] sm:$0xff]
    %v8597 = vld [vmem:[#allocation3 + $0x4e0] sm:$0xff]
    %v8598 = vld [vmem:[#allocation3 + $0x4e8] sm:$0xff]
    %v8599 = vld [vmem:[#allocation3 + $0x54c] sm:$0xff]
    %v8600 = vld [vmem:[#allocation3 + $0x554] sm:$0xff]
    %v8601 = vld [vmem:[#allocation3 + $0x5b8] sm:$0xff]
    %v8602 = vld [vmem:[#allocation3 + $0x5c0] sm:$0xff]
    %v8603 = vld [vmem:[#allocation3 + $0x624] sm:$0xff]
    %v8604 = vld [vmem:[#allocation3 + $0x62c] sm:$0xff]
    %v8605 = vld [vmem:[#allocation3 + $0x690] sm:$0xff]
    %v8606 = vld [vmem:[#allocation3 + $0x698] sm:$0xff]
    %v8607 = vld [vmem:[#allocation3 + $0x6fc] sm:$0xff]
    %v8608 = vld [vmem:[#allocation3 + $0x704] sm:$0xff]
    %v8609 = vld [vmem:[#allocation3 + $0x768] sm:$0xff]
    %v8610 = vld [vmem:[#allocation3 + $0x770] sm:$0xff]
    %v8611 = vld [vmem:[#allocation3 + $0x7d4] sm:$0xff]
    %v8612 = vld [vmem:[#allocation3 + $0x7dc] sm:$0xff]
    %v8613 = vld [vmem:[#allocation3 + $0x840] sm:$0xff]
    %v8614 = vld [vmem:[#allocation3 + $0x848] sm:$0xff]
    %v8615 = vld [vmem:[#allocation3 + $0x8ac] sm:$0xff]
    %v8616 = vld [vmem:[#allocation3 + $0x8b4] sm:$0xff]
    %v8617 = vld [vmem:[#allocation3 + $0x918] sm:$0xff]
    %v8618 = vld [vmem:[#allocation3 + $0x920] sm:$0xff]
    %v8619 = vld [vmem:[#allocation3 + $0x984] sm:$0xff]
    %v8620 = vld [vmem:[#allocation3 + $0x98c] sm:$0xff]
    %v8621 = vld [vmem:[#allocation3 + $0x9f0] sm:$0xff]
    %v8622 = vld [vmem:[#allocation3 + $0x9f8] sm:$0xff]
    %v8623 = vld [vmem:[#allocation3 + $0xa5c] sm:$0xff]
    %v8624 = vld [vmem:[#allocation3 + $0xa64] sm:$0xff]
    %v8625 = vld [vmem:[#allocation3 + $0xac8] sm:$0xff]
    %v8626 = vld [vmem:[#allocation3 + $0xad0] sm:$0xff]
    %v8627 = vld [vmem:[#allocation3 + $0xb34] sm:$0xff]
    %v8628 = vld [vmem:[#allocation3 + $0xb3c] sm:$0xff]
    %v8629 = vld [vmem:[#allocation3 + $0xba0] sm:$0xff]
    %v8630 = vld [vmem:[#allocation3 + $0xba8] sm:$0xff]
    %v8631 = vld [vmem:[#allocation3 + $0xc0c] sm:$0xff]
    %v8632 = vld [vmem:[#allocation3 + $0xc14] sm:$0xff]
    %v8633 = vld [vmem:[#allocation3 + $0xc78] sm:$0xff]
    %v8634 = vld [vmem:[#allocation3 + $0xc80] sm:$0xff]
    %v8635 = vld [vmem:[#allocation3 + $0xce4] sm:$0xff]
    %v8636 = vld [vmem:[#allocation3 + $0xcec] sm:$0xff]
    %v8637 = vld [vmem:[#allocation3 + $0xd50] sm:$0xff]
    %v8638 = vld [vmem:[#allocation3 + $0xd58] sm:$0xff]
    %v8639 = vld [vmem:[#allocation3 + $0xdbc] sm:$0xff]
    %v8640 = vld [vmem:[#allocation3 + $0xdc4] sm:$0xff]
    %v8641 = vld [vmem:[#allocation3 + $0xe28] sm:$0xff]
    %v8642 = vld [vmem:[#allocation3 + $0xe30] sm:$0xff]
    %v8643 = vld [vmem:[#allocation3 + $0xe94] sm:$0xff]
    %v8644 = vld [vmem:[#allocation3 + $0xe9c] sm:$0xff]
    %v8645 = vld [vmem:[#allocation3 + $0xf00] sm:$0xff]
    %v8646 = vld [vmem:[#allocation3 + $0xf08] sm:$0xff]
    %v8647 = vld [vmem:[#allocation3 + $0xf6c] sm:$0xff]
    %v8648 = vld [vmem:[#allocation3 + $0xf74] sm:$0xff]
    %v8649 = vld [vmem:[#allocation3 + $0xfd8] sm:$0xff]
    %v8650 = vld [vmem:[#allocation3 + $0xfe0] sm:$0xff]
    %v8651 = vld [vmem:[#allocation3 + $0x1044] sm:$0xff]
    %v8652 = vld [vmem:[#allocation3 + $0x104c] sm:$0xff]
    %v8653 = vld [vmem:[#allocation3 + $0x10b0] sm:$0xff]
    %v8654 = vld [vmem:[#allocation3 + $0x10b8] sm:$0xff]
    %v8655 = vld [vmem:[#allocation3 + $0x111c] sm:$0xff]
    %v8656 = vld [vmem:[#allocation3 + $0x1124] sm:$0xff]
    %v8657 = vld [vmem:[#allocation3 + $0x1188] sm:$0xff]
    %v8658 = vld [vmem:[#allocation3 + $0x1190] sm:$0xff]
    %v8659 = vld [vmem:[#allocation3 + $0x11f4] sm:$0xff]
    %v8660 = vld [vmem:[#allocation3 + $0x11fc] sm:$0xff]
    %v8661 = vld [vmem:[#allocation3 + $0x1260] sm:$0xff]
    %v8662 = vld [vmem:[#allocation3 + $0x1268] sm:$0xff]
    %v8663 = vld [vmem:[#allocation3 + $0x12cc] sm:$0xff]
    %v8664 = vld [vmem:[#allocation3 + $0x12d4] sm:$0xff]
    %v8665 = vld [vmem:[#allocation3 + $0x1338] sm:$0xff]
    %v8666 = vld [vmem:[#allocation3 + $0x1340] sm:$0xff]
    %v8667 = vld [vmem:[#allocation3 + $0x13a4] sm:$0xff]
    %v8668 = vld [vmem:[#allocation3 + $0x13ac] sm:$0xff]
    %v8669 = vld [vmem:[#allocation3 + $0x1410] sm:$0xff]
    %v8670 = vld [vmem:[#allocation3 + $0x1418] sm:$0xff]
    %v8671 = vld [vmem:[#allocation3 + $0x147c] sm:$0xff]
    %v8672 = vld [vmem:[#allocation3 + $0x1484] sm:$0xff]
    %v8673 = vld [vmem:[#allocation3 + $0x14e8] sm:$0xff]
    %v8674 = vld [vmem:[#allocation3 + $0x14f0] sm:$0xff]
    %v8675 = vld [vmem:[#allocation3 + $0x1554] sm:$0xff]
    %v8676 = vld [vmem:[#allocation3 + $0x155c] sm:$0xff]
    %v8677 = vld [vmem:[#allocation3 + $0x15c0] sm:$0xff]
    %v8678 = vld [vmem:[#allocation3 + $0x15c8] sm:$0xff]
    %v8679 = vld [vmem:[#allocation3 + $0x162c] sm:$0xff]
    %v8680 = vld [vmem:[#allocation3 + $0x1634] sm:$0xff]
    %v8681 = vld [vmem:[#allocation3 + $0x1698] sm:$0xff]
    %v8682 = vld [vmem:[#allocation3 + $0x16a0] sm:$0xff]
    %v8683 = vld [vmem:[#allocation3 + $0x1704] sm:$0xff]
    %v8684 = vld [vmem:[#allocation3 + $0x170c] sm:$0xff]
    %v8685 = vld [vmem:[#allocation3 + $0x1770] sm:$0xff]
    %v8686 = vld [vmem:[#allocation3 + $0x1778] sm:$0xff]
    %v8687 = vld [vmem:[#allocation3 + $0x17dc] sm:$0xff]
    %v8688 = vld [vmem:[#allocation3 + $0x17e4] sm:$0xff]
    %v8689 = vld [vmem:[#allocation3 + $0x1848] sm:$0xff]
    %v8690 = vld [vmem:[#allocation3 + $0x1850] sm:$0xff]
    %v8691 = vld [vmem:[#allocation3 + $0x18b4] sm:$0xff]
    %v8692 = vld [vmem:[#allocation3 + $0x18bc] sm:$0xff]
    %v8693 = vld [vmem:[#allocation3 + $0x1920] sm:$0xff]
    %v8694 = vld [vmem:[#allocation3 + $0x1928] sm:$0xff]
    %v8695 = vld [vmem:[#allocation3 + $0x198c] sm:$0xff]
    %v8696 = vld [vmem:[#allocation3 + $0x1994] sm:$0xff]
    %v8697 = vld [vmem:[#allocation3 + $0x19f8] sm:$0xff]
    %v8698 = vld [vmem:[#allocation3 + $0x1a00] sm:$0xff]
    %v8699 = vld [vmem:[#allocation3 + $0x1a64] sm:$0xff]
    %v8700 = vld [vmem:[#allocation3 + $0x1a6c] sm:$0xff]
    %v8701 = vld [vmem:[#allocation3 + $0x1ad0] sm:$0xff]
    %v8702 = vld [vmem:[#allocation3 + $0x1ad8] sm:$0xff]
    %s8703 = scalar_lea.vmem [#allocation6], 65
    %v8704 = vld [vmem:[%s8703] ss:$8 sm:$0xf]
    %v8706 = vperm.slane %v8704, 0
    %v8707 = vperm.slane %v8704, 1
    %v8708 = vperm.slane %v8704, 2
    %v8709 = vperm.slane %v8704, 3
    %v8842 = vunpack.c.l.b16 %v8575
    %v8843 = vunpack.c.h.b16 %v8575
    %v8844 = vunpack.c.l.b16 %v8576
    %v8845 = vunpack.c.h.b16 %v8576
    %v8846 = vunpack.c.l.b16 %v8577
    %v8847 = vunpack.c.h.b16 %v8577
    %v8848 = vunpack.c.l.b16 %v8578
    %v8849 = vunpack.c.h.b16 %v8578
    %v8850 = vunpack.c.l.b16 %v8579
    %v8851 = vunpack.c.h.b16 %v8579
    %v8852 = vunpack.c.l.b16 %v8580
    %v8853 = vunpack.c.h.b16 %v8580
    %v8854 = vunpack.c.l.b16 %v8581
    %v8855 = vunpack.c.h.b16 %v8581
    %v8856 = vunpack.c.l.b16 %v8582
    %v8857 = vunpack.c.h.b16 %v8582
    %v8858 = vunpack.c.l.b16 %v8583
    %v8859 = vunpack.c.h.b16 %v8583
    %v8860 = vunpack.c.l.b16 %v8584
    %v8861 = vunpack.c.h.b16 %v8584
    %v8862 = vunpack.c.l.b16 %v8585
    %v8863 = vunpack.c.h.b16 %v8585
    %v8864 = vunpack.c.l.b16 %v8586
    %v8865 = vunpack.c.h.b16 %v8586
    %v8866 = vunpack.c.l.b16 %v8587
    %v8867 = vunpack.c.h.b16 %v8587
    %v8868 = vunpack.c.l.b16 %v8588
    %v8869 = vunpack.c.h.b16 %v8588
    %v8870 = vunpack.c.l.b16 %v8589
    %v8871 = vunpack.c.h.b16 %v8589
    %v8872 = vunpack.c.l.b16 %v8590
    %v8873 = vunpack.c.h.b16 %v8590
    %v8874 = vunpack.c.l.b16 %v8591
    %v8875 = vunpack.c.h.b16 %v8591
    %v8876 = vunpack.c.l.b16 %v8592
    %v8877 = vunpack.c.h.b16 %v8592
    %v8878 = vunpack.c.l.b16 %v8593
    %v8879 = vunpack.c.h.b16 %v8593
    %v8880 = vunpack.c.l.b16 %v8594
    %v8881 = vunpack.c.h.b16 %v8594
    %v8882 = vunpack.c.l.b16 %v8595
    %v8883 = vunpack.c.h.b16 %v8595
    %v8884 = vunpack.c.l.b16 %v8596
    %v8885 = vunpack.c.h.b16 %v8596
    %v8886 = vunpack.c.l.b16 %v8597
    %v8887 = vunpack.c.h.b16 %v8597
    %v8888 = vunpack.c.l.b16 %v8598
    %v8889 = vunpack.c.h.b16 %v8598
    %v8890 = vunpack.c.l.b16 %v8599
    %v8891 = vunpack.c.h.b16 %v8599
    %v8892 = vunpack.c.l.b16 %v8600
    %v8893 = vunpack.c.h.b16 %v8600
    %v8894 = vunpack.c.l.b16 %v8601
    %v8895 = vunpack.c.h.b16 %v8601
    %v8896 = vunpack.c.l.b16 %v8602
    %v8897 = vunpack.c.h.b16 %v8602
    %v8898 = vunpack.c.l.b16 %v8603
    %v8899 = vunpack.c.h.b16 %v8603
    %v8900 = vunpack.c.l.b16 %v8604
    %v8901 = vunpack.c.h.b16 %v8604
    %v8902 = vunpack.c.l.b16 %v8605
    %v8903 = vunpack.c.h.b16 %v8605
    %v8904 = vunpack.c.l.b16 %v8606
    %v8905 = vunpack.c.h.b16 %v8606
    %v8906 = vunpack.c.l.b16 %v8607
    %v8907 = vunpack.c.h.b16 %v8607
    %v8908 = vunpack.c.l.b16 %v8608
    %v8909 = vunpack.c.h.b16 %v8608
    %v8910 = vunpack.c.l.b16 %v8609
    %v8911 = vunpack.c.h.b16 %v8609
    %v8912 = vunpack.c.l.b16 %v8610
    %v8913 = vunpack.c.h.b16 %v8610
    %v8914 = vunpack.c.l.b16 %v8611
    %v8915 = vunpack.c.h.b16 %v8611
    %v8916 = vunpack.c.l.b16 %v8612
    %v8917 = vunpack.c.h.b16 %v8612
    %v8918 = vunpack.c.l.b16 %v8613
    %v8919 = vunpack.c.h.b16 %v8613
    %v8920 = vunpack.c.l.b16 %v8614
    %v8921 = vunpack.c.h.b16 %v8614
    %v8922 = vunpack.c.l.b16 %v8615
    %v8923 = vunpack.c.h.b16 %v8615
    %v8924 = vunpack.c.l.b16 %v8616
    %v8925 = vunpack.c.h.b16 %v8616
    %v8926 = vunpack.c.l.b16 %v8617
    %v8927 = vunpack.c.h.b16 %v8617
    %v8928 = vunpack.c.l.b16 %v8618
    %v8929 = vunpack.c.h.b16 %v8618
    %v8930 = vunpack.c.l.b16 %v8619
    %v8931 = vunpack.c.h.b16 %v8619
    %v8932 = vunpack.c.l.b16 %v8620
    %v8933 = vunpack.c.h.b16 %v8620
    %v8934 = vunpack.c.l.b16 %v8621
    %v8935 = vunpack.c.h.b16 %v8621
    %v8936 = vunpack.c.l.b16 %v8622
    %v8937 = vunpack.c.h.b16 %v8622
    %v8938 = vunpack.c.l.b16 %v8623
    %v8939 = vunpack.c.h.b16 %v8623
    %v8940 = vunpack.c.l.b16 %v8624
    %v8941 = vunpack.c.h.b16 %v8624
    %v8942 = vunpack.c.l.b16 %v8625
    %v8943 = vunpack.c.h.b16 %v8625
    %v8944 = vunpack.c.l.b16 %v8626
    %v8945 = vunpack.c.h.b16 %v8626
    %v8946 = vunpack.c.l.b16 %v8627
    %v8947 = vunpack.c.h.b16 %v8627
    %v8948 = vunpack.c.l.b16 %v8628
    %v8949 = vunpack.c.h.b16 %v8628
    %v8950 = vunpack.c.l.b16 %v8629
    %v8951 = vunpack.c.h.b16 %v8629
    %v8952 = vunpack.c.l.b16 %v8630
    %v8953 = vunpack.c.h.b16 %v8630
    %v8954 = vunpack.c.l.b16 %v8631
    %v8955 = vunpack.c.h.b16 %v8631
    %v8956 = vunpack.c.l.b16 %v8632
    %v8957 = vunpack.c.h.b16 %v8632
    %v8958 = vunpack.c.l.b16 %v8633
    %v8959 = vunpack.c.h.b16 %v8633
    %v8960 = vunpack.c.l.b16 %v8634
    %v8961 = vunpack.c.h.b16 %v8634
    %v8962 = vunpack.c.l.b16 %v8635
    %v8963 = vunpack.c.h.b16 %v8635
    %v8964 = vunpack.c.l.b16 %v8636
    %v8965 = vunpack.c.h.b16 %v8636
    %v8966 = vunpack.c.l.b16 %v8637
    %v8967 = vunpack.c.h.b16 %v8637
    %v8968 = vunpack.c.l.b16 %v8638
    %v8969 = vunpack.c.h.b16 %v8638
    %v8970 = vunpack.c.l.b16 %v8639
    %v8971 = vunpack.c.h.b16 %v8639
    %v8972 = vunpack.c.l.b16 %v8640
    %v8973 = vunpack.c.h.b16 %v8640
    %v8974 = vunpack.c.l.b16 %v8641
    %v8975 = vunpack.c.h.b16 %v8641
    %v8976 = vunpack.c.l.b16 %v8642
    %v8977 = vunpack.c.h.b16 %v8642
    %v8978 = vunpack.c.l.b16 %v8643
    %v8979 = vunpack.c.h.b16 %v8643
    %v8980 = vunpack.c.l.b16 %v8644
    %v8981 = vunpack.c.h.b16 %v8644
    %v8982 = vunpack.c.l.b16 %v8645
    %v8983 = vunpack.c.h.b16 %v8645
    %v8984 = vunpack.c.l.b16 %v8646
    %v8985 = vunpack.c.h.b16 %v8646
    %v8986 = vunpack.c.l.b16 %v8647
    %v8987 = vunpack.c.h.b16 %v8647
    %v8988 = vunpack.c.l.b16 %v8648
    %v8989 = vunpack.c.h.b16 %v8648
    %v8990 = vunpack.c.l.b16 %v8649
    %v8991 = vunpack.c.h.b16 %v8649
    %v8992 = vunpack.c.l.b16 %v8650
    %v8993 = vunpack.c.h.b16 %v8650
    %v8994 = vunpack.c.l.b16 %v8651
    %v8995 = vunpack.c.h.b16 %v8651
    %v8996 = vunpack.c.l.b16 %v8652
    %v8997 = vunpack.c.h.b16 %v8652
    %v8998 = vunpack.c.l.b16 %v8653
    %v8999 = vunpack.c.h.b16 %v8653
    %v9000 = vunpack.c.l.b16 %v8654
    %v9001 = vunpack.c.h.b16 %v8654
    %v9002 = vunpack.c.l.b16 %v8655
    %v9003 = vunpack.c.h.b16 %v8655
    %v9004 = vunpack.c.l.b16 %v8656
    %v9005 = vunpack.c.h.b16 %v8656
    %v9006 = vunpack.c.l.b16 %v8657
    %v9007 = vunpack.c.h.b16 %v8657
    %v9008 = vunpack.c.l.b16 %v8658
    %v9009 = vunpack.c.h.b16 %v8658
    %v9010 = vunpack.c.l.b16 %v8659
    %v9011 = vunpack.c.h.b16 %v8659
    %v9012 = vunpack.c.l.b16 %v8660
    %v9013 = vunpack.c.h.b16 %v8660
    %v9014 = vunpack.c.l.b16 %v8661
    %v9015 = vunpack.c.h.b16 %v8661
    %v9016 = vunpack.c.l.b16 %v8662
    %v9017 = vunpack.c.h.b16 %v8662
    %v9018 = vunpack.c.l.b16 %v8663
    %v9019 = vunpack.c.h.b16 %v8663
    %v9020 = vunpack.c.l.b16 %v8664
    %v9021 = vunpack.c.h.b16 %v8664
    %v9022 = vunpack.c.l.b16 %v8665
    %v9023 = vunpack.c.h.b16 %v8665
    %v9024 = vunpack.c.l.b16 %v8666
    %v9025 = vunpack.c.h.b16 %v8666
    %v9026 = vunpack.c.l.b16 %v8667
    %v9027 = vunpack.c.h.b16 %v8667
    %v9028 = vunpack.c.l.b16 %v8668
    %v9029 = vunpack.c.h.b16 %v8668
    %v9030 = vunpack.c.l.b16 %v8669
    %v9031 = vunpack.c.h.b16 %v8669
    %v9032 = vunpack.c.l.b16 %v8670
    %v9033 = vunpack.c.h.b16 %v8670
    %v9034 = vunpack.c.l.b16 %v8671
    %v9035 = vunpack.c.h.b16 %v8671
    %v9036 = vunpack.c.l.b16 %v8672
    %v9037 = vunpack.c.h.b16 %v8672
    %v9038 = vunpack.c.l.b16 %v8673
    %v9039 = vunpack.c.h.b16 %v8673
    %v9040 = vunpack.c.l.b16 %v8674
    %v9041 = vunpack.c.h.b16 %v8674
    %v9042 = vunpack.c.l.b16 %v8675
    %v9043 = vunpack.c.h.b16 %v8675
    %v9044 = vunpack.c.l.b16 %v8676
    %v9045 = vunpack.c.h.b16 %v8676
    %v9046 = vunpack.c.l.b16 %v8677
    %v9047 = vunpack.c.h.b16 %v8677
    %v9048 = vunpack.c.l.b16 %v8678
    %v9049 = vunpack.c.h.b16 %v8678
    %v9050 = vunpack.c.l.b16 %v8679
    %v9051 = vunpack.c.h.b16 %v8679
    %v9052 = vunpack.c.l.b16 %v8680
    %v9053 = vunpack.c.h.b16 %v8680
    %v9054 = vunpack.c.l.b16 %v8681
    %v9055 = vunpack.c.h.b16 %v8681
    %v9056 = vunpack.c.l.b16 %v8682
    %v9057 = vunpack.c.h.b16 %v8682
    %v9058 = vunpack.c.l.b16 %v8683
    %v9059 = vunpack.c.h.b16 %v8683
    %v9060 = vunpack.c.l.b16 %v8684
    %v9061 = vunpack.c.h.b16 %v8684
    %v9062 = vunpack.c.l.b16 %v8685
    %v9063 = vunpack.c.h.b16 %v8685
    %v9064 = vunpack.c.l.b16 %v8686
    %v9065 = vunpack.c.h.b16 %v8686
    %v9066 = vunpack.c.l.b16 %v8687
    %v9067 = vunpack.c.h.b16 %v8687
    %v9068 = vunpack.c.l.b16 %v8688
    %v9069 = vunpack.c.h.b16 %v8688
    %v9070 = vunpack.c.l.b16 %v8689
    %v9071 = vunpack.c.h.b16 %v8689
    %v9072 = vunpack.c.l.b16 %v8690
    %v9073 = vunpack.c.h.b16 %v8690
    %v9074 = vunpack.c.l.b16 %v8691
    %v9075 = vunpack.c.h.b16 %v8691
    %v9076 = vunpack.c.l.b16 %v8692
    %v9077 = vunpack.c.h.b16 %v8692
    %v9078 = vunpack.c.l.b16 %v8693
    %v9079 = vunpack.c.h.b16 %v8693
    %v9080 = vunpack.c.l.b16 %v8694
    %v9081 = vunpack.c.h.b16 %v8694
    %v9082 = vunpack.c.l.b16 %v8695
    %v9083 = vunpack.c.h.b16 %v8695
    %v9084 = vunpack.c.l.b16 %v8696
    %v9085 = vunpack.c.h.b16 %v8696
    %v9086 = vunpack.c.l.b16 %v8697
    %v9087 = vunpack.c.h.b16 %v8697
    %v9088 = vunpack.c.l.b16 %v8698
    %v9089 = vunpack.c.h.b16 %v8698
    %v9090 = vunpack.c.l.b16 %v8699
    %v9091 = vunpack.c.h.b16 %v8699
    %v9092 = vunpack.c.l.b16 %v8700
    %v9093 = vunpack.c.h.b16 %v8700
    %v9094 = vunpack.c.l.b16 %v8701
    %v9095 = vunpack.c.h.b16 %v8701
    %v9096 = vunpack.c.l.b16 %v8702
    %v9097 = vunpack.c.h.b16 %v8702
    %v9098 = vpack.c.b16 %v8846, %v8842
    %v9099 = vpack.c.b16 %v8847, %v8843
    %v9100 = vpack.c.b16 %v8848, %v8844
    %v9101 = vpack.c.b16 %v8849, %v8845
    %v9102 = vpack.c.b16 %v8854, %v8850
    %v9103 = vpack.c.b16 %v8855, %v8851
    %v9104 = vpack.c.b16 %v8856, %v8852
    %v9105 = vpack.c.b16 %v8857, %v8853
    %v9106 = vpack.c.b16 %v8862, %v8858
    %v9107 = vpack.c.b16 %v8863, %v8859
    %v9108 = vpack.c.b16 %v8864, %v8860
    %v9109 = vpack.c.b16 %v8865, %v8861
    %v9110 = vpack.c.b16 %v8870, %v8866
    %v9111 = vpack.c.b16 %v8871, %v8867
    %v9112 = vpack.c.b16 %v8872, %v8868
    %v9113 = vpack.c.b16 %v8873, %v8869
    %v9114 = vpack.c.b16 %v8878, %v8874
    %v9115 = vpack.c.b16 %v8879, %v8875
    %v9116 = vpack.c.b16 %v8880, %v8876
    %v9117 = vpack.c.b16 %v8881, %v8877
    %v9118 = vpack.c.b16 %v8886, %v8882
    %v9119 = vpack.c.b16 %v8887, %v8883
    %v9120 = vpack.c.b16 %v8888, %v8884
    %v9121 = vpack.c.b16 %v8889, %v8885
    %v9122 = vpack.c.b16 %v8894, %v8890
    %v9123 = vpack.c.b16 %v8895, %v8891
    %v9124 = vpack.c.b16 %v8896, %v8892
    %v9125 = vpack.c.b16 %v8897, %v8893
    %v9126 = vpack.c.b16 %v8902, %v8898
    %v9127 = vpack.c.b16 %v8903, %v8899
    %v9128 = vpack.c.b16 %v8904, %v8900
    %v9129 = vpack.c.b16 %v8905, %v8901
    %v9130 = vpack.c.b16 %v8910, %v8906
    %v9131 = vpack.c.b16 %v8911, %v8907
    %v9132 = vpack.c.b16 %v8912, %v8908
    %v9133 = vpack.c.b16 %v8913, %v8909
    %v9134 = vpack.c.b16 %v8918, %v8914
    %v9135 = vpack.c.b16 %v8919, %v8915
    %v9136 = vpack.c.b16 %v8920, %v8916
    %v9137 = vpack.c.b16 %v8921, %v8917
    %v9138 = vpack.c.b16 %v8926, %v8922
    %v9139 = vpack.c.b16 %v8927, %v8923
    %v9140 = vpack.c.b16 %v8928, %v8924
    %v9141 = vpack.c.b16 %v8929, %v8925
    %v9142 = vpack.c.b16 %v8934, %v8930
    %v9143 = vpack.c.b16 %v8935, %v8931
    %v9144 = vpack.c.b16 %v8936, %v8932
    %v9145 = vpack.c.b16 %v8937, %v8933
    %v9146 = vpack.c.b16 %v8942, %v8938
    %v9147 = vpack.c.b16 %v8943, %v8939
    %v9148 = vpack.c.b16 %v8944, %v8940
    %v9149 = vpack.c.b16 %v8945, %v8941
    %v9150 = vpack.c.b16 %v8950, %v8946
    %v9151 = vpack.c.b16 %v8951, %v8947
    %v9152 = vpack.c.b16 %v8952, %v8948
    %v9153 = vpack.c.b16 %v8953, %v8949
    %v9154 = vpack.c.b16 %v8958, %v8954
    %v9155 = vpack.c.b16 %v8959, %v8955
    %v9156 = vpack.c.b16 %v8960, %v8956
    %v9157 = vpack.c.b16 %v8961, %v8957
    %v9158 = vpack.c.b16 %v8966, %v8962
    %v9159 = vpack.c.b16 %v8967, %v8963
    %v9160 = vpack.c.b16 %v8968, %v8964
    %v9161 = vpack.c.b16 %v8969, %v8965
    %v9162 = vpack.c.b16 %v8974, %v8970
    %v9163 = vpack.c.b16 %v8975, %v8971
    %v9164 = vpack.c.b16 %v8976, %v8972
    %v9165 = vpack.c.b16 %v8977, %v8973
    %v9166 = vpack.c.b16 %v8982, %v8978
    %v9167 = vpack.c.b16 %v8983, %v8979
    %v9168 = vpack.c.b16 %v8984, %v8980
    %v9169 = vpack.c.b16 %v8985, %v8981
    %v9170 = vpack.c.b16 %v8990, %v8986
    %v9171 = vpack.c.b16 %v8991, %v8987
    %v9172 = vpack.c.b16 %v8992, %v8988
    %v9173 = vpack.c.b16 %v8993, %v8989
    %v9174 = vpack.c.b16 %v8998, %v8994
    %v9175 = vpack.c.b16 %v8999, %v8995
    %v9176 = vpack.c.b16 %v9000, %v8996
    %v9177 = vpack.c.b16 %v9001, %v8997
    %v9178 = vpack.c.b16 %v9006, %v9002
    %v9179 = vpack.c.b16 %v9007, %v9003
    %v9180 = vpack.c.b16 %v9008, %v9004
    %v9181 = vpack.c.b16 %v9009, %v9005
    %v9182 = vpack.c.b16 %v9014, %v9010
    %v9183 = vpack.c.b16 %v9015, %v9011
    %v9184 = vpack.c.b16 %v9016, %v9012
    %v9185 = vpack.c.b16 %v9017, %v9013
    %v9186 = vpack.c.b16 %v9022, %v9018
    %v9187 = vpack.c.b16 %v9023, %v9019
    %v9188 = vpack.c.b16 %v9024, %v9020
    %v9189 = vpack.c.b16 %v9025, %v9021
    %v9190 = vpack.c.b16 %v9030, %v9026
    %v9191 = vpack.c.b16 %v9031, %v9027
    %v9192 = vpack.c.b16 %v9032, %v9028
    %v9193 = vpack.c.b16 %v9033, %v9029
    %v9194 = vpack.c.b16 %v9038, %v9034
    %v9195 = vpack.c.b16 %v9039, %v9035
    %v9196 = vpack.c.b16 %v9040, %v9036
    %v9197 = vpack.c.b16 %v9041, %v9037
    %v9198 = vpack.c.b16 %v9046, %v9042
    %v9199 = vpack.c.b16 %v9047, %v9043
    %v9200 = vpack.c.b16 %v9048, %v9044
    %v9201 = vpack.c.b16 %v9049, %v9045
    %v9202 = vpack.c.b16 %v9054, %v9050
    %v9203 = vpack.c.b16 %v9055, %v9051
    %v9204 = vpack.c.b16 %v9056, %v9052
    %v9205 = vpack.c.b16 %v9057, %v9053
    %v9206 = vpack.c.b16 %v9062, %v9058
    %v9207 = vpack.c.b16 %v9063, %v9059
    %v9208 = vpack.c.b16 %v9064, %v9060
    %v9209 = vpack.c.b16 %v9065, %v9061
    %v9210 = vpack.c.b16 %v9070, %v9066
    %v9211 = vpack.c.b16 %v9071, %v9067
    %v9212 = vpack.c.b16 %v9072, %v9068
    %v9213 = vpack.c.b16 %v9073, %v9069
    %v9214 = vpack.c.b16 %v9078, %v9074
    %v9215 = vpack.c.b16 %v9079, %v9075
    %v9216 = vpack.c.b16 %v9080, %v9076
    %v9217 = vpack.c.b16 %v9081, %v9077
    %v9218 = vpack.c.b16 %v9086, %v9082
    %v9219 = vpack.c.b16 %v9087, %v9083
    %v9220 = vpack.c.b16 %v9088, %v9084
    %v9221 = vpack.c.b16 %v9089, %v9085
    %v9222 = vpack.c.b16 %v9094, %v9090
    %v9223 = vpack.c.b16 %v9095, %v9091
    %v9224 = vpack.c.b16 %v9096, %v9092
    %v9225 = vpack.c.b16 %v9097, %v9093
    %9354 = vmatpush.bf16.msra.mxu0 %v9126
    %9355 = vmatpush.bf16.msra.mxu0 %v9122
    %9356 = vmatpush.bf16.msra.mxu0 %v9118
    %9357 = vmatpush.bf16.msra.mxu0 %v9114
    %9358 = vmatpush.bf16.msra.mxu0 %v9110
    %9359 = vmatpush.bf16.msra.mxu0 %v9106
    %9360 = vmatpush.bf16.msra.mxu0 %v9102
    %9361 = vmatpush.bf16.msra.mxu0 %v9098
    %9362 = vmatmul.bf16.gmra.mxu0 %v8571
    %v9363 = vpop.f32.mrf.mxu0
    %v9364 = vadd.f32 %v8706, %v9363
    %v9365 = vpop.f32.mrf.mxu0
    %v9366 = vadd.f32 %v8706, %v9365
    %9367 = vdwg.mxu0
    %9368 = vmatpush.bf16.msra.mxu0 %v9158
    %9369 = vmatpush.bf16.msra.mxu0 %v9154
    %9370 = vmatpush.bf16.msra.mxu0 %v9150
    %9371 = vmatpush.bf16.msra.mxu0 %v9146
    %9372 = vmatpush.bf16.msra.mxu0 %v9142
    %9373 = vmatpush.bf16.msra.mxu0 %v9138
    %9374 = vmatpush.bf16.msra.mxu0 %v9134
    %9375 = vmatpush.bf16.msra.mxu0 %v9130
    %9376 = vmatmul.bf16.gmra.mxu0 %v8572
    %v9377 = vpop.f32.mrf.mxu0
    %v9378 = vadd.f32 %v9364, %v9377
    %v9379 = vpop.f32.mrf.mxu0
    %v9380 = vadd.f32 %v9366, %v9379
    %9381 = vdwg.mxu0
    %9382 = vmatpush.bf16.msra.mxu0 %v9190
    %9383 = vmatpush.bf16.msra.mxu0 %v9186
    %9384 = vmatpush.bf16.msra.mxu0 %v9182
    %9385 = vmatpush.bf16.msra.mxu0 %v9178
    %9386 = vmatpush.bf16.msra.mxu0 %v9174
    %9387 = vmatpush.bf16.msra.mxu0 %v9170
    %9388 = vmatpush.bf16.msra.mxu0 %v9166
    %9389 = vmatpush.bf16.msra.mxu0 %v9162
    %9390 = vmatmul.bf16.gmra.mxu0 %v8573
    %v9391 = vpop.f32.mrf.mxu0
    %v9392 = vadd.f32 %v9378, %v9391
    %v9393 = vpop.f32.mrf.mxu0
    %v9394 = vadd.f32 %v9380, %v9393
    %9395 = vdwg.mxu0
    %9396 = vmatpush.bf16.msra.mxu0 %v9222
    %9397 = vmatpush.bf16.msra.mxu0 %v9218
    %9398 = vmatpush.bf16.msra.mxu0 %v9214
    %9399 = vmatpush.bf16.msra.mxu0 %v9210
    %9400 = vmatpush.bf16.msra.mxu0 %v9206
    %9401 = vmatpush.bf16.msra.mxu0 %v9202
    %9402 = vmatpush.bf16.msra.mxu0 %v9198
    %9403 = vmatpush.bf16.msra.mxu0 %v9194
    %9404 = vmatmul.bf16.gmra.mxu0 %v8574
    %v9405 = vpop.f32.mrf.mxu0
    %v9406 = vadd.f32 %v9392, %v9405
    %v9407 = vpop.f32.mrf.mxu0
    %v9408 = vadd.f32 %v9394, %v9407
    %9409 = vdwg.mxu0
    %9410 = vmatpush.bf16.msra.mxu0 %v9127
    %9411 = vmatpush.bf16.msra.mxu0 %v9123
    %9412 = vmatpush.bf16.msra.mxu0 %v9119
    %9413 = vmatpush.bf16.msra.mxu0 %v9115
    %9414 = vmatpush.bf16.msra.mxu0 %v9111
    %9415 = vmatpush.bf16.msra.mxu0 %v9107
    %9416 = vmatpush.bf16.msra.mxu0 %v9103
    %9417 = vmatpush.bf16.msra.mxu0 %v9099
    %9418 = vmatmul.bf16.gmra.mxu0 %v8571
    %v9419 = vpop.f32.mrf.mxu0
    %v9420 = vadd.f32 %v8707, %v9419
    %v9421 = vpop.f32.mrf.mxu0
    %v9422 = vadd.f32 %v8707, %v9421
    %9423 = vdwg.mxu0
    %9424 = vmatpush.bf16.msra.mxu0 %v9159
    %9425 = vmatpush.bf16.msra.mxu0 %v9155
    %9426 = vmatpush.bf16.msra.mxu0 %v9151
    %9427 = vmatpush.bf16.msra.mxu0 %v9147
    %9428 = vmatpush.bf16.msra.mxu0 %v9143
    %9429 = vmatpush.bf16.msra.mxu0 %v9139
    %9430 = vmatpush.bf16.msra.mxu0 %v9135
    %9431 = vmatpush.bf16.msra.mxu0 %v9131
    %9432 = vmatmul.bf16.gmra.mxu0 %v8572
    %v9433 = vpop.f32.mrf.mxu0
    %v9434 = vadd.f32 %v9420, %v9433
    %v9435 = vpop.f32.mrf.mxu0
    %v9436 = vadd.f32 %v9422, %v9435
    %9437 = vdwg.mxu0
    %9438 = vmatpush.bf16.msra.mxu0 %v9191
    %9439 = vmatpush.bf16.msra.mxu0 %v9187
    %9440 = vmatpush.bf16.msra.mxu0 %v9183
    %9441 = vmatpush.bf16.msra.mxu0 %v9179
    %9442 = vmatpush.bf16.msra.mxu0 %v9175
    %9443 = vmatpush.bf16.msra.mxu0 %v9171
    %9444 = vmatpush.bf16.msra.mxu0 %v9167
    %9445 = vmatpush.bf16.msra.mxu0 %v9163
    %9446 = vmatmul.bf16.gmra.mxu0 %v8573
    %v9447 = vpop.f32.mrf.mxu0
    %v9448 = vadd.f32 %v9434, %v9447
    %v9449 = vpop.f32.mrf.mxu0
    %v9450 = vadd.f32 %v9436, %v9449
    %9451 = vdwg.mxu0
    %9452 = vmatpush.bf16.msra.mxu0 %v9223
    %9453 = vmatpush.bf16.msra.mxu0 %v9219
    %9454 = vmatpush.bf16.msra.mxu0 %v9215
    %9455 = vmatpush.bf16.msra.mxu0 %v9211
    %9456 = vmatpush.bf16.msra.mxu0 %v9207
    %9457 = vmatpush.bf16.msra.mxu0 %v9203
    %9458 = vmatpush.bf16.msra.mxu0 %v9199
    %9459 = vmatpush.bf16.msra.mxu0 %v9195
    %9460 = vmatmul.bf16.gmra.mxu0 %v8574
    %v9461 = vpop.f32.mrf.mxu0
    %v9462 = vadd.f32 %v9448, %v9461
    %v9463 = vpop.f32.mrf.mxu0
    %v9464 = vadd.f32 %v9450, %v9463
    %9465 = vdwg.mxu0
    %9466 = vmatpush.bf16.msra.mxu0 %v9128
    %9467 = vmatpush.bf16.msra.mxu0 %v9124
    %9468 = vmatpush.bf16.msra.mxu0 %v9120
    %9469 = vmatpush.bf16.msra.mxu0 %v9116
    %9470 = vmatpush.bf16.msra.mxu0 %v9112
    %9471 = vmatpush.bf16.msra.mxu0 %v9108
    %9472 = vmatpush.bf16.msra.mxu0 %v9104
    %9473 = vmatpush.bf16.msra.mxu0 %v9100
    %9474 = vmatmul.bf16.gmra.mxu0 %v8571
    %v9475 = vpop.f32.mrf.mxu0
    %v9476 = vadd.f32 %v8708, %v9475
    %v9477 = vpop.f32.mrf.mxu0
    %v9478 = vadd.f32 %v8708, %v9477
    %9479 = vdwg.mxu0
    %9480 = vmatpush.bf16.msra.mxu0 %v9160
    %9481 = vmatpush.bf16.msra.mxu0 %v9156
    %9482 = vmatpush.bf16.msra.mxu0 %v9152
    %9483 = vmatpush.bf16.msra.mxu0 %v9148
    %9484 = vmatpush.bf16.msra.mxu0 %v9144
    %9485 = vmatpush.bf16.msra.mxu0 %v9140
    %9486 = vmatpush.bf16.msra.mxu0 %v9136
    %9487 = vmatpush.bf16.msra.mxu0 %v9132
    %9488 = vmatmul.bf16.gmra.mxu0 %v8572
    %v9489 = vpop.f32.mrf.mxu0
    %v9490 = vadd.f32 %v9476, %v9489
    %v9491 = vpop.f32.mrf.mxu0
    %v9492 = vadd.f32 %v9478, %v9491
    %9493 = vdwg.mxu0
    %9494 = vmatpush.bf16.msra.mxu0 %v9192
    %9495 = vmatpush.bf16.msra.mxu0 %v9188
    %9496 = vmatpush.bf16.msra.mxu0 %v9184
    %9497 = vmatpush.bf16.msra.mxu0 %v9180
    %9498 = vmatpush.bf16.msra.mxu0 %v9176
    %9499 = vmatpush.bf16.msra.mxu0 %v9172
    %9500 = vmatpush.bf16.msra.mxu0 %v9168
    %9501 = vmatpush.bf16.msra.mxu0 %v9164
    %9502 = vmatmul.bf16.gmra.mxu0 %v8573
    %v9503 = vpop.f32.mrf.mxu0
    %v9504 = vadd.f32 %v9490, %v9503
    %v9505 = vpop.f32.mrf.mxu0
    %v9506 = vadd.f32 %v9492, %v9505
    %9507 = vdwg.mxu0
    %9508 = vmatpush.bf16.msra.mxu0 %v9224
    %9509 = vmatpush.bf16.msra.mxu0 %v9220
    %9510 = vmatpush.bf16.msra.mxu0 %v9216
    %9511 = vmatpush.bf16.msra.mxu0 %v9212
    %9512 = vmatpush.bf16.msra.mxu0 %v9208
    %9513 = vmatpush.bf16.msra.mxu0 %v9204
    %9514 = vmatpush.bf16.msra.mxu0 %v9200
    %9515 = vmatpush.bf16.msra.mxu0 %v9196
    %9516 = vmatmul.bf16.gmra.mxu0 %v8574
    %v9517 = vpop.f32.mrf.mxu0
    %v9518 = vadd.f32 %v9504, %v9517
    %v9519 = vpop.f32.mrf.mxu0
    %v9520 = vadd.f32 %v9506, %v9519
    %9521 = vdwg.mxu0
    %9522 = vmatpush.bf16.msra.mxu0 %v9129
    %9523 = vmatpush.bf16.msra.mxu0 %v9125
    %9524 = vmatpush.bf16.msra.mxu0 %v9121
    %9525 = vmatpush.bf16.msra.mxu0 %v9117
    %9526 = vmatpush.bf16.msra.mxu0 %v9113
    %9527 = vmatpush.bf16.msra.mxu0 %v9109
    %9528 = vmatpush.bf16.msra.mxu0 %v9105
    %9529 = vmatpush.bf16.msra.mxu0 %v9101
    %9530 = vmatmul.bf16.gmra.mxu0 %v8571
    %v9531 = vpop.f32.mrf.mxu0
    %v9532 = vadd.f32 %v8709, %v9531
    %v9533 = vpop.f32.mrf.mxu0
    %v9534 = vadd.f32 %v8709, %v9533
    %9535 = vdwg.mxu0
    %9536 = vmatpush.bf16.msra.mxu0 %v9161
    %9537 = vmatpush.bf16.msra.mxu0 %v9157
    %9538 = vmatpush.bf16.msra.mxu0 %v9153
    %9539 = vmatpush.bf16.msra.mxu0 %v9149
    %9540 = vmatpush.bf16.msra.mxu0 %v9145
    %9541 = vmatpush.bf16.msra.mxu0 %v9141
    %9542 = vmatpush.bf16.msra.mxu0 %v9137
    %9543 = vmatpush.bf16.msra.mxu0 %v9133
    %9544 = vmatmul.bf16.gmra.mxu0 %v8572
    %v9545 = vpop.f32.mrf.mxu0
    %v9546 = vadd.f32 %v9532, %v9545
    %v9547 = vpop.f32.mrf.mxu0
    %v9548 = vadd.f32 %v9534, %v9547
    %9549 = vdwg.mxu0
    %9550 = vmatpush.bf16.msra.mxu0 %v9193
    %9551 = vmatpush.bf16.msra.mxu0 %v9189
    %9552 = vmatpush.bf16.msra.mxu0 %v9185
    %9553 = vmatpush.bf16.msra.mxu0 %v9181
    %9554 = vmatpush.bf16.msra.mxu0 %v9177
    %9555 = vmatpush.bf16.msra.mxu0 %v9173
    %9556 = vmatpush.bf16.msra.mxu0 %v9169
    %9557 = vmatpush.bf16.msra.mxu0 %v9165
    %9558 = vmatmul.bf16.gmra.mxu0 %v8573
    %v9559 = vpop.f32.mrf.mxu0
    %v9560 = vadd.f32 %v9546, %v9559
    %v9561 = vpop.f32.mrf.mxu0
    %v9562 = vadd.f32 %v9548, %v9561
    %9563 = vdwg.mxu0
    %9564 = vmatpush.bf16.msra.mxu0 %v9225
    %9565 = vmatpush.bf16.msra.mxu0 %v9221
    %9566 = vmatpush.bf16.msra.mxu0 %v9217
    %9567 = vmatpush.bf16.msra.mxu0 %v9213
    %9568 = vmatpush.bf16.msra.mxu0 %v9209
    %9569 = vmatpush.bf16.msra.mxu0 %v9205
    %9570 = vmatpush.bf16.msra.mxu0 %v9201
    %9571 = vmatpush.bf16.msra.mxu0 %v9197
    %9572 = vmatmul.bf16.gmra.mxu0 %v8574
    %v9573 = vpop.f32.mrf.mxu0
    %v9574 = vadd.f32 %v9560, %v9573
    %v9575 = vpop.f32.mrf.mxu0
    %v9576 = vadd.f32 %v9562, %v9575
    %9577 = vdwg.mxu0
    %v9578 = vmax.f32 %v9406, 0.0
    %v9579 = vmax.f32 %v9462, 0.0
    %v9580 = vmax.f32 %v9518, 0.0
    %v9581 = vmax.f32 %v9574, 0.0
    %v9582 = vmax.f32 %v9408, 0.0
    %v9583 = vmax.f32 %v9464, 0.0
    %v9584 = vmax.f32 %v9520, 0.0
    %v9585 = vmax.f32 %v9576, 0.0
    %v9586 = vpack.c.bf16 %v9582, %v9578
    %v9587 = vpack.c.bf16 %v9583, %v9579
    %v9588 = vpack.c.bf16 %v9584, %v9580
    %v9589 = vpack.c.bf16 %v9585, %v9581
    %v9590 = vld [vmem:[#allocation3 + $0x4c] sm:$0xff]
    %v9591 = vld [vmem:[#allocation3 + $0x54] sm:$0xff]
    %v9592 = vld [vmem:[#allocation3 + $0x5c] sm:$0xff]
    %v9593 = vld [vmem:[#allocation3 + $0x64] sm:$0xff]
    %v9594 = vld [vmem:[#allocation3 + $0xb8] sm:$0xff]
    %v9595 = vld [vmem:[#allocation3 + $0xc0] sm:$0xff]
    %v9596 = vld [vmem:[#allocation3 + $0xc8] sm:$0xff]
    %v9597 = vld [vmem:[#allocation3 + $0xd0] sm:$0xff]
    %v9598 = vld [vmem:[#allocation3 + $0x124] sm:$0xff]
    %v9599 = vld [vmem:[#allocation3 + $0x12c] sm:$0xff]
    %v9600 = vld [vmem:[#allocation3 + $0x134] sm:$0xff]
    %v9601 = vld [vmem:[#allocation3 + $0x13c] sm:$0xff]
    %v9602 = vld [vmem:[#allocation3 + $0x190] sm:$0xff]
    %v9603 = vld [vmem:[#allocation3 + $0x198] sm:$0xff]
    %v9604 = vld [vmem:[#allocation3 + $0x1a0] sm:$0xff]
    %v9605 = vld [vmem:[#allocation3 + $0x1a8] sm:$0xff]
    %v9606 = vld [vmem:[#allocation3 + $0x1fc] sm:$0xff]
    %v9607 = vld [vmem:[#allocation3 + $0x204] sm:$0xff]
    %v9608 = vld [vmem:[#allocation3 + $0x20c] sm:$0xff]
    %v9609 = vld [vmem:[#allocation3 + $0x214] sm:$0xff]
    %v9610 = vld [vmem:[#allocation3 + $0x268] sm:$0xff]
    %v9611 = vld [vmem:[#allocation3 + $0x270] sm:$0xff]
    %v9612 = vld [vmem:[#allocation3 + $0x278] sm:$0xff]
    %v9613 = vld [vmem:[#allocation3 + $0x280] sm:$0xff]
    %v9614 = vld [vmem:[#allocation3 + $0x2d4] sm:$0xff]
    %v9615 = vld [vmem:[#allocation3 + $0x2dc] sm:$0xff]
    %v9616 = vld [vmem:[#allocation3 + $0x2e4] sm:$0xff]
    %v9617 = vld [vmem:[#allocation3 + $0x2ec] sm:$0xff]
    %v9618 = vld [vmem:[#allocation3 + $0x340] sm:$0xff]
    %v9619 = vld [vmem:[#allocation3 + $0x348] sm:$0xff]
    %v9620 = vld [vmem:[#allocation3 + $0x350] sm:$0xff]
    %v9621 = vld [vmem:[#allocation3 + $0x358] sm:$0xff]
    %v9622 = vld [vmem:[#allocation3 + $0x3ac] sm:$0xff]
    %v9623 = vld [vmem:[#allocation3 + $0x3b4] sm:$0xff]
    %v9624 = vld [vmem:[#allocation3 + $0x3bc] sm:$0xff]
    %v9625 = vld [vmem:[#allocation3 + $0x3c4] sm:$0xff]
    %v9626 = vld [vmem:[#allocation3 + $0x418] sm:$0xff]
    %v9627 = vld [vmem:[#allocation3 + $0x420] sm:$0xff]
    %v9628 = vld [vmem:[#allocation3 + $0x428] sm:$0xff]
    %v9629 = vld [vmem:[#allocation3 + $0x430] sm:$0xff]
    %v9630 = vld [vmem:[#allocation3 + $0x484] sm:$0xff]
    %v9631 = vld [vmem:[#allocation3 + $0x48c] sm:$0xff]
    %v9632 = vld [vmem:[#allocation3 + $0x494] sm:$0xff]
    %v9633 = vld [vmem:[#allocation3 + $0x49c] sm:$0xff]
    %v9634 = vld [vmem:[#allocation3 + $0x4f0] sm:$0xff]
    %v9635 = vld [vmem:[#allocation3 + $0x4f8] sm:$0xff]
    %v9636 = vld [vmem:[#allocation3 + $0x500] sm:$0xff]
    %v9637 = vld [vmem:[#allocation3 + $0x508] sm:$0xff]
    %v9638 = vld [vmem:[#allocation3 + $0x55c] sm:$0xff]
    %v9639 = vld [vmem:[#allocation3 + $0x564] sm:$0xff]
    %v9640 = vld [vmem:[#allocation3 + $0x56c] sm:$0xff]
    %v9641 = vld [vmem:[#allocation3 + $0x574] sm:$0xff]
    %v9642 = vld [vmem:[#allocation3 + $0x5c8] sm:$0xff]
    %v9643 = vld [vmem:[#allocation3 + $0x5d0] sm:$0xff]
    %v9644 = vld [vmem:[#allocation3 + $0x5d8] sm:$0xff]
    %v9645 = vld [vmem:[#allocation3 + $0x5e0] sm:$0xff]
    %v9646 = vld [vmem:[#allocation3 + $0x634] sm:$0xff]
    %v9647 = vld [vmem:[#allocation3 + $0x63c] sm:$0xff]
    %v9648 = vld [vmem:[#allocation3 + $0x644] sm:$0xff]
    %v9649 = vld [vmem:[#allocation3 + $0x64c] sm:$0xff]
    %v9650 = vld [vmem:[#allocation3 + $0x6a0] sm:$0xff]
    %v9651 = vld [vmem:[#allocation3 + $0x6a8] sm:$0xff]
    %v9652 = vld [vmem:[#allocation3 + $0x6b0] sm:$0xff]
    %v9653 = vld [vmem:[#allocation3 + $0x6b8] sm:$0xff]
    %v9654 = vld [vmem:[#allocation3 + $0x70c] sm:$0xff]
    %v9655 = vld [vmem:[#allocation3 + $0x714] sm:$0xff]
    %v9656 = vld [vmem:[#allocation3 + $0x71c] sm:$0xff]
    %v9657 = vld [vmem:[#allocation3 + $0x724] sm:$0xff]
    %v9658 = vld [vmem:[#allocation3 + $0x778] sm:$0xff]
    %v9659 = vld [vmem:[#allocation3 + $0x780] sm:$0xff]
    %v9660 = vld [vmem:[#allocation3 + $0x788] sm:$0xff]
    %v9661 = vld [vmem:[#allocation3 + $0x790] sm:$0xff]
    %v9662 = vld [vmem:[#allocation3 + $0x7e4] sm:$0xff]
    %v9663 = vld [vmem:[#allocation3 + $0x7ec] sm:$0xff]
    %v9664 = vld [vmem:[#allocation3 + $0x7f4] sm:$0xff]
    %v9665 = vld [vmem:[#allocation3 + $0x7fc] sm:$0xff]
    %v9666 = vld [vmem:[#allocation3 + $0x850] sm:$0xff]
    %v9667 = vld [vmem:[#allocation3 + $0x858] sm:$0xff]
    %v9668 = vld [vmem:[#allocation3 + $0x860] sm:$0xff]
    %v9669 = vld [vmem:[#allocation3 + $0x868] sm:$0xff]
    %v9670 = vld [vmem:[#allocation3 + $0x8bc] sm:$0xff]
    %v9671 = vld [vmem:[#allocation3 + $0x8c4] sm:$0xff]
    %v9672 = vld [vmem:[#allocation3 + $0x8cc] sm:$0xff]
    %v9673 = vld [vmem:[#allocation3 + $0x8d4] sm:$0xff]
    %v9674 = vld [vmem:[#allocation3 + $0x928] sm:$0xff]
    %v9675 = vld [vmem:[#allocation3 + $0x930] sm:$0xff]
    %v9676 = vld [vmem:[#allocation3 + $0x938] sm:$0xff]
    %v9677 = vld [vmem:[#allocation3 + $0x940] sm:$0xff]
    %v9678 = vld [vmem:[#allocation3 + $0x994] sm:$0xff]
    %v9679 = vld [vmem:[#allocation3 + $0x99c] sm:$0xff]
    %v9680 = vld [vmem:[#allocation3 + $0x9a4] sm:$0xff]
    %v9681 = vld [vmem:[#allocation3 + $0x9ac] sm:$0xff]
    %v9682 = vld [vmem:[#allocation3 + $0xa00] sm:$0xff]
    %v9683 = vld [vmem:[#allocation3 + $0xa08] sm:$0xff]
    %v9684 = vld [vmem:[#allocation3 + $0xa10] sm:$0xff]
    %v9685 = vld [vmem:[#allocation3 + $0xa18] sm:$0xff]
    %v9686 = vld [vmem:[#allocation3 + $0xa6c] sm:$0xff]
    %v9687 = vld [vmem:[#allocation3 + $0xa74] sm:$0xff]
    %v9688 = vld [vmem:[#allocation3 + $0xa7c] sm:$0xff]
    %v9689 = vld [vmem:[#allocation3 + $0xa84] sm:$0xff]
    %v9690 = vld [vmem:[#allocation3 + $0xad8] sm:$0xff]
    %v9691 = vld [vmem:[#allocation3 + $0xae0] sm:$0xff]
    %v9692 = vld [vmem:[#allocation3 + $0xae8] sm:$0xff]
    %v9693 = vld [vmem:[#allocation3 + $0xaf0] sm:$0xff]
    %v9694 = vld [vmem:[#allocation3 + $0xb44] sm:$0xff]
    %v9695 = vld [vmem:[#allocation3 + $0xb4c] sm:$0xff]
    %v9696 = vld [vmem:[#allocation3 + $0xb54] sm:$0xff]
    %v9697 = vld [vmem:[#allocation3 + $0xb5c] sm:$0xff]
    %v9698 = vld [vmem:[#allocation3 + $0xbb0] sm:$0xff]
    %v9699 = vld [vmem:[#allocation3 + $0xbb8] sm:$0xff]
    %v9700 = vld [vmem:[#allocation3 + $0xbc0] sm:$0xff]
    %v9701 = vld [vmem:[#allocation3 + $0xbc8] sm:$0xff]
    %v9702 = vld [vmem:[#allocation3 + $0xc1c] sm:$0xff]
    %v9703 = vld [vmem:[#allocation3 + $0xc24] sm:$0xff]
    %v9704 = vld [vmem:[#allocation3 + $0xc2c] sm:$0xff]
    %v9705 = vld [vmem:[#allocation3 + $0xc34] sm:$0xff]
    %v9706 = vld [vmem:[#allocation3 + $0xc88] sm:$0xff]
    %v9707 = vld [vmem:[#allocation3 + $0xc90] sm:$0xff]
    %v9708 = vld [vmem:[#allocation3 + $0xc98] sm:$0xff]
    %v9709 = vld [vmem:[#allocation3 + $0xca0] sm:$0xff]
    %v9710 = vld [vmem:[#allocation3 + $0xcf4] sm:$0xff]
    %v9711 = vld [vmem:[#allocation3 + $0xcfc] sm:$0xff]
    %v9712 = vld [vmem:[#allocation3 + $0xd04] sm:$0xff]
    %v9713 = vld [vmem:[#allocation3 + $0xd0c] sm:$0xff]
    %v9714 = vld [vmem:[#allocation3 + $0xd60] sm:$0xff]
    %v9715 = vld [vmem:[#allocation3 + $0xd68] sm:$0xff]
    %v9716 = vld [vmem:[#allocation3 + $0xd70] sm:$0xff]
    %v9717 = vld [vmem:[#allocation3 + $0xd78] sm:$0xff]
    %v9718 = vld [vmem:[#allocation3 + $0xdcc] sm:$0xff]
    %v9719 = vld [vmem:[#allocation3 + $0xdd4] sm:$0xff]
    %v9720 = vld [vmem:[#allocation3 + $0xddc] sm:$0xff]
    %v9721 = vld [vmem:[#allocation3 + $0xde4] sm:$0xff]
    %v9722 = vld [vmem:[#allocation3 + $0xe38] sm:$0xff]
    %v9723 = vld [vmem:[#allocation3 + $0xe40] sm:$0xff]
    %v9724 = vld [vmem:[#allocation3 + $0xe48] sm:$0xff]
    %v9725 = vld [vmem:[#allocation3 + $0xe50] sm:$0xff]
    %v9726 = vld [vmem:[#allocation3 + $0xea4] sm:$0xff]
    %v9727 = vld [vmem:[#allocation3 + $0xeac] sm:$0xff]
    %v9728 = vld [vmem:[#allocation3 + $0xeb4] sm:$0xff]
    %v9729 = vld [vmem:[#allocation3 + $0xebc] sm:$0xff]
    %v9730 = vld [vmem:[#allocation3 + $0xf10] sm:$0xff]
    %v9731 = vld [vmem:[#allocation3 + $0xf18] sm:$0xff]
    %v9732 = vld [vmem:[#allocation3 + $0xf20] sm:$0xff]
    %v9733 = vld [vmem:[#allocation3 + $0xf28] sm:$0xff]
    %v9734 = vld [vmem:[#allocation3 + $0xf7c] sm:$0xff]
    %v9735 = vld [vmem:[#allocation3 + $0xf84] sm:$0xff]
    %v9736 = vld [vmem:[#allocation3 + $0xf8c] sm:$0xff]
    %v9737 = vld [vmem:[#allocation3 + $0xf94] sm:$0xff]
    %v9738 = vld [vmem:[#allocation3 + $0xfe8] sm:$0xff]
    %v9739 = vld [vmem:[#allocation3 + $0xff0] sm:$0xff]
    %v9740 = vld [vmem:[#allocation3 + $0xff8] sm:$0xff]
    %v9741 = vld [vmem:[#allocation3 + $0x1000] sm:$0xff]
    %v9742 = vld [vmem:[#allocation3 + $0x1054] sm:$0xff]
    %v9743 = vld [vmem:[#allocation3 + $0x105c] sm:$0xff]
    %v9744 = vld [vmem:[#allocation3 + $0x1064] sm:$0xff]
    %v9745 = vld [vmem:[#allocation3 + $0x106c] sm:$0xff]
    %v9746 = vld [vmem:[#allocation3 + $0x10c0] sm:$0xff]
    %v9747 = vld [vmem:[#allocation3 + $0x10c8] sm:$0xff]
    %v9748 = vld [vmem:[#allocation3 + $0x10d0] sm:$0xff]
    %v9749 = vld [vmem:[#allocation3 + $0x10d8] sm:$0xff]
    %v9750 = vld [vmem:[#allocation3 + $0x112c] sm:$0xff]
    %v9751 = vld [vmem:[#allocation3 + $0x1134] sm:$0xff]
    %v9752 = vld [vmem:[#allocation3 + $0x113c] sm:$0xff]
    %v9753 = vld [vmem:[#allocation3 + $0x1144] sm:$0xff]
    %v9754 = vld [vmem:[#allocation3 + $0x1198] sm:$0xff]
    %v9755 = vld [vmem:[#allocation3 + $0x11a0] sm:$0xff]
    %v9756 = vld [vmem:[#allocation3 + $0x11a8] sm:$0xff]
    %v9757 = vld [vmem:[#allocation3 + $0x11b0] sm:$0xff]
    %v9758 = vld [vmem:[#allocation3 + $0x1204] sm:$0xff]
    %v9759 = vld [vmem:[#allocation3 + $0x120c] sm:$0xff]
    %v9760 = vld [vmem:[#allocation3 + $0x1214] sm:$0xff]
    %v9761 = vld [vmem:[#allocation3 + $0x121c] sm:$0xff]
    %v9762 = vld [vmem:[#allocation3 + $0x1270] sm:$0xff]
    %v9763 = vld [vmem:[#allocation3 + $0x1278] sm:$0xff]
    %v9764 = vld [vmem:[#allocation3 + $0x1280] sm:$0xff]
    %v9765 = vld [vmem:[#allocation3 + $0x1288] sm:$0xff]
    %v9766 = vld [vmem:[#allocation3 + $0x12dc] sm:$0xff]
    %v9767 = vld [vmem:[#allocation3 + $0x12e4] sm:$0xff]
    %v9768 = vld [vmem:[#allocation3 + $0x12ec] sm:$0xff]
    %v9769 = vld [vmem:[#allocation3 + $0x12f4] sm:$0xff]
    %v9770 = vld [vmem:[#allocation3 + $0x1348] sm:$0xff]
    %v9771 = vld [vmem:[#allocation3 + $0x1350] sm:$0xff]
    %v9772 = vld [vmem:[#allocation3 + $0x1358] sm:$0xff]
    %v9773 = vld [vmem:[#allocation3 + $0x1360] sm:$0xff]
    %v9774 = vld [vmem:[#allocation3 + $0x13b4] sm:$0xff]
    %v9775 = vld [vmem:[#allocation3 + $0x13bc] sm:$0xff]
    %v9776 = vld [vmem:[#allocation3 + $0x13c4] sm:$0xff]
    %v9777 = vld [vmem:[#allocation3 + $0x13cc] sm:$0xff]
    %v9778 = vld [vmem:[#allocation3 + $0x1420] sm:$0xff]
    %v9779 = vld [vmem:[#allocation3 + $0x1428] sm:$0xff]
    %v9780 = vld [vmem:[#allocation3 + $0x1430] sm:$0xff]
    %v9781 = vld [vmem:[#allocation3 + $0x1438] sm:$0xff]
    %v9782 = vld [vmem:[#allocation3 + $0x148c] sm:$0xff]
    %v9783 = vld [vmem:[#allocation3 + $0x1494] sm:$0xff]
    %v9784 = vld [vmem:[#allocation3 + $0x149c] sm:$0xff]
    %v9785 = vld [vmem:[#allocation3 + $0x14a4] sm:$0xff]
    %v9786 = vld [vmem:[#allocation3 + $0x14f8] sm:$0xff]
    %v9787 = vld [vmem:[#allocation3 + $0x1500] sm:$0xff]
    %v9788 = vld [vmem:[#allocation3 + $0x1508] sm:$0xff]
    %v9789 = vld [vmem:[#allocation3 + $0x1510] sm:$0xff]
    %v9790 = vld [vmem:[#allocation3 + $0x1564] sm:$0xff]
    %v9791 = vld [vmem:[#allocation3 + $0x156c] sm:$0xff]
    %v9792 = vld [vmem:[#allocation3 + $0x1574] sm:$0xff]
    %v9793 = vld [vmem:[#allocation3 + $0x157c] sm:$0xff]
    %v9794 = vld [vmem:[#allocation3 + $0x15d0] sm:$0xff]
    %v9795 = vld [vmem:[#allocation3 + $0x15d8] sm:$0xff]
    %v9796 = vld [vmem:[#allocation3 + $0x15e0] sm:$0xff]
    %v9797 = vld [vmem:[#allocation3 + $0x15e8] sm:$0xff]
    %v9798 = vld [vmem:[#allocation3 + $0x163c] sm:$0xff]
    %v9799 = vld [vmem:[#allocation3 + $0x1644] sm:$0xff]
    %v9800 = vld [vmem:[#allocation3 + $0x164c] sm:$0xff]
    %v9801 = vld [vmem:[#allocation3 + $0x1654] sm:$0xff]
    %v9802 = vld [vmem:[#allocation3 + $0x16a8] sm:$0xff]
    %v9803 = vld [vmem:[#allocation3 + $0x16b0] sm:$0xff]
    %v9804 = vld [vmem:[#allocation3 + $0x16b8] sm:$0xff]
    %v9805 = vld [vmem:[#allocation3 + $0x16c0] sm:$0xff]
    %v9806 = vld [vmem:[#allocation3 + $0x1714] sm:$0xff]
    %v9807 = vld [vmem:[#allocation3 + $0x171c] sm:$0xff]
    %v9808 = vld [vmem:[#allocation3 + $0x1724] sm:$0xff]
    %v9809 = vld [vmem:[#allocation3 + $0x172c] sm:$0xff]
    %v9810 = vld [vmem:[#allocation3 + $0x1780] sm:$0xff]
    %v9811 = vld [vmem:[#allocation3 + $0x1788] sm:$0xff]
    %v9812 = vld [vmem:[#allocation3 + $0x1790] sm:$0xff]
    %v9813 = vld [vmem:[#allocation3 + $0x1798] sm:$0xff]
    %v9814 = vld [vmem:[#allocation3 + $0x17ec] sm:$0xff]
    %v9815 = vld [vmem:[#allocation3 + $0x17f4] sm:$0xff]
    %v9816 = vld [vmem:[#allocation3 + $0x17fc] sm:$0xff]
    %v9817 = vld [vmem:[#allocation3 + $0x1804] sm:$0xff]
    %v9818 = vld [vmem:[#allocation3 + $0x1858] sm:$0xff]
    %v9819 = vld [vmem:[#allocation3 + $0x1860] sm:$0xff]
    %v9820 = vld [vmem:[#allocation3 + $0x1868] sm:$0xff]
    %v9821 = vld [vmem:[#allocation3 + $0x1870] sm:$0xff]
    %v9822 = vld [vmem:[#allocation3 + $0x18c4] sm:$0xff]
    %v9823 = vld [vmem:[#allocation3 + $0x18cc] sm:$0xff]
    %v9824 = vld [vmem:[#allocation3 + $0x18d4] sm:$0xff]
    %v9825 = vld [vmem:[#allocation3 + $0x18dc] sm:$0xff]
    %v9826 = vld [vmem:[#allocation3 + $0x1930] sm:$0xff]
    %v9827 = vld [vmem:[#allocation3 + $0x1938] sm:$0xff]
    %v9828 = vld [vmem:[#allocation3 + $0x1940] sm:$0xff]
    %v9829 = vld [vmem:[#allocation3 + $0x1948] sm:$0xff]
    %v9830 = vld [vmem:[#allocation3 + $0x199c] sm:$0xff]
    %v9831 = vld [vmem:[#allocation3 + $0x19a4] sm:$0xff]
    %v9832 = vld [vmem:[#allocation3 + $0x19ac] sm:$0xff]
    %v9833 = vld [vmem:[#allocation3 + $0x19b4] sm:$0xff]
    %v9834 = vld [vmem:[#allocation3 + $0x1a08] sm:$0xff]
    %v9835 = vld [vmem:[#allocation3 + $0x1a10] sm:$0xff]
    %v9836 = vld [vmem:[#allocation3 + $0x1a18] sm:$0xff]
    %v9837 = vld [vmem:[#allocation3 + $0x1a20] sm:$0xff]
    %v9838 = vld [vmem:[#allocation3 + $0x1a74] sm:$0xff]
    %v9839 = vld [vmem:[#allocation3 + $0x1a7c] sm:$0xff]
    %v9840 = vld [vmem:[#allocation3 + $0x1a84] sm:$0xff]
    %v9841 = vld [vmem:[#allocation3 + $0x1a8c] sm:$0xff]
    %v9842 = vld [vmem:[#allocation3 + $0x1ae0] sm:$0xff]
    %v9843 = vld [vmem:[#allocation3 + $0x1ae8] sm:$0xff]
    %v9844 = vld [vmem:[#allocation3 + $0x1af0] sm:$0xff]
    %v9845 = vld [vmem:[#allocation3 + $0x1af8] sm:$0xff]
    %s9846 = scalar_lea.vmem [#allocation6], 66
    %v9847 = vld [vmem:[%s9846] ss:$8 sm:$0xf]
    %v9848 = vld [vmem:[%s9846] ss:$8 sm:$0xf0]
    %v9849 = vor.u32 %v9847, %v9848
    %v9851 = vperm.slane %v9849, 0
    %v9852 = vperm.slane %v9849, 1
    %v9853 = vperm.slane %v9849, 2
    %v9854 = vperm.slane %v9849, 3
    %v9855 = vperm.slane %v9849, 4
    %v9856 = vperm.slane %v9849, 5
    %v9857 = vperm.slane %v9849, 6
    %v9858 = vperm.slane %v9849, 7
    %v10123 = vunpack.c.l.b16 %v9590
    %v10124 = vunpack.c.h.b16 %v9590
    %v10125 = vunpack.c.l.b16 %v9591
    %v10126 = vunpack.c.h.b16 %v9591
    %v10127 = vunpack.c.l.b16 %v9592
    %v10128 = vunpack.c.h.b16 %v9592
    %v10129 = vunpack.c.l.b16 %v9593
    %v10130 = vunpack.c.h.b16 %v9593
    %v10131 = vunpack.c.l.b16 %v9594
    %v10132 = vunpack.c.h.b16 %v9594
    %v10133 = vunpack.c.l.b16 %v9595
    %v10134 = vunpack.c.h.b16 %v9595
    %v10135 = vunpack.c.l.b16 %v9596
    %v10136 = vunpack.c.h.b16 %v9596
    %v10137 = vunpack.c.l.b16 %v9597
    %v10138 = vunpack.c.h.b16 %v9597
    %v10139 = vunpack.c.l.b16 %v9598
    %v10140 = vunpack.c.h.b16 %v9598
    %v10141 = vunpack.c.l.b16 %v9599
    %v10142 = vunpack.c.h.b16 %v9599
    %v10143 = vunpack.c.l.b16 %v9600
    %v10144 = vunpack.c.h.b16 %v9600
    %v10145 = vunpack.c.l.b16 %v9601
    %v10146 = vunpack.c.h.b16 %v9601
    %v10147 = vunpack.c.l.b16 %v9602
    %v10148 = vunpack.c.h.b16 %v9602
    %v10149 = vunpack.c.l.b16 %v9603
    %v10150 = vunpack.c.h.b16 %v9603
    %v10151 = vunpack.c.l.b16 %v9604
    %v10152 = vunpack.c.h.b16 %v9604
    %v10153 = vunpack.c.l.b16 %v9605
    %v10154 = vunpack.c.h.b16 %v9605
    %v10155 = vunpack.c.l.b16 %v9606
    %v10156 = vunpack.c.h.b16 %v9606
    %v10157 = vunpack.c.l.b16 %v9607
    %v10158 = vunpack.c.h.b16 %v9607
    %v10159 = vunpack.c.l.b16 %v9608
    %v10160 = vunpack.c.h.b16 %v9608
    %v10161 = vunpack.c.l.b16 %v9609
    %v10162 = vunpack.c.h.b16 %v9609
    %v10163 = vunpack.c.l.b16 %v9610
    %v10164 = vunpack.c.h.b16 %v9610
    %v10165 = vunpack.c.l.b16 %v9611
    %v10166 = vunpack.c.h.b16 %v9611
    %v10167 = vunpack.c.l.b16 %v9612
    %v10168 = vunpack.c.h.b16 %v9612
    %v10169 = vunpack.c.l.b16 %v9613
    %v10170 = vunpack.c.h.b16 %v9613
    %v10171 = vunpack.c.l.b16 %v9614
    %v10172 = vunpack.c.h.b16 %v9614
    %v10173 = vunpack.c.l.b16 %v9615
    %v10174 = vunpack.c.h.b16 %v9615
    %v10175 = vunpack.c.l.b16 %v9616
    %v10176 = vunpack.c.h.b16 %v9616
    %v10177 = vunpack.c.l.b16 %v9617
    %v10178 = vunpack.c.h.b16 %v9617
    %v10179 = vunpack.c.l.b16 %v9618
    %v10180 = vunpack.c.h.b16 %v9618
    %v10181 = vunpack.c.l.b16 %v9619
    %v10182 = vunpack.c.h.b16 %v9619
    %v10183 = vunpack.c.l.b16 %v9620
    %v10184 = vunpack.c.h.b16 %v9620
    %v10185 = vunpack.c.l.b16 %v9621
    %v10186 = vunpack.c.h.b16 %v9621
    %v10187 = vunpack.c.l.b16 %v9622
    %v10188 = vunpack.c.h.b16 %v9622
    %v10189 = vunpack.c.l.b16 %v9623
    %v10190 = vunpack.c.h.b16 %v9623
    %v10191 = vunpack.c.l.b16 %v9624
    %v10192 = vunpack.c.h.b16 %v9624
    %v10193 = vunpack.c.l.b16 %v9625
    %v10194 = vunpack.c.h.b16 %v9625
    %v10195 = vunpack.c.l.b16 %v9626
    %v10196 = vunpack.c.h.b16 %v9626
    %v10197 = vunpack.c.l.b16 %v9627
    %v10198 = vunpack.c.h.b16 %v9627
    %v10199 = vunpack.c.l.b16 %v9628
    %v10200 = vunpack.c.h.b16 %v9628
    %v10201 = vunpack.c.l.b16 %v9629
    %v10202 = vunpack.c.h.b16 %v9629
    %v10203 = vunpack.c.l.b16 %v9630
    %v10204 = vunpack.c.h.b16 %v9630
    %v10205 = vunpack.c.l.b16 %v9631
    %v10206 = vunpack.c.h.b16 %v9631
    %v10207 = vunpack.c.l.b16 %v9632
    %v10208 = vunpack.c.h.b16 %v9632
    %v10209 = vunpack.c.l.b16 %v9633
    %v10210 = vunpack.c.h.b16 %v9633
    %v10211 = vunpack.c.l.b16 %v9634
    %v10212 = vunpack.c.h.b16 %v9634
    %v10213 = vunpack.c.l.b16 %v9635
    %v10214 = vunpack.c.h.b16 %v9635
    %v10215 = vunpack.c.l.b16 %v9636
    %v10216 = vunpack.c.h.b16 %v9636
    %v10217 = vunpack.c.l.b16 %v9637
    %v10218 = vunpack.c.h.b16 %v9637
    %v10219 = vunpack.c.l.b16 %v9638
    %v10220 = vunpack.c.h.b16 %v9638
    %v10221 = vunpack.c.l.b16 %v9639
    %v10222 = vunpack.c.h.b16 %v9639
    %v10223 = vunpack.c.l.b16 %v9640
    %v10224 = vunpack.c.h.b16 %v9640
    %v10225 = vunpack.c.l.b16 %v9641
    %v10226 = vunpack.c.h.b16 %v9641
    %v10227 = vunpack.c.l.b16 %v9642
    %v10228 = vunpack.c.h.b16 %v9642
    %v10229 = vunpack.c.l.b16 %v9643
    %v10230 = vunpack.c.h.b16 %v9643
    %v10231 = vunpack.c.l.b16 %v9644
    %v10232 = vunpack.c.h.b16 %v9644
    %v10233 = vunpack.c.l.b16 %v9645
    %v10234 = vunpack.c.h.b16 %v9645
    %v10235 = vunpack.c.l.b16 %v9646
    %v10236 = vunpack.c.h.b16 %v9646
    %v10237 = vunpack.c.l.b16 %v9647
    %v10238 = vunpack.c.h.b16 %v9647
    %v10239 = vunpack.c.l.b16 %v9648
    %v10240 = vunpack.c.h.b16 %v9648
    %v10241 = vunpack.c.l.b16 %v9649
    %v10242 = vunpack.c.h.b16 %v9649
    %v10243 = vunpack.c.l.b16 %v9650
    %v10244 = vunpack.c.h.b16 %v9650
    %v10245 = vunpack.c.l.b16 %v9651
    %v10246 = vunpack.c.h.b16 %v9651
    %v10247 = vunpack.c.l.b16 %v9652
    %v10248 = vunpack.c.h.b16 %v9652
    %v10249 = vunpack.c.l.b16 %v9653
    %v10250 = vunpack.c.h.b16 %v9653
    %v10251 = vunpack.c.l.b16 %v9654
    %v10252 = vunpack.c.h.b16 %v9654
    %v10253 = vunpack.c.l.b16 %v9655
    %v10254 = vunpack.c.h.b16 %v9655
    %v10255 = vunpack.c.l.b16 %v9656
    %v10256 = vunpack.c.h.b16 %v9656
    %v10257 = vunpack.c.l.b16 %v9657
    %v10258 = vunpack.c.h.b16 %v9657
    %v10259 = vunpack.c.l.b16 %v9658
    %v10260 = vunpack.c.h.b16 %v9658
    %v10261 = vunpack.c.l.b16 %v9659
    %v10262 = vunpack.c.h.b16 %v9659
    %v10263 = vunpack.c.l.b16 %v9660
    %v10264 = vunpack.c.h.b16 %v9660
    %v10265 = vunpack.c.l.b16 %v9661
    %v10266 = vunpack.c.h.b16 %v9661
    %v10267 = vunpack.c.l.b16 %v9662
    %v10268 = vunpack.c.h.b16 %v9662
    %v10269 = vunpack.c.l.b16 %v9663
    %v10270 = vunpack.c.h.b16 %v9663
    %v10271 = vunpack.c.l.b16 %v9664
    %v10272 = vunpack.c.h.b16 %v9664
    %v10273 = vunpack.c.l.b16 %v9665
    %v10274 = vunpack.c.h.b16 %v9665
    %v10275 = vunpack.c.l.b16 %v9666
    %v10276 = vunpack.c.h.b16 %v9666
    %v10277 = vunpack.c.l.b16 %v9667
    %v10278 = vunpack.c.h.b16 %v9667
    %v10279 = vunpack.c.l.b16 %v9668
    %v10280 = vunpack.c.h.b16 %v9668
    %v10281 = vunpack.c.l.b16 %v9669
    %v10282 = vunpack.c.h.b16 %v9669
    %v10283 = vunpack.c.l.b16 %v9670
    %v10284 = vunpack.c.h.b16 %v9670
    %v10285 = vunpack.c.l.b16 %v9671
    %v10286 = vunpack.c.h.b16 %v9671
    %v10287 = vunpack.c.l.b16 %v9672
    %v10288 = vunpack.c.h.b16 %v9672
    %v10289 = vunpack.c.l.b16 %v9673
    %v10290 = vunpack.c.h.b16 %v9673
    %v10291 = vunpack.c.l.b16 %v9674
    %v10292 = vunpack.c.h.b16 %v9674
    %v10293 = vunpack.c.l.b16 %v9675
    %v10294 = vunpack.c.h.b16 %v9675
    %v10295 = vunpack.c.l.b16 %v9676
    %v10296 = vunpack.c.h.b16 %v9676
    %v10297 = vunpack.c.l.b16 %v9677
    %v10298 = vunpack.c.h.b16 %v9677
    %v10299 = vunpack.c.l.b16 %v9678
    %v10300 = vunpack.c.h.b16 %v9678
    %v10301 = vunpack.c.l.b16 %v9679
    %v10302 = vunpack.c.h.b16 %v9679
    %v10303 = vunpack.c.l.b16 %v9680
    %v10304 = vunpack.c.h.b16 %v9680
    %v10305 = vunpack.c.l.b16 %v9681
    %v10306 = vunpack.c.h.b16 %v9681
    %v10307 = vunpack.c.l.b16 %v9682
    %v10308 = vunpack.c.h.b16 %v9682
    %v10309 = vunpack.c.l.b16 %v9683
    %v10310 = vunpack.c.h.b16 %v9683
    %v10311 = vunpack.c.l.b16 %v9684
    %v10312 = vunpack.c.h.b16 %v9684
    %v10313 = vunpack.c.l.b16 %v9685
    %v10314 = vunpack.c.h.b16 %v9685
    %v10315 = vunpack.c.l.b16 %v9686
    %v10316 = vunpack.c.h.b16 %v9686
    %v10317 = vunpack.c.l.b16 %v9687
    %v10318 = vunpack.c.h.b16 %v9687
    %v10319 = vunpack.c.l.b16 %v9688
    %v10320 = vunpack.c.h.b16 %v9688
    %v10321 = vunpack.c.l.b16 %v9689
    %v10322 = vunpack.c.h.b16 %v9689
    %v10323 = vunpack.c.l.b16 %v9690
    %v10324 = vunpack.c.h.b16 %v9690
    %v10325 = vunpack.c.l.b16 %v9691
    %v10326 = vunpack.c.h.b16 %v9691
    %v10327 = vunpack.c.l.b16 %v9692
    %v10328 = vunpack.c.h.b16 %v9692
    %v10329 = vunpack.c.l.b16 %v9693
    %v10330 = vunpack.c.h.b16 %v9693
    %v10331 = vunpack.c.l.b16 %v9694
    %v10332 = vunpack.c.h.b16 %v9694
    %v10333 = vunpack.c.l.b16 %v9695
    %v10334 = vunpack.c.h.b16 %v9695
    %v10335 = vunpack.c.l.b16 %v9696
    %v10336 = vunpack.c.h.b16 %v9696
    %v10337 = vunpack.c.l.b16 %v9697
    %v10338 = vunpack.c.h.b16 %v9697
    %v10339 = vunpack.c.l.b16 %v9698
    %v10340 = vunpack.c.h.b16 %v9698
    %v10341 = vunpack.c.l.b16 %v9699
    %v10342 = vunpack.c.h.b16 %v9699
    %v10343 = vunpack.c.l.b16 %v9700
    %v10344 = vunpack.c.h.b16 %v9700
    %v10345 = vunpack.c.l.b16 %v9701
    %v10346 = vunpack.c.h.b16 %v9701
    %v10347 = vunpack.c.l.b16 %v9702
    %v10348 = vunpack.c.h.b16 %v9702
    %v10349 = vunpack.c.l.b16 %v9703
    %v10350 = vunpack.c.h.b16 %v9703
    %v10351 = vunpack.c.l.b16 %v9704
    %v10352 = vunpack.c.h.b16 %v9704
    %v10353 = vunpack.c.l.b16 %v9705
    %v10354 = vunpack.c.h.b16 %v9705
    %v10355 = vunpack.c.l.b16 %v9706
    %v10356 = vunpack.c.h.b16 %v9706
    %v10357 = vunpack.c.l.b16 %v9707
    %v10358 = vunpack.c.h.b16 %v9707
    %v10359 = vunpack.c.l.b16 %v9708
    %v10360 = vunpack.c.h.b16 %v9708
    %v10361 = vunpack.c.l.b16 %v9709
    %v10362 = vunpack.c.h.b16 %v9709
    %v10363 = vunpack.c.l.b16 %v9710
    %v10364 = vunpack.c.h.b16 %v9710
    %v10365 = vunpack.c.l.b16 %v9711
    %v10366 = vunpack.c.h.b16 %v9711
    %v10367 = vunpack.c.l.b16 %v9712
    %v10368 = vunpack.c.h.b16 %v9712
    %v10369 = vunpack.c.l.b16 %v9713
    %v10370 = vunpack.c.h.b16 %v9713
    %v10371 = vunpack.c.l.b16 %v9714
    %v10372 = vunpack.c.h.b16 %v9714
    %v10373 = vunpack.c.l.b16 %v9715
    %v10374 = vunpack.c.h.b16 %v9715
    %v10375 = vunpack.c.l.b16 %v9716
    %v10376 = vunpack.c.h.b16 %v9716
    %v10377 = vunpack.c.l.b16 %v9717
    %v10378 = vunpack.c.h.b16 %v9717
    %v10379 = vunpack.c.l.b16 %v9718
    %v10380 = vunpack.c.h.b16 %v9718
    %v10381 = vunpack.c.l.b16 %v9719
    %v10382 = vunpack.c.h.b16 %v9719
    %v10383 = vunpack.c.l.b16 %v9720
    %v10384 = vunpack.c.h.b16 %v9720
    %v10385 = vunpack.c.l.b16 %v9721
    %v10386 = vunpack.c.h.b16 %v9721
    %v10387 = vunpack.c.l.b16 %v9722
    %v10388 = vunpack.c.h.b16 %v9722
    %v10389 = vunpack.c.l.b16 %v9723
    %v10390 = vunpack.c.h.b16 %v9723
    %v10391 = vunpack.c.l.b16 %v9724
    %v10392 = vunpack.c.h.b16 %v9724
    %v10393 = vunpack.c.l.b16 %v9725
    %v10394 = vunpack.c.h.b16 %v9725
    %v10395 = vunpack.c.l.b16 %v9726
    %v10396 = vunpack.c.h.b16 %v9726
    %v10397 = vunpack.c.l.b16 %v9727
    %v10398 = vunpack.c.h.b16 %v9727
    %v10399 = vunpack.c.l.b16 %v9728
    %v10400 = vunpack.c.h.b16 %v9728
    %v10401 = vunpack.c.l.b16 %v9729
    %v10402 = vunpack.c.h.b16 %v9729
    %v10403 = vunpack.c.l.b16 %v9730
    %v10404 = vunpack.c.h.b16 %v9730
    %v10405 = vunpack.c.l.b16 %v9731
    %v10406 = vunpack.c.h.b16 %v9731
    %v10407 = vunpack.c.l.b16 %v9732
    %v10408 = vunpack.c.h.b16 %v9732
    %v10409 = vunpack.c.l.b16 %v9733
    %v10410 = vunpack.c.h.b16 %v9733
    %v10411 = vunpack.c.l.b16 %v9734
    %v10412 = vunpack.c.h.b16 %v9734
    %v10413 = vunpack.c.l.b16 %v9735
    %v10414 = vunpack.c.h.b16 %v9735
    %v10415 = vunpack.c.l.b16 %v9736
    %v10416 = vunpack.c.h.b16 %v9736
    %v10417 = vunpack.c.l.b16 %v9737
    %v10418 = vunpack.c.h.b16 %v9737
    %v10419 = vunpack.c.l.b16 %v9738
    %v10420 = vunpack.c.h.b16 %v9738
    %v10421 = vunpack.c.l.b16 %v9739
    %v10422 = vunpack.c.h.b16 %v9739
    %v10423 = vunpack.c.l.b16 %v9740
    %v10424 = vunpack.c.h.b16 %v9740
    %v10425 = vunpack.c.l.b16 %v9741
    %v10426 = vunpack.c.h.b16 %v9741
    %v10427 = vunpack.c.l.b16 %v9742
    %v10428 = vunpack.c.h.b16 %v9742
    %v10429 = vunpack.c.l.b16 %v9743
    %v10430 = vunpack.c.h.b16 %v9743
    %v10431 = vunpack.c.l.b16 %v9744
    %v10432 = vunpack.c.h.b16 %v9744
    %v10433 = vunpack.c.l.b16 %v9745
    %v10434 = vunpack.c.h.b16 %v9745
    %v10435 = vunpack.c.l.b16 %v9746
    %v10436 = vunpack.c.h.b16 %v9746
    %v10437 = vunpack.c.l.b16 %v9747
    %v10438 = vunpack.c.h.b16 %v9747
    %v10439 = vunpack.c.l.b16 %v9748
    %v10440 = vunpack.c.h.b16 %v9748
    %v10441 = vunpack.c.l.b16 %v9749
    %v10442 = vunpack.c.h.b16 %v9749
    %v10443 = vunpack.c.l.b16 %v9750
    %v10444 = vunpack.c.h.b16 %v9750
    %v10445 = vunpack.c.l.b16 %v9751
    %v10446 = vunpack.c.h.b16 %v9751
    %v10447 = vunpack.c.l.b16 %v9752
    %v10448 = vunpack.c.h.b16 %v9752
    %v10449 = vunpack.c.l.b16 %v9753
    %v10450 = vunpack.c.h.b16 %v9753
    %v10451 = vunpack.c.l.b16 %v9754
    %v10452 = vunpack.c.h.b16 %v9754
    %v10453 = vunpack.c.l.b16 %v9755
    %v10454 = vunpack.c.h.b16 %v9755
    %v10455 = vunpack.c.l.b16 %v9756
    %v10456 = vunpack.c.h.b16 %v9756
    %v10457 = vunpack.c.l.b16 %v9757
    %v10458 = vunpack.c.h.b16 %v9757
    %v10459 = vunpack.c.l.b16 %v9758
    %v10460 = vunpack.c.h.b16 %v9758
    %v10461 = vunpack.c.l.b16 %v9759
    %v10462 = vunpack.c.h.b16 %v9759
    %v10463 = vunpack.c.l.b16 %v9760
    %v10464 = vunpack.c.h.b16 %v9760
    %v10465 = vunpack.c.l.b16 %v9761
    %v10466 = vunpack.c.h.b16 %v9761
    %v10467 = vunpack.c.l.b16 %v9762
    %v10468 = vunpack.c.h.b16 %v9762
    %v10469 = vunpack.c.l.b16 %v9763
    %v10470 = vunpack.c.h.b16 %v9763
    %v10471 = vunpack.c.l.b16 %v9764
    %v10472 = vunpack.c.h.b16 %v9764
    %v10473 = vunpack.c.l.b16 %v9765
    %v10474 = vunpack.c.h.b16 %v9765
    %v10475 = vunpack.c.l.b16 %v9766
    %v10476 = vunpack.c.h.b16 %v9766
    %v10477 = vunpack.c.l.b16 %v9767
    %v10478 = vunpack.c.h.b16 %v9767
    %v10479 = vunpack.c.l.b16 %v9768
    %v10480 = vunpack.c.h.b16 %v9768
    %v10481 = vunpack.c.l.b16 %v9769
    %v10482 = vunpack.c.h.b16 %v9769
    %v10483 = vunpack.c.l.b16 %v9770
    %v10484 = vunpack.c.h.b16 %v9770
    %v10485 = vunpack.c.l.b16 %v9771
    %v10486 = vunpack.c.h.b16 %v9771
    %v10487 = vunpack.c.l.b16 %v9772
    %v10488 = vunpack.c.h.b16 %v9772
    %v10489 = vunpack.c.l.b16 %v9773
    %v10490 = vunpack.c.h.b16 %v9773
    %v10491 = vunpack.c.l.b16 %v9774
    %v10492 = vunpack.c.h.b16 %v9774
    %v10493 = vunpack.c.l.b16 %v9775
    %v10494 = vunpack.c.h.b16 %v9775
    %v10495 = vunpack.c.l.b16 %v9776
    %v10496 = vunpack.c.h.b16 %v9776
    %v10497 = vunpack.c.l.b16 %v9777
    %v10498 = vunpack.c.h.b16 %v9777
    %v10499 = vunpack.c.l.b16 %v9778
    %v10500 = vunpack.c.h.b16 %v9778
    %v10501 = vunpack.c.l.b16 %v9779
    %v10502 = vunpack.c.h.b16 %v9779
    %v10503 = vunpack.c.l.b16 %v9780
    %v10504 = vunpack.c.h.b16 %v9780
    %v10505 = vunpack.c.l.b16 %v9781
    %v10506 = vunpack.c.h.b16 %v9781
    %v10507 = vunpack.c.l.b16 %v9782
    %v10508 = vunpack.c.h.b16 %v9782
    %v10509 = vunpack.c.l.b16 %v9783
    %v10510 = vunpack.c.h.b16 %v9783
    %v10511 = vunpack.c.l.b16 %v9784
    %v10512 = vunpack.c.h.b16 %v9784
    %v10513 = vunpack.c.l.b16 %v9785
    %v10514 = vunpack.c.h.b16 %v9785
    %v10515 = vunpack.c.l.b16 %v9786
    %v10516 = vunpack.c.h.b16 %v9786
    %v10517 = vunpack.c.l.b16 %v9787
    %v10518 = vunpack.c.h.b16 %v9787
    %v10519 = vunpack.c.l.b16 %v9788
    %v10520 = vunpack.c.h.b16 %v9788
    %v10521 = vunpack.c.l.b16 %v9789
    %v10522 = vunpack.c.h.b16 %v9789
    %v10523 = vunpack.c.l.b16 %v9790
    %v10524 = vunpack.c.h.b16 %v9790
    %v10525 = vunpack.c.l.b16 %v9791
    %v10526 = vunpack.c.h.b16 %v9791
    %v10527 = vunpack.c.l.b16 %v9792
    %v10528 = vunpack.c.h.b16 %v9792
    %v10529 = vunpack.c.l.b16 %v9793
    %v10530 = vunpack.c.h.b16 %v9793
    %v10531 = vunpack.c.l.b16 %v9794
    %v10532 = vunpack.c.h.b16 %v9794
    %v10533 = vunpack.c.l.b16 %v9795
    %v10534 = vunpack.c.h.b16 %v9795
    %v10535 = vunpack.c.l.b16 %v9796
    %v10536 = vunpack.c.h.b16 %v9796
    %v10537 = vunpack.c.l.b16 %v9797
    %v10538 = vunpack.c.h.b16 %v9797
    %v10539 = vunpack.c.l.b16 %v9798
    %v10540 = vunpack.c.h.b16 %v9798
    %v10541 = vunpack.c.l.b16 %v9799
    %v10542 = vunpack.c.h.b16 %v9799
    %v10543 = vunpack.c.l.b16 %v9800
    %v10544 = vunpack.c.h.b16 %v9800
    %v10545 = vunpack.c.l.b16 %v9801
    %v10546 = vunpack.c.h.b16 %v9801
    %v10547 = vunpack.c.l.b16 %v9802
    %v10548 = vunpack.c.h.b16 %v9802
    %v10549 = vunpack.c.l.b16 %v9803
    %v10550 = vunpack.c.h.b16 %v9803
    %v10551 = vunpack.c.l.b16 %v9804
    %v10552 = vunpack.c.h.b16 %v9804
    %v10553 = vunpack.c.l.b16 %v9805
    %v10554 = vunpack.c.h.b16 %v9805
    %v10555 = vunpack.c.l.b16 %v9806
    %v10556 = vunpack.c.h.b16 %v9806
    %v10557 = vunpack.c.l.b16 %v9807
    %v10558 = vunpack.c.h.b16 %v9807
    %v10559 = vunpack.c.l.b16 %v9808
    %v10560 = vunpack.c.h.b16 %v9808
    %v10561 = vunpack.c.l.b16 %v9809
    %v10562 = vunpack.c.h.b16 %v9809
    %v10563 = vunpack.c.l.b16 %v9810
    %v10564 = vunpack.c.h.b16 %v9810
    %v10565 = vunpack.c.l.b16 %v9811
    %v10566 = vunpack.c.h.b16 %v9811
    %v10567 = vunpack.c.l.b16 %v9812
    %v10568 = vunpack.c.h.b16 %v9812
    %v10569 = vunpack.c.l.b16 %v9813
    %v10570 = vunpack.c.h.b16 %v9813
    %v10571 = vunpack.c.l.b16 %v9814
    %v10572 = vunpack.c.h.b16 %v9814
    %v10573 = vunpack.c.l.b16 %v9815
    %v10574 = vunpack.c.h.b16 %v9815
    %v10575 = vunpack.c.l.b16 %v9816
    %v10576 = vunpack.c.h.b16 %v9816
    %v10577 = vunpack.c.l.b16 %v9817
    %v10578 = vunpack.c.h.b16 %v9817
    %v10579 = vunpack.c.l.b16 %v9818
    %v10580 = vunpack.c.h.b16 %v9818
    %v10581 = vunpack.c.l.b16 %v9819
    %v10582 = vunpack.c.h.b16 %v9819
    %v10583 = vunpack.c.l.b16 %v9820
    %v10584 = vunpack.c.h.b16 %v9820
    %v10585 = vunpack.c.l.b16 %v9821
    %v10586 = vunpack.c.h.b16 %v9821
    %v10587 = vunpack.c.l.b16 %v9822
    %v10588 = vunpack.c.h.b16 %v9822
    %v10589 = vunpack.c.l.b16 %v9823
    %v10590 = vunpack.c.h.b16 %v9823
    %v10591 = vunpack.c.l.b16 %v9824
    %v10592 = vunpack.c.h.b16 %v9824
    %v10593 = vunpack.c.l.b16 %v9825
    %v10594 = vunpack.c.h.b16 %v9825
    %v10595 = vunpack.c.l.b16 %v9826
    %v10596 = vunpack.c.h.b16 %v9826
    %v10597 = vunpack.c.l.b16 %v9827
    %v10598 = vunpack.c.h.b16 %v9827
    %v10599 = vunpack.c.l.b16 %v9828
    %v10600 = vunpack.c.h.b16 %v9828
    %v10601 = vunpack.c.l.b16 %v9829
    %v10602 = vunpack.c.h.b16 %v9829
    %v10603 = vunpack.c.l.b16 %v9830
    %v10604 = vunpack.c.h.b16 %v9830
    %v10605 = vunpack.c.l.b16 %v9831
    %v10606 = vunpack.c.h.b16 %v9831
    %v10607 = vunpack.c.l.b16 %v9832
    %v10608 = vunpack.c.h.b16 %v9832
    %v10609 = vunpack.c.l.b16 %v9833
    %v10610 = vunpack.c.h.b16 %v9833
    %v10611 = vunpack.c.l.b16 %v9834
    %v10612 = vunpack.c.h.b16 %v9834
    %v10613 = vunpack.c.l.b16 %v9835
    %v10614 = vunpack.c.h.b16 %v9835
    %v10615 = vunpack.c.l.b16 %v9836
    %v10616 = vunpack.c.h.b16 %v9836
    %v10617 = vunpack.c.l.b16 %v9837
    %v10618 = vunpack.c.h.b16 %v9837
    %v10619 = vunpack.c.l.b16 %v9838
    %v10620 = vunpack.c.h.b16 %v9838
    %v10621 = vunpack.c.l.b16 %v9839
    %v10622 = vunpack.c.h.b16 %v9839
    %v10623 = vunpack.c.l.b16 %v9840
    %v10624 = vunpack.c.h.b16 %v9840
    %v10625 = vunpack.c.l.b16 %v9841
    %v10626 = vunpack.c.h.b16 %v9841
    %v10627 = vunpack.c.l.b16 %v9842
    %v10628 = vunpack.c.h.b16 %v9842
    %v10629 = vunpack.c.l.b16 %v9843
    %v10630 = vunpack.c.h.b16 %v9843
    %v10631 = vunpack.c.l.b16 %v9844
    %v10632 = vunpack.c.h.b16 %v9844
    %v10633 = vunpack.c.l.b16 %v9845
    %v10634 = vunpack.c.h.b16 %v9845
    %v10635 = vpack.c.b16 %v10131, %v10123
    %v10636 = vpack.c.b16 %v10132, %v10124
    %v10637 = vpack.c.b16 %v10133, %v10125
    %v10638 = vpack.c.b16 %v10134, %v10126
    %v10639 = vpack.c.b16 %v10135, %v10127
    %v10640 = vpack.c.b16 %v10136, %v10128
    %v10641 = vpack.c.b16 %v10137, %v10129
    %v10642 = vpack.c.b16 %v10138, %v10130
    %v10643 = vpack.c.b16 %v10147, %v10139
    %v10644 = vpack.c.b16 %v10148, %v10140
    %v10645 = vpack.c.b16 %v10149, %v10141
    %v10646 = vpack.c.b16 %v10150, %v10142
    %v10647 = vpack.c.b16 %v10151, %v10143
    %v10648 = vpack.c.b16 %v10152, %v10144
    %v10649 = vpack.c.b16 %v10153, %v10145
    %v10650 = vpack.c.b16 %v10154, %v10146
    %v10651 = vpack.c.b16 %v10163, %v10155
    %v10652 = vpack.c.b16 %v10164, %v10156
    %v10653 = vpack.c.b16 %v10165, %v10157
    %v10654 = vpack.c.b16 %v10166, %v10158
    %v10655 = vpack.c.b16 %v10167, %v10159
    %v10656 = vpack.c.b16 %v10168, %v10160
    %v10657 = vpack.c.b16 %v10169, %v10161
    %v10658 = vpack.c.b16 %v10170, %v10162
    %v10659 = vpack.c.b16 %v10179, %v10171
    %v10660 = vpack.c.b16 %v10180, %v10172
    %v10661 = vpack.c.b16 %v10181, %v10173
    %v10662 = vpack.c.b16 %v10182, %v10174
    %v10663 = vpack.c.b16 %v10183, %v10175
    %v10664 = vpack.c.b16 %v10184, %v10176
    %v10665 = vpack.c.b16 %v10185, %v10177
    %v10666 = vpack.c.b16 %v10186, %v10178
    %v10667 = vpack.c.b16 %v10195, %v10187
    %v10668 = vpack.c.b16 %v10196, %v10188
    %v10669 = vpack.c.b16 %v10197, %v10189
    %v10670 = vpack.c.b16 %v10198, %v10190
    %v10671 = vpack.c.b16 %v10199, %v10191
    %v10672 = vpack.c.b16 %v10200, %v10192
    %v10673 = vpack.c.b16 %v10201, %v10193
    %v10674 = vpack.c.b16 %v10202, %v10194
    %v10675 = vpack.c.b16 %v10211, %v10203
    %v10676 = vpack.c.b16 %v10212, %v10204
    %v10677 = vpack.c.b16 %v10213, %v10205
    %v10678 = vpack.c.b16 %v10214, %v10206
    %v10679 = vpack.c.b16 %v10215, %v10207
    %v10680 = vpack.c.b16 %v10216, %v10208
    %v10681 = vpack.c.b16 %v10217, %v10209
    %v10682 = vpack.c.b16 %v10218, %v10210
    %v10683 = vpack.c.b16 %v10227, %v10219
    %v10684 = vpack.c.b16 %v10228, %v10220
    %v10685 = vpack.c.b16 %v10229, %v10221
    %v10686 = vpack.c.b16 %v10230, %v10222
    %v10687 = vpack.c.b16 %v10231, %v10223
    %v10688 = vpack.c.b16 %v10232, %v10224
    %v10689 = vpack.c.b16 %v10233, %v10225
    %v10690 = vpack.c.b16 %v10234, %v10226
    %v10691 = vpack.c.b16 %v10243, %v10235
    %v10692 = vpack.c.b16 %v10244, %v10236
    %v10693 = vpack.c.b16 %v10245, %v10237
    %v10694 = vpack.c.b16 %v10246, %v10238
    %v10695 = vpack.c.b16 %v10247, %v10239
    %v10696 = vpack.c.b16 %v10248, %v10240
    %v10697 = vpack.c.b16 %v10249, %v10241
    %v10698 = vpack.c.b16 %v10250, %v10242
    %v10699 = vpack.c.b16 %v10259, %v10251
    %v10700 = vpack.c.b16 %v10260, %v10252
    %v10701 = vpack.c.b16 %v10261, %v10253
    %v10702 = vpack.c.b16 %v10262, %v10254
    %v10703 = vpack.c.b16 %v10263, %v10255
    %v10704 = vpack.c.b16 %v10264, %v10256
    %v10705 = vpack.c.b16 %v10265, %v10257
    %v10706 = vpack.c.b16 %v10266, %v10258
    %v10707 = vpack.c.b16 %v10275, %v10267
    %v10708 = vpack.c.b16 %v10276, %v10268
    %v10709 = vpack.c.b16 %v10277, %v10269
    %v10710 = vpack.c.b16 %v10278, %v10270
    %v10711 = vpack.c.b16 %v10279, %v10271
    %v10712 = vpack.c.b16 %v10280, %v10272
    %v10713 = vpack.c.b16 %v10281, %v10273
    %v10714 = vpack.c.b16 %v10282, %v10274
    %v10715 = vpack.c.b16 %v10291, %v10283
    %v10716 = vpack.c.b16 %v10292, %v10284
    %v10717 = vpack.c.b16 %v10293, %v10285
    %v10718 = vpack.c.b16 %v10294, %v10286
    %v10719 = vpack.c.b16 %v10295, %v10287
    %v10720 = vpack.c.b16 %v10296, %v10288
    %v10721 = vpack.c.b16 %v10297, %v10289
    %v10722 = vpack.c.b16 %v10298, %v10290
    %v10723 = vpack.c.b16 %v10307, %v10299
    %v10724 = vpack.c.b16 %v10308, %v10300
    %v10725 = vpack.c.b16 %v10309, %v10301
    %v10726 = vpack.c.b16 %v10310, %v10302
    %v10727 = vpack.c.b16 %v10311, %v10303
    %v10728 = vpack.c.b16 %v10312, %v10304
    %v10729 = vpack.c.b16 %v10313, %v10305
    %v10730 = vpack.c.b16 %v10314, %v10306
    %v10731 = vpack.c.b16 %v10323, %v10315
    %v10732 = vpack.c.b16 %v10324, %v10316
    %v10733 = vpack.c.b16 %v10325, %v10317
    %v10734 = vpack.c.b16 %v10326, %v10318
    %v10735 = vpack.c.b16 %v10327, %v10319
    %v10736 = vpack.c.b16 %v10328, %v10320
    %v10737 = vpack.c.b16 %v10329, %v10321
    %v10738 = vpack.c.b16 %v10330, %v10322
    %v10739 = vpack.c.b16 %v10339, %v10331
    %v10740 = vpack.c.b16 %v10340, %v10332
    %v10741 = vpack.c.b16 %v10341, %v10333
    %v10742 = vpack.c.b16 %v10342, %v10334
    %v10743 = vpack.c.b16 %v10343, %v10335
    %v10744 = vpack.c.b16 %v10344, %v10336
    %v10745 = vpack.c.b16 %v10345, %v10337
    %v10746 = vpack.c.b16 %v10346, %v10338
    %v10747 = vpack.c.b16 %v10355, %v10347
    %v10748 = vpack.c.b16 %v10356, %v10348
    %v10749 = vpack.c.b16 %v10357, %v10349
    %v10750 = vpack.c.b16 %v10358, %v10350
    %v10751 = vpack.c.b16 %v10359, %v10351
    %v10752 = vpack.c.b16 %v10360, %v10352
    %v10753 = vpack.c.b16 %v10361, %v10353
    %v10754 = vpack.c.b16 %v10362, %v10354
    %v10755 = vpack.c.b16 %v10371, %v10363
    %v10756 = vpack.c.b16 %v10372, %v10364
    %v10757 = vpack.c.b16 %v10373, %v10365
    %v10758 = vpack.c.b16 %v10374, %v10366
    %v10759 = vpack.c.b16 %v10375, %v10367
    %v10760 = vpack.c.b16 %v10376, %v10368
    %v10761 = vpack.c.b16 %v10377, %v10369
    %v10762 = vpack.c.b16 %v10378, %v10370
    %v10763 = vpack.c.b16 %v10387, %v10379
    %v10764 = vpack.c.b16 %v10388, %v10380
    %v10765 = vpack.c.b16 %v10389, %v10381
    %v10766 = vpack.c.b16 %v10390, %v10382
    %v10767 = vpack.c.b16 %v10391, %v10383
    %v10768 = vpack.c.b16 %v10392, %v10384
    %v10769 = vpack.c.b16 %v10393, %v10385
    %v10770 = vpack.c.b16 %v10394, %v10386
    %v10771 = vpack.c.b16 %v10403, %v10395
    %v10772 = vpack.c.b16 %v10404, %v10396
    %v10773 = vpack.c.b16 %v10405, %v10397
    %v10774 = vpack.c.b16 %v10406, %v10398
    %v10775 = vpack.c.b16 %v10407, %v10399
    %v10776 = vpack.c.b16 %v10408, %v10400
    %v10777 = vpack.c.b16 %v10409, %v10401
    %v10778 = vpack.c.b16 %v10410, %v10402
    %v10779 = vpack.c.b16 %v10419, %v10411
    %v10780 = vpack.c.b16 %v10420, %v10412
    %v10781 = vpack.c.b16 %v10421, %v10413
    %v10782 = vpack.c.b16 %v10422, %v10414
    %v10783 = vpack.c.b16 %v10423, %v10415
    %v10784 = vpack.c.b16 %v10424, %v10416
    %v10785 = vpack.c.b16 %v10425, %v10417
    %v10786 = vpack.c.b16 %v10426, %v10418
    %v10787 = vpack.c.b16 %v10435, %v10427
    %v10788 = vpack.c.b16 %v10436, %v10428
    %v10789 = vpack.c.b16 %v10437, %v10429
    %v10790 = vpack.c.b16 %v10438, %v10430
    %v10791 = vpack.c.b16 %v10439, %v10431
    %v10792 = vpack.c.b16 %v10440, %v10432
    %v10793 = vpack.c.b16 %v10441, %v10433
    %v10794 = vpack.c.b16 %v10442, %v10434
    %v10795 = vpack.c.b16 %v10451, %v10443
    %v10796 = vpack.c.b16 %v10452, %v10444
    %v10797 = vpack.c.b16 %v10453, %v10445
    %v10798 = vpack.c.b16 %v10454, %v10446
    %v10799 = vpack.c.b16 %v10455, %v10447
    %v10800 = vpack.c.b16 %v10456, %v10448
    %v10801 = vpack.c.b16 %v10457, %v10449
    %v10802 = vpack.c.b16 %v10458, %v10450
    %v10803 = vpack.c.b16 %v10467, %v10459
    %v10804 = vpack.c.b16 %v10468, %v10460
    %v10805 = vpack.c.b16 %v10469, %v10461
    %v10806 = vpack.c.b16 %v10470, %v10462
    %v10807 = vpack.c.b16 %v10471, %v10463
    %v10808 = vpack.c.b16 %v10472, %v10464
    %v10809 = vpack.c.b16 %v10473, %v10465
    %v10810 = vpack.c.b16 %v10474, %v10466
    %v10811 = vpack.c.b16 %v10483, %v10475
    %v10812 = vpack.c.b16 %v10484, %v10476
    %v10813 = vpack.c.b16 %v10485, %v10477
    %v10814 = vpack.c.b16 %v10486, %v10478
    %v10815 = vpack.c.b16 %v10487, %v10479
    %v10816 = vpack.c.b16 %v10488, %v10480
    %v10817 = vpack.c.b16 %v10489, %v10481
    %v10818 = vpack.c.b16 %v10490, %v10482
    %v10819 = vpack.c.b16 %v10499, %v10491
    %v10820 = vpack.c.b16 %v10500, %v10492
    %v10821 = vpack.c.b16 %v10501, %v10493
    %v10822 = vpack.c.b16 %v10502, %v10494
    %v10823 = vpack.c.b16 %v10503, %v10495
    %v10824 = vpack.c.b16 %v10504, %v10496
    %v10825 = vpack.c.b16 %v10505, %v10497
    %v10826 = vpack.c.b16 %v10506, %v10498
    %v10827 = vpack.c.b16 %v10515, %v10507
    %v10828 = vpack.c.b16 %v10516, %v10508
    %v10829 = vpack.c.b16 %v10517, %v10509
    %v10830 = vpack.c.b16 %v10518, %v10510
    %v10831 = vpack.c.b16 %v10519, %v10511
    %v10832 = vpack.c.b16 %v10520, %v10512
    %v10833 = vpack.c.b16 %v10521, %v10513
    %v10834 = vpack.c.b16 %v10522, %v10514
    %v10835 = vpack.c.b16 %v10531, %v10523
    %v10836 = vpack.c.b16 %v10532, %v10524
    %v10837 = vpack.c.b16 %v10533, %v10525
    %v10838 = vpack.c.b16 %v10534, %v10526
    %v10839 = vpack.c.b16 %v10535, %v10527
    %v10840 = vpack.c.b16 %v10536, %v10528
    %v10841 = vpack.c.b16 %v10537, %v10529
    %v10842 = vpack.c.b16 %v10538, %v10530
    %v10843 = vpack.c.b16 %v10547, %v10539
    %v10844 = vpack.c.b16 %v10548, %v10540
    %v10845 = vpack.c.b16 %v10549, %v10541
    %v10846 = vpack.c.b16 %v10550, %v10542
    %v10847 = vpack.c.b16 %v10551, %v10543
    %v10848 = vpack.c.b16 %v10552, %v10544
    %v10849 = vpack.c.b16 %v10553, %v10545
    %v10850 = vpack.c.b16 %v10554, %v10546
    %v10851 = vpack.c.b16 %v10563, %v10555
    %v10852 = vpack.c.b16 %v10564, %v10556
    %v10853 = vpack.c.b16 %v10565, %v10557
    %v10854 = vpack.c.b16 %v10566, %v10558
    %v10855 = vpack.c.b16 %v10567, %v10559
    %v10856 = vpack.c.b16 %v10568, %v10560
    %v10857 = vpack.c.b16 %v10569, %v10561
    %v10858 = vpack.c.b16 %v10570, %v10562
    %v10859 = vpack.c.b16 %v10579, %v10571
    %v10860 = vpack.c.b16 %v10580, %v10572
    %v10861 = vpack.c.b16 %v10581, %v10573
    %v10862 = vpack.c.b16 %v10582, %v10574
    %v10863 = vpack.c.b16 %v10583, %v10575
    %v10864 = vpack.c.b16 %v10584, %v10576
    %v10865 = vpack.c.b16 %v10585, %v10577
    %v10866 = vpack.c.b16 %v10586, %v10578
    %v10867 = vpack.c.b16 %v10595, %v10587
    %v10868 = vpack.c.b16 %v10596, %v10588
    %v10869 = vpack.c.b16 %v10597, %v10589
    %v10870 = vpack.c.b16 %v10598, %v10590
    %v10871 = vpack.c.b16 %v10599, %v10591
    %v10872 = vpack.c.b16 %v10600, %v10592
    %v10873 = vpack.c.b16 %v10601, %v10593
    %v10874 = vpack.c.b16 %v10602, %v10594
    %v10875 = vpack.c.b16 %v10611, %v10603
    %v10876 = vpack.c.b16 %v10612, %v10604
    %v10877 = vpack.c.b16 %v10613, %v10605
    %v10878 = vpack.c.b16 %v10614, %v10606
    %v10879 = vpack.c.b16 %v10615, %v10607
    %v10880 = vpack.c.b16 %v10616, %v10608
    %v10881 = vpack.c.b16 %v10617, %v10609
    %v10882 = vpack.c.b16 %v10618, %v10610
    %v10883 = vpack.c.b16 %v10627, %v10619
    %v10884 = vpack.c.b16 %v10628, %v10620
    %v10885 = vpack.c.b16 %v10629, %v10621
    %v10886 = vpack.c.b16 %v10630, %v10622
    %v10887 = vpack.c.b16 %v10631, %v10623
    %v10888 = vpack.c.b16 %v10632, %v10624
    %v10889 = vpack.c.b16 %v10633, %v10625
    %v10890 = vpack.c.b16 %v10634, %v10626
    %11147 = vmatpush.bf16.msra.mxu0 %v10691
    %11148 = vmatpush.bf16.msra.mxu0 %v10683
    %11149 = vmatpush.bf16.msra.mxu0 %v10675
    %11150 = vmatpush.bf16.msra.mxu0 %v10667
    %11151 = vmatpush.bf16.msra.mxu0 %v10659
    %11152 = vmatpush.bf16.msra.mxu0 %v10651
    %11153 = vmatpush.bf16.msra.mxu0 %v10643
    %11154 = vmatpush.bf16.msra.mxu0 %v10635
    %11155 = vmatmul.bf16.gmra.mxu0 %v9586
    %v11156 = vpop.f32.mrf.mxu0
    %v11157 = vadd.f32 %v9851, %v11156
    %v11158 = vpop.f32.mrf.mxu0
    %v11159 = vadd.f32 %v9851, %v11158
    %11160 = vdwg.mxu0
    %11161 = vmatpush.bf16.msra.mxu0 %v10755
    %11162 = vmatpush.bf16.msra.mxu0 %v10747
    %11163 = vmatpush.bf16.msra.mxu0 %v10739
    %11164 = vmatpush.bf16.msra.mxu0 %v10731
    %11165 = vmatpush.bf16.msra.mxu0 %v10723
    %11166 = vmatpush.bf16.msra.mxu0 %v10715
    %11167 = vmatpush.bf16.msra.mxu0 %v10707
    %11168 = vmatpush.bf16.msra.mxu0 %v10699
    %11169 = vmatmul.bf16.gmra.mxu0 %v9587
    %v11170 = vpop.f32.mrf.mxu0
    %v11171 = vadd.f32 %v11157, %v11170
    %v11172 = vpop.f32.mrf.mxu0
    %v11173 = vadd.f32 %v11159, %v11172
    %11174 = vdwg.mxu0
    %11175 = vmatpush.bf16.msra.mxu0 %v10819
    %11176 = vmatpush.bf16.msra.mxu0 %v10811
    %11177 = vmatpush.bf16.msra.mxu0 %v10803
    %11178 = vmatpush.bf16.msra.mxu0 %v10795
    %11179 = vmatpush.bf16.msra.mxu0 %v10787
    %11180 = vmatpush.bf16.msra.mxu0 %v10779
    %11181 = vmatpush.bf16.msra.mxu0 %v10771
    %11182 = vmatpush.bf16.msra.mxu0 %v10763
    %11183 = vmatmul.bf16.gmra.mxu0 %v9588
    %v11184 = vpop.f32.mrf.mxu0
    %v11185 = vadd.f32 %v11171, %v11184
    %v11186 = vpop.f32.mrf.mxu0
    %v11187 = vadd.f32 %v11173, %v11186
    %11188 = vdwg.mxu0
    %11189 = vmatpush.bf16.msra.mxu0 %v10883
    %11190 = vmatpush.bf16.msra.mxu0 %v10875
    %11191 = vmatpush.bf16.msra.mxu0 %v10867
    %11192 = vmatpush.bf16.msra.mxu0 %v10859
    %11193 = vmatpush.bf16.msra.mxu0 %v10851
    %11194 = vmatpush.bf16.msra.mxu0 %v10843
    %11195 = vmatpush.bf16.msra.mxu0 %v10835
    %11196 = vmatpush.bf16.msra.mxu0 %v10827
    %11197 = vmatmul.bf16.gmra.mxu0 %v9589
    %v11198 = vpop.f32.mrf.mxu0
    %v11199 = vadd.f32 %v11185, %v11198
    %v11200 = vpop.f32.mrf.mxu0
    %v11201 = vadd.f32 %v11187, %v11200
    %11202 = vdwg.mxu0
    %11203 = vmatpush.bf16.msra.mxu0 %v10692
    %11204 = vmatpush.bf16.msra.mxu0 %v10684
    %11205 = vmatpush.bf16.msra.mxu0 %v10676
    %11206 = vmatpush.bf16.msra.mxu0 %v10668
    %11207 = vmatpush.bf16.msra.mxu0 %v10660
    %11208 = vmatpush.bf16.msra.mxu0 %v10652
    %11209 = vmatpush.bf16.msra.mxu0 %v10644
    %11210 = vmatpush.bf16.msra.mxu0 %v10636
    %11211 = vmatmul.bf16.gmra.mxu0 %v9586
    %v11212 = vpop.f32.mrf.mxu0
    %v11213 = vadd.f32 %v9852, %v11212
    %v11214 = vpop.f32.mrf.mxu0
    %v11215 = vadd.f32 %v9852, %v11214
    %11216 = vdwg.mxu0
    %11217 = vmatpush.bf16.msra.mxu0 %v10756
    %11218 = vmatpush.bf16.msra.mxu0 %v10748
    %11219 = vmatpush.bf16.msra.mxu0 %v10740
    %11220 = vmatpush.bf16.msra.mxu0 %v10732
    %11221 = vmatpush.bf16.msra.mxu0 %v10724
    %11222 = vmatpush.bf16.msra.mxu0 %v10716
    %11223 = vmatpush.bf16.msra.mxu0 %v10708
    %11224 = vmatpush.bf16.msra.mxu0 %v10700
    %11225 = vmatmul.bf16.gmra.mxu0 %v9587
    %v11226 = vpop.f32.mrf.mxu0
    %v11227 = vadd.f32 %v11213, %v11226
    %v11228 = vpop.f32.mrf.mxu0
    %v11229 = vadd.f32 %v11215, %v11228
    %11230 = vdwg.mxu0
    %11231 = vmatpush.bf16.msra.mxu0 %v10820
    %11232 = vmatpush.bf16.msra.mxu0 %v10812
    %11233 = vmatpush.bf16.msra.mxu0 %v10804
    %11234 = vmatpush.bf16.msra.mxu0 %v10796
    %11235 = vmatpush.bf16.msra.mxu0 %v10788
    %11236 = vmatpush.bf16.msra.mxu0 %v10780
    %11237 = vmatpush.bf16.msra.mxu0 %v10772
    %11238 = vmatpush.bf16.msra.mxu0 %v10764
    %11239 = vmatmul.bf16.gmra.mxu0 %v9588
    %v11240 = vpop.f32.mrf.mxu0
    %v11241 = vadd.f32 %v11227, %v11240
    %v11242 = vpop.f32.mrf.mxu0
    %v11243 = vadd.f32 %v11229, %v11242
    %11244 = vdwg.mxu0
    %11245 = vmatpush.bf16.msra.mxu0 %v10884
    %11246 = vmatpush.bf16.msra.mxu0 %v10876
    %11247 = vmatpush.bf16.msra.mxu0 %v10868
    %11248 = vmatpush.bf16.msra.mxu0 %v10860
    %11249 = vmatpush.bf16.msra.mxu0 %v10852
    %11250 = vmatpush.bf16.msra.mxu0 %v10844
    %11251 = vmatpush.bf16.msra.mxu0 %v10836
    %11252 = vmatpush.bf16.msra.mxu0 %v10828
    %11253 = vmatmul.bf16.gmra.mxu0 %v9589
    %v11254 = vpop.f32.mrf.mxu0
    %v11255 = vadd.f32 %v11241, %v11254
    %v11256 = vpop.f32.mrf.mxu0
    %v11257 = vadd.f32 %v11243, %v11256
    %11258 = vdwg.mxu0
    %11259 = vmatpush.bf16.msra.mxu0 %v10693
    %11260 = vmatpush.bf16.msra.mxu0 %v10685
    %11261 = vmatpush.bf16.msra.mxu0 %v10677
    %11262 = vmatpush.bf16.msra.mxu0 %v10669
    %11263 = vmatpush.bf16.msra.mxu0 %v10661
    %11264 = vmatpush.bf16.msra.mxu0 %v10653
    %11265 = vmatpush.bf16.msra.mxu0 %v10645
    %11266 = vmatpush.bf16.msra.mxu0 %v10637
    %11267 = vmatmul.bf16.gmra.mxu0 %v9586
    %v11268 = vpop.f32.mrf.mxu0
    %v11269 = vadd.f32 %v9853, %v11268
    %v11270 = vpop.f32.mrf.mxu0
    %v11271 = vadd.f32 %v9853, %v11270
    %11272 = vdwg.mxu0
    %11273 = vmatpush.bf16.msra.mxu0 %v10757
    %11274 = vmatpush.bf16.msra.mxu0 %v10749
    %11275 = vmatpush.bf16.msra.mxu0 %v10741
    %11276 = vmatpush.bf16.msra.mxu0 %v10733
    %11277 = vmatpush.bf16.msra.mxu0 %v10725
    %11278 = vmatpush.bf16.msra.mxu0 %v10717
    %11279 = vmatpush.bf16.msra.mxu0 %v10709
    %11280 = vmatpush.bf16.msra.mxu0 %v10701
    %11281 = vmatmul.bf16.gmra.mxu0 %v9587
    %v11282 = vpop.f32.mrf.mxu0
    %v11283 = vadd.f32 %v11269, %v11282
    %v11284 = vpop.f32.mrf.mxu0
    %v11285 = vadd.f32 %v11271, %v11284
    %11286 = vdwg.mxu0
    %11287 = vmatpush.bf16.msra.mxu0 %v10821
    %11288 = vmatpush.bf16.msra.mxu0 %v10813
    %11289 = vmatpush.bf16.msra.mxu0 %v10805
    %11290 = vmatpush.bf16.msra.mxu0 %v10797
    %11291 = vmatpush.bf16.msra.mxu0 %v10789
    %11292 = vmatpush.bf16.msra.mxu0 %v10781
    %11293 = vmatpush.bf16.msra.mxu0 %v10773
    %11294 = vmatpush.bf16.msra.mxu0 %v10765
    %11295 = vmatmul.bf16.gmra.mxu0 %v9588
    %v11296 = vpop.f32.mrf.mxu0
    %v11297 = vadd.f32 %v11283, %v11296
    %v11298 = vpop.f32.mrf.mxu0
    %v11299 = vadd.f32 %v11285, %v11298
    %11300 = vdwg.mxu0
    %11301 = vmatpush.bf16.msra.mxu0 %v10885
    %11302 = vmatpush.bf16.msra.mxu0 %v10877
    %11303 = vmatpush.bf16.msra.mxu0 %v10869
    %11304 = vmatpush.bf16.msra.mxu0 %v10861
    %11305 = vmatpush.bf16.msra.mxu0 %v10853
    %11306 = vmatpush.bf16.msra.mxu0 %v10845
    %11307 = vmatpush.bf16.msra.mxu0 %v10837
    %11308 = vmatpush.bf16.msra.mxu0 %v10829
    %11309 = vmatmul.bf16.gmra.mxu0 %v9589
    %v11310 = vpop.f32.mrf.mxu0
    %v11311 = vadd.f32 %v11297, %v11310
    %v11312 = vpop.f32.mrf.mxu0
    %v11313 = vadd.f32 %v11299, %v11312
    %11314 = vdwg.mxu0
    %11315 = vmatpush.bf16.msra.mxu0 %v10694
    %11316 = vmatpush.bf16.msra.mxu0 %v10686
    %11317 = vmatpush.bf16.msra.mxu0 %v10678
    %11318 = vmatpush.bf16.msra.mxu0 %v10670
    %11319 = vmatpush.bf16.msra.mxu0 %v10662
    %11320 = vmatpush.bf16.msra.mxu0 %v10654
    %11321 = vmatpush.bf16.msra.mxu0 %v10646
    %11322 = vmatpush.bf16.msra.mxu0 %v10638
    %11323 = vmatmul.bf16.gmra.mxu0 %v9586
    %v11324 = vpop.f32.mrf.mxu0
    %v11325 = vadd.f32 %v9854, %v11324
    %v11326 = vpop.f32.mrf.mxu0
    %v11327 = vadd.f32 %v9854, %v11326
    %11328 = vdwg.mxu0
    %11329 = vmatpush.bf16.msra.mxu0 %v10758
    %11330 = vmatpush.bf16.msra.mxu0 %v10750
    %11331 = vmatpush.bf16.msra.mxu0 %v10742
    %11332 = vmatpush.bf16.msra.mxu0 %v10734
    %11333 = vmatpush.bf16.msra.mxu0 %v10726
    %11334 = vmatpush.bf16.msra.mxu0 %v10718
    %11335 = vmatpush.bf16.msra.mxu0 %v10710
    %11336 = vmatpush.bf16.msra.mxu0 %v10702
    %11337 = vmatmul.bf16.gmra.mxu0 %v9587
    %v11338 = vpop.f32.mrf.mxu0
    %v11339 = vadd.f32 %v11325, %v11338
    %v11340 = vpop.f32.mrf.mxu0
    %v11341 = vadd.f32 %v11327, %v11340
    %11342 = vdwg.mxu0
    %11343 = vmatpush.bf16.msra.mxu0 %v10822
    %11344 = vmatpush.bf16.msra.mxu0 %v10814
    %11345 = vmatpush.bf16.msra.mxu0 %v10806
    %11346 = vmatpush.bf16.msra.mxu0 %v10798
    %11347 = vmatpush.bf16.msra.mxu0 %v10790
    %11348 = vmatpush.bf16.msra.mxu0 %v10782
    %11349 = vmatpush.bf16.msra.mxu0 %v10774
    %11350 = vmatpush.bf16.msra.mxu0 %v10766
    %11351 = vmatmul.bf16.gmra.mxu0 %v9588
    %v11352 = vpop.f32.mrf.mxu0
    %v11353 = vadd.f32 %v11339, %v11352
    %v11354 = vpop.f32.mrf.mxu0
    %v11355 = vadd.f32 %v11341, %v11354
    %11356 = vdwg.mxu0
    %11357 = vmatpush.bf16.msra.mxu0 %v10886
    %11358 = vmatpush.bf16.msra.mxu0 %v10878
    %11359 = vmatpush.bf16.msra.mxu0 %v10870
    %11360 = vmatpush.bf16.msra.mxu0 %v10862
    %11361 = vmatpush.bf16.msra.mxu0 %v10854
    %11362 = vmatpush.bf16.msra.mxu0 %v10846
    %11363 = vmatpush.bf16.msra.mxu0 %v10838
    %11364 = vmatpush.bf16.msra.mxu0 %v10830
    %11365 = vmatmul.bf16.gmra.mxu0 %v9589
    %v11366 = vpop.f32.mrf.mxu0
    %v11367 = vadd.f32 %v11353, %v11366
    %v11368 = vpop.f32.mrf.mxu0
    %v11369 = vadd.f32 %v11355, %v11368
    %11370 = vdwg.mxu0
    %11371 = vmatpush.bf16.msra.mxu0 %v10695
    %11372 = vmatpush.bf16.msra.mxu0 %v10687
    %11373 = vmatpush.bf16.msra.mxu0 %v10679
    %11374 = vmatpush.bf16.msra.mxu0 %v10671
    %11375 = vmatpush.bf16.msra.mxu0 %v10663
    %11376 = vmatpush.bf16.msra.mxu0 %v10655
    %11377 = vmatpush.bf16.msra.mxu0 %v10647
    %11378 = vmatpush.bf16.msra.mxu0 %v10639
    %11379 = vmatmul.bf16.gmra.mxu0 %v9586
    %v11380 = vpop.f32.mrf.mxu0
    %v11381 = vadd.f32 %v9855, %v11380
    %v11382 = vpop.f32.mrf.mxu0
    %v11383 = vadd.f32 %v9855, %v11382
    %11384 = vdwg.mxu0
    %11385 = vmatpush.bf16.msra.mxu0 %v10759
    %11386 = vmatpush.bf16.msra.mxu0 %v10751
    %11387 = vmatpush.bf16.msra.mxu0 %v10743
    %11388 = vmatpush.bf16.msra.mxu0 %v10735
    %11389 = vmatpush.bf16.msra.mxu0 %v10727
    %11390 = vmatpush.bf16.msra.mxu0 %v10719
    %11391 = vmatpush.bf16.msra.mxu0 %v10711
    %11392 = vmatpush.bf16.msra.mxu0 %v10703
    %11393 = vmatmul.bf16.gmra.mxu0 %v9587
    %v11394 = vpop.f32.mrf.mxu0
    %v11395 = vadd.f32 %v11381, %v11394
    %v11396 = vpop.f32.mrf.mxu0
    %v11397 = vadd.f32 %v11383, %v11396
    %11398 = vdwg.mxu0
    %11399 = vmatpush.bf16.msra.mxu0 %v10823
    %11400 = vmatpush.bf16.msra.mxu0 %v10815
    %11401 = vmatpush.bf16.msra.mxu0 %v10807
    %11402 = vmatpush.bf16.msra.mxu0 %v10799
    %11403 = vmatpush.bf16.msra.mxu0 %v10791
    %11404 = vmatpush.bf16.msra.mxu0 %v10783
    %11405 = vmatpush.bf16.msra.mxu0 %v10775
    %11406 = vmatpush.bf16.msra.mxu0 %v10767
    %11407 = vmatmul.bf16.gmra.mxu0 %v9588
    %v11408 = vpop.f32.mrf.mxu0
    %v11409 = vadd.f32 %v11395, %v11408
    %v11410 = vpop.f32.mrf.mxu0
    %v11411 = vadd.f32 %v11397, %v11410
    %11412 = vdwg.mxu0
    %11413 = vmatpush.bf16.msra.mxu0 %v10887
    %11414 = vmatpush.bf16.msra.mxu0 %v10879
    %11415 = vmatpush.bf16.msra.mxu0 %v10871
    %11416 = vmatpush.bf16.msra.mxu0 %v10863
    %11417 = vmatpush.bf16.msra.mxu0 %v10855
    %11418 = vmatpush.bf16.msra.mxu0 %v10847
    %11419 = vmatpush.bf16.msra.mxu0 %v10839
    %11420 = vmatpush.bf16.msra.mxu0 %v10831
    %11421 = vmatmul.bf16.gmra.mxu0 %v9589
    %v11422 = vpop.f32.mrf.mxu0
    %v11423 = vadd.f32 %v11409, %v11422
    %v11424 = vpop.f32.mrf.mxu0
    %v11425 = vadd.f32 %v11411, %v11424
    %11426 = vdwg.mxu0
    %11427 = vmatpush.bf16.msra.mxu0 %v10696
    %11428 = vmatpush.bf16.msra.mxu0 %v10688
    %11429 = vmatpush.bf16.msra.mxu0 %v10680
    %11430 = vmatpush.bf16.msra.mxu0 %v10672
    %11431 = vmatpush.bf16.msra.mxu0 %v10664
    %11432 = vmatpush.bf16.msra.mxu0 %v10656
    %11433 = vmatpush.bf16.msra.mxu0 %v10648
    %11434 = vmatpush.bf16.msra.mxu0 %v10640
    %11435 = vmatmul.bf16.gmra.mxu0 %v9586
    %v11436 = vpop.f32.mrf.mxu0
    %v11437 = vadd.f32 %v9856, %v11436
    %v11438 = vpop.f32.mrf.mxu0
    %v11439 = vadd.f32 %v9856, %v11438
    %11440 = vdwg.mxu0
    %11441 = vmatpush.bf16.msra.mxu0 %v10760
    %11442 = vmatpush.bf16.msra.mxu0 %v10752
    %11443 = vmatpush.bf16.msra.mxu0 %v10744
    %11444 = vmatpush.bf16.msra.mxu0 %v10736
    %11445 = vmatpush.bf16.msra.mxu0 %v10728
    %11446 = vmatpush.bf16.msra.mxu0 %v10720
    %11447 = vmatpush.bf16.msra.mxu0 %v10712
    %11448 = vmatpush.bf16.msra.mxu0 %v10704
    %11449 = vmatmul.bf16.gmra.mxu0 %v9587
    %v11450 = vpop.f32.mrf.mxu0
    %v11451 = vadd.f32 %v11437, %v11450
    %v11452 = vpop.f32.mrf.mxu0
    %v11453 = vadd.f32 %v11439, %v11452
    %11454 = vdwg.mxu0
    %11455 = vmatpush.bf16.msra.mxu0 %v10824
    %11456 = vmatpush.bf16.msra.mxu0 %v10816
    %11457 = vmatpush.bf16.msra.mxu0 %v10808
    %11458 = vmatpush.bf16.msra.mxu0 %v10800
    %11459 = vmatpush.bf16.msra.mxu0 %v10792
    %11460 = vmatpush.bf16.msra.mxu0 %v10784
    %11461 = vmatpush.bf16.msra.mxu0 %v10776
    %11462 = vmatpush.bf16.msra.mxu0 %v10768
    %11463 = vmatmul.bf16.gmra.mxu0 %v9588
    %v11464 = vpop.f32.mrf.mxu0
    %v11465 = vadd.f32 %v11451, %v11464
    %v11466 = vpop.f32.mrf.mxu0
    %v11467 = vadd.f32 %v11453, %v11466
    %11468 = vdwg.mxu0
    %11469 = vmatpush.bf16.msra.mxu0 %v10888
    %11470 = vmatpush.bf16.msra.mxu0 %v10880
    %11471 = vmatpush.bf16.msra.mxu0 %v10872
    %11472 = vmatpush.bf16.msra.mxu0 %v10864
    %11473 = vmatpush.bf16.msra.mxu0 %v10856
    %11474 = vmatpush.bf16.msra.mxu0 %v10848
    %11475 = vmatpush.bf16.msra.mxu0 %v10840
    %11476 = vmatpush.bf16.msra.mxu0 %v10832
    %11477 = vmatmul.bf16.gmra.mxu0 %v9589
    %v11478 = vpop.f32.mrf.mxu0
    %v11479 = vadd.f32 %v11465, %v11478
    %v11480 = vpop.f32.mrf.mxu0
    %v11481 = vadd.f32 %v11467, %v11480
    %11482 = vdwg.mxu0
    %11483 = vmatpush.bf16.msra.mxu0 %v10697
    %11484 = vmatpush.bf16.msra.mxu0 %v10689
    %11485 = vmatpush.bf16.msra.mxu0 %v10681
    %11486 = vmatpush.bf16.msra.mxu0 %v10673
    %11487 = vmatpush.bf16.msra.mxu0 %v10665
    %11488 = vmatpush.bf16.msra.mxu0 %v10657
    %11489 = vmatpush.bf16.msra.mxu0 %v10649
    %11490 = vmatpush.bf16.msra.mxu0 %v10641
    %11491 = vmatmul.bf16.gmra.mxu0 %v9586
    %v11492 = vpop.f32.mrf.mxu0
    %v11493 = vadd.f32 %v9857, %v11492
    %v11494 = vpop.f32.mrf.mxu0
    %v11495 = vadd.f32 %v9857, %v11494
    %11496 = vdwg.mxu0
    %11497 = vmatpush.bf16.msra.mxu0 %v10761
    %11498 = vmatpush.bf16.msra.mxu0 %v10753
    %11499 = vmatpush.bf16.msra.mxu0 %v10745
    %11500 = vmatpush.bf16.msra.mxu0 %v10737
    %11501 = vmatpush.bf16.msra.mxu0 %v10729
    %11502 = vmatpush.bf16.msra.mxu0 %v10721
    %11503 = vmatpush.bf16.msra.mxu0 %v10713
    %11504 = vmatpush.bf16.msra.mxu0 %v10705
    %11505 = vmatmul.bf16.gmra.mxu0 %v9587
    %v11506 = vpop.f32.mrf.mxu0
    %v11507 = vadd.f32 %v11493, %v11506
    %v11508 = vpop.f32.mrf.mxu0
    %v11509 = vadd.f32 %v11495, %v11508
    %11510 = vdwg.mxu0
    %11511 = vmatpush.bf16.msra.mxu0 %v10825
    %11512 = vmatpush.bf16.msra.mxu0 %v10817
    %11513 = vmatpush.bf16.msra.mxu0 %v10809
    %11514 = vmatpush.bf16.msra.mxu0 %v10801
    %11515 = vmatpush.bf16.msra.mxu0 %v10793
    %11516 = vmatpush.bf16.msra.mxu0 %v10785
    %11517 = vmatpush.bf16.msra.mxu0 %v10777
    %11518 = vmatpush.bf16.msra.mxu0 %v10769
    %11519 = vmatmul.bf16.gmra.mxu0 %v9588
    %v11520 = vpop.f32.mrf.mxu0
    %v11521 = vadd.f32 %v11507, %v11520
    %v11522 = vpop.f32.mrf.mxu0
    %v11523 = vadd.f32 %v11509, %v11522
    %11524 = vdwg.mxu0
    %11525 = vmatpush.bf16.msra.mxu0 %v10889
    %11526 = vmatpush.bf16.msra.mxu0 %v10881
    %11527 = vmatpush.bf16.msra.mxu0 %v10873
    %11528 = vmatpush.bf16.msra.mxu0 %v10865
    %11529 = vmatpush.bf16.msra.mxu0 %v10857
    %11530 = vmatpush.bf16.msra.mxu0 %v10849
    %11531 = vmatpush.bf16.msra.mxu0 %v10841
    %11532 = vmatpush.bf16.msra.mxu0 %v10833
    %11533 = vmatmul.bf16.gmra.mxu0 %v9589
    %v11534 = vpop.f32.mrf.mxu0
    %v11535 = vadd.f32 %v11521, %v11534
    %v11536 = vpop.f32.mrf.mxu0
    %v11537 = vadd.f32 %v11523, %v11536
    %11538 = vdwg.mxu0
    %11539 = vmatpush.bf16.msra.mxu0 %v10698
    %11540 = vmatpush.bf16.msra.mxu0 %v10690
    %11541 = vmatpush.bf16.msra.mxu0 %v10682
    %11542 = vmatpush.bf16.msra.mxu0 %v10674
    %11543 = vmatpush.bf16.msra.mxu0 %v10666
    %11544 = vmatpush.bf16.msra.mxu0 %v10658
    %11545 = vmatpush.bf16.msra.mxu0 %v10650
    %11546 = vmatpush.bf16.msra.mxu0 %v10642
    %11547 = vmatmul.bf16.gmra.mxu0 %v9586
    %v11548 = vpop.f32.mrf.mxu0
    %v11549 = vadd.f32 %v9858, %v11548
    %v11550 = vpop.f32.mrf.mxu0
    %v11551 = vadd.f32 %v9858, %v11550
    %11552 = vdwg.mxu0
    %11553 = vmatpush.bf16.msra.mxu0 %v10762
    %11554 = vmatpush.bf16.msra.mxu0 %v10754
    %11555 = vmatpush.bf16.msra.mxu0 %v10746
    %11556 = vmatpush.bf16.msra.mxu0 %v10738
    %11557 = vmatpush.bf16.msra.mxu0 %v10730
    %11558 = vmatpush.bf16.msra.mxu0 %v10722
    %11559 = vmatpush.bf16.msra.mxu0 %v10714
    %11560 = vmatpush.bf16.msra.mxu0 %v10706
    %11561 = vmatmul.bf16.gmra.mxu0 %v9587
    %v11562 = vpop.f32.mrf.mxu0
    %v11563 = vadd.f32 %v11549, %v11562
    %v11564 = vpop.f32.mrf.mxu0
    %v11565 = vadd.f32 %v11551, %v11564
    %11566 = vdwg.mxu0
    %11567 = vmatpush.bf16.msra.mxu0 %v10826
    %11568 = vmatpush.bf16.msra.mxu0 %v10818
    %11569 = vmatpush.bf16.msra.mxu0 %v10810
    %11570 = vmatpush.bf16.msra.mxu0 %v10802
    %11571 = vmatpush.bf16.msra.mxu0 %v10794
    %11572 = vmatpush.bf16.msra.mxu0 %v10786
    %11573 = vmatpush.bf16.msra.mxu0 %v10778
    %11574 = vmatpush.bf16.msra.mxu0 %v10770
    %11575 = vmatmul.bf16.gmra.mxu0 %v9588
    %v11576 = vpop.f32.mrf.mxu0
    %v11577 = vadd.f32 %v11563, %v11576
    %v11578 = vpop.f32.mrf.mxu0
    %v11579 = vadd.f32 %v11565, %v11578
    %11580 = vdwg.mxu0
    %11581 = vmatpush.bf16.msra.mxu0 %v10890
    %11582 = vmatpush.bf16.msra.mxu0 %v10882
    %11583 = vmatpush.bf16.msra.mxu0 %v10874
    %11584 = vmatpush.bf16.msra.mxu0 %v10866
    %11585 = vmatpush.bf16.msra.mxu0 %v10858
    %11586 = vmatpush.bf16.msra.mxu0 %v10850
    %11587 = vmatpush.bf16.msra.mxu0 %v10842
    %11588 = vmatpush.bf16.msra.mxu0 %v10834
    %11589 = vmatmul.bf16.gmra.mxu0 %v9589
    %v11590 = vpop.f32.mrf.mxu0
    %v11591 = vadd.f32 %v11577, %v11590
    %v11592 = vpop.f32.mrf.mxu0
    %v11593 = vadd.f32 %v11579, %v11592
    %11594 = vdwg.mxu0
    %v11595 = vxor.u32 %v11199, 2147483648
    %v11596 = vxor.u32 %v11255, 2147483648
    %v11597 = vxor.u32 %v11311, 2147483648
    %v11598 = vxor.u32 %v11367, 2147483648
    %v11599 = vxor.u32 %v11423, 2147483648
    %v11600 = vxor.u32 %v11479, 2147483648
    %v11601 = vxor.u32 %v11535, 2147483648
    %v11602 = vxor.u32 %v11591, 2147483648
    %v11603 = vxor.u32 %v11201, 2147483648
    %v11604 = vxor.u32 %v11257, 2147483648
    %v11605 = vxor.u32 %v11313, 2147483648
    %v11606 = vxor.u32 %v11369, 2147483648
    %v11607 = vxor.u32 %v11425, 2147483648
    %v11608 = vxor.u32 %v11481, 2147483648
    %v11609 = vxor.u32 %v11537, 2147483648
    %v11610 = vxor.u32 %v11593, 2147483648
    %v11611 = vmul.f32 %v11595, 1.442695
    %v11612 = vpow.pop %v11611
    %v11613 = vmul.f32 %v11596, 1.442695
    %v11614 = vpow.pop %v11613
    %v11615 = vmul.f32 %v11597, 1.442695
    %v11616 = vpow.pop %v11615
    %v11617 = vmul.f32 %v11598, 1.442695
    %v11618 = vpow.pop %v11617
    %v11619 = vmul.f32 %v11599, 1.442695
    %v11620 = vpow.pop %v11619
    %v11621 = vmul.f32 %v11600, 1.442695
    %v11622 = vpow.pop %v11621
    %v11623 = vmul.f32 %v11601, 1.442695
    %v11624 = vpow.pop %v11623
    %v11625 = vmul.f32 %v11602, 1.442695
    %v11626 = vpow.pop %v11625
    %v11627 = vmul.f32 %v11603, 1.442695
    %v11628 = vpow.pop %v11627
    %v11629 = vmul.f32 %v11604, 1.442695
    %v11630 = vpow.pop %v11629
    %v11631 = vmul.f32 %v11605, 1.442695
    %v11632 = vpow.pop %v11631
    %v11633 = vmul.f32 %v11606, 1.442695
    %v11634 = vpow.pop %v11633
    %v11635 = vmul.f32 %v11607, 1.442695
    %v11636 = vpow.pop %v11635
    %v11637 = vmul.f32 %v11608, 1.442695
    %v11638 = vpow.pop %v11637
    %v11639 = vmul.f32 %v11609, 1.442695
    %v11640 = vpow.pop %v11639
    %v11641 = vmul.f32 %v11610, 1.442695
    %v11642 = vpow.pop %v11641
    %v11643 = vadd.f32 %v11612, 1.0
    %v11644 = vadd.f32 %v11614, 1.0
    %v11645 = vadd.f32 %v11616, 1.0
    %v11646 = vadd.f32 %v11618, 1.0
    %v11647 = vadd.f32 %v11620, 1.0
    %v11648 = vadd.f32 %v11622, 1.0
    %v11649 = vadd.f32 %v11624, 1.0
    %v11650 = vadd.f32 %v11626, 1.0
    %v11651 = vadd.f32 %v11628, 1.0
    %v11652 = vadd.f32 %v11630, 1.0
    %v11653 = vadd.f32 %v11632, 1.0
    %v11654 = vadd.f32 %v11634, 1.0
    %v11655 = vadd.f32 %v11636, 1.0
    %v11656 = vadd.f32 %v11638, 1.0
    %v11657 = vadd.f32 %v11640, 1.0
    %v11658 = vadd.f32 %v11642, 1.0
    %v11659 = vrcp.pop %v11643
    %v11660 = vmul.f32 %v11643, %v11659
    %v11661 = vsub.f32 1.0, %v11660
    %v11662 = vmul.f32 %v11659, %v11661
    %v11663 = vadd.f32 %v11659, %v11662
    %vm11664 = vweird.f32 %v11643
    %vm11665 = vweird.f32 %v11659
    %vm11666 = vmor %vm11664, %vm11665
    %v11667 = vsel %vm11666, %v11659, %v11663
    %v11668 = vand.u32 2147483647, %v11643
    %vm11669 = vcmp.eq.f32.partialorder %v11668, 8.507059e+37
    %v11670 = vand.u32 %v11643, 2147483648
    %v11671 = vor.u32 1.1754944e-38, %v11670
    %v11672 = vsel %vm11669, %v11671, %v11667
    %v11673 = vmul.f32 1.0, %v11672
    %v11674 = vrcp.pop %v11644
    %v11675 = vmul.f32 %v11644, %v11674
    %v11676 = vsub.f32 1.0, %v11675
    %v11677 = vmul.f32 %v11674, %v11676
    %v11678 = vadd.f32 %v11674, %v11677
    %vm11679 = vweird.f32 %v11644
    %vm11680 = vweird.f32 %v11674
    %vm11681 = vmor %vm11679, %vm11680
    %v11682 = vsel %vm11681, %v11674, %v11678
    %v11683 = vand.u32 2147483647, %v11644
    %vm11684 = vcmp.eq.f32.partialorder %v11683, 8.507059e+37
    %v11685 = vand.u32 %v11644, 2147483648
    %v11686 = vor.u32 1.1754944e-38, %v11685
    %v11687 = vsel %vm11684, %v11686, %v11682
    %v11688 = vmul.f32 1.0, %v11687
    %v11689 = vrcp.pop %v11645
    %v11690 = vmul.f32 %v11645, %v11689
    %v11691 = vsub.f32 1.0, %v11690
    %v11692 = vmul.f32 %v11689, %v11691
    %v11693 = vadd.f32 %v11689, %v11692
    %vm11694 = vweird.f32 %v11645
    %vm11695 = vweird.f32 %v11689
    %vm11696 = vmor %vm11694, %vm11695
    %v11697 = vsel %vm11696, %v11689, %v11693
    %v11698 = vand.u32 2147483647, %v11645
    %vm11699 = vcmp.eq.f32.partialorder %v11698, 8.507059e+37
    %v11700 = vand.u32 %v11645, 2147483648
    %v11701 = vor.u32 1.1754944e-38, %v11700
    %v11702 = vsel %vm11699, %v11701, %v11697
    %v11703 = vmul.f32 1.0, %v11702
    %v11704 = vrcp.pop %v11646
    %v11705 = vmul.f32 %v11646, %v11704
    %v11706 = vsub.f32 1.0, %v11705
    %v11707 = vmul.f32 %v11704, %v11706
    %v11708 = vadd.f32 %v11704, %v11707
    %vm11709 = vweird.f32 %v11646
    %vm11710 = vweird.f32 %v11704
    %vm11711 = vmor %vm11709, %vm11710
    %v11712 = vsel %vm11711, %v11704, %v11708
    %v11713 = vand.u32 2147483647, %v11646
    %vm11714 = vcmp.eq.f32.partialorder %v11713, 8.507059e+37
    %v11715 = vand.u32 %v11646, 2147483648
    %v11716 = vor.u32 1.1754944e-38, %v11715
    %v11717 = vsel %vm11714, %v11716, %v11712
    %v11718 = vmul.f32 1.0, %v11717
    %v11719 = vrcp.pop %v11647
    %v11720 = vmul.f32 %v11647, %v11719
    %v11721 = vsub.f32 1.0, %v11720
    %v11722 = vmul.f32 %v11719, %v11721
    %v11723 = vadd.f32 %v11719, %v11722
    %vm11724 = vweird.f32 %v11647
    %vm11725 = vweird.f32 %v11719
    %vm11726 = vmor %vm11724, %vm11725
    %v11727 = vsel %vm11726, %v11719, %v11723
    %v11728 = vand.u32 2147483647, %v11647
    %vm11729 = vcmp.eq.f32.partialorder %v11728, 8.507059e+37
    %v11730 = vand.u32 %v11647, 2147483648
    %v11731 = vor.u32 1.1754944e-38, %v11730
    %v11732 = vsel %vm11729, %v11731, %v11727
    %v11733 = vmul.f32 1.0, %v11732
    %v11734 = vrcp.pop %v11648
    %v11735 = vmul.f32 %v11648, %v11734
    %v11736 = vsub.f32 1.0, %v11735
    %v11737 = vmul.f32 %v11734, %v11736
    %v11738 = vadd.f32 %v11734, %v11737
    %vm11739 = vweird.f32 %v11648
    %vm11740 = vweird.f32 %v11734
    %vm11741 = vmor %vm11739, %vm11740
    %v11742 = vsel %vm11741, %v11734, %v11738
    %v11743 = vand.u32 2147483647, %v11648
    %vm11744 = vcmp.eq.f32.partialorder %v11743, 8.507059e+37
    %v11745 = vand.u32 %v11648, 2147483648
    %v11746 = vor.u32 1.1754944e-38, %v11745
    %v11747 = vsel %vm11744, %v11746, %v11742
    %v11748 = vmul.f32 1.0, %v11747
    %v11749 = vrcp.pop %v11649
    %v11750 = vmul.f32 %v11649, %v11749
    %v11751 = vsub.f32 1.0, %v11750
    %v11752 = vmul.f32 %v11749, %v11751
    %v11753 = vadd.f32 %v11749, %v11752
    %vm11754 = vweird.f32 %v11649
    %vm11755 = vweird.f32 %v11749
    %vm11756 = vmor %vm11754, %vm11755
    %v11757 = vsel %vm11756, %v11749, %v11753
    %v11758 = vand.u32 2147483647, %v11649
    %vm11759 = vcmp.eq.f32.partialorder %v11758, 8.507059e+37
    %v11760 = vand.u32 %v11649, 2147483648
    %v11761 = vor.u32 1.1754944e-38, %v11760
    %v11762 = vsel %vm11759, %v11761, %v11757
    %v11763 = vmul.f32 1.0, %v11762
    %v11764 = vrcp.pop %v11650
    %v11765 = vmul.f32 %v11650, %v11764
    %v11766 = vsub.f32 1.0, %v11765
    %v11767 = vmul.f32 %v11764, %v11766
    %v11768 = vadd.f32 %v11764, %v11767
    %vm11769 = vweird.f32 %v11650
    %vm11770 = vweird.f32 %v11764
    %vm11771 = vmor %vm11769, %vm11770
    %v11772 = vsel %vm11771, %v11764, %v11768
    %v11773 = vand.u32 2147483647, %v11650
    %vm11774 = vcmp.eq.f32.partialorder %v11773, 8.507059e+37
    %v11775 = vand.u32 %v11650, 2147483648
    %v11776 = vor.u32 1.1754944e-38, %v11775
    %v11777 = vsel %vm11774, %v11776, %v11772
    %v11778 = vmul.f32 1.0, %v11777
    %v11779 = vrcp.pop %v11651
    %v11780 = vmul.f32 %v11651, %v11779
    %v11781 = vsub.f32 1.0, %v11780
    %v11782 = vmul.f32 %v11779, %v11781
    %v11783 = vadd.f32 %v11779, %v11782
    %vm11784 = vweird.f32 %v11651
    %vm11785 = vweird.f32 %v11779
    %vm11786 = vmor %vm11784, %vm11785
    %v11787 = vsel %vm11786, %v11779, %v11783
    %v11788 = vand.u32 2147483647, %v11651
    %vm11789 = vcmp.eq.f32.partialorder %v11788, 8.507059e+37
    %v11790 = vand.u32 %v11651, 2147483648
    %v11791 = vor.u32 1.1754944e-38, %v11790
    %v11792 = vsel %vm11789, %v11791, %v11787
    %v11793 = vmul.f32 1.0, %v11792
    %v11794 = vrcp.pop %v11652
    %v11795 = vmul.f32 %v11652, %v11794
    %v11796 = vsub.f32 1.0, %v11795
    %v11797 = vmul.f32 %v11794, %v11796
    %v11798 = vadd.f32 %v11794, %v11797
    %vm11799 = vweird.f32 %v11652
    %vm11800 = vweird.f32 %v11794
    %vm11801 = vmor %vm11799, %vm11800
    %v11802 = vsel %vm11801, %v11794, %v11798
    %v11803 = vand.u32 2147483647, %v11652
    %vm11804 = vcmp.eq.f32.partialorder %v11803, 8.507059e+37
    %v11805 = vand.u32 %v11652, 2147483648
    %v11806 = vor.u32 1.1754944e-38, %v11805
    %v11807 = vsel %vm11804, %v11806, %v11802
    %v11808 = vmul.f32 1.0, %v11807
    %v11809 = vrcp.pop %v11653
    %v11810 = vmul.f32 %v11653, %v11809
    %v11811 = vsub.f32 1.0, %v11810
    %v11812 = vmul.f32 %v11809, %v11811
    %v11813 = vadd.f32 %v11809, %v11812
    %vm11814 = vweird.f32 %v11653
    %vm11815 = vweird.f32 %v11809
    %vm11816 = vmor %vm11814, %vm11815
    %v11817 = vsel %vm11816, %v11809, %v11813
    %v11818 = vand.u32 2147483647, %v11653
    %vm11819 = vcmp.eq.f32.partialorder %v11818, 8.507059e+37
    %v11820 = vand.u32 %v11653, 2147483648
    %v11821 = vor.u32 1.1754944e-38, %v11820
    %v11822 = vsel %vm11819, %v11821, %v11817
    %v11823 = vmul.f32 1.0, %v11822
    %v11824 = vrcp.pop %v11654
    %v11825 = vmul.f32 %v11654, %v11824
    %v11826 = vsub.f32 1.0, %v11825
    %v11827 = vmul.f32 %v11824, %v11826
    %v11828 = vadd.f32 %v11824, %v11827
    %vm11829 = vweird.f32 %v11654
    %vm11830 = vweird.f32 %v11824
    %vm11831 = vmor %vm11829, %vm11830
    %v11832 = vsel %vm11831, %v11824, %v11828
    %v11833 = vand.u32 2147483647, %v11654
    %vm11834 = vcmp.eq.f32.partialorder %v11833, 8.507059e+37
    %v11835 = vand.u32 %v11654, 2147483648
    %v11836 = vor.u32 1.1754944e-38, %v11835
    %v11837 = vsel %vm11834, %v11836, %v11832
    %v11838 = vmul.f32 1.0, %v11837
    %v11839 = vrcp.pop %v11655
    %v11840 = vmul.f32 %v11655, %v11839
    %v11841 = vsub.f32 1.0, %v11840
    %v11842 = vmul.f32 %v11839, %v11841
    %v11843 = vadd.f32 %v11839, %v11842
    %vm11844 = vweird.f32 %v11655
    %vm11845 = vweird.f32 %v11839
    %vm11846 = vmor %vm11844, %vm11845
    %v11847 = vsel %vm11846, %v11839, %v11843
    %v11848 = vand.u32 2147483647, %v11655
    %vm11849 = vcmp.eq.f32.partialorder %v11848, 8.507059e+37
    %v11850 = vand.u32 %v11655, 2147483648
    %v11851 = vor.u32 1.1754944e-38, %v11850
    %v11852 = vsel %vm11849, %v11851, %v11847
    %v11853 = vmul.f32 1.0, %v11852
    %v11854 = vrcp.pop %v11656
    %v11855 = vmul.f32 %v11656, %v11854
    %v11856 = vsub.f32 1.0, %v11855
    %v11857 = vmul.f32 %v11854, %v11856
    %v11858 = vadd.f32 %v11854, %v11857
    %vm11859 = vweird.f32 %v11656
    %vm11860 = vweird.f32 %v11854
    %vm11861 = vmor %vm11859, %vm11860
    %v11862 = vsel %vm11861, %v11854, %v11858
    %v11863 = vand.u32 2147483647, %v11656
    %vm11864 = vcmp.eq.f32.partialorder %v11863, 8.507059e+37
    %v11865 = vand.u32 %v11656, 2147483648
    %v11866 = vor.u32 1.1754944e-38, %v11865
    %v11867 = vsel %vm11864, %v11866, %v11862
    %v11868 = vmul.f32 1.0, %v11867
    %v11869 = vrcp.pop %v11657
    %v11870 = vmul.f32 %v11657, %v11869
    %v11871 = vsub.f32 1.0, %v11870
    %v11872 = vmul.f32 %v11869, %v11871
    %v11873 = vadd.f32 %v11869, %v11872
    %vm11874 = vweird.f32 %v11657
    %vm11875 = vweird.f32 %v11869
    %vm11876 = vmor %vm11874, %vm11875
    %v11877 = vsel %vm11876, %v11869, %v11873
    %v11878 = vand.u32 2147483647, %v11657
    %vm11879 = vcmp.eq.f32.partialorder %v11878, 8.507059e+37
    %v11880 = vand.u32 %v11657, 2147483648
    %v11881 = vor.u32 1.1754944e-38, %v11880
    %v11882 = vsel %vm11879, %v11881, %v11877
    %v11883 = vmul.f32 1.0, %v11882
    %v11884 = vrcp.pop %v11658
    %v11885 = vmul.f32 %v11658, %v11884
    %v11886 = vsub.f32 1.0, %v11885
    %v11887 = vmul.f32 %v11884, %v11886
    %v11888 = vadd.f32 %v11884, %v11887
    %vm11889 = vweird.f32 %v11658
    %vm11890 = vweird.f32 %v11884
    %vm11891 = vmor %vm11889, %vm11890
    %v11892 = vsel %vm11891, %v11884, %v11888
    %v11893 = vand.u32 2147483647, %v11658
    %vm11894 = vcmp.eq.f32.partialorder %v11893, 8.507059e+37
    %v11895 = vand.u32 %v11658, 2147483648
    %v11896 = vor.u32 1.1754944e-38, %v11895
    %v11897 = vsel %vm11894, %v11896, %v11892
    %v11898 = vmul.f32 1.0, %v11897
    %11899 = vst [vmem:[%s6] sm:$0xff] %v11673
    %11900 = vst [vmem:[%s6 + $0x8] sm:$0xff] %v11688
    %11901 = vst [vmem:[%s6 + $0x10] sm:$0xff] %v11703
    %11902 = vst [vmem:[%s6 + $0x18] sm:$0xff] %v11718
    %11903 = vst [vmem:[%s6 + $0x20] sm:$0xff] %v11733
    %11904 = vst [vmem:[%s6 + $0x28] sm:$0xff] %v11748
    %11905 = vst [vmem:[%s6 + $0x30] sm:$0xff] %v11763
    %11906 = vst [vmem:[%s6 + $0x38] sm:$0xff] %v11778
    %11907 = vst [vmem:[%s6 + $0x88] sm:$0xff] %v11793
    %11908 = vst [vmem:[%s6 + $0x90] sm:$0xff] %v11808
    %11909 = vst [vmem:[%s6 + $0x98] sm:$0xff] %v11823
    %11910 = vst [vmem:[%s6 + $0xa0] sm:$0xff] %v11838
    %11911 = vst [vmem:[%s6 + $0xa8] sm:$0xff] %v11853
    %11912 = vst [vmem:[%s6 + $0xb0] sm:$0xff] %v11868
    %11913 = vst [vmem:[%s6 + $0xb8] sm:$0xff] %v11883
    %11914 = vst [vmem:[%s6 + $0xc0] sm:$0xff] %v11898
    %11915 = vst [vmem:[%s6 + $0x40] sm:$0xff] %v6103
    %11916 = vst [vmem:[%s6 + $0x48] sm:$0xff] %v6104
    %11917 = vst [vmem:[%s6 + $0x50] sm:$0xff] %v6105
    %11918 = vst [vmem:[%s6 + $0xc8] sm:$0xff] %v6106
    %11919 = vst [vmem:[%s6 + $0xd0] sm:$0xff] %v6107
    %11920 = vst [vmem:[%s6 + $0xd8] sm:$0xff] %v6108
    %11921 = vst [vmem:[%s6 + $0x58] sm:$0xff] %v6124
    %11922 = vst [vmem:[%s6 + $0x60] sm:$0xff] %v6125
    %11923 = vst [vmem:[%s6 + $0x68] sm:$0xff] %v6126
    %11924 = vst [vmem:[%s6 + $0xe0] sm:$0xff] %v6127
    %11925 = vst [vmem:[%s6 + $0xe8] sm:$0xff] %v6128
    %11926 = vst [vmem:[%s6 + $0xf0] sm:$0xff] %v6129
    %11927 = vst [vmem:[%s6 + $0x70] sm:$0xff] %v6160
    %11928 = vst [vmem:[%s6 + $0x78] sm:$0xff] %v6161
    %11929 = vst [vmem:[%s6 + $0x80] sm:$0xff] %v6162
    %11930 = vst [vmem:[%s6 + $0xf8] sm:$0xff] %v6163
    %11931 = vst [vmem:[%s6 + $0x100] sm:$0xff] %v6164
    %11932 = vst [vmem:[%s6 + $0x108] sm:$0xff] %v6165
    // Predicated region
    $region30: #{vae_forward.1} parent=1 // pred_check
      _
    $region31: #{vae_forward.1} parent=1 // pred_check_branch
      %11934 = sbr.rel (0) target = $region33
    $region32: #{vae_forward.1} parent=1 // pred_region
      _
    $region33: #{vae_forward.1} parent=1 // pred_fallthru
      _
    // Predicated region
    $region34: #{vae_forward.1} parent=1 // pred_check
      _
    $region35: #{vae_forward.1} parent=1 // pred_check_branch
      %11936 = sbr.rel (0) target = $region37
    $region36: #{vae_forward.1} parent=1 // pred_region
      _
    $region37: #{vae_forward.1} parent=1 // pred_fallthru
      _
    %11937 = vsyncpa [#allocation7], 1
  %11938 = vsyncmov [#allocation5]
  %s11939 = vpop.sfrf %11938
  %p11940 = scmp.eq.s32.totalorder %s11939, 0
  %p11941 = pneg %p11940
  %11943 = shalt.err (%p11941)
  %s11944 = scalar_lea.sflag [#allocation5], 1
  %11945 = vsyncmov %s11944
  %s11946 = vpop.sfrf %11945
  %p11947 = scmp.eq.s32.totalorder %s11946, 0
  %p11948 = pneg %p11947
  %11950 = shalt.err (%p11948)
  %s11951 = scalar_lea.sflag [#allocation5], 2
  %11952 = vsyncmov %s11951
  %s11953 = vpop.sfrf %11952
  %p11954 = scmp.eq.s32.totalorder %s11953, 0
  %p11955 = pneg %p11954
  %11957 = shalt.err (%p11955)

</llo_original>
